<compile_context>
chip_gen: v6e
topology: v6e:2x2x1
jax: 0.10.0
libtpu: 0.0.40
codegen_flags: <defaults>
</compile_context>

<pallas_src>
import functools
import math

import jax
import jax.numpy as jnp
from jax import lax
from jax.experimental import pallas as pl
from jax.experimental.pallas import tpu as pltpu

NEG_SLOPE = 0.01          # nn.LeakyReLU default
BN_EPS = 1e-5             # nn.BatchNorm1d default
LANE = 128
MM_DTYPE = jnp.bfloat16   # MXU input dtype (f32 accumulation everywhere)
MASK_NEG = -1e30          # additive bias for padded K columns

# VMEM budget for pinning ke1/ve1 fully resident in stage 2 (counts the
# pipeline's 2 revolving buffers); conservative enough for v7x's 64 MiB VMEM.
KV_RESIDENT_BUDGET = 16 * 1024 * 1024
# 48 MiB scoped VMEM: above the 16/32 MiB defaults, still safe on every gen
# (v5e/v6e 128 MiB physical, v7x 64 MiB).  v6e/v5e can go higher if K/V
# residency at very large Nk is desired.
VMEM_LIMIT_BYTES = 48 * 1024 * 1024


def _leaky(x):
    return jnp.where(x >= 0, x, NEG_SLOPE * x)


def _ceil_to(x, m):
    return ((x + m - 1) // m) * m


def _pad2(x, rows, cols):
    return jnp.pad(x, ((0, rows - x.shape[0]), (0, cols - x.shape[1])))


def _rep_lanes(x, reps):
    """Replicate a lane-replicated (rows, 128) stat tile to (rows, 128*reps)."""
    return x if reps == 1 else jnp.tile(x, (1, reps))


def _bn_rows(h, g, bt, n_valid):
    """BatchNorm1d (training-mode, biased variance) over the first n_valid rows;
    pad rows are excluded from the statistics and zeroed in the output."""
    n_rows = h.shape[0]
    if n_rows == n_valid:
        mu = jnp.mean(h, axis=0, keepdims=True)
        var = jnp.mean(jnp.square(h - mu), axis=0, keepdims=True)
        return (h - mu) * lax.rsqrt(var + BN_EPS) * g + bt
    valid = lax.broadcasted_iota(jnp.int32, h.shape, 0) < n_valid
    inv_n = 1.0 / n_valid
    mu = jnp.sum(jnp.where(valid, h, 0.0), axis=0, keepdims=True) * inv_n
    d = h - mu
    var = jnp.sum(jnp.where(valid, d * d, 0.0), axis=0, keepdims=True) * inv_n
    y = d * lax.rsqrt(var + BN_EPS) * g + bt
    return jnp.where(valid, y, 0.0)


# ---------------------------------------------------------------------------
# Stage 1a: q branch  (Linear -> LeakyReLU -> Linear -> LeakyReLU -> BN)
# ---------------------------------------------------------------------------
# TODO(synk): for very large Nq/Nk, convert stage 1 to a row-tiled, pipelined
# grid with a two-pass BN (pass 1 accumulates sum/sum-sq, pass 2 normalizes);
# the gridless whole-array version here is fine for N ~ 10^3-10^4.
def _proj_q_kernel(x_ref, w1_ref, b1_ref, w2_ref, b2_ref, g_ref, bt_ref, o_ref,
                   *, n_valid):
    h = jnp.dot(x_ref[...], w1_ref[...], preferred_element_type=jnp.float32)
    h = _leaky(h + b1_ref[...])
    h = jnp.dot(h.astype(w2_ref.dtype), w2_ref[...],
                preferred_element_type=jnp.float32)
    h = _leaky(h + b2_ref[...])
    o_ref[...] = _bn_rows(h, g_ref[...], bt_ref[...], n_valid).astype(o_ref.dtype)


# ---------------------------------------------------------------------------
# Stage 1b: fused k/v branch (shared input k; first Linear of K|V fused)
# ---------------------------------------------------------------------------
def _proj_kv_kernel(x_ref, w1_ref, b1_ref,
                    wk2_ref, bk2_ref, gk_ref, btk_ref,
                    wv2_ref, bv2_ref, gv_ref, btv_ref,
                    ko_ref, vo_ref, *, n_valid):
    fp = ko_ref.shape[1]
    # one (Nk_pad, 2*Fp) matmul feeds both the K and V branches
    h = jnp.dot(x_ref[...], w1_ref[...], preferred_element_type=jnp.float32)
    h = _leaky(h + b1_ref[...]).astype(wk2_ref.dtype)          # (Nk_pad, 2*Fp)

    def second(hpart, w2_ref, b2_ref, g_ref, bt_ref, out_ref):
        z = jnp.dot(hpart, w2_ref[...], preferred_element_type=jnp.float32)
        z = _leaky(z + b2_ref[...])
        out_ref[...] = _bn_rows(z, g_ref[...], bt_ref[...],
                                n_valid).astype(out_ref.dtype)

    second(h[:, :fp], wk2_ref, bk2_ref, gk_ref, btk_ref, ko_ref)
    second(h[:, fp:], wv2_ref, bv2_ref, gv_ref, btv_ref, vo_ref)


# ---------------------------------------------------------------------------
# Stage 2: flash-style attention, grid = (Nq tiles, Nk tiles)
# ---------------------------------------------------------------------------
def _flash_attn_kernel(q_ref, k_ref, v_ref, a_ref, bias_ref, o_ref,
                       m_sc, l_sc, *, tk, kv_resident):
    kj = pl.program_id(1)
    fp = o_ref.shape[1]

    @pl.when(kj == 0)
    def _init():
        m_sc[...] = jnp.full_like(m_sc, -jnp.inf)
        l_sc[...] = jnp.zeros_like(l_sc)
        o_ref[...] = jnp.zeros_like(o_ref)          # accumulate directly here

    if kv_resident:
        # ke1/ve1 live fully resident in VMEM (constant index_map); slice the
        # current kj tile out of them instead of re-streaming per q tile.
        off = pl.multiple_of(kj * tk, LANE)
        k_t = k_ref[pl.ds(off, tk), :]
        v_t = v_ref[pl.ds(off, tk), :]
    else:
        k_t = k_ref[...]
        v_t = v_ref[...]

    # logits: contract feature dim of both operands (no materialized ke1.T);
    # the 1/sqrt(feat) scale is already folded into qe1's BN affine.
    s = lax.dot_general(q_ref[...], k_t,
                        dimension_numbers=(((1,), (1,)), ((), ())),
                        preferred_element_type=jnp.float32)      # (tq, tk)
    # multiplicative mask exactly as the PyTorch module (A * prod); the
    # additive bias row is 0 for real keys and -1e30 for padded K columns.
    s = a_ref[...].astype(jnp.float32) * s + bias_ref[...]

    # online softmax update; m/l are lane-replicated (tq, 128) tiles
    m_prev = m_sc[...]
    m_new = jnp.maximum(m_prev, jnp.max(s, axis=1, keepdims=True))
    alpha = jnp.exp(m_prev - m_new)
    p = jnp.exp(s - _rep_lanes(m_new, tk // LANE))
    l_sc[...] = alpha * l_sc[...] + jnp.sum(p, axis=1, keepdims=True)
    o_ref[...] = (_rep_lanes(alpha, fp // LANE) * o_ref[...]
                  + jnp.dot(p.astype(v_t.dtype), v_t,
                            preferred_element_type=jnp.float32))
    m_sc[...] = m_new

    @pl.when(kj == pl.num_programs(1) - 1)
    def _finalize():
        inv_l = pl.reciprocal(l_sc[...], approx=True)
        o_ref[...] = o_ref[...] * _rep_lanes(inv_l, fp // LANE)


# ---------------------------------------------------------------------------
# Tile selection
# ---------------------------------------------------------------------------
def _pick_q_tile(nq):
    n128 = _ceil_to(nq, LANE)
    # largest tile in {512,384,256,128} dividing n128 that keeps >=2 q tiles
    # (so the "parallel" qi axis can span both v7x TensorCores)
    for t in (512, 384, 256, 128):
        if n128 % t == 0 and n128 // t >= 2:
            return t
    for t in (512, 384, 256, 128):
        if n128 % t == 0:
            return t
    return min(512, n128)


def _pick_k_tile(nk):
    n128 = _ceil_to(nk, LANE)
    for t in (512, 384, 256, 128):
        if t <= n128 and n128 % t == 0:
            return t
    return min(512, n128)


# ---------------------------------------------------------------------------
# Wrapper
# ---------------------------------------------------------------------------
def attention_prop_forward(A, q, k, params, feat_size):
    """params: flat tuple of 18 arrays (PyTorch-equivalent, unpadded shapes)."""
    (wq1, bq1, wq2, bq2, gq, btq,
     wk1, bk1, wk2, bk2, gk, btk,
     wv1, bv1, wv2, bv2, gv, btv) = params

    nq, q_size = q.shape
    nk, k_size = k.shape
    f = feat_size
    fp = _ceil_to(f, LANE)
    dq = _ceil_to(q_size, LANE)
    dk = _ceil_to(k_size, LANE)
    scale = 1.0 / math.sqrt(f)
    f32 = jnp.float32

    # ---- stage-2 tiling (decided first so stage 1 emits padded rows) -------
    tq = _pick_q_tile(nq)
    tk = _pick_k_tile(nk)
    nq_pad = _ceil_to(nq, tq)
    nk_pad = _ceil_to(nk, tk)
    n_qi = nq_pad // tq

    # ---- host-side padding / packing (lane dims -> multiples of 128) -------
    q_p = _pad2(q, nq_pad, dq).astype(MM_DTYPE)
    k_p = _pad2(k, nk_pad, dk).astype(MM_DTYPE)

    wq1p = _pad2(wq1, dq, fp).astype(MM_DTYPE)
    wq2p = _pad2(wq2, fp, fp).astype(MM_DTYPE)
    bq1p = _pad2(bq1, 1, fp).astype(f32)
    bq2p = _pad2(bq2, 1, fp).astype(f32)
    # fold the 1/sqrt(feat) logit scale into the q-branch BN affine
    gqp = _pad2(gq * scale, 1, fp).astype(f32)
    btqp = _pad2(btq * scale, 1, fp).astype(f32)

    # fuse the first Linear of K and V branches: one (dk, 2*fp) weight
    wkv1 = jnp.concatenate([_pad2(wk1, dk, fp), _pad2(wv1, dk, fp)],
                           axis=1).astype(MM_DTYPE)
    bkv1 = jnp.concatenate([_pad2(bk1, 1, fp), _pad2(bv1, 1, fp)],
                           axis=1).astype(f32)
    wk2p = _pad2(wk2, fp, fp).astype(MM_DTYPE)
    wv2p = _pad2(wv2, fp, fp).astype(MM_DTYPE)
    bk2p = _pad2(bk2, 1, fp).astype(f32)
    bv2p = _pad2(bv2, 1, fp).astype(f32)
    gkp, btkp = _pad2(gk, 1, fp).astype(f32), _pad2(btk, 1, fp).astype(f32)
    gvp, btvp = _pad2(gv, 1, fp).astype(f32), _pad2(btv, 1, fp).astype(f32)

    # ---- stage 1: projections + BN (exact batch stats over the real rows) --
    qe1s = pl.pallas_call(
        functools.partial(_proj_q_kernel, n_valid=nq),
        out_shape=jax.ShapeDtypeStruct((nq_pad, fp), MM_DTYPE),
    )(q_p, wq1p, bq1p, wq2p, bq2p, gqp, btqp)

    ke1, ve1 = pl.pallas_call(
        functools.partial(_proj_kv_kernel, n_valid=nk),
        out_shape=(jax.ShapeDtypeStruct((nk_pad, fp), MM_DTYPE),
                   jax.ShapeDtypeStruct((nk_pad, fp), MM_DTYPE)),
    )(k_p, wkv1, bkv1, wk2p, bk2p, gkp, btkp, wv2p, bv2p, gvp, btvp)

    # ---- stage 2: tiled flash attention -------------------------------------
    # A is the only O(Nq*Nk) operand: ship it as int8 (0/1 exact) to halve the
    # dominant HBM stream; cast to f32 on the VPU inside the kernel.
    # TODO(synk): block-sparse skipping of all-zero A tiles is NOT
    # semantics-preserving under the module's multiplicative mask (zero-masked
    # logits still contribute exp(0-m) to the denominator); it would need an
    # analytic per-row correction, so it is not done here.
    a_p = _pad2(A, nq_pad, nk_pad).astype(jnp.int8)

    # additive {0, -1e30} bias for padded K columns (streamed as (1, tk) block)
    bias = jnp.where(jnp.arange(nk_pad) < nk, 0.0, MASK_NEG)
    bias = bias.astype(f32).reshape(1, nk_pad)

    # pin ke1/ve1 fully resident in VMEM when they fit (counting 2 buffers)
    kv_resident = (2 * 2 * nk_pad * fp * 2) <= KV_RESIDENT_BUDGET
    if kv_resident:
        k_spec = pl.BlockSpec((nk_pad, fp), lambda qi, kj: (0, 0))
        v_spec = pl.BlockSpec((nk_pad, fp), lambda qi, kj: (0, 0))
        kv_stream_bytes = 2 * nk_pad * fp * 2
    else:
        k_spec = pl.BlockSpec((tk, fp), lambda qi, kj: (kj, 0))
        v_spec = pl.BlockSpec((tk, fp), lambda qi, kj: (kj, 0))
        kv_stream_bytes = 2 * nk_pad * fp * 2 * n_qi   # re-streamed per q tile

    grid = (n_qi, nk_pad // tk)
    flops = 4 * nq_pad * nk_pad * fp                     # QK^T + PV
    bytes_accessed = (nq_pad * nk_pad                    # A (int8)
                      + nq_pad * fp * 2                  # qe1 (bf16)
                      + kv_stream_bytes                  # ke1 + ve1 (bf16)
                      + nq_pad * fp * 4                  # out (f32)
                      + n_qi * nk_pad * 4)               # bias re-stream

    out_p = pl.pallas_call(
        functools.partial(_flash_attn_kernel, tk=tk, kv_resident=kv_resident),
        out_shape=jax.ShapeDtypeStruct((nq_pad, fp), jnp.float32),
        grid=grid,
        in_specs=[
            pl.BlockSpec((tq, fp), lambda qi, kj: (qi, 0)),   # qe1 (scaled)
            k_spec,                                           # ke1
            v_spec,                                           # ve1
            pl.BlockSpec((tq, tk), lambda qi, kj: (qi, kj)),  # A tile (int8)
            pl.BlockSpec((1, tk), lambda qi, kj: (0, kj)),    # pad-col bias
        ],
        out_specs=pl.BlockSpec((tq, fp), lambda qi, kj: (qi, 0)),
        scratch_shapes=[
            pltpu.VMEM((tq, LANE), jnp.float32),   # running max m (replicated)
            pltpu.VMEM((tq, LANE), jnp.float32),   # running sum l (replicated)
        ],
        compiler_params=pltpu.CompilerParams(
            dimension_semantics=("parallel", "arbitrary"),
            vmem_limit_bytes=VMEM_LIMIT_BYTES),
        cost_estimate=pl.CostEstimate(
            flops=flops, transcendentals=nq_pad * nk_pad,
            bytes_accessed=bytes_accessed),
    )(qe1s, ke1, ve1, a_p, bias)

    return out_p[:nq, :f]


# ---------------------------------------------------------------------------
# Parameter init (PyTorch-style) and plain-JAX references
# ---------------------------------------------------------------------------
def init_linear(key, fan_in, fan_out):
    """uniform(-1/sqrt(fan_in), 1/sqrt(fan_in)); W stored (in, out)."""
    k1, k2 = jax.random.split(key)
    bound = 1.0 / math.sqrt(fan_in)
    W = jax.random.uniform(k1, (fan_in, fan_out), jnp.float32, -bound, bound)
    b = jax.random.uniform(k2, (1, fan_out), jnp.float32, -bound, bound)
    return W, b


def init_params(key, q_size, k_size, feat):
    keys = jax.random.split(key, 6)
    wq1, bq1 = init_linear(keys[0], q_size, feat)
    wq2, bq2 = init_linear(keys[1], feat, feat)
    wk1, bk1 = init_linear(keys[2], k_size, feat)
    wk2, bk2 = init_linear(keys[3], feat, feat)
    wv1, bv1 = init_linear(keys[4], k_size, feat)
    wv2, bv2 = init_linear(keys[5], feat, feat)
    ones = jnp.ones((1, feat), jnp.float32)    # BatchNorm1d weight default
    zeros = jnp.zeros((1, feat), jnp.float32)  # BatchNorm1d bias default
    return (wq1, bq1, wq2, bq2, ones, zeros,
            wk1, bk1, wk2, bk2, ones, zeros,
            wv1, bv1, wv2, bv2, ones, zeros)


def reference_forward(A, q, k, params, feat_size, *, mm_dtype=jnp.float32,
                      match_kernel=False):
    """Plain-JAX reference.  mm_dtype=bf16 + match_kernel=True mirrors the
    kernel's MXU-input rounding and scale folding; defaults are faithful f32."""
    (wq1, bq1, wq2, bq2, gq, btq,
     wk1, bk1, wk2, bk2, gk, btk,
     wv1, bv1, wv2, bv2, gv, btv) = params
    scale = 1.0 / math.sqrt(feat_size)

    def mm(a, b):
        return jnp.dot(a.astype(mm_dtype), b.astype(mm_dtype),
                       preferred_element_type=jnp.float32)

    def mlp_bn(x, w1, b1, w2, b2, g, bt):
        h = _leaky(mm(x, w1) + b1)
        h = _leaky(mm(h, w2) + b2)
        mu = jnp.mean(h, axis=0, keepdims=True)
        var = jnp.mean(jnp.square(h - mu), axis=0, keepdims=True)
        return (h - mu) * lax.rsqrt(var + BN_EPS) * g + bt

    qg, qb = (gq * scale, btq * scale) if match_kernel else (gq, btq)
    qe1 = mlp_bn(q, wq1, bq1, wq2, bq2, qg, qb)
    ke1 = mlp_bn(k, wk1, bk1, wk2, bk2, gk, btk)
    ve1 = mlp_bn(k, wv1, bv1, wv2, bv2, gv, btv)
    prod = mm(qe1, ke1.T)
    if not match_kernel:
        prod = prod * scale
    masked = A.astype(jnp.float32) * prod
    attn = jax.nn.softmax(masked, axis=1)
    return mm(attn, ve1)


if __name__ == "__main__":
    # shapes chosen to exercise: 2 q tiles (megacore), 2 kj tiles (online
    # softmax accumulation), row padding in BN (250 -> 256) and padded K
    # columns handled by the additive bias (760 -> 768).
    nq, nk = 250, 760
    q_size, k_size, feat_size = 12, 20, 32

    root = jax.random.PRNGKey(0)
    kp, kq, kk, ka = jax.random.split(root, 4)

    params = init_params(kp, q_size, k_size, feat_size)
    q = jax.random.normal(kq, (nq, q_size), jnp.float32)
    k = jax.random.normal(kk, (nk, k_size), jnp.float32)
    # adjacency mask, materialized dense (the torch module does A.to_dense())
    A = (jax.random.uniform(ka, (nq, nk)) < 0.5).astype(jnp.float32)

    fwd = jax.jit(attention_prop_forward, static_argnums=(4,))
    out = fwd(A, q, k, params, feat_size)
    jax.block_until_ready(out)
    assert out.shape == (nq, feat_size)

    # tight check against a reference with identical MXU-input rounding
    ref_matched = reference_forward(A, q, k, params, feat_size,
                                    mm_dtype=MM_DTYPE, match_kernel=True)
    assert jnp.allclose(out, ref_matched, rtol=3e-2, atol=3e-2), \
        "mismatch vs bf16-matched reference"

    # sanity check against the faithful f32 reference of the PyTorch module
    ref_f32 = reference_forward(A, q, k, params, feat_size)
    assert jnp.allclose(out, ref_f32, rtol=1e-1, atol=1e-1), \
        "mismatch vs f32 reference"

    print("KERNEL_OK")
</pallas_src>

<mosaic_0001>
module attributes {stable_mosaic.version = 11 : i64} {
  func.func @_proj_kv_kernel(%arg0: memref<768x128xbf16, #tpu.memory_space<vmem>>, %arg1: memref<128x256xbf16, #tpu.memory_space<vmem>>, %arg2: memref<1x256xf32, #tpu.memory_space<vmem>>, %arg3: memref<128x128xbf16, #tpu.memory_space<vmem>>, %arg4: memref<1x128xf32, #tpu.memory_space<vmem>>, %arg5: memref<1x128xf32, #tpu.memory_space<vmem>>, %arg6: memref<1x128xf32, #tpu.memory_space<vmem>>, %arg7: memref<128x128xbf16, #tpu.memory_space<vmem>>, %arg8: memref<1x128xf32, #tpu.memory_space<vmem>>, %arg9: memref<1x128xf32, #tpu.memory_space<vmem>>, %arg10: memref<1x128xf32, #tpu.memory_space<vmem>>, %arg11: memref<768x128xbf16, #tpu.memory_space<vmem>>, %arg12: memref<768x128xbf16, #tpu.memory_space<vmem>>) attributes {dimension_semantics = [], scalar_prefetch = 0 : i64, scratch_operands = 0 : i64, tpu.core_type = #tpu.core_type<tc>} {
    %c0 = arith.constant 0 : index
    %c0_0 = arith.constant 0 : index
    %0 = vector.load %arg0[%c0, %c0_0] : memref<768x128xbf16, #tpu.memory_space<vmem>>, vector<768x128xbf16>
    %c0_1 = arith.constant 0 : index
    %c0_2 = arith.constant 0 : index
    %1 = vector.load %arg1[%c0_1, %c0_2] : memref<128x256xbf16, #tpu.memory_space<vmem>>, vector<128x256xbf16>
    %cst = arith.constant dense<0.000000e+00> : vector<768x256xf32>
    %2 = tpu.matmul %0, %1, %cst {dimension_numbers = #tpu.dot_dimension_numbers<[1], [0], [0], [1], [0, 0, 1, 1], [], []>} : vector<768x128xbf16>, vector<128x256xbf16>, vector<768x256xf32> -> vector<768x256xf32>
    %c0_3 = arith.constant 0 : index
    %c0_4 = arith.constant 0 : index
    %3 = vector.load %arg2[%c0_3, %c0_4] : memref<1x256xf32, #tpu.memory_space<vmem>>, vector<1x256xf32>
    %4 = vector.broadcast %3 : vector<1x256xf32> to vector<768x256xf32>
    %5 = arith.addf %2, %4 : vector<768x256xf32>
    %cst_5 = arith.constant 0.000000e+00 : f32
    %6 = vector.broadcast %cst_5 : f32 to vector<768x256xf32>
    %7 = arith.cmpf oge, %5, %6 : vector<768x256xf32>
    %cst_6 = arith.constant 0.00999999977 : f32
    %8 = vector.broadcast %cst_6 : f32 to vector<768x256xf32>
    %9 = arith.mulf %8, %5 : vector<768x256xf32>
    %10 = arith.select %7, %5, %9 : vector<768x256xi1>, vector<768x256xf32>
    %11 = arith.truncf %10 : vector<768x256xf32> to vector<768x256xbf16>
    %12 = vector.extract_strided_slice %11 {offsets = [0, 0], sizes = [768, 128], strides = [1, 1]} : vector<768x256xbf16> to vector<768x128xbf16>
    %c0_7 = arith.constant 0 : index
    %c0_8 = arith.constant 0 : index
    %13 = vector.load %arg3[%c0_7, %c0_8] : memref<128x128xbf16, #tpu.memory_space<vmem>>, vector<128x128xbf16>
    %cst_9 = arith.constant dense<0.000000e+00> : vector<768x128xf32>
    %14 = tpu.matmul %12, %13, %cst_9 {dimension_numbers = #tpu.dot_dimension_numbers<[1], [0], [0], [1], [0, 0, 1, 1], [], []>} : vector<768x128xbf16>, vector<128x128xbf16>, vector<768x128xf32> -> vector<768x128xf32>
    %c0_10 = arith.constant 0 : index
    %c0_11 = arith.constant 0 : index
    %15 = vector.load %arg4[%c0_10, %c0_11] : memref<1x128xf32, #tpu.memory_space<vmem>>, vector<1x128xf32>
    %16 = vector.broadcast %15 : vector<1x128xf32> to vector<768x128xf32>
    %17 = arith.addf %14, %16 : vector<768x128xf32>
    %cst_12 = arith.constant 0.000000e+00 : f32
    %18 = vector.broadcast %cst_12 : f32 to vector<768x128xf32>
    %19 = arith.cmpf oge, %17, %18 : vector<768x128xf32>
    %cst_13 = arith.constant 0.00999999977 : f32
    %20 = vector.broadcast %cst_13 : f32 to vector<768x128xf32>
    %21 = arith.mulf %20, %17 : vector<768x128xf32>
    %22 = arith.select %19, %17, %21 : vector<768x128xi1>, vector<768x128xf32>
    %c0_14 = arith.constant 0 : index
    %c0_15 = arith.constant 0 : index
    %23 = vector.load %arg5[%c0_14, %c0_15] : memref<1x128xf32, #tpu.memory_space<vmem>>, vector<1x128xf32>
    %c0_16 = arith.constant 0 : index
    %c0_17 = arith.constant 0 : index
    %24 = vector.load %arg6[%c0_16, %c0_17] : memref<1x128xf32, #tpu.memory_space<vmem>>, vector<1x128xf32>
    %25 = tpu.iota {dimensions = array<i32: 0>} : vector<768x128xi32>
    %c760_i32 = arith.constant 760 : i32
    %26 = vector.broadcast %c760_i32 : i32 to vector<768x128xi32>
    %27 = arith.cmpi slt, %25, %26 : vector<768x128xi32>
    %cst_18 = arith.constant 0.000000e+00 : f32
    %28 = vector.broadcast %cst_18 : f32 to vector<768x128xf32>
    %29 = arith.select %27, %22, %28 : vector<768x128xi1>, vector<768x128xf32>
    %cst_19 = arith.constant dense<0.000000e+00> : vector<128xf32>
    %30 = vector.multi_reduction <add>, %29, %cst_19 [0] : vector<768x128xf32> to vector<128xf32>
    %31 = vector.shape_cast %30 : vector<128xf32> to vector<1x128xf32>
    %cst_20 = arith.constant 0.00131578953 : f32
    %32 = vector.broadcast %cst_20 : f32 to vector<1x128xf32>
    %33 = arith.mulf %31, %32 : vector<1x128xf32>
    %34 = vector.broadcast %33 : vector<1x128xf32> to vector<768x128xf32>
    %35 = arith.subf %22, %34 : vector<768x128xf32>
    %36 = arith.mulf %35, %35 : vector<768x128xf32>
    %cst_21 = arith.constant 0.000000e+00 : f32
    %37 = vector.broadcast %cst_21 : f32 to vector<768x128xf32>
    %38 = arith.select %27, %36, %37 : vector<768x128xi1>, vector<768x128xf32>
    %cst_22 = arith.constant dense<0.000000e+00> : vector<128xf32>
    %39 = vector.multi_reduction <add>, %38, %cst_22 [0] : vector<768x128xf32> to vector<128xf32>
    %40 = vector.shape_cast %39 : vector<128xf32> to vector<1x128xf32>
    %cst_23 = arith.constant 0.00131578953 : f32
    %41 = vector.broadcast %cst_23 : f32 to vector<1x128xf32>
    %42 = arith.mulf %40, %41 : vector<1x128xf32>
    %cst_24 = arith.constant 9.99999974E-6 : f32
    %43 = vector.broadcast %cst_24 : f32 to vector<1x128xf32>
    %44 = arith.addf %42, %43 : vector<1x128xf32>
    %45 = math.rsqrt %44 : vector<1x128xf32>
    %46 = vector.broadcast %45 : vector<1x128xf32> to vector<768x128xf32>
    %47 = arith.mulf %35, %46 : vector<768x128xf32>
    %48 = vector.broadcast %23 : vector<1x128xf32> to vector<768x128xf32>
    %49 = arith.mulf %47, %48 : vector<768x128xf32>
    %50 = vector.broadcast %24 : vector<1x128xf32> to vector<768x128xf32>
    %51 = arith.addf %49, %50 : vector<768x128xf32>
    %cst_25 = arith.constant 0.000000e+00 : f32
    %52 = vector.broadcast %cst_25 : f32 to vector<768x128xf32>
    %53 = arith.select %27, %51, %52 : vector<768x128xi1>, vector<768x128xf32>
    %54 = arith.truncf %53 : vector<768x128xf32> to vector<768x128xbf16>
    %c0_26 = arith.constant 0 : index
    %c0_27 = arith.constant 0 : index
    %55 = vector.load %arg11[%c0_26, %c0_27] : memref<768x128xbf16, #tpu.memory_space<vmem>>, vector<768x128xbf16>
    tpu.vector_store %arg11[%c0_26, %c0_27], %54 {strides = array<i32>} : memref<768x128xbf16, #tpu.memory_space<vmem>>, vector<768x128xbf16>,
    %56 = vector.extract_strided_slice %11 {offsets = [0, 128], sizes = [768, 128], strides = [1, 1]} : vector<768x256xbf16> to vector<768x128xbf16>
    %c0_28 = arith.constant 0 : index
    %c0_29 = arith.constant 0 : index
    %57 = vector.load %arg7[%c0_28, %c0_29] : memref<128x128xbf16, #tpu.memory_space<vmem>>, vector<128x128xbf16>
    %cst_30 = arith.constant dense<0.000000e+00> : vector<768x128xf32>
    %58 = tpu.matmul %56, %57, %cst_30 {dimension_numbers = #tpu.dot_dimension_numbers<[1], [0], [0], [1], [0, 0, 1, 1], [], []>} : vector<768x128xbf16>, vector<128x128xbf16>, vector<768x128xf32> -> vector<768x128xf32>
    %c0_31 = arith.constant 0 : index
    %c0_32 = arith.constant 0 : index
    %59 = vector.load %arg8[%c0_31, %c0_32] : memref<1x128xf32, #tpu.memory_space<vmem>>, vector<1x128xf32>
    %60 = vector.broadcast %59 : vector<1x128xf32> to vector<768x128xf32>
    %61 = arith.addf %58, %60 : vector<768x128xf32>
    %cst_33 = arith.constant 0.000000e+00 : f32
    %62 = vector.broadcast %cst_33 : f32 to vector<768x128xf32>
    %63 = arith.cmpf oge, %61, %62 : vector<768x128xf32>
    %cst_34 = arith.constant 0.00999999977 : f32
    %64 = vector.broadcast %cst_34 : f32 to vector<768x128xf32>
    %65 = arith.mulf %64, %61 : vector<768x128xf32>
    %66 = arith.select %63, %61, %65 : vector<768x128xi1>, vector<768x128xf32>
    %c0_35 = arith.constant 0 : index
    %c0_36 = arith.constant 0 : index
    %67 = vector.load %arg9[%c0_35, %c0_36] : memref<1x128xf32, #tpu.memory_space<vmem>>, vector<1x128xf32>
    %c0_37 = arith.constant 0 : index
    %c0_38 = arith.constant 0 : index
    %68 = vector.load %arg10[%c0_37, %c0_38] : memref<1x128xf32, #tpu.memory_space<vmem>>, vector<1x128xf32>
    %69 = tpu.iota {dimensions = array<i32: 0>} : vector<768x128xi32>
    %c760_i32_39 = arith.constant 760 : i32
    %70 = vector.broadcast %c760_i32_39 : i32 to vector<768x128xi32>
    %71 = arith.cmpi slt, %69, %70 : vector<768x128xi32>
    %cst_40 = arith.constant 0.000000e+00 : f32
    %72 = vector.broadcast %cst_40 : f32 to vector<768x128xf32>
    %73 = arith.select %71, %66, %72 : vector<768x128xi1>, vector<768x128xf32>
    %cst_41 = arith.constant dense<0.000000e+00> : vector<128xf32>
    %74 = vector.multi_reduction <add>, %73, %cst_41 [0] : vector<768x128xf32> to vector<128xf32>
    %75 = vector.shape_cast %74 : vector<128xf32> to vector<1x128xf32>
    %cst_42 = arith.constant 0.00131578953 : f32
    %76 = vector.broadcast %cst_42 : f32 to vector<1x128xf32>
    %77 = arith.mulf %75, %76 : vector<1x128xf32>
    %78 = vector.broadcast %77 : vector<1x128xf32> to vector<768x128xf32>
    %79 = arith.subf %66, %78 : vector<768x128xf32>
    %80 = arith.mulf %79, %79 : vector<768x128xf32>
    %cst_43 = arith.constant 0.000000e+00 : f32
    %81 = vector.broadcast %cst_43 : f32 to vector<768x128xf32>
    %82 = arith.select %71, %80, %81 : vector<768x128xi1>, vector<768x128xf32>
    %cst_44 = arith.constant dense<0.000000e+00> : vector<128xf32>
    %83 = vector.multi_reduction <add>, %82, %cst_44 [0] : vector<768x128xf32> to vector<128xf32>
    %84 = vector.shape_cast %83 : vector<128xf32> to vector<1x128xf32>
    %cst_45 = arith.constant 0.00131578953 : f32
    %85 = vector.broadcast %cst_45 : f32 to vector<1x128xf32>
    %86 = arith.mulf %84, %85 : vector<1x128xf32>
    %cst_46 = arith.constant 9.99999974E-6 : f32
    %87 = vector.broadcast %cst_46 : f32 to vector<1x128xf32>
    %88 = arith.addf %86, %87 : vector<1x128xf32>
    %89 = math.rsqrt %88 : vector<1x128xf32>
    %90 = vector.broadcast %89 : vector<1x128xf32> to vector<768x128xf32>
    %91 = arith.mulf %79, %90 : vector<768x128xf32>
    %92 = vector.broadcast %67 : vector<1x128xf32> to vector<768x128xf32>
    %93 = arith.mulf %91, %92 : vector<768x128xf32>
    %94 = vector.broadcast %68 : vector<1x128xf32> to vector<768x128xf32>
    %95 = arith.addf %93, %94 : vector<768x128xf32>
    %cst_47 = arith.constant 0.000000e+00 : f32
    %96 = vector.broadcast %cst_47 : f32 to vector<768x128xf32>
    %97 = arith.select %71, %95, %96 : vector<768x128xi1>, vector<768x128xf32>
    %98 = arith.truncf %97 : vector<768x128xf32> to vector<768x128xbf16>
    %c0_48 = arith.constant 0 : index
    %c0_49 = arith.constant 0 : index
    %99 = vector.load %arg12[%c0_48, %c0_49] : memref<768x128xbf16, #tpu.memory_space<vmem>>, vector<768x128xbf16>
    tpu.vector_store %arg12[%c0_48, %c0_49], %98 {strides = array<i32>} : memref<768x128xbf16, #tpu.memory_space<vmem>>, vector<768x128xbf16>,
    return
  }
}

module attributes {stable_mosaic.version = 11 : i64} {
  func.func @_proj_q_kernel(%arg0: memref<256x128xbf16, #tpu.memory_space<vmem>>, %arg1: memref<128x128xbf16, #tpu.memory_space<vmem>>, %arg2: memref<1x128xf32, #tpu.memory_space<vmem>>, %arg3: memref<128x128xbf16, #tpu.memory_space<vmem>>, %arg4: memref<1x128xf32, #tpu.memory_space<vmem>>, %arg5: memref<1x128xf32, #tpu.memory_space<vmem>>, %arg6: memref<1x128xf32, #tpu.memory_space<vmem>>, %arg7: memref<256x128xbf16, #tpu.memory_space<vmem>>) attributes {dimension_semantics = [], scalar_prefetch = 0 : i64, scratch_operands = 0 : i64, tpu.core_type = #tpu.core_type<tc>} {
    %c0 = arith.constant 0 : index
    %c0_0 = arith.constant 0 : index
    %0 = vector.load %arg0[%c0, %c0_0] : memref<256x128xbf16, #tpu.memory_space<vmem>>, vector<256x128xbf16>
    %c0_1 = arith.constant 0 : index
    %c0_2 = arith.constant 0 : index
    %1 = vector.load %arg1[%c0_1, %c0_2] : memref<128x128xbf16, #tpu.memory_space<vmem>>, vector<128x128xbf16>
    %cst = arith.constant dense<0.000000e+00> : vector<256x128xf32>
    %2 = tpu.matmul %0, %1, %cst {dimension_numbers = #tpu.dot_dimension_numbers<[1], [0], [0], [1], [0, 0, 1, 1], [], []>} : vector<256x128xbf16>, vector<128x128xbf16>, vector<256x128xf32> -> vector<256x128xf32>
    %c0_3 = arith.constant 0 : index
    %c0_4 = arith.constant 0 : index
    %3 = vector.load %arg2[%c0_3, %c0_4] : memref<1x128xf32, #tpu.memory_space<vmem>>, vector<1x128xf32>
    %4 = vector.broadcast %3 : vector<1x128xf32> to vector<256x128xf32>
    %5 = arith.addf %2, %4 : vector<256x128xf32>
    %cst_5 = arith.constant 0.000000e+00 : f32
    %6 = vector.broadcast %cst_5 : f32 to vector<256x128xf32>
    %7 = arith.cmpf oge, %5, %6 : vector<256x128xf32>
    %cst_6 = arith.constant 0.00999999977 : f32
    %8 = vector.broadcast %cst_6 : f32 to vector<256x128xf32>
    %9 = arith.mulf %8, %5 : vector<256x128xf32>
    %10 = arith.select %7, %5, %9 : vector<256x128xi1>, vector<256x128xf32>
    %11 = arith.truncf %10 : vector<256x128xf32> to vector<256x128xbf16>
    %c0_7 = arith.constant 0 : index
    %c0_8 = arith.constant 0 : index
    %12 = vector.load %arg3[%c0_7, %c0_8] : memref<128x128xbf16, #tpu.memory_space<vmem>>, vector<128x128xbf16>
    %cst_9 = arith.constant dense<0.000000e+00> : vector<256x128xf32>
    %13 = tpu.matmul %11, %12, %cst_9 {dimension_numbers = #tpu.dot_dimension_numbers<[1], [0], [0], [1], [0, 0, 1, 1], [], []>} : vector<256x128xbf16>, vector<128x128xbf16>, vector<256x128xf32> -> vector<256x128xf32>
    %c0_10 = arith.constant 0 : index
    %c0_11 = arith.constant 0 : index
    %14 = vector.load %arg4[%c0_10, %c0_11] : memref<1x128xf32, #tpu.memory_space<vmem>>, vector<1x128xf32>
    %15 = vector.broadcast %14 : vector<1x128xf32> to vector<256x128xf32>
    %16 = arith.addf %13, %15 : vector<256x128xf32>
    %cst_12 = arith.constant 0.000000e+00 : f32
    %17 = vector.broadcast %cst_12 : f32 to vector<256x128xf32>
    %18 = arith.cmpf oge, %16, %17 : vector<256x128xf32>
    %cst_13 = arith.constant 0.00999999977 : f32
    %19 = vector.broadcast %cst_13 : f32 to vector<256x128xf32>
    %20 = arith.mulf %19, %16 : vector<256x128xf32>
    %21 = arith.select %18, %16, %20 : vector<256x128xi1>, vector<256x128xf32>
    %c0_14 = arith.constant 0 : index
    %c0_15 = arith.constant 0 : index
    %22 = vector.load %arg5[%c0_14, %c0_15] : memref<1x128xf32, #tpu.memory_space<vmem>>, vector<1x128xf32>
    %c0_16 = arith.constant 0 : index
    %c0_17 = arith.constant 0 : index
    %23 = vector.load %arg6[%c0_16, %c0_17] : memref<1x128xf32, #tpu.memory_space<vmem>>, vector<1x128xf32>
    %24 = tpu.iota {dimensions = array<i32: 0>} : vector<256x128xi32>
    %c250_i32 = arith.constant 250 : i32
    %25 = vector.broadcast %c250_i32 : i32 to vector<256x128xi32>
    %26 = arith.cmpi slt, %24, %25 : vector<256x128xi32>
    %cst_18 = arith.constant 0.000000e+00 : f32
    %27 = vector.broadcast %cst_18 : f32 to vector<256x128xf32>
    %28 = arith.select %26, %21, %27 : vector<256x128xi1>, vector<256x128xf32>
    %cst_19 = arith.constant dense<0.000000e+00> : vector<128xf32>
    %29 = vector.multi_reduction <add>, %28, %cst_19 [0] : vector<256x128xf32> to vector<128xf32>
    %30 = vector.shape_cast %29 : vector<128xf32> to vector<1x128xf32>
    %cst_20 = arith.constant 4.000000e-03 : f32
    %31 = vector.broadcast %cst_20 : f32 to vector<1x128xf32>
    %32 = arith.mulf %30, %31 : vector<1x128xf32>
    %33 = vector.broadcast %32 : vector<1x128xf32> to vector<256x128xf32>
    %34 = arith.subf %21, %33 : vector<256x128xf32>
    %35 = arith.mulf %34, %34 : vector<256x128xf32>
    %cst_21 = arith.constant 0.000000e+00 : f32
    %36 = vector.broadcast %cst_21 : f32 to vector<256x128xf32>
    %37 = arith.select %26, %35, %36 : vector<256x128xi1>, vector<256x128xf32>
    %cst_22 = arith.constant dense<0.000000e+00> : vector<128xf32>
    %38 = vector.multi_reduction <add>, %37, %cst_22 [0] : vector<256x128xf32> to vector<128xf32>
    %39 = vector.shape_cast %38 : vector<128xf32> to vector<1x128xf32>
    %cst_23 = arith.constant 4.000000e-03 : f32
    %40 = vector.broadcast %cst_23 : f32 to vector<1x128xf32>
    %41 = arith.mulf %39, %40 : vector<1x128xf32>
    %cst_24 = arith.constant 9.99999974E-6 : f32
    %42 = vector.broadcast %cst_24 : f32 to vector<1x128xf32>
    %43 = arith.addf %41, %42 : vector<1x128xf32>
    %44 = math.rsqrt %43 : vector<1x128xf32>
    %45 = vector.broadcast %44 : vector<1x128xf32> to vector<256x128xf32>
    %46 = arith.mulf %34, %45 : vector<256x128xf32>
    %47 = vector.broadcast %22 : vector<1x128xf32> to vector<256x128xf32>
    %48 = arith.mulf %46, %47 : vector<256x128xf32>
    %49 = vector.broadcast %23 : vector<1x128xf32> to vector<256x128xf32>
    %50 = arith.addf %48, %49 : vector<256x128xf32>
    %cst_25 = arith.constant 0.000000e+00 : f32
    %51 = vector.broadcast %cst_25 : f32 to vector<256x128xf32>
    %52 = arith.select %26, %50, %51 : vector<256x128xi1>, vector<256x128xf32>
    %53 = arith.truncf %52 : vector<256x128xf32> to vector<256x128xbf16>
    %c0_26 = arith.constant 0 : index
    %c0_27 = arith.constant 0 : index
    %54 = vector.load %arg7[%c0_26, %c0_27] : memref<256x128xbf16, #tpu.memory_space<vmem>>, vector<256x128xbf16>
    tpu.vector_store %arg7[%c0_26, %c0_27], %53 {strides = array<i32>} : memref<256x128xbf16, #tpu.memory_space<vmem>>, vector<256x128xbf16>,
    return
  }
}

module attributes {stable_mosaic.version = 11 : i64} {
  func.func @_flash_attn_kernel(%arg0: i32, %arg1: i32, %arg2: memref<128x128xbf16, #tpu.memory_space<vmem>>, %arg3: memref<768x128xbf16, #tpu.memory_space<vmem>>, %arg4: memref<768x128xbf16, #tpu.memory_space<vmem>>, %arg5: memref<128x384xi8, #tpu.memory_space<vmem>>, %arg6: memref<1x384xf32, #tpu.memory_space<vmem>>, %arg7: memref<128x128xf32, #tpu.memory_space<vmem>>, %arg8: memref<128x128xf32, #tpu.memory_space<vmem>>, %arg9: memref<128x128xf32, #tpu.memory_space<vmem>>) attributes {dimension_semantics = [#tpu.dimension_semantics<parallel>, #tpu.dimension_semantics<arbitrary>], iteration_bounds = array<i64: 2, 2>, scalar_prefetch = 0 : i64, scratch_operands = 2 : i64, tpu.core_type = #tpu.core_type<tc>, window_params = [{transform_indices = @transform_0, window_bounds = array<i64: 128, 128>}, {pipeline_mode = #tpu.pipeline_mode<synchronous>, transform_indices = @transform_1, window_bounds = array<i64: 768, 128>}, {pipeline_mode = #tpu.pipeline_mode<synchronous>, transform_indices = @transform_2, window_bounds = array<i64: 768, 128>}, {transform_indices = @transform_3, window_bounds = array<i64: 128, 384>}, {transform_indices = @transform_4, window_bounds = array<i64: 1, 384>}, {transform_indices = @transform_5, window_bounds = array<i64: 128, 128>}]} {
    %c0_i32 = arith.constant 0 : i32
    %0 = arith.cmpi eq, %arg1, %c0_i32 : i32
    %1 = arith.extui %0 : i1 to i32
    %c0_i32_0 = arith.constant 0 : i32
    %2 = arith.cmpi ne, %1, %c0_i32_0 : i32
    scf.if %2 {
      %cst_24 = arith.constant 0xFF800000 : f32
      %44 = vector.broadcast %cst_24 : f32 to vector<128x128xf32>
      %c0_25 = arith.constant 0 : index
      %c0_26 = arith.constant 0 : index
      %45 = vector.load %arg8[%c0_25, %c0_26] : memref<128x128xf32, #tpu.memory_space<vmem>>, vector<128x128xf32>
      tpu.vector_store %arg8[%c0_25, %c0_26], %44 {strides = array<i32>} : memref<128x128xf32, #tpu.memory_space<vmem>>, vector<128x128xf32>,
      %cst_27 = arith.constant 0.000000e+00 : f32
      %46 = vector.broadcast %cst_27 : f32 to vector<128x128xf32>
      %c0_28 = arith.constant 0 : index
      %c0_29 = arith.constant 0 : index
      %47 = vector.load %arg9[%c0_28, %c0_29] : memref<128x128xf32, #tpu.memory_space<vmem>>, vector<128x128xf32>
      tpu.vector_store %arg9[%c0_28, %c0_29], %46 {strides = array<i32>} : memref<128x128xf32, #tpu.memory_space<vmem>>, vector<128x128xf32>,
      %cst_30 = arith.constant 0.000000e+00 : f32
      %48 = vector.broadcast %cst_30 : f32 to vector<128x128xf32>
      %c0_31 = arith.constant 0 : index
      %c0_32 = arith.constant 0 : index
      %49 = vector.load %arg7[%c0_31, %c0_32] : memref<128x128xf32, #tpu.memory_space<vmem>>, vector<128x128xf32>
      tpu.vector_store %arg7[%c0_31, %c0_32], %48 {strides = array<i32>} : memref<128x128xf32, #tpu.memory_space<vmem>>, vector<128x128xf32>,
    } else {
    }
    %c384_i32 = arith.constant 384 : i32
    %3 = arith.muli %arg1, %c384_i32 : i32
    %4 = tpu.assume_multiple %3, 128 : i32
    %5 = arith.index_cast %4 : i32 to index
    %c0 = arith.constant 0 : index
    %6 = vector.load %arg3[%5, %c0] : memref<768x128xbf16, #tpu.memory_space<vmem>>, vector<384x128xbf16>
    %7 = arith.index_cast %4 : i32 to index
    %c0_1 = arith.constant 0 : index
    %8 = vector.load %arg4[%7, %c0_1] : memref<768x128xbf16, #tpu.memory_space<vmem>>, vector<384x128xbf16>
    %c0_2 = arith.constant 0 : index
    %c0_3 = arith.constant 0 : index
    %9 = vector.load %arg2[%c0_2, %c0_3] : memref<128x128xbf16, #tpu.memory_space<vmem>>, vector<128x128xbf16>
    %cst = arith.constant dense<0.000000e+00> : vector<128x384xf32>
    %10 = tpu.matmul %9, %6, %cst {dimension_numbers = #tpu.dot_dimension_numbers<[1], [1], [0], [0], [0, 0, 1, 0], [], []>} : vector<128x128xbf16>, vector<384x128xbf16>, vector<128x384xf32> -> vector<128x384xf32>
    %c0_4 = arith.constant 0 : index
    %c0_5 = arith.constant 0 : index
    %11 = vector.load %arg5[%c0_4, %c0_5] : memref<128x384xi8, #tpu.memory_space<vmem>>, vector<128x384xi8>
    %12 = arith.sitofp %11 : vector<128x384xi8> to vector<128x384xf32>
    %13 = arith.mulf %12, %10 : vector<128x384xf32>
    %c0_6 = arith.constant 0 : index
    %c0_7 = arith.constant 0 : index
    %14 = vector.load %arg6[%c0_6, %c0_7] : memref<1x384xf32, #tpu.memory_space<vmem>>, vector<1x384xf32>
    %15 = vector.broadcast %14 : vector<1x384xf32> to vector<128x384xf32>
    %16 = arith.addf %13, %15 : vector<128x384xf32>
    %c0_8 = arith.constant 0 : index
    %c0_9 = arith.constant 0 : index
    %17 = vector.load %arg8[%c0_8, %c0_9] : memref<128x128xf32, #tpu.memory_space<vmem>>, vector<128x128xf32>
    %cst_10 = arith.constant dense<0xFF800000> : vector<128xf32>
    %18 = vector.multi_reduction <maximumf>, %16, %cst_10 [1] : vector<128x384xf32> to vector<128xf32>
    %19 = vector.shape_cast %18 : vector<128xf32> to vector<128x1xf32>
    %20 = vector.broadcast %19 : vector<128x1xf32> to vector<128x128xf32>
    %21 = arith.maximumf %17, %20 : vector<128x128xf32>
    %22 = arith.subf %17, %21 : vector<128x128xf32>
    %23 = math.exp %22 : vector<128x128xf32>
    %24 = tpu.concatenate %21, %21, %21 in 1 : vector<128x128xf32>, vector<128x128xf32>, vector<128x128xf32> -> vector<128x384xf32>
    %25 = arith.subf %16, %24 : vector<128x384xf32>
    %26 = math.exp %25 : vector<128x384xf32>
    %c0_11 = arith.constant 0 : index
    %c0_12 = arith.constant 0 : index
    %27 = vector.load %arg9[%c0_11, %c0_12] : memref<128x128xf32, #tpu.memory_space<vmem>>, vector<128x128xf32>
    %28 = arith.mulf %23, %27 : vector<128x128xf32>
    %cst_13 = arith.constant dense<0.000000e+00> : vector<128xf32>
    %29 = vector.multi_reduction <add>, %26, %cst_13 [1] : vector<128x384xf32> to vector<128xf32>
    %30 = vector.shape_cast %29 : vector<128xf32> to vector<128x1xf32>
    %31 = vector.broadcast %30 : vector<128x1xf32> to vector<128x128xf32>
    %32 = arith.addf %28, %31 : vector<128x128xf32>
    %c0_14 = arith.constant 0 : index
    %c0_15 = arith.constant 0 : index
    %33 = vector.load %arg9[%c0_14, %c0_15] : memref<128x128xf32, #tpu.memory_space<vmem>>, vector<128x128xf32>
    tpu.vector_store %arg9[%c0_14, %c0_15], %32 {strides = array<i32>} : memref<128x128xf32, #tpu.memory_space<vmem>>, vector<128x128xf32>,
    %c0_16 = arith.constant 0 : index
    %c0_17 = arith.constant 0 : index
    %34 = vector.load %arg7[%c0_16, %c0_17] : memref<128x128xf32, #tpu.memory_space<vmem>>, vector<128x128xf32>
    %35 = arith.mulf %23, %34 : vector<128x128xf32>
    %36 = arith.truncf %26 : vector<128x384xf32> to vector<128x384xbf16>
    %cst_18 = arith.constant dense<0.000000e+00> : vector<128x128xf32>
    %37 = tpu.matmul %36, %8, %cst_18 {dimension_numbers = #tpu.dot_dimension_numbers<[1], [0], [0], [1], [0, 0, 1, 1], [], []>} : vector<128x384xbf16>, vector<384x128xbf16>, vector<128x128xf32> -> vector<128x128xf32>
    %38 = arith.addf %35, %37 : vector<128x128xf32>
    %c0_19 = arith.constant 0 : index
    %c0_20 = arith.constant 0 : index
    %39 = vector.load %arg7[%c0_19, %c0_20] : memref<128x128xf32, #tpu.memory_space<vmem>>, vector<128x128xf32>
    tpu.vector_store %arg7[%c0_19, %c0_20], %38 {strides = array<i32>} : memref<128x128xf32, #tpu.memory_space<vmem>>, vector<128x128xf32>,
    %c0_21 = arith.constant 0 : index
    %c0_22 = arith.constant 0 : index
    %40 = vector.load %arg8[%c0_21, %c0_22] : memref<128x128xf32, #tpu.memory_space<vmem>>, vector<128x128xf32>
    tpu.vector_store %arg8[%c0_21, %c0_22], %21 {strides = array<i32>} : memref<128x128xf32, #tpu.memory_space<vmem>>, vector<128x128xf32>,
    %c1_i32 = arith.constant 1 : i32
    %41 = arith.cmpi eq, %arg1, %c1_i32 : i32
    %42 = arith.extui %41 : i1 to i32
    %c0_i32_23 = arith.constant 0 : i32
    %43 = arith.cmpi ne, %42, %c0_i32_23 : i32
    scf.if %43 {
      %c0_24 = arith.constant 0 : index
      %c0_25 = arith.constant 0 : index
      %44 = vector.load %arg9[%c0_24, %c0_25] : memref<128x128xf32, #tpu.memory_space<vmem>>, vector<128x128xf32>
      %45 = tpu.reciprocal %44 {approx = true} : vector<128x128xf32> -> vector<128x128xf32>
      %c0_26 = arith.constant 0 : index
      %c0_27 = arith.constant 0 : index
      %46 = vector.load %arg7[%c0_26, %c0_27] : memref<128x128xf32, #tpu.memory_space<vmem>>, vector<128x128xf32>
      %47 = arith.mulf %46, %45 : vector<128x128xf32>
      %c0_28 = arith.constant 0 : index
      %c0_29 = arith.constant 0 : index
      %48 = vector.load %arg7[%c0_28, %c0_29] : memref<128x128xf32, #tpu.memory_space<vmem>>, vector<128x128xf32>
      tpu.vector_store %arg7[%c0_28, %c0_29], %47 {strides = array<i32>} : memref<128x128xf32, #tpu.memory_space<vmem>>, vector<128x128xf32>,
    } else {
    }
    return
  }
  func.func @transform_0(%arg0: i32, %arg1: i32) -> (i32, i32) {
    %c0_i32 = arith.constant 0 : i32
    %c0_i32_0 = arith.constant 0 : i32
    return %arg0, %c0_i32 : i32, i32
  }
  func.func @transform_1(%arg0: i32, %arg1: i32) -> (i32, i32) {
    %c0_i32 = arith.constant 0 : i32
    %c0_i32_0 = arith.constant 0 : i32
    %c0_i32_1 = arith.constant 0 : i32
    return %c0_i32, %c0_i32_0 : i32, i32
  }
  func.func @transform_2(%arg0: i32, %arg1: i32) -> (i32, i32) {
    %c0_i32 = arith.constant 0 : i32
    %c0_i32_0 = arith.constant 0 : i32
    %c0_i32_1 = arith.constant 0 : i32
    return %c0_i32, %c0_i32_0 : i32, i32
  }
  func.func @transform_3(%arg0: i32, %arg1: i32) -> (i32, i32) {
    %c0_i32 = arith.constant 0 : i32
    return %arg0, %arg1 : i32, i32
  }
  func.func @transform_4(%arg0: i32, %arg1: i32) -> (i32, i32) {
    %c0_i32 = arith.constant 0 : i32
    %c0_i32_0 = arith.constant 0 : i32
    return %c0_i32, %arg1 : i32, i32
  }
  func.func @transform_5(%arg0: i32, %arg1: i32) -> (i32, i32) {
    %c0_i32 = arith.constant 0 : i32
    %c0_i32_0 = arith.constant 0 : i32
    return %arg0, %c0_i32 : i32, i32
  }
}

</mosaic_0001>

<llo_original>
// kernel: attention_prop_forward.3
$region0: #{attention_prop_forward.3}
  #allocation0 [shape = 'u32[]', space=smem, size = 0x4, offset = 0x4, fixed_abs, tag = 'smem constant byte address 0x4 - core index']
  #allocation1 [shape = 'u32[144,128]{1,0:T(1,128)}', space=vmem, size = 0x12000, scoped, tag = 'internal scratch']
  %s0 = inlined_call_operand.vmem [shape: bf16[256,128], index: 0, kind: input, shape index: {}]
  %s1 = inlined_call_operand.vmem [shape: bf16[128,128], index: 1, kind: input, shape index: {}]
  %s2 = inlined_call_operand.vmem [shape: f32[1,128], index: 2, kind: input, shape index: {}]
  %s3 = inlined_call_operand.vmem [shape: bf16[128,128], index: 3, kind: input, shape index: {}]
  %s4 = inlined_call_operand.vmem [shape: f32[1,128], index: 4, kind: input, shape index: {}]
  %s5 = inlined_call_operand.vmem [shape: f32[1,128], index: 5, kind: input, shape index: {}]
  %s6 = inlined_call_operand.vmem [shape: f32[1,128], index: 6, kind: input, shape index: {}]
  %s7 = inlined_call_operand.vmem [shape: bf16[256,128], index: 7, kind: output, shape index: {}]
  %s8 = sld [smem:[#allocation0]]
  $region38: #{attention_prop_forward.3} parent=0
    _
  %s10 = ssub.s32 1, %s8
  %s11 = scalar_select 0, %s10, %s8
  // Predicated region
  $region2: #{attention_prop_forward.3} parent=0 // pred_check
    _
  $region3: #{attention_prop_forward.3} parent=0 // pred_check_branch
    %13 = sbr.rel (0) target = $region5
  $region4: #{attention_prop_forward.3} parent=0 // pred_region
    _
  $region5: #{attention_prop_forward.3} parent=0 // pred_fallthru
    _
  // Predicated region
  $region6: #{attention_prop_forward.3} parent=0 // pred_check
    _
  $region7: #{attention_prop_forward.3} parent=0 // pred_check_branch
    %15 = sbr.rel (0) target = $region9
  $region8: #{attention_prop_forward.3} parent=0 // pred_region
    _
  $region9: #{attention_prop_forward.3} parent=0 // pred_fallthru
    _
  // Predicated region
  $region10: #{attention_prop_forward.3} parent=0 // pred_check
    _
  $region11: #{attention_prop_forward.3} parent=0 // pred_check_branch
    %17 = sbr.rel (0) target = $region13
  $region12: #{attention_prop_forward.3} parent=0 // pred_region
    _
  $region13: #{attention_prop_forward.3} parent=0 // pred_fallthru
    _
  // Predicated region
  $region14: #{attention_prop_forward.3} parent=0 // pred_check
    _
  $region15: #{attention_prop_forward.3} parent=0 // pred_check_branch
    %19 = sbr.rel (0) target = $region17
  $region16: #{attention_prop_forward.3} parent=0 // pred_region
    _
  $region17: #{attention_prop_forward.3} parent=0 // pred_fallthru
    _
  // Predicated region
  $region18: #{attention_prop_forward.3} parent=0 // pred_check
    _
  $region19: #{attention_prop_forward.3} parent=0 // pred_check_branch
    %21 = sbr.rel (0) target = $region21
  $region20: #{attention_prop_forward.3} parent=0 // pred_region
    _
  $region21: #{attention_prop_forward.3} parent=0 // pred_fallthru
    _
  // Predicated region
  $region22: #{attention_prop_forward.3} parent=0 // pred_check
    _
  $region23: #{attention_prop_forward.3} parent=0 // pred_check_branch
    %23 = sbr.rel (0) target = $region25
  $region24: #{attention_prop_forward.3} parent=0 // pred_region
    _
  $region25: #{attention_prop_forward.3} parent=0 // pred_fallthru
    _
  // Predicated region
  $region26: #{attention_prop_forward.3} parent=0 // pred_check
    _
  $region27: #{attention_prop_forward.3} parent=0 // pred_check_branch
    %25 = sbr.rel (0) target = $region29
  $region28: #{attention_prop_forward.3} parent=0 // pred_region
    _
  $region29: #{attention_prop_forward.3} parent=0 // pred_fallthru
    _
  %v27 = vld [vmem:[%s0] sm:$0xf]
  %v28 = vld [vmem:[%s0 + $0x4] sm:$0xf]
  %v29 = vld [vmem:[%s0 + $0x8] sm:$0xf]
  %v30 = vld [vmem:[%s0 + $0xc] sm:$0xf]
  %v31 = vld [vmem:[%s0 + $0x10] sm:$0xf]
  %v32 = vld [vmem:[%s0 + $0x14] sm:$0xf]
  %v33 = vld [vmem:[%s0 + $0x18] sm:$0xf]
  %v34 = vld [vmem:[%s0 + $0x1c] sm:$0xf]
  %v35 = vld [vmem:[%s0 + $0x20] sm:$0xf]
  %v36 = vld [vmem:[%s0 + $0x24] sm:$0xf]
  %v37 = vld [vmem:[%s0 + $0x28] sm:$0xf]
  %v38 = vld [vmem:[%s0 + $0x2c] sm:$0xf]
  %v39 = vld [vmem:[%s0 + $0x30] sm:$0xf]
  %v40 = vld [vmem:[%s0 + $0x34] sm:$0xf]
  %v41 = vld [vmem:[%s0 + $0x38] sm:$0xf]
  %v42 = vld [vmem:[%s0 + $0x3c] sm:$0xf]
  %v43 = vld [vmem:[%s0 + $0x40] sm:$0xf]
  %v44 = vld [vmem:[%s0 + $0x44] sm:$0xf]
  %v45 = vld [vmem:[%s0 + $0x48] sm:$0xf]
  %v46 = vld [vmem:[%s0 + $0x4c] sm:$0xf]
  %v47 = vld [vmem:[%s0 + $0x50] sm:$0xf]
  %v48 = vld [vmem:[%s0 + $0x54] sm:$0xf]
  %v49 = vld [vmem:[%s0 + $0x58] sm:$0xf]
  %v50 = vld [vmem:[%s0 + $0x5c] sm:$0xf]
  %v51 = vld [vmem:[%s0 + $0x60] sm:$0xf]
  %v52 = vld [vmem:[%s0 + $0x64] sm:$0xf]
  %v53 = vld [vmem:[%s0 + $0x68] sm:$0xf]
  %v54 = vld [vmem:[%s0 + $0x6c] sm:$0xf]
  %v55 = vld [vmem:[%s0 + $0x70] sm:$0xf]
  %v56 = vld [vmem:[%s0 + $0x74] sm:$0xf]
  %v57 = vld [vmem:[%s0 + $0x78] sm:$0xf]
  %v58 = vld [vmem:[%s0 + $0x7c] sm:$0xf]
  %v59 = vld [vmem:[%s1] sm:$0xf]
  %v60 = vld [vmem:[%s1 + $0x4] sm:$0xf]
  %v61 = vld [vmem:[%s1 + $0x8] sm:$0xf]
  %v62 = vld [vmem:[%s1 + $0xc] sm:$0xf]
  %v63 = vld [vmem:[%s1 + $0x10] sm:$0xf]
  %v64 = vld [vmem:[%s1 + $0x14] sm:$0xf]
  %v65 = vld [vmem:[%s1 + $0x18] sm:$0xf]
  %v66 = vld [vmem:[%s1 + $0x1c] sm:$0xf]
  %v67 = vld [vmem:[%s1 + $0x20] sm:$0xf]
  %v68 = vld [vmem:[%s1 + $0x24] sm:$0xf]
  %v69 = vld [vmem:[%s1 + $0x28] sm:$0xf]
  %v70 = vld [vmem:[%s1 + $0x2c] sm:$0xf]
  %v71 = vld [vmem:[%s1 + $0x30] sm:$0xf]
  %v72 = vld [vmem:[%s1 + $0x34] sm:$0xf]
  %v73 = vld [vmem:[%s1 + $0x38] sm:$0xf]
  %v74 = vld [vmem:[%s1 + $0x3c] sm:$0xf]
  %v75 = vld [vmem:[%s2] sm:$0x1]
  %v77 = vlaneseq
  %v78 = vshrl.u32 %v77, 7
  %v79 = vsub.s32 0, %v78
  %v80 = vrot.slane %v75, %v79
  %v114 = vunpack.c.l.b16 %v27
  %v115 = vunpack.c.l.b16 %v28
  %v116 = vunpack.c.l.b16 %v29
  %v117 = vunpack.c.l.b16 %v30
  %v118 = vunpack.c.l.b16 %v31
  %v119 = vunpack.c.l.b16 %v32
  %v120 = vunpack.c.l.b16 %v33
  %v121 = vunpack.c.l.b16 %v34
  %v122 = vunpack.c.l.b16 %v35
  %v123 = vunpack.c.l.b16 %v36
  %v124 = vunpack.c.l.b16 %v37
  %v125 = vunpack.c.l.b16 %v38
  %v126 = vunpack.c.l.b16 %v39
  %v127 = vunpack.c.l.b16 %v40
  %v128 = vunpack.c.l.b16 %v41
  %v129 = vunpack.c.l.b16 %v42
  %v130 = vunpack.c.l.b16 %v43
  %v131 = vunpack.c.l.b16 %v44
  %v132 = vunpack.c.l.b16 %v45
  %v133 = vunpack.c.l.b16 %v46
  %v134 = vunpack.c.l.b16 %v47
  %v135 = vunpack.c.l.b16 %v48
  %v136 = vunpack.c.l.b16 %v49
  %v137 = vunpack.c.l.b16 %v50
  %v138 = vunpack.c.l.b16 %v51
  %v139 = vunpack.c.l.b16 %v52
  %v140 = vunpack.c.l.b16 %v53
  %v141 = vunpack.c.l.b16 %v54
  %v142 = vunpack.c.l.b16 %v55
  %v143 = vunpack.c.l.b16 %v56
  %v144 = vunpack.c.l.b16 %v57
  %v145 = vunpack.c.l.b16 %v58
  %v146 = vpack.c.b16 %v115, %v114
  %v147 = vpack.c.b16 %v117, %v116
  %v148 = vpack.c.b16 %v119, %v118
  %v149 = vpack.c.b16 %v121, %v120
  %v150 = vpack.c.b16 %v123, %v122
  %v151 = vpack.c.b16 %v125, %v124
  %v152 = vpack.c.b16 %v127, %v126
  %v153 = vpack.c.b16 %v129, %v128
  %v154 = vpack.c.b16 %v131, %v130
  %v155 = vpack.c.b16 %v133, %v132
  %v156 = vpack.c.b16 %v135, %v134
  %v157 = vpack.c.b16 %v137, %v136
  %v158 = vpack.c.b16 %v139, %v138
  %v159 = vpack.c.b16 %v141, %v140
  %v160 = vpack.c.b16 %v143, %v142
  %v161 = vpack.c.b16 %v145, %v144
  %v194 = vunpack.c.l.b16 %v59
  %v195 = vunpack.c.l.b16 %v60
  %v196 = vunpack.c.l.b16 %v61
  %v197 = vunpack.c.l.b16 %v62
  %v198 = vunpack.c.l.b16 %v63
  %v199 = vunpack.c.l.b16 %v64
  %v200 = vunpack.c.l.b16 %v65
  %v201 = vunpack.c.l.b16 %v66
  %v202 = vunpack.c.l.b16 %v67
  %v203 = vunpack.c.l.b16 %v68
  %v204 = vunpack.c.l.b16 %v69
  %v205 = vunpack.c.l.b16 %v70
  %v206 = vunpack.c.l.b16 %v71
  %v207 = vunpack.c.l.b16 %v72
  %v208 = vunpack.c.l.b16 %v73
  %v209 = vunpack.c.l.b16 %v74
  %v210 = vpack.c.b16 %v195, %v194
  %v211 = vpack.c.b16 %v197, %v196
  %v212 = vpack.c.b16 %v199, %v198
  %v213 = vpack.c.b16 %v201, %v200
  %v214 = vpack.c.b16 %v203, %v202
  %v215 = vpack.c.b16 %v205, %v204
  %v216 = vpack.c.b16 %v207, %v206
  %v217 = vpack.c.b16 %v209, %v208
  %226 = vmatprep.subr.bf16.mxu0 0
  %227 = vmatpush1.bf16.msra.mxu0 %v217
  %228 = vmatprep.subr.bf16.mxu0 0
  %229 = vmatpush1.bf16.msra.mxu0 %v216
  %230 = vmatprep.subr.bf16.mxu0 0
  %231 = vmatpush1.bf16.msra.mxu0 %v215
  %232 = vmatprep.subr.bf16.mxu0 0
  %233 = vmatpush1.bf16.msra.mxu0 %v214
  %234 = vmatprep.subr.bf16.mxu0 0
  %235 = vmatpush1.bf16.msra.mxu0 %v213
  %236 = vmatprep.subr.bf16.mxu0 0
  %237 = vmatpush1.bf16.msra.mxu0 %v212
  %238 = vmatprep.subr.bf16.mxu0 0
  %239 = vmatpush1.bf16.msra.mxu0 %v211
  %240 = vmatprep.subr.bf16.mxu0 0
  %241 = vmatpush1.bf16.msra.mxu0 %v210
  %242 = vmatprep.subr.bf16.mxu0 0
  %243 = vmatpush2.bf16.msra.mxu0 0
  %244 = vmatprep.subr.bf16.mxu0 0
  %245 = vmatpush2.bf16.msra.mxu0 0
  %246 = vmatprep.subr.bf16.mxu0 0
  %247 = vmatpush2.bf16.msra.mxu0 0
  %248 = vmatprep.subr.bf16.mxu0 0
  %249 = vmatpush2.bf16.msra.mxu0 0
  %250 = vmatprep.subr.bf16.mxu0 0
  %251 = vmatpush2.bf16.msra.mxu0 0
  %252 = vmatprep.subr.bf16.mxu0 0
  %253 = vmatpush2.bf16.msra.mxu0 0
  %254 = vmatprep.subr.bf16.mxu0 0
  %255 = vmatpush2.bf16.msra.mxu0 0
  %256 = vmatprep.subr.bf16.mxu0 0
  %257 = vmatpush2.bf16.msra.mxu0 0
  %258 = vmatprep.mubr.bf16.mxu0 0
  %259 = vmatmul.mubr.bf16.gmra.mxu0 %v146
  %v260 = vpop.f32.mrf.mxu0
  %v261 = vadd.f32 %v80, %v260
  %v262 = vpop.f32.mrf.mxu0
  %v263 = vpop.f32.mrf.mxu0
  %v264 = vadd.f32 %v80, %v263
  %v265 = vpop.f32.mrf.mxu0
  %266 = vmatprep.mubr.bf16.mxu0 0
  %267 = vmatmul.mubr.bf16.gmra.mxu0 %v147
  %v268 = vpop.f32.mrf.mxu0
  %v269 = vadd.f32 %v80, %v268
  %v270 = vpop.f32.mrf.mxu0
  %v271 = vpop.f32.mrf.mxu0
  %v272 = vadd.f32 %v80, %v271
  %v273 = vpop.f32.mrf.mxu0
  %274 = vmatprep.mubr.bf16.mxu0 0
  %275 = vmatmul.mubr.bf16.gmra.mxu0 %v148
  %v276 = vpop.f32.mrf.mxu0
  %v277 = vadd.f32 %v80, %v276
  %v278 = vpop.f32.mrf.mxu0
  %v279 = vpop.f32.mrf.mxu0
  %v280 = vadd.f32 %v80, %v279
  %v281 = vpop.f32.mrf.mxu0
  %282 = vmatprep.mubr.bf16.mxu0 0
  %283 = vmatmul.mubr.bf16.gmra.mxu0 %v149
  %v284 = vpop.f32.mrf.mxu0
  %v285 = vadd.f32 %v80, %v284
  %v286 = vpop.f32.mrf.mxu0
  %v287 = vpop.f32.mrf.mxu0
  %v288 = vadd.f32 %v80, %v287
  %v289 = vpop.f32.mrf.mxu0
  %290 = vmatprep.mubr.bf16.mxu0 0
  %291 = vmatmul.mubr.bf16.gmra.mxu0 %v150
  %v292 = vpop.f32.mrf.mxu0
  %v293 = vadd.f32 %v80, %v292
  %v294 = vpop.f32.mrf.mxu0
  %v295 = vpop.f32.mrf.mxu0
  %v296 = vadd.f32 %v80, %v295
  %v297 = vpop.f32.mrf.mxu0
  %298 = vmatprep.mubr.bf16.mxu0 0
  %299 = vmatmul.mubr.bf16.gmra.mxu0 %v151
  %v300 = vpop.f32.mrf.mxu0
  %v301 = vadd.f32 %v80, %v300
  %v302 = vpop.f32.mrf.mxu0
  %v303 = vpop.f32.mrf.mxu0
  %v304 = vadd.f32 %v80, %v303
  %v305 = vpop.f32.mrf.mxu0
  %306 = vmatprep.mubr.bf16.mxu0 0
  %307 = vmatmul.mubr.bf16.gmra.mxu0 %v152
  %v308 = vpop.f32.mrf.mxu0
  %v309 = vadd.f32 %v80, %v308
  %v310 = vpop.f32.mrf.mxu0
  %v311 = vpop.f32.mrf.mxu0
  %v312 = vadd.f32 %v80, %v311
  %v313 = vpop.f32.mrf.mxu0
  %314 = vmatprep.mubr.bf16.mxu0 0
  %315 = vmatmul.mubr.bf16.gmra.mxu0 %v153
  %v316 = vpop.f32.mrf.mxu0
  %v317 = vadd.f32 %v80, %v316
  %v318 = vpop.f32.mrf.mxu0
  %v319 = vpop.f32.mrf.mxu0
  %v320 = vadd.f32 %v80, %v319
  %v321 = vpop.f32.mrf.mxu0
  %322 = vmatprep.mubr.bf16.mxu0 0
  %323 = vmatmul.mubr.bf16.gmra.mxu0 %v154
  %v324 = vpop.f32.mrf.mxu0
  %v325 = vadd.f32 %v80, %v324
  %v326 = vpop.f32.mrf.mxu0
  %v327 = vpop.f32.mrf.mxu0
  %v328 = vadd.f32 %v80, %v327
  %v329 = vpop.f32.mrf.mxu0
  %330 = vmatprep.mubr.bf16.mxu0 0
  %331 = vmatmul.mubr.bf16.gmra.mxu0 %v155
  %v332 = vpop.f32.mrf.mxu0
  %v333 = vadd.f32 %v80, %v332
  %v334 = vpop.f32.mrf.mxu0
  %v335 = vpop.f32.mrf.mxu0
  %v336 = vadd.f32 %v80, %v335
  %v337 = vpop.f32.mrf.mxu0
  %338 = vmatprep.mubr.bf16.mxu0 0
  %339 = vmatmul.mubr.bf16.gmra.mxu0 %v156
  %v340 = vpop.f32.mrf.mxu0
  %v341 = vadd.f32 %v80, %v340
  %v342 = vpop.f32.mrf.mxu0
  %v343 = vpop.f32.mrf.mxu0
  %v344 = vadd.f32 %v80, %v343
  %v345 = vpop.f32.mrf.mxu0
  %346 = vmatprep.mubr.bf16.mxu0 0
  %347 = vmatmul.mubr.bf16.gmra.mxu0 %v157
  %v348 = vpop.f32.mrf.mxu0
  %v349 = vadd.f32 %v80, %v348
  %v350 = vpop.f32.mrf.mxu0
  %v351 = vpop.f32.mrf.mxu0
  %v352 = vadd.f32 %v80, %v351
  %v353 = vpop.f32.mrf.mxu0
  %354 = vmatprep.mubr.bf16.mxu0 0
  %355 = vmatmul.mubr.bf16.gmra.mxu0 %v158
  %v356 = vpop.f32.mrf.mxu0
  %v357 = vadd.f32 %v80, %v356
  %v358 = vpop.f32.mrf.mxu0
  %v359 = vpop.f32.mrf.mxu0
  %v360 = vadd.f32 %v80, %v359
  %v361 = vpop.f32.mrf.mxu0
  %362 = vmatprep.mubr.bf16.mxu0 0
  %363 = vmatmul.mubr.bf16.gmra.mxu0 %v159
  %v364 = vpop.f32.mrf.mxu0
  %v365 = vadd.f32 %v80, %v364
  %v366 = vpop.f32.mrf.mxu0
  %v367 = vpop.f32.mrf.mxu0
  %v368 = vadd.f32 %v80, %v367
  %v369 = vpop.f32.mrf.mxu0
  %370 = vmatprep.mubr.bf16.mxu0 0
  %371 = vmatmul.mubr.bf16.gmra.mxu0 %v160
  %v372 = vpop.f32.mrf.mxu0
  %v373 = vadd.f32 %v80, %v372
  %v374 = vpop.f32.mrf.mxu0
  %v375 = vpop.f32.mrf.mxu0
  %v376 = vadd.f32 %v80, %v375
  %v377 = vpop.f32.mrf.mxu0
  %378 = vmatprep.mubr.bf16.mxu0 0
  %379 = vmatmul.mubr.bf16.gmra.mxu0 %v161
  %v380 = vpop.f32.mrf.mxu0
  %v381 = vadd.f32 %v80, %v380
  %v382 = vpop.f32.mrf.mxu0
  %v383 = vpop.f32.mrf.mxu0
  %v384 = vadd.f32 %v80, %v383
  %v385 = vpop.f32.mrf.mxu0
  %386 = vdwg.mxu0
  %vm387 = vcmp.ge.f32.partialorder %v261, 0.0
  %vm388 = vcmp.ge.f32.partialorder %v264, 0.0
  %vm389 = vcmp.ge.f32.partialorder %v269, 0.0
  %vm390 = vcmp.ge.f32.partialorder %v272, 0.0
  %vm391 = vcmp.ge.f32.partialorder %v277, 0.0
  %vm392 = vcmp.ge.f32.partialorder %v280, 0.0
  %vm393 = vcmp.ge.f32.partialorder %v285, 0.0
  %vm394 = vcmp.ge.f32.partialorder %v288, 0.0
  %vm395 = vcmp.ge.f32.partialorder %v293, 0.0
  %vm396 = vcmp.ge.f32.partialorder %v296, 0.0
  %vm397 = vcmp.ge.f32.partialorder %v301, 0.0
  %vm398 = vcmp.ge.f32.partialorder %v304, 0.0
  %vm399 = vcmp.ge.f32.partialorder %v309, 0.0
  %vm400 = vcmp.ge.f32.partialorder %v312, 0.0
  %vm401 = vcmp.ge.f32.partialorder %v317, 0.0
  %vm402 = vcmp.ge.f32.partialorder %v320, 0.0
  %vm403 = vcmp.ge.f32.partialorder %v325, 0.0
  %vm404 = vcmp.ge.f32.partialorder %v328, 0.0
  %vm405 = vcmp.ge.f32.partialorder %v333, 0.0
  %vm406 = vcmp.ge.f32.partialorder %v336, 0.0
  %vm407 = vcmp.ge.f32.partialorder %v341, 0.0
  %vm408 = vcmp.ge.f32.partialorder %v344, 0.0
  %vm409 = vcmp.ge.f32.partialorder %v349, 0.0
  %vm410 = vcmp.ge.f32.partialorder %v352, 0.0
  %vm411 = vcmp.ge.f32.partialorder %v357, 0.0
  %vm412 = vcmp.ge.f32.partialorder %v360, 0.0
  %vm413 = vcmp.ge.f32.partialorder %v365, 0.0
  %vm414 = vcmp.ge.f32.partialorder %v368, 0.0
  %vm415 = vcmp.ge.f32.partialorder %v373, 0.0
  %vm416 = vcmp.ge.f32.partialorder %v376, 0.0
  %vm417 = vcmp.ge.f32.partialorder %v381, 0.0
  %vm418 = vcmp.ge.f32.partialorder %v384, 0.0
  %v419 = vmul.f32 %v261, 0.01
  %v420 = vmul.f32 %v264, 0.01
  %v421 = vmul.f32 %v269, 0.01
  %v422 = vmul.f32 %v272, 0.01
  %v423 = vmul.f32 %v277, 0.01
  %v424 = vmul.f32 %v280, 0.01
  %v425 = vmul.f32 %v285, 0.01
  %v426 = vmul.f32 %v288, 0.01
  %v427 = vmul.f32 %v293, 0.01
  %v428 = vmul.f32 %v296, 0.01
  %v429 = vmul.f32 %v301, 0.01
  %v430 = vmul.f32 %v304, 0.01
  %v431 = vmul.f32 %v309, 0.01
  %v432 = vmul.f32 %v312, 0.01
  %v433 = vmul.f32 %v317, 0.01
  %v434 = vmul.f32 %v320, 0.01
  %v435 = vmul.f32 %v325, 0.01
  %v436 = vmul.f32 %v328, 0.01
  %v437 = vmul.f32 %v333, 0.01
  %v438 = vmul.f32 %v336, 0.01
  %v439 = vmul.f32 %v341, 0.01
  %v440 = vmul.f32 %v344, 0.01
  %v441 = vmul.f32 %v349, 0.01
  %v442 = vmul.f32 %v352, 0.01
  %v443 = vmul.f32 %v357, 0.01
  %v444 = vmul.f32 %v360, 0.01
  %v445 = vmul.f32 %v365, 0.01
  %v446 = vmul.f32 %v368, 0.01
  %v447 = vmul.f32 %v373, 0.01
  %v448 = vmul.f32 %v376, 0.01
  %v449 = vmul.f32 %v381, 0.01
  %v450 = vmul.f32 %v384, 0.01
  %v451 = vsel %vm387, %v261, %v419
  %v452 = vsel %vm388, %v264, %v420
  %v453 = vsel %vm389, %v269, %v421
  %v454 = vsel %vm390, %v272, %v422
  %v455 = vsel %vm391, %v277, %v423
  %v456 = vsel %vm392, %v280, %v424
  %v457 = vsel %vm393, %v285, %v425
  %v458 = vsel %vm394, %v288, %v426
  %v459 = vsel %vm395, %v293, %v427
  %v460 = vsel %vm396, %v296, %v428
  %v461 = vsel %vm397, %v301, %v429
  %v462 = vsel %vm398, %v304, %v430
  %v463 = vsel %vm399, %v309, %v431
  %v464 = vsel %vm400, %v312, %v432
  %v465 = vsel %vm401, %v317, %v433
  %v466 = vsel %vm402, %v320, %v434
  %v467 = vsel %vm403, %v325, %v435
  %v468 = vsel %vm404, %v328, %v436
  %v469 = vsel %vm405, %v333, %v437
  %v470 = vsel %vm406, %v336, %v438
  %v471 = vsel %vm407, %v341, %v439
  %v472 = vsel %vm408, %v344, %v440
  %v473 = vsel %vm409, %v349, %v441
  %v474 = vsel %vm410, %v352, %v442
  %v475 = vsel %vm411, %v357, %v443
  %v476 = vsel %vm412, %v360, %v444
  %v477 = vsel %vm413, %v365, %v445
  %v478 = vsel %vm414, %v368, %v446
  %v479 = vsel %vm415, %v373, %v447
  %v480 = vsel %vm416, %v376, %v448
  %v481 = vsel %vm417, %v381, %v449
  %v482 = vsel %vm418, %v384, %v450
  %v483 = vpack.c.bf16 %v452, %v451
  %v484 = vpack.c.bf16 %v454, %v453
  %v485 = vpack.c.bf16 %v456, %v455
  %v486 = vpack.c.bf16 %v458, %v457
  %v487 = vpack.c.bf16 %v460, %v459
  %v488 = vpack.c.bf16 %v462, %v461
  %v489 = vpack.c.bf16 %v464, %v463
  %v490 = vpack.c.bf16 %v466, %v465
  %v491 = vpack.c.bf16 %v468, %v467
  %v492 = vpack.c.bf16 %v470, %v469
  %v493 = vpack.c.bf16 %v472, %v471
  %v494 = vpack.c.bf16 %v474, %v473
  %v495 = vpack.c.bf16 %v476, %v475
  %v496 = vpack.c.bf16 %v478, %v477
  %v497 = vpack.c.bf16 %v480, %v479
  %v498 = vpack.c.bf16 %v482, %v481
  %v499 = vld [vmem:[%s3] sm:$0xf]
  %v500 = vld [vmem:[%s3 + $0x4] sm:$0xf]
  %v501 = vld [vmem:[%s3 + $0x8] sm:$0xf]
  %v502 = vld [vmem:[%s3 + $0xc] sm:$0xf]
  %v503 = vld [vmem:[%s3 + $0x10] sm:$0xf]
  %v504 = vld [vmem:[%s3 + $0x14] sm:$0xf]
  %v505 = vld [vmem:[%s3 + $0x18] sm:$0xf]
  %v506 = vld [vmem:[%s3 + $0x1c] sm:$0xf]
  %v507 = vld [vmem:[%s3 + $0x20] sm:$0xf]
  %v508 = vld [vmem:[%s3 + $0x24] sm:$0xf]
  %v509 = vld [vmem:[%s3 + $0x28] sm:$0xf]
  %v510 = vld [vmem:[%s3 + $0x2c] sm:$0xf]
  %v511 = vld [vmem:[%s3 + $0x30] sm:$0xf]
  %v512 = vld [vmem:[%s3 + $0x34] sm:$0xf]
  %v513 = vld [vmem:[%s3 + $0x38] sm:$0xf]
  %v514 = vld [vmem:[%s3 + $0x3c] sm:$0xf]
  %v515 = vld [vmem:[%s4] sm:$0x1]
  %v517 = vlaneseq
  %v518 = vshrl.u32 %v517, 7
  %v519 = vsub.s32 0, %v518
  %v520 = vrot.slane %v515, %v519
  %v538 = vunpack.c.l.b16 %v499
  %v539 = vunpack.c.l.b16 %v500
  %v540 = vunpack.c.l.b16 %v501
  %v541 = vunpack.c.l.b16 %v502
  %v542 = vunpack.c.l.b16 %v503
  %v543 = vunpack.c.l.b16 %v504
  %v544 = vunpack.c.l.b16 %v505
  %v545 = vunpack.c.l.b16 %v506
  %v546 = vunpack.c.l.b16 %v507
  %v547 = vunpack.c.l.b16 %v508
  %v548 = vunpack.c.l.b16 %v509
  %v549 = vunpack.c.l.b16 %v510
  %v550 = vunpack.c.l.b16 %v511
  %v551 = vunpack.c.l.b16 %v512
  %v552 = vunpack.c.l.b16 %v513
  %v553 = vunpack.c.l.b16 %v514
  %v554 = vpack.c.b16 %v539, %v538
  %v555 = vpack.c.b16 %v541, %v540
  %v556 = vpack.c.b16 %v543, %v542
  %v557 = vpack.c.b16 %v545, %v544
  %v558 = vpack.c.b16 %v547, %v546
  %v559 = vpack.c.b16 %v549, %v548
  %v560 = vpack.c.b16 %v551, %v550
  %v561 = vpack.c.b16 %v553, %v552
  %570 = vmatprep.subr.bf16.mxu0 0
  %571 = vmatpush1.bf16.msra.mxu0 %v561
  %572 = vmatprep.subr.bf16.mxu0 0
  %573 = vmatpush1.bf16.msra.mxu0 %v560
  %574 = vmatprep.subr.bf16.mxu0 0
  %575 = vmatpush1.bf16.msra.mxu0 %v559
  %576 = vmatprep.subr.bf16.mxu0 0
  %577 = vmatpush1.bf16.msra.mxu0 %v558
  %578 = vmatprep.subr.bf16.mxu0 0
  %579 = vmatpush1.bf16.msra.mxu0 %v557
  %580 = vmatprep.subr.bf16.mxu0 0
  %581 = vmatpush1.bf16.msra.mxu0 %v556
  %582 = vmatprep.subr.bf16.mxu0 0
  %583 = vmatpush1.bf16.msra.mxu0 %v555
  %584 = vmatprep.subr.bf16.mxu0 0
  %585 = vmatpush1.bf16.msra.mxu0 %v554
  %586 = vmatprep.subr.bf16.mxu0 0
  %587 = vmatpush2.bf16.msra.mxu0 0
  %588 = vmatprep.subr.bf16.mxu0 0
  %589 = vmatpush2.bf16.msra.mxu0 0
  %590 = vmatprep.subr.bf16.mxu0 0
  %591 = vmatpush2.bf16.msra.mxu0 0
  %592 = vmatprep.subr.bf16.mxu0 0
  %593 = vmatpush2.bf16.msra.mxu0 0
  %594 = vmatprep.subr.bf16.mxu0 0
  %595 = vmatpush2.bf16.msra.mxu0 0
  %596 = vmatprep.subr.bf16.mxu0 0
  %597 = vmatpush2.bf16.msra.mxu0 0
  %598 = vmatprep.subr.bf16.mxu0 0
  %599 = vmatpush2.bf16.msra.mxu0 0
  %600 = vmatprep.subr.bf16.mxu0 0
  %601 = vmatpush2.bf16.msra.mxu0 0
  %602 = vmatprep.mubr.bf16.mxu0 0
  %603 = vmatmul.mubr.bf16.gmra.mxu0 %v483
  %v604 = vpop.f32.mrf.mxu0
  %v605 = vadd.f32 %v520, %v604
  %v606 = vpop.f32.mrf.mxu0
  %v607 = vpop.f32.mrf.mxu0
  %v608 = vadd.f32 %v520, %v607
  %v609 = vpop.f32.mrf.mxu0
  %610 = vmatprep.mubr.bf16.mxu0 0
  %611 = vmatmul.mubr.bf16.gmra.mxu0 %v484
  %v612 = vpop.f32.mrf.mxu0
  %v613 = vadd.f32 %v520, %v612
  %v614 = vpop.f32.mrf.mxu0
  %v615 = vpop.f32.mrf.mxu0
  %v616 = vadd.f32 %v520, %v615
  %v617 = vpop.f32.mrf.mxu0
  %618 = vmatprep.mubr.bf16.mxu0 0
  %619 = vmatmul.mubr.bf16.gmra.mxu0 %v485
  %v620 = vpop.f32.mrf.mxu0
  %v621 = vadd.f32 %v520, %v620
  %v622 = vpop.f32.mrf.mxu0
  %v623 = vpop.f32.mrf.mxu0
  %v624 = vadd.f32 %v520, %v623
  %v625 = vpop.f32.mrf.mxu0
  %626 = vmatprep.mubr.bf16.mxu0 0
  %627 = vmatmul.mubr.bf16.gmra.mxu0 %v486
  %v628 = vpop.f32.mrf.mxu0
  %v629 = vadd.f32 %v520, %v628
  %v630 = vpop.f32.mrf.mxu0
  %v631 = vpop.f32.mrf.mxu0
  %v632 = vadd.f32 %v520, %v631
  %v633 = vpop.f32.mrf.mxu0
  %634 = vmatprep.mubr.bf16.mxu0 0
  %635 = vmatmul.mubr.bf16.gmra.mxu0 %v487
  %v636 = vpop.f32.mrf.mxu0
  %v637 = vadd.f32 %v520, %v636
  %v638 = vpop.f32.mrf.mxu0
  %v639 = vpop.f32.mrf.mxu0
  %v640 = vadd.f32 %v520, %v639
  %v641 = vpop.f32.mrf.mxu0
  %642 = vmatprep.mubr.bf16.mxu0 0
  %643 = vmatmul.mubr.bf16.gmra.mxu0 %v488
  %v644 = vpop.f32.mrf.mxu0
  %v645 = vadd.f32 %v520, %v644
  %v646 = vpop.f32.mrf.mxu0
  %v647 = vpop.f32.mrf.mxu0
  %v648 = vadd.f32 %v520, %v647
  %v649 = vpop.f32.mrf.mxu0
  %650 = vmatprep.mubr.bf16.mxu0 0
  %651 = vmatmul.mubr.bf16.gmra.mxu0 %v489
  %v652 = vpop.f32.mrf.mxu0
  %v653 = vadd.f32 %v520, %v652
  %v654 = vpop.f32.mrf.mxu0
  %v655 = vpop.f32.mrf.mxu0
  %v656 = vadd.f32 %v520, %v655
  %v657 = vpop.f32.mrf.mxu0
  %658 = vmatprep.mubr.bf16.mxu0 0
  %659 = vmatmul.mubr.bf16.gmra.mxu0 %v490
  %v660 = vpop.f32.mrf.mxu0
  %v661 = vadd.f32 %v520, %v660
  %v662 = vpop.f32.mrf.mxu0
  %v663 = vpop.f32.mrf.mxu0
  %v664 = vadd.f32 %v520, %v663
  %v665 = vpop.f32.mrf.mxu0
  %666 = vmatprep.mubr.bf16.mxu0 0
  %667 = vmatmul.mubr.bf16.gmra.mxu0 %v491
  %v668 = vpop.f32.mrf.mxu0
  %v669 = vadd.f32 %v520, %v668
  %v670 = vpop.f32.mrf.mxu0
  %v671 = vpop.f32.mrf.mxu0
  %v672 = vadd.f32 %v520, %v671
  %v673 = vpop.f32.mrf.mxu0
  %674 = vmatprep.mubr.bf16.mxu0 0
  %675 = vmatmul.mubr.bf16.gmra.mxu0 %v492
  %v676 = vpop.f32.mrf.mxu0
  %v677 = vadd.f32 %v520, %v676
  %v678 = vpop.f32.mrf.mxu0
  %v679 = vpop.f32.mrf.mxu0
  %v680 = vadd.f32 %v520, %v679
  %v681 = vpop.f32.mrf.mxu0
  %682 = vmatprep.mubr.bf16.mxu0 0
  %683 = vmatmul.mubr.bf16.gmra.mxu0 %v493
  %v684 = vpop.f32.mrf.mxu0
  %v685 = vadd.f32 %v520, %v684
  %v686 = vpop.f32.mrf.mxu0
  %v687 = vpop.f32.mrf.mxu0
  %v688 = vadd.f32 %v520, %v687
  %v689 = vpop.f32.mrf.mxu0
  %690 = vmatprep.mubr.bf16.mxu0 0
  %691 = vmatmul.mubr.bf16.gmra.mxu0 %v494
  %v692 = vpop.f32.mrf.mxu0
  %v693 = vadd.f32 %v520, %v692
  %v694 = vpop.f32.mrf.mxu0
  %v695 = vpop.f32.mrf.mxu0
  %v696 = vadd.f32 %v520, %v695
  %v697 = vpop.f32.mrf.mxu0
  %698 = vmatprep.mubr.bf16.mxu0 0
  %699 = vmatmul.mubr.bf16.gmra.mxu0 %v495
  %v700 = vpop.f32.mrf.mxu0
  %v701 = vadd.f32 %v520, %v700
  %v702 = vpop.f32.mrf.mxu0
  %v703 = vpop.f32.mrf.mxu0
  %v704 = vadd.f32 %v520, %v703
  %v705 = vpop.f32.mrf.mxu0
  %706 = vmatprep.mubr.bf16.mxu0 0
  %707 = vmatmul.mubr.bf16.gmra.mxu0 %v496
  %v708 = vpop.f32.mrf.mxu0
  %v709 = vadd.f32 %v520, %v708
  %v710 = vpop.f32.mrf.mxu0
  %v711 = vpop.f32.mrf.mxu0
  %v712 = vadd.f32 %v520, %v711
  %v713 = vpop.f32.mrf.mxu0
  %714 = vmatprep.mubr.bf16.mxu0 0
  %715 = vmatmul.mubr.bf16.gmra.mxu0 %v497
  %v716 = vpop.f32.mrf.mxu0
  %v717 = vadd.f32 %v520, %v716
  %v718 = vpop.f32.mrf.mxu0
  %v719 = vpop.f32.mrf.mxu0
  %v720 = vadd.f32 %v520, %v719
  %v721 = vpop.f32.mrf.mxu0
  %722 = vmatprep.mubr.bf16.mxu0 0
  %723 = vmatmul.mubr.bf16.gmra.mxu0 %v498
  %v724 = vpop.f32.mrf.mxu0
  %v725 = vadd.f32 %v520, %v724
  %v726 = vpop.f32.mrf.mxu0
  %v727 = vpop.f32.mrf.mxu0
  %v728 = vadd.f32 %v520, %v727
  %v729 = vpop.f32.mrf.mxu0
  %730 = vdwg.mxu0
  %vm731 = vcmp.ge.f32.partialorder %v605, 0.0
  %vm732 = vcmp.ge.f32.partialorder %v608, 0.0
  %vm733 = vcmp.ge.f32.partialorder %v613, 0.0
  %vm734 = vcmp.ge.f32.partialorder %v616, 0.0
  %vm735 = vcmp.ge.f32.partialorder %v621, 0.0
  %vm736 = vcmp.ge.f32.partialorder %v624, 0.0
  %vm737 = vcmp.ge.f32.partialorder %v629, 0.0
  %vm738 = vcmp.ge.f32.partialorder %v632, 0.0
  %vm739 = vcmp.ge.f32.partialorder %v637, 0.0
  %vm740 = vcmp.ge.f32.partialorder %v640, 0.0
  %vm741 = vcmp.ge.f32.partialorder %v645, 0.0
  %vm742 = vcmp.ge.f32.partialorder %v648, 0.0
  %vm743 = vcmp.ge.f32.partialorder %v653, 0.0
  %vm744 = vcmp.ge.f32.partialorder %v656, 0.0
  %vm745 = vcmp.ge.f32.partialorder %v661, 0.0
  %vm746 = vcmp.ge.f32.partialorder %v664, 0.0
  %vm747 = vcmp.ge.f32.partialorder %v669, 0.0
  %vm748 = vcmp.ge.f32.partialorder %v672, 0.0
  %vm749 = vcmp.ge.f32.partialorder %v677, 0.0
  %vm750 = vcmp.ge.f32.partialorder %v680, 0.0
  %vm751 = vcmp.ge.f32.partialorder %v685, 0.0
  %vm752 = vcmp.ge.f32.partialorder %v688, 0.0
  %vm753 = vcmp.ge.f32.partialorder %v693, 0.0
  %vm754 = vcmp.ge.f32.partialorder %v696, 0.0
  %vm755 = vcmp.ge.f32.partialorder %v701, 0.0
  %vm756 = vcmp.ge.f32.partialorder %v704, 0.0
  %vm757 = vcmp.ge.f32.partialorder %v709, 0.0
  %vm758 = vcmp.ge.f32.partialorder %v712, 0.0
  %vm759 = vcmp.ge.f32.partialorder %v717, 0.0
  %vm760 = vcmp.ge.f32.partialorder %v720, 0.0
  %vm761 = vcmp.ge.f32.partialorder %v725, 0.0
  %vm762 = vcmp.ge.f32.partialorder %v728, 0.0
  %v763 = vmul.f32 %v605, 0.01
  %v764 = vmul.f32 %v608, 0.01
  %v765 = vmul.f32 %v613, 0.01
  %v766 = vmul.f32 %v616, 0.01
  %v767 = vmul.f32 %v621, 0.01
  %v768 = vmul.f32 %v624, 0.01
  %v769 = vmul.f32 %v629, 0.01
  %v770 = vmul.f32 %v632, 0.01
  %v771 = vmul.f32 %v637, 0.01
  %v772 = vmul.f32 %v640, 0.01
  %v773 = vmul.f32 %v645, 0.01
  %v774 = vmul.f32 %v648, 0.01
  %v775 = vmul.f32 %v653, 0.01
  %v776 = vmul.f32 %v656, 0.01
  %v777 = vmul.f32 %v661, 0.01
  %v778 = vmul.f32 %v664, 0.01
  %v779 = vmul.f32 %v669, 0.01
  %v780 = vmul.f32 %v672, 0.01
  %v781 = vmul.f32 %v677, 0.01
  %v782 = vmul.f32 %v680, 0.01
  %v783 = vmul.f32 %v685, 0.01
  %v784 = vmul.f32 %v688, 0.01
  %v785 = vmul.f32 %v693, 0.01
  %v786 = vmul.f32 %v696, 0.01
  %v787 = vmul.f32 %v701, 0.01
  %v788 = vmul.f32 %v704, 0.01
  %v789 = vmul.f32 %v709, 0.01
  %v790 = vmul.f32 %v712, 0.01
  %v791 = vmul.f32 %v717, 0.01
  %v792 = vmul.f32 %v720, 0.01
  %v793 = vmul.f32 %v725, 0.01
  %v794 = vmul.f32 %v728, 0.01
  %v795 = vsel %vm731, %v605, %v763
  %v796 = vsel %vm732, %v608, %v764
  %v797 = vsel %vm733, %v613, %v765
  %v798 = vsel %vm734, %v616, %v766
  %v799 = vsel %vm735, %v621, %v767
  %v800 = vsel %vm736, %v624, %v768
  %v801 = vsel %vm737, %v629, %v769
  %v802 = vsel %vm738, %v632, %v770
  %v803 = vsel %vm739, %v637, %v771
  %v804 = vsel %vm740, %v640, %v772
  %v805 = vsel %vm741, %v645, %v773
  %v806 = vsel %vm742, %v648, %v774
  %v807 = vsel %vm743, %v653, %v775
  %v808 = vsel %vm744, %v656, %v776
  %v809 = vsel %vm745, %v661, %v777
  %v810 = vsel %vm746, %v664, %v778
  %v811 = vsel %vm747, %v669, %v779
  %v812 = vsel %vm748, %v672, %v780
  %v813 = vsel %vm749, %v677, %v781
  %v814 = vsel %vm750, %v680, %v782
  %v815 = vsel %vm751, %v685, %v783
  %v816 = vsel %vm752, %v688, %v784
  %v817 = vsel %vm753, %v693, %v785
  %v818 = vsel %vm754, %v696, %v786
  %v819 = vsel %vm755, %v701, %v787
  %v820 = vsel %vm756, %v704, %v788
  %v821 = vsel %vm757, %v709, %v789
  %v822 = vsel %vm758, %v712, %v790
  %v823 = vsel %vm759, %v717, %v791
  %v824 = vsel %vm760, %v720, %v792
  %v825 = vsel %vm761, %v725, %v793
  %v826 = vsel %vm762, %v728, %v794
  %v827 = vld [vmem:[%s5] sm:$0x1]
  %v828 = vld [vmem:[%s6] sm:$0x1]
  %v829 = vlaneseq
  %v830 = vshrl.u32 %v829, 7
  %v831 = vadd.s32 %v830, 8
  %v832 = vadd.s32 %v830, 16
  %v833 = vadd.s32 %v830, 24
  %v834 = vadd.s32 %v830, 32
  %v835 = vadd.s32 %v830, 40
  %v836 = vadd.s32 %v830, 48
  %v837 = vadd.s32 %v830, 56
  %v838 = vadd.s32 %v830, 64
  %v839 = vadd.s32 %v830, 72
  %v840 = vadd.s32 %v830, 80
  %v841 = vadd.s32 %v830, 88
  %v842 = vadd.s32 %v830, 96
  %v843 = vadd.s32 %v830, 104
  %v844 = vadd.s32 %v830, 112
  %v845 = vadd.s32 %v830, 120
  %v846 = vadd.s32 %v830, 128
  %v847 = vadd.s32 %v830, 136
  %v848 = vadd.s32 %v830, 144
  %v849 = vadd.s32 %v830, 152
  %v850 = vadd.s32 %v830, 160
  %v851 = vadd.s32 %v830, 168
  %v852 = vadd.s32 %v830, 176
  %v853 = vadd.s32 %v830, 184
  %v854 = vadd.s32 %v830, 192
  %v855 = vadd.s32 %v830, 200
  %v856 = vadd.s32 %v830, 208
  %v857 = vadd.s32 %v830, 216
  %v858 = vadd.s32 %v830, 224
  %v859 = vadd.s32 %v830, 232
  %v860 = vadd.s32 %v830, 240
  %v861 = vadd.s32 %v830, 248
  %vm862 = vcmp.lt.s32.totalorder %v830, 250
  %vm863 = vcmp.lt.s32.totalorder %v831, 250
  %vm864 = vcmp.lt.s32.totalorder %v832, 250
  %vm865 = vcmp.lt.s32.totalorder %v833, 250
  %vm866 = vcmp.lt.s32.totalorder %v834, 250
  %vm867 = vcmp.lt.s32.totalorder %v835, 250
  %vm868 = vcmp.lt.s32.totalorder %v836, 250
  %vm869 = vcmp.lt.s32.totalorder %v837, 250
  %vm870 = vcmp.lt.s32.totalorder %v838, 250
  %vm871 = vcmp.lt.s32.totalorder %v839, 250
  %vm872 = vcmp.lt.s32.totalorder %v840, 250
  %vm873 = vcmp.lt.s32.totalorder %v841, 250
  %vm874 = vcmp.lt.s32.totalorder %v842, 250
  %vm875 = vcmp.lt.s32.totalorder %v843, 250
  %vm876 = vcmp.lt.s32.totalorder %v844, 250
  %vm877 = vcmp.lt.s32.totalorder %v845, 250
  %vm878 = vcmp.lt.s32.totalorder %v846, 250
  %vm879 = vcmp.lt.s32.totalorder %v847, 250
  %vm880 = vcmp.lt.s32.totalorder %v848, 250
  %vm881 = vcmp.lt.s32.totalorder %v849, 250
  %vm882 = vcmp.lt.s32.totalorder %v850, 250
  %vm883 = vcmp.lt.s32.totalorder %v851, 250
  %vm884 = vcmp.lt.s32.totalorder %v852, 250
  %vm885 = vcmp.lt.s32.totalorder %v853, 250
  %vm886 = vcmp.lt.s32.totalorder %v854, 250
  %vm887 = vcmp.lt.s32.totalorder %v855, 250
  %vm888 = vcmp.lt.s32.totalorder %v856, 250
  %vm889 = vcmp.lt.s32.totalorder %v857, 250
  %vm890 = vcmp.lt.s32.totalorder %v858, 250
  %vm891 = vcmp.lt.s32.totalorder %v859, 250
  %vm892 = vcmp.lt.s32.totalorder %v860, 250
  %vm893 = vcmp.lt.s32.totalorder %v861, 250
  %v894 = vsel %vm862, %v795, 0.0
  %v895 = vsel %vm863, %v796, 0.0
  %v896 = vsel %vm864, %v797, 0.0
  %v897 = vsel %vm865, %v798, 0.0
  %v898 = vsel %vm866, %v799, 0.0
  %v899 = vsel %vm867, %v800, 0.0
  %v900 = vsel %vm868, %v801, 0.0
  %v901 = vsel %vm869, %v802, 0.0
  %v902 = vsel %vm870, %v803, 0.0
  %v903 = vsel %vm871, %v804, 0.0
  %v904 = vsel %vm872, %v805, 0.0
  %v905 = vsel %vm873, %v806, 0.0
  %v906 = vsel %vm874, %v807, 0.0
  %v907 = vsel %vm875, %v808, 0.0
  %v908 = vsel %vm876, %v809, 0.0
  %v909 = vsel %vm877, %v810, 0.0
  %v910 = vsel %vm878, %v811, 0.0
  %v911 = vsel %vm879, %v812, 0.0
  %v912 = vsel %vm880, %v813, 0.0
  %v913 = vsel %vm881, %v814, 0.0
  %v914 = vsel %vm882, %v815, 0.0
  %v915 = vsel %vm883, %v816, 0.0
  %v916 = vsel %vm884, %v817, 0.0
  %v917 = vsel %vm885, %v818, 0.0
  %v918 = vsel %vm886, %v819, 0.0
  %v919 = vsel %vm887, %v820, 0.0
  %v920 = vsel %vm888, %v821, 0.0
  %v921 = vsel %vm889, %v822, 0.0
  %v922 = vsel %vm890, %v823, 0.0
  %v923 = vsel %vm891, %v824, 0.0
  %v924 = vsel %vm892, %v825, 0.0
  %v925 = vsel %vm893, %v826, 0.0
  %v926 = vadd.f32 %v894, %v895
  %v927 = vadd.f32 %v926, %v896
  %v928 = vadd.f32 %v927, %v897
  %v929 = vadd.f32 %v928, %v898
  %v930 = vadd.f32 %v929, %v899
  %v931 = vadd.f32 %v930, %v900
  %v932 = vadd.f32 %v931, %v901
  %v933 = vadd.f32 %v932, %v902
  %v934 = vadd.f32 %v933, %v903
  %v935 = vadd.f32 %v934, %v904
  %v936 = vadd.f32 %v935, %v905
  %v937 = vadd.f32 %v936, %v906
  %v938 = vadd.f32 %v937, %v907
  %v939 = vadd.f32 %v938, %v908
  %v940 = vadd.f32 %v939, %v909
  %v941 = vadd.f32 %v940, %v910
  %v942 = vadd.f32 %v941, %v911
  %v943 = vadd.f32 %v942, %v912
  %v944 = vadd.f32 %v943, %v913
  %v945 = vadd.f32 %v944, %v914
  %v946 = vadd.f32 %v945, %v915
  %v947 = vadd.f32 %v946, %v916
  %v948 = vadd.f32 %v947, %v917
  %v949 = vadd.f32 %v948, %v918
  %v950 = vadd.f32 %v949, %v919
  %v951 = vadd.f32 %v950, %v920
  %v952 = vadd.f32 %v951, %v921
  %v953 = vadd.f32 %v952, %v922
  %v954 = vadd.f32 %v953, %v923
  %v955 = vadd.f32 %v954, %v924
  %v956 = vadd.f32 %v955, %v925
  %v957 = vrot.slane %v956, 4
  %v958 = vadd.f32 %v956, %v957
  %v959 = vrot.slane %v958, 2
  %v960 = vadd.f32 %v958, %v959
  %v961 = vrot.slane %v960, 1
  %v962 = vadd.f32 %v960, %v961
  %v963 = vmul.f32 %v962, 0.004
  %v964 = vsub.f32 %v795, %v963
  %v965 = vsub.f32 %v796, %v963
  %v966 = vsub.f32 %v797, %v963
  %v967 = vsub.f32 %v798, %v963
  %v968 = vsub.f32 %v799, %v963
  %v969 = vsub.f32 %v800, %v963
  %v970 = vsub.f32 %v801, %v963
  %v971 = vsub.f32 %v802, %v963
  %v972 = vsub.f32 %v803, %v963
  %v973 = vsub.f32 %v804, %v963
  %v974 = vsub.f32 %v805, %v963
  %v975 = vsub.f32 %v806, %v963
  %v976 = vsub.f32 %v807, %v963
  %v977 = vsub.f32 %v808, %v963
  %v978 = vsub.f32 %v809, %v963
  %v979 = vsub.f32 %v810, %v963
  %v980 = vsub.f32 %v811, %v963
  %v981 = vsub.f32 %v812, %v963
  %v982 = vsub.f32 %v813, %v963
  %v983 = vsub.f32 %v814, %v963
  %v984 = vsub.f32 %v815, %v963
  %v985 = vsub.f32 %v816, %v963
  %v986 = vsub.f32 %v817, %v963
  %v987 = vsub.f32 %v818, %v963
  %v988 = vsub.f32 %v819, %v963
  %v989 = vsub.f32 %v820, %v963
  %v990 = vsub.f32 %v821, %v963
  %v991 = vsub.f32 %v822, %v963
  %v992 = vsub.f32 %v823, %v963
  %v993 = vsub.f32 %v824, %v963
  %v994 = vsub.f32 %v825, %v963
  %v995 = vsub.f32 %v826, %v963
  %v996 = vmul.f32 %v964, %v964
  %v997 = vmul.f32 %v965, %v965
  %v998 = vmul.f32 %v966, %v966
  %v999 = vmul.f32 %v967, %v967
  %v1000 = vmul.f32 %v968, %v968
  %v1001 = vmul.f32 %v969, %v969
  %v1002 = vmul.f32 %v970, %v970
  %v1003 = vmul.f32 %v971, %v971
  %v1004 = vmul.f32 %v972, %v972
  %v1005 = vmul.f32 %v973, %v973
  %v1006 = vmul.f32 %v974, %v974
  %v1007 = vmul.f32 %v975, %v975
  %v1008 = vmul.f32 %v976, %v976
  %v1009 = vmul.f32 %v977, %v977
  %v1010 = vmul.f32 %v978, %v978
  %v1011 = vmul.f32 %v979, %v979
  %v1012 = vmul.f32 %v980, %v980
  %v1013 = vmul.f32 %v981, %v981
  %v1014 = vmul.f32 %v982, %v982
  %v1015 = vmul.f32 %v983, %v983
  %v1016 = vmul.f32 %v984, %v984
  %v1017 = vmul.f32 %v985, %v985
  %v1018 = vmul.f32 %v986, %v986
  %v1019 = vmul.f32 %v987, %v987
  %v1020 = vmul.f32 %v988, %v988
  %v1021 = vmul.f32 %v989, %v989
  %v1022 = vmul.f32 %v990, %v990
  %v1023 = vmul.f32 %v991, %v991
  %v1024 = vmul.f32 %v992, %v992
  %v1025 = vmul.f32 %v993, %v993
  %v1026 = vmul.f32 %v994, %v994
  %v1027 = vmul.f32 %v995, %v995
  %v1028 = vsel %vm862, %v996, 0.0
  %v1029 = vsel %vm863, %v997, 0.0
  %v1030 = vsel %vm864, %v998, 0.0
  %v1031 = vsel %vm865, %v999, 0.0
  %v1032 = vsel %vm866, %v1000, 0.0
  %v1033 = vsel %vm867, %v1001, 0.0
  %v1034 = vsel %vm868, %v1002, 0.0
  %v1035 = vsel %vm869, %v1003, 0.0
  %v1036 = vsel %vm870, %v1004, 0.0
  %v1037 = vsel %vm871, %v1005, 0.0
  %v1038 = vsel %vm872, %v1006, 0.0
  %v1039 = vsel %vm873, %v1007, 0.0
  %v1040 = vsel %vm874, %v1008, 0.0
  %v1041 = vsel %vm875, %v1009, 0.0
  %v1042 = vsel %vm876, %v1010, 0.0
  %v1043 = vsel %vm877, %v1011, 0.0
  %v1044 = vsel %vm878, %v1012, 0.0
  %v1045 = vsel %vm879, %v1013, 0.0
  %v1046 = vsel %vm880, %v1014, 0.0
  %v1047 = vsel %vm881, %v1015, 0.0
  %v1048 = vsel %vm882, %v1016, 0.0
  %v1049 = vsel %vm883, %v1017, 0.0
  %v1050 = vsel %vm884, %v1018, 0.0
  %v1051 = vsel %vm885, %v1019, 0.0
  %v1052 = vsel %vm886, %v1020, 0.0
  %v1053 = vsel %vm887, %v1021, 0.0
  %v1054 = vsel %vm888, %v1022, 0.0
  %v1055 = vsel %vm889, %v1023, 0.0
  %v1056 = vsel %vm890, %v1024, 0.0
  %v1057 = vsel %vm891, %v1025, 0.0
  %v1058 = vsel %vm892, %v1026, 0.0
  %v1059 = vsel %vm893, %v1027, 0.0
  %v1060 = vadd.f32 %v1028, %v1029
  %v1061 = vadd.f32 %v1060, %v1030
  %v1062 = vadd.f32 %v1061, %v1031
  %v1063 = vadd.f32 %v1062, %v1032
  %v1064 = vadd.f32 %v1063, %v1033
  %v1065 = vadd.f32 %v1064, %v1034
  %v1066 = vadd.f32 %v1065, %v1035
  %v1067 = vadd.f32 %v1066, %v1036
  %v1068 = vadd.f32 %v1067, %v1037
  %v1069 = vadd.f32 %v1068, %v1038
  %v1070 = vadd.f32 %v1069, %v1039
  %v1071 = vadd.f32 %v1070, %v1040
  %v1072 = vadd.f32 %v1071, %v1041
  %v1073 = vadd.f32 %v1072, %v1042
  %v1074 = vadd.f32 %v1073, %v1043
  %v1075 = vadd.f32 %v1074, %v1044
  %v1076 = vadd.f32 %v1075, %v1045
  %v1077 = vadd.f32 %v1076, %v1046
  %v1078 = vadd.f32 %v1077, %v1047
  %v1079 = vadd.f32 %v1078, %v1048
  %v1080 = vadd.f32 %v1079, %v1049
  %v1081 = vadd.f32 %v1080, %v1050
  %v1082 = vadd.f32 %v1081, %v1051
  %v1083 = vadd.f32 %v1082, %v1052
  %v1084 = vadd.f32 %v1083, %v1053
  %v1085 = vadd.f32 %v1084, %v1054
  %v1086 = vadd.f32 %v1085, %v1055
  %v1087 = vadd.f32 %v1086, %v1056
  %v1088 = vadd.f32 %v1087, %v1057
  %v1089 = vadd.f32 %v1088, %v1058
  %v1090 = vadd.f32 %v1089, %v1059
  %v1091 = vrot.slane %v1090, 4
  %v1092 = vadd.f32 %v1090, %v1091
  %v1093 = vrot.slane %v1092, 2
  %v1094 = vadd.f32 %v1092, %v1093
  %v1095 = vrot.slane %v1094, 1
  %v1096 = vadd.f32 %v1094, %v1095
  %v1097 = vmul.f32 %v1096, 0.004
  %v1098 = vadd.f32 %v1097, 1e-05
  %v1099 = vrsqrt.pop %v1098
  %v1100 = vmul.f32 %v964, %v1099
  %v1101 = vmul.f32 %v965, %v1099
  %v1102 = vmul.f32 %v966, %v1099
  %v1103 = vmul.f32 %v967, %v1099
  %v1104 = vmul.f32 %v968, %v1099
  %v1105 = vmul.f32 %v969, %v1099
  %v1106 = vmul.f32 %v970, %v1099
  %v1107 = vmul.f32 %v971, %v1099
  %v1108 = vmul.f32 %v972, %v1099
  %v1109 = vmul.f32 %v973, %v1099
  %v1110 = vmul.f32 %v974, %v1099
  %v1111 = vmul.f32 %v975, %v1099
  %v1112 = vmul.f32 %v976, %v1099
  %v1113 = vmul.f32 %v977, %v1099
  %v1114 = vmul.f32 %v978, %v1099
  %v1115 = vmul.f32 %v979, %v1099
  %v1116 = vmul.f32 %v980, %v1099
  %v1117 = vmul.f32 %v981, %v1099
  %v1118 = vmul.f32 %v982, %v1099
  %v1119 = vmul.f32 %v983, %v1099
  %v1120 = vmul.f32 %v984, %v1099
  %v1121 = vmul.f32 %v985, %v1099
  %v1122 = vmul.f32 %v986, %v1099
  %v1123 = vmul.f32 %v987, %v1099
  %v1124 = vmul.f32 %v988, %v1099
  %v1125 = vmul.f32 %v989, %v1099
  %v1126 = vmul.f32 %v990, %v1099
  %v1127 = vmul.f32 %v991, %v1099
  %v1128 = vmul.f32 %v992, %v1099
  %v1129 = vmul.f32 %v993, %v1099
  %v1130 = vmul.f32 %v994, %v1099
  %v1131 = vmul.f32 %v995, %v1099
  %v1133 = vlaneseq
  %v1134 = vshrl.u32 %v1133, 7
  %v1135 = vsub.s32 0, %v1134
  %v1136 = vrot.slane %v827, %v1135
  %v1138 = vmul.f32 %v1100, %v1136
  %v1139 = vmul.f32 %v1101, %v1136
  %v1140 = vmul.f32 %v1102, %v1136
  %v1141 = vmul.f32 %v1103, %v1136
  %v1142 = vmul.f32 %v1104, %v1136
  %v1143 = vmul.f32 %v1105, %v1136
  %v1144 = vmul.f32 %v1106, %v1136
  %v1145 = vmul.f32 %v1107, %v1136
  %v1146 = vmul.f32 %v1108, %v1136
  %v1147 = vmul.f32 %v1109, %v1136
  %v1148 = vmul.f32 %v1110, %v1136
  %v1149 = vmul.f32 %v1111, %v1136
  %v1150 = vmul.f32 %v1112, %v1136
  %v1151 = vmul.f32 %v1113, %v1136
  %v1152 = vmul.f32 %v1114, %v1136
  %v1153 = vmul.f32 %v1115, %v1136
  %v1154 = vmul.f32 %v1116, %v1136
  %v1155 = vmul.f32 %v1117, %v1136
  %v1156 = vmul.f32 %v1118, %v1136
  %v1157 = vmul.f32 %v1119, %v1136
  %v1158 = vmul.f32 %v1120, %v1136
  %v1159 = vmul.f32 %v1121, %v1136
  %v1160 = vmul.f32 %v1122, %v1136
  %v1161 = vmul.f32 %v1123, %v1136
  %v1162 = vmul.f32 %v1124, %v1136
  %v1163 = vmul.f32 %v1125, %v1136
  %v1164 = vmul.f32 %v1126, %v1136
  %v1165 = vmul.f32 %v1127, %v1136
  %v1166 = vmul.f32 %v1128, %v1136
  %v1167 = vmul.f32 %v1129, %v1136
  %v1168 = vmul.f32 %v1130, %v1136
  %v1169 = vmul.f32 %v1131, %v1136
  %v1171 = vlaneseq
  %v1172 = vshrl.u32 %v1171, 7
  %v1173 = vsub.s32 0, %v1172
  %v1174 = vrot.slane %v828, %v1173
  %v1176 = vadd.f32 %v1138, %v1174
  %v1177 = vadd.f32 %v1139, %v1174
  %v1178 = vadd.f32 %v1140, %v1174
  %v1179 = vadd.f32 %v1141, %v1174
  %v1180 = vadd.f32 %v1142, %v1174
  %v1181 = vadd.f32 %v1143, %v1174
  %v1182 = vadd.f32 %v1144, %v1174
  %v1183 = vadd.f32 %v1145, %v1174
  %v1184 = vadd.f32 %v1146, %v1174
  %v1185 = vadd.f32 %v1147, %v1174
  %v1186 = vadd.f32 %v1148, %v1174
  %v1187 = vadd.f32 %v1149, %v1174
  %v1188 = vadd.f32 %v1150, %v1174
  %v1189 = vadd.f32 %v1151, %v1174
  %v1190 = vadd.f32 %v1152, %v1174
  %v1191 = vadd.f32 %v1153, %v1174
  %v1192 = vadd.f32 %v1154, %v1174
  %v1193 = vadd.f32 %v1155, %v1174
  %v1194 = vadd.f32 %v1156, %v1174
  %v1195 = vadd.f32 %v1157, %v1174
  %v1196 = vadd.f32 %v1158, %v1174
  %v1197 = vadd.f32 %v1159, %v1174
  %v1198 = vadd.f32 %v1160, %v1174
  %v1199 = vadd.f32 %v1161, %v1174
  %v1200 = vadd.f32 %v1162, %v1174
  %v1201 = vadd.f32 %v1163, %v1174
  %v1202 = vadd.f32 %v1164, %v1174
  %v1203 = vadd.f32 %v1165, %v1174
  %v1204 = vadd.f32 %v1166, %v1174
  %v1205 = vadd.f32 %v1167, %v1174
  %v1206 = vadd.f32 %v1168, %v1174
  %v1207 = vadd.f32 %v1169, %v1174
  %v1208 = vsel %vm862, %v1176, 0.0
  %v1209 = vsel %vm863, %v1177, 0.0
  %v1210 = vsel %vm864, %v1178, 0.0
  %v1211 = vsel %vm865, %v1179, 0.0
  %v1212 = vsel %vm866, %v1180, 0.0
  %v1213 = vsel %vm867, %v1181, 0.0
  %v1214 = vsel %vm868, %v1182, 0.0
  %v1215 = vsel %vm869, %v1183, 0.0
  %v1216 = vsel %vm870, %v1184, 0.0
  %v1217 = vsel %vm871, %v1185, 0.0
  %v1218 = vsel %vm872, %v1186, 0.0
  %v1219 = vsel %vm873, %v1187, 0.0
  %v1220 = vsel %vm874, %v1188, 0.0
  %v1221 = vsel %vm875, %v1189, 0.0
  %v1222 = vsel %vm876, %v1190, 0.0
  %v1223 = vsel %vm877, %v1191, 0.0
  %v1224 = vsel %vm878, %v1192, 0.0
  %v1225 = vsel %vm879, %v1193, 0.0
  %v1226 = vsel %vm880, %v1194, 0.0
  %v1227 = vsel %vm881, %v1195, 0.0
  %v1228 = vsel %vm882, %v1196, 0.0
  %v1229 = vsel %vm883, %v1197, 0.0
  %v1230 = vsel %vm884, %v1198, 0.0
  %v1231 = vsel %vm885, %v1199, 0.0
  %v1232 = vsel %vm886, %v1200, 0.0
  %v1233 = vsel %vm887, %v1201, 0.0
  %v1234 = vsel %vm888, %v1202, 0.0
  %v1235 = vsel %vm889, %v1203, 0.0
  %v1236 = vsel %vm890, %v1204, 0.0
  %v1237 = vsel %vm891, %v1205, 0.0
  %v1238 = vsel %vm892, %v1206, 0.0
  %v1239 = vsel %vm893, %v1207, 0.0
  %v1240 = vpack.c.bf16 %v1209, %v1208
  %v1241 = vpack.c.bf16 %v1211, %v1210
  %v1242 = vpack.c.bf16 %v1213, %v1212
  %v1243 = vpack.c.bf16 %v1215, %v1214
  %v1244 = vpack.c.bf16 %v1217, %v1216
  %v1245 = vpack.c.bf16 %v1219, %v1218
  %v1246 = vpack.c.bf16 %v1221, %v1220
  %v1247 = vpack.c.bf16 %v1223, %v1222
  %v1248 = vpack.c.bf16 %v1225, %v1224
  %v1249 = vpack.c.bf16 %v1227, %v1226
  %v1250 = vpack.c.bf16 %v1229, %v1228
  %v1251 = vpack.c.bf16 %v1231, %v1230
  %v1252 = vpack.c.bf16 %v1233, %v1232
  %v1253 = vpack.c.bf16 %v1235, %v1234
  %v1254 = vpack.c.bf16 %v1237, %v1236
  %v1255 = vpack.c.bf16 %v1239, %v1238
  %v1272 = vunpack.c.l.b16 %v1240
  %v1273 = vunpack.c.h.b16 %v1240
  %v1274 = vunpack.c.l.b16 %v1241
  %v1275 = vunpack.c.h.b16 %v1241
  %v1276 = vunpack.c.l.b16 %v1242
  %v1277 = vunpack.c.h.b16 %v1242
  %v1278 = vunpack.c.l.b16 %v1243
  %v1279 = vunpack.c.h.b16 %v1243
  %v1280 = vunpack.c.l.b16 %v1244
  %v1281 = vunpack.c.h.b16 %v1244
  %v1282 = vunpack.c.l.b16 %v1245
  %v1283 = vunpack.c.h.b16 %v1245
  %v1284 = vunpack.c.l.b16 %v1246
  %v1285 = vunpack.c.h.b16 %v1246
  %v1286 = vunpack.c.l.b16 %v1247
  %v1287 = vunpack.c.h.b16 %v1247
  %v1288 = vunpack.c.l.b16 %v1248
  %v1289 = vunpack.c.h.b16 %v1248
  %v1290 = vunpack.c.l.b16 %v1249
  %v1291 = vunpack.c.h.b16 %v1249
  %v1292 = vunpack.c.l.b16 %v1250
  %v1293 = vunpack.c.h.b16 %v1250
  %v1294 = vunpack.c.l.b16 %v1251
  %v1295 = vunpack.c.h.b16 %v1251
  %v1296 = vunpack.c.l.b16 %v1252
  %v1297 = vunpack.c.h.b16 %v1252
  %v1298 = vunpack.c.l.b16 %v1253
  %v1299 = vunpack.c.h.b16 %v1253
  %v1300 = vunpack.c.l.b16 %v1254
  %v1301 = vunpack.c.h.b16 %v1254
  %v1302 = vunpack.c.l.b16 %v1255
  %v1303 = vunpack.c.h.b16 %v1255
  %v1304 = vpack.c.b16 %v1272, %v1272
  %v1305 = vpack.c.b16 %v1273, %v1273
  %v1306 = vpack.c.b16 %v1274, %v1274
  %v1307 = vpack.c.b16 %v1275, %v1275
  %v1308 = vpack.c.b16 %v1276, %v1276
  %v1309 = vpack.c.b16 %v1277, %v1277
  %v1310 = vpack.c.b16 %v1278, %v1278
  %v1311 = vpack.c.b16 %v1279, %v1279
  %v1312 = vpack.c.b16 %v1280, %v1280
  %v1313 = vpack.c.b16 %v1281, %v1281
  %v1314 = vpack.c.b16 %v1282, %v1282
  %v1315 = vpack.c.b16 %v1283, %v1283
  %v1316 = vpack.c.b16 %v1284, %v1284
  %v1317 = vpack.c.b16 %v1285, %v1285
  %v1318 = vpack.c.b16 %v1286, %v1286
  %v1319 = vpack.c.b16 %v1287, %v1287
  %v1320 = vpack.c.b16 %v1288, %v1288
  %v1321 = vpack.c.b16 %v1289, %v1289
  %v1322 = vpack.c.b16 %v1290, %v1290
  %v1323 = vpack.c.b16 %v1291, %v1291
  %v1324 = vpack.c.b16 %v1292, %v1292
  %v1325 = vpack.c.b16 %v1293, %v1293
  %v1326 = vpack.c.b16 %v1294, %v1294
  %v1327 = vpack.c.b16 %v1295, %v1295
  %v1328 = vpack.c.b16 %v1296, %v1296
  %v1329 = vpack.c.b16 %v1297, %v1297
  %v1330 = vpack.c.b16 %v1298, %v1298
  %v1331 = vpack.c.b16 %v1299, %v1299
  %v1332 = vpack.c.b16 %v1300, %v1300
  %v1333 = vpack.c.b16 %v1301, %v1301
  %v1334 = vpack.c.b16 %v1302, %v1302
  %v1335 = vpack.c.b16 %v1303, %v1303
  %1368 = vst [vmem:[%s7] sm:$0xf] %v1304
  %1369 = vst [vmem:[%s7 + $0x4] sm:$0xf] %v1305
  %1370 = vst [vmem:[%s7 + $0x8] sm:$0xf] %v1306
  %1371 = vst [vmem:[%s7 + $0xc] sm:$0xf] %v1307
  %1372 = vst [vmem:[%s7 + $0x10] sm:$0xf] %v1308
  %1373 = vst [vmem:[%s7 + $0x14] sm:$0xf] %v1309
  %1374 = vst [vmem:[%s7 + $0x18] sm:$0xf] %v1310
  %1375 = vst [vmem:[%s7 + $0x1c] sm:$0xf] %v1311
  %1376 = vst [vmem:[%s7 + $0x20] sm:$0xf] %v1312
  %1377 = vst [vmem:[%s7 + $0x24] sm:$0xf] %v1313
  %1378 = vst [vmem:[%s7 + $0x28] sm:$0xf] %v1314
  %1379 = vst [vmem:[%s7 + $0x2c] sm:$0xf] %v1315
  %1380 = vst [vmem:[%s7 + $0x30] sm:$0xf] %v1316
  %1381 = vst [vmem:[%s7 + $0x34] sm:$0xf] %v1317
  %1382 = vst [vmem:[%s7 + $0x38] sm:$0xf] %v1318
  %1383 = vst [vmem:[%s7 + $0x3c] sm:$0xf] %v1319
  %1384 = vst [vmem:[%s7 + $0x40] sm:$0xf] %v1320
  %1385 = vst [vmem:[%s7 + $0x44] sm:$0xf] %v1321
  %1386 = vst [vmem:[%s7 + $0x48] sm:$0xf] %v1322
  %1387 = vst [vmem:[%s7 + $0x4c] sm:$0xf] %v1323
  %1388 = vst [vmem:[%s7 + $0x50] sm:$0xf] %v1324
  %1389 = vst [vmem:[%s7 + $0x54] sm:$0xf] %v1325
  %1390 = vst [vmem:[%s7 + $0x58] sm:$0xf] %v1326
  %1391 = vst [vmem:[%s7 + $0x5c] sm:$0xf] %v1327
  %1392 = vst [vmem:[%s7 + $0x60] sm:$0xf] %v1328
  %1393 = vst [vmem:[%s7 + $0x64] sm:$0xf] %v1329
  %1394 = vst [vmem:[%s7 + $0x68] sm:$0xf] %v1330
  %1395 = vst [vmem:[%s7 + $0x6c] sm:$0xf] %v1331
  %1396 = vst [vmem:[%s7 + $0x70] sm:$0xf] %v1332
  %1397 = vst [vmem:[%s7 + $0x74] sm:$0xf] %v1333
  %1398 = vst [vmem:[%s7 + $0x78] sm:$0xf] %v1334
  %1399 = vst [vmem:[%s7 + $0x7c] sm:$0xf] %v1335
  // Predicated region
  $region30: #{attention_prop_forward.3} parent=0 // pred_check
    _
  $region31: #{attention_prop_forward.3} parent=0 // pred_check_branch
    %1401 = sbr.rel (0) target = $region33
  $region32: #{attention_prop_forward.3} parent=0 // pred_region
    _
  $region33: #{attention_prop_forward.3} parent=0 // pred_fallthru
    _
  // Predicated region
  $region34: #{attention_prop_forward.3} parent=0 // pred_check
    _
  $region35: #{attention_prop_forward.3} parent=0 // pred_check_branch
    %1403 = sbr.rel (0) target = $region37
  $region36: #{attention_prop_forward.3} parent=0 // pred_region
    _
  $region37: #{attention_prop_forward.3} parent=0 // pred_fallthru
    _

// kernel: attention_prop_forward.5
$region0: #{attention_prop_forward.5}
  #allocation0 [shape = 'u32[]', space=smem, size = 0x4, offset = 0x4, fixed_abs, tag = 'smem constant byte address 0x4 - core index']
  #allocation1 [shape = 'u32[144,128]{1,0:T(1,128)}', space=vmem, size = 0x12000, scoped, tag = 'internal scratch']
  #allocation2 [shape = 'f32[128,128]{1,0:T(8,128)}', space=vmem, size = 0x10000, scoped, tag = 'scratch operand']
  #allocation3 [shape = 'f32[128,128]{1,0:T(8,128)}', space=vmem, size = 0x10000, scoped, tag = 'scratch operand']
  %s0 = inlined_call_operand.vmem [shape: bf16[256,128], index: 0, kind: input, shape index: {}]
  %s1 = inlined_call_operand.vmem [shape: bf16[768,128], index: 1, kind: input, shape index: {}]
  %s2 = inlined_call_operand.vmem [shape: bf16[768,128], index: 2, kind: input, shape index: {}]
  %s3 = inlined_call_operand.vmem [shape: s8[256,768], index: 3, kind: input, shape index: {}]
  %s4 = inlined_call_operand.vmem [shape: f32[1,768], index: 4, kind: input, shape index: {}]
  %s5 = inlined_call_operand.vmem [shape: f32[256,128], index: 5, kind: output, shape index: {}]
  %s6 = sld [smem:[#allocation0]]
  $region84: #{attention_prop_forward.5} parent=0
    _
  %s8 = ssub.s32 1, %s6
  %s9 = scalar_select 0, %s8, %s6
  $region1: #{attention_prop_forward.5} parent=0
    #allocation4 [shape = 'u8[98304]{0}', space=vmem, size = 0x18000, scoped, tag = 'input window, operand 3']
    loop: start=0, step=1, limit=6
    $region2: #{attention_prop_forward.5} parent=1 // loop_pre_header
      _
    $region3: #{attention_prop_forward.5} parent=1 // loop_header
      %s11 = sphi 0, %s15
      %p12 = scmp.ge.s32.totalorder %s11, 6
      %s18 = sphi 0, %s30
      %s19 = sphi 0, %s26
      %s20 = sphi 0, %s18
      %s21 = sphi 0, %s19
      %s22 = sphi 0, %s20
      %s23 = sphi 0, %s21
      %s33 = sphi 0, %s35
      %s36 = sphi 0, %s33
      %s37 = sphi 0, %s36
      %s53 = sphi 0, %s37
      %s57 = sphi 0, %s57
      %s59 = sphi 0, %s57
      %s60 = sphi 0, %s59
      %s74 = sphi 0, %s60
      %s78 = sphi 0, %s78
      %s80 = sphi 0, %s78
      %s81 = sphi 0, %s80
      %s95 = sphi 0, %s81
      %s103 = sphi 0, %s105
      %s106 = sphi 0, %s103
      %s107 = sphi 0, %s106
      %s123 = sphi 0, %s107
      %s129 = sphi 0, %s131
      %s132 = sphi 0, %s129
      %s133 = sphi 0, %s132
      %s149 = sphi 0, %s133
      %s155 = sphi 0, %s157
      %s158 = sphi 0, %s155
      %s159 = sphi 0, %s158
      %s175 = sphi 0, %s159
    $region4: #{attention_prop_forward.5} parent=1 // loop_header_branch
      %14 = sbr.rel (%p12) target = $region8
    $region5: #{attention_prop_forward.5} parent=1 // loop_body
      %s16 = ssub.s32 %s11, 1
      %s17 = ssub.s32 %s11, 2
      %s24 = sadd.s32 1, %s19
      %p25 = scmp.ge.s32.totalorder %s24, 2
      %s26 = scalar_select %p25, 0, %s24
      %s27 = sadd.s32 1, %s18
      %s28 = scalar_select %p25, %s27, %s18
      %p29 = scmp.ge.s32.totalorder %s28, 2
      %s30 = scalar_select %p29, 0, %s28
      %s31 = ssub.s32 %s18, %s30
      %p32 = scmp.eq.s32.totalorder %s31, 0
      %s34 = sadd.s32 %s33, 1
      %s35 = scalar_select %p32, %s33, %s34
      %p38 = pneg %p32
      %p39 = scmp.eq.s32.totalorder %s11, 3
      %p40 = por %p38, %p39
      %p41 = scmp.ne.s32.totalorder %s33, %s36
      %p42 = scmp.eq.s32.totalorder %s11, 0
      %p43 = por %p41, %p42
      %p44 = scmp.ne.s32.totalorder %s33, %s36
      %p45 = scmp.eq.s32.totalorder %s16, 3
      %p46 = por %p44, %p45
      %p47 = scmp.ne.s32.totalorder %s36, %s37
      %p48 = scmp.eq.s32.totalorder %s16, 0
      %p49 = por %p47, %p48
      %p50 = scmp.ne.s32.totalorder %s36, %s37
      %p51 = scmp.eq.s32.totalorder %s17, 3
      %p52 = por %p50, %p51
      %p54 = scmp.ne.s32.totalorder %s37, %s53
      %p55 = scmp.eq.s32.totalorder %s17, 0
      %p56 = por %p54, %p55
      %s58 = sadd.s32 %s57, 1
      %p61 = scmp.eq.s32.totalorder %s11, 3
      %p62 = scmp.ne.s32.totalorder %s57, %s59
      %p63 = scmp.eq.s32.totalorder %s11, 0
      %p64 = por %p62, %p63
      %p65 = scmp.ne.s32.totalorder %s57, %s59
      %p66 = scmp.eq.s32.totalorder %s16, 3
      %p67 = por %p65, %p66
      %p68 = scmp.ne.s32.totalorder %s59, %s60
      %p69 = scmp.eq.s32.totalorder %s16, 0
      %p70 = por %p68, %p69
      %p71 = scmp.ne.s32.totalorder %s59, %s60
      %p72 = scmp.eq.s32.totalorder %s17, 3
      %p73 = por %p71, %p72
      %p75 = scmp.ne.s32.totalorder %s60, %s74
      %p76 = scmp.eq.s32.totalorder %s17, 0
      %p77 = por %p75, %p76
      %s79 = sadd.s32 %s78, 1
      %p82 = scmp.eq.s32.totalorder %s11, 3
      %p83 = scmp.ne.s32.totalorder %s78, %s80
      %p84 = scmp.eq.s32.totalorder %s11, 0
      %p85 = por %p83, %p84
      %p86 = scmp.ne.s32.totalorder %s78, %s80
      %p87 = scmp.eq.s32.totalorder %s16, 3
      %p88 = por %p86, %p87
      %p89 = scmp.ne.s32.totalorder %s80, %s81
      %p90 = scmp.eq.s32.totalorder %s16, 0
      %p91 = por %p89, %p90
      %p92 = scmp.ne.s32.totalorder %s80, %s81
      %p93 = scmp.eq.s32.totalorder %s17, 3
      %p94 = por %p92, %p93
      %p96 = scmp.ne.s32.totalorder %s81, %s95
      %p97 = scmp.eq.s32.totalorder %s17, 0
      %p98 = por %p96, %p97
      %s99 = ssub.s32 %s18, %s30
      %s100 = ssub.s32 %s19, %s26
      %s101 = sor.u32 %s99, %s100
      %p102 = scmp.eq.s32.totalorder %s101, 0
      %s104 = sadd.s32 %s103, 1
      %s105 = scalar_select %p102, %s103, %s104
      %p108 = pneg %p102
      %p109 = scmp.eq.s32.totalorder %s11, 3
      %p110 = por %p108, %p109
      %p111 = scmp.ne.s32.totalorder %s103, %s106
      %p112 = scmp.eq.s32.totalorder %s11, 0
      %p113 = por %p111, %p112
      %p114 = scmp.ne.s32.totalorder %s103, %s106
      %p115 = scmp.eq.s32.totalorder %s16, 3
      %p116 = por %p114, %p115
      %p117 = scmp.ne.s32.totalorder %s106, %s107
      %p118 = scmp.eq.s32.totalorder %s16, 0
      %p119 = por %p117, %p118
      %p120 = scmp.ne.s32.totalorder %s106, %s107
      %p121 = scmp.eq.s32.totalorder %s17, 3
      %p122 = por %p120, %p121
      %p124 = scmp.ne.s32.totalorder %s107, %s123
      %p125 = scmp.eq.s32.totalorder %s17, 0
      %p126 = por %p124, %p125
      %s127 = ssub.s32 %s19, %s26
      %p128 = scmp.eq.s32.totalorder %s127, 0
      %s130 = sadd.s32 %s129, 1
      %s131 = scalar_select %p128, %s129, %s130
      %p134 = pneg %p128
      %p135 = scmp.eq.s32.totalorder %s11, 3
      %p136 = por %p134, %p135
      %p137 = scmp.ne.s32.totalorder %s129, %s132
      %p138 = scmp.eq.s32.totalorder %s11, 0
      %p139 = por %p137, %p138
      %p140 = scmp.ne.s32.totalorder %s129, %s132
      %p141 = scmp.eq.s32.totalorder %s16, 3
      %p142 = por %p140, %p141
      %p143 = scmp.ne.s32.totalorder %s132, %s133
      %p144 = scmp.eq.s32.totalorder %s16, 0
      %p145 = por %p143, %p144
      %p146 = scmp.ne.s32.totalorder %s132, %s133
      %p147 = scmp.eq.s32.totalorder %s17, 3
      %p148 = por %p146, %p147
      %p150 = scmp.ne.s32.totalorder %s133, %s149
      %p151 = scmp.eq.s32.totalorder %s17, 0
      %p152 = por %p150, %p151
      %s153 = ssub.s32 %s18, %s30
      %p154 = scmp.eq.s32.totalorder %s153, 0
      %s156 = sadd.s32 %s155, 1
      %s157 = scalar_select %p154, %s155, %s156
      %p160 = pneg %p154
      %p161 = scmp.eq.s32.totalorder %s11, 3
      %p162 = por %p160, %p161
      %p163 = scmp.ne.s32.totalorder %s155, %s158
      %p164 = scmp.eq.s32.totalorder %s11, 0
      %p165 = por %p163, %p164
      %p166 = scmp.ne.s32.totalorder %s155, %s158
      %p167 = scmp.eq.s32.totalorder %s16, 3
      %p168 = por %p166, %p167
      %p169 = scmp.ne.s32.totalorder %s158, %s159
      %p170 = scmp.eq.s32.totalorder %s16, 0
      %p171 = por %p169, %p170
      %p172 = scmp.ne.s32.totalorder %s158, %s159
      %p173 = scmp.eq.s32.totalorder %s17, 3
      %p174 = por %p172, %p173
      %p176 = scmp.ne.s32.totalorder %s159, %s175
      %p177 = scmp.eq.s32.totalorder %s17, 0
      %p178 = por %p176, %p177
      %p179 = scmp.le.s32.totalorder 1, %s11
      %p180 = scmp.lt.s32.totalorder %s11, 5
      %p181 = pnand %p179, %p180
      %p182 = pneg %p181
      // Predicated region
      $region9: #{attention_prop_forward.5} parent=5 // pred_check
        _
      $region10: #{attention_prop_forward.5} parent=5 // pred_check_branch
        %184 = sbr.rel (%p181) target = $region12
      $region11: #{attention_prop_forward.5} parent=5 // pred_region
        %s185 = ssub.s32 %s11, 1
        // Predicated region
        $region13: #{attention_prop_forward.5} parent=11 // pred_check
          %p186 = pneg %p70
        $region14: #{attention_prop_forward.5} parent=11 // pred_check_branch
          %188 = sbr.rel (%p186) target = $region16
        $region15: #{attention_prop_forward.5} parent=11 // pred_region
          _
        $region16: #{attention_prop_forward.5} parent=11 // pred_fallthru
          _
        // Predicated region
        $region17: #{attention_prop_forward.5} parent=11 // pred_check
          %p189 = pneg %p91
        $region18: #{attention_prop_forward.5} parent=11 // pred_check_branch
          %191 = sbr.rel (%p189) target = $region20
        $region19: #{attention_prop_forward.5} parent=11 // pred_region
          _
        $region20: #{attention_prop_forward.5} parent=11 // pred_fallthru
          _
      $region12: #{attention_prop_forward.5} parent=5 // pred_fallthru
        _
      %p192 = scmp.lt.s32.totalorder %s11, 4
      // Predicated region
      $region21: #{attention_prop_forward.5} parent=5 // pred_check
        %p193 = pneg %p192
      $region22: #{attention_prop_forward.5} parent=5 // pred_check_branch
        %195 = sbr.rel (%p193) target = $region24
      $region23: #{attention_prop_forward.5} parent=5 // pred_region
        // Predicated region
        $region25: #{attention_prop_forward.5} parent=23 // pred_check
          %p196 = pneg %p43
        $region26: #{attention_prop_forward.5} parent=23 // pred_check_branch
          %198 = sbr.rel (%p196) target = $region28
        $region27: #{attention_prop_forward.5} parent=23 // pred_region
          %s199 = smul.u32 16, %s18
          %p200 = scmp.lt.s32.totalorder %s199, 31
          %s201 = scalar_select %p200, %s199, 31
          %s202 = smul.addr %s201, 4
          %s203 = scalar_lea.vmem %s0, %s202
          %s204 = smul.u32 16, %s18
        $region28: #{attention_prop_forward.5} parent=23 // pred_fallthru
          _
        // Predicated region
        $region29: #{attention_prop_forward.5} parent=23 // pred_check
          %p205 = pneg %p113
        $region30: #{attention_prop_forward.5} parent=23 // pred_check_branch
          %207 = sbr.rel (%p205) target = $region32
        $region31: #{attention_prop_forward.5} parent=23 // pred_region
          %s208 = sand.u32 %s103, 1
          %s209 = sand.u32 %s103, 1
          %s210 = smul.addr %s209, 96
          %s211 = scalar_lea.vmem [#allocation4], %s210
          %s212 = smul.u32 4, %s18
          %s213 = smul.u32 3, %s19
          %s214 = smul.addr %s212, 6
          %s215 = sadd.s32 %s213, %s214
          %s216 = smul.addr %s215, 8
          %s217 = scalar_lea.vmem %s3, %s216
          // Predicated region
          $region33: #{attention_prop_forward.5} parent=31 // pred_check
            _
          $region34: #{attention_prop_forward.5} parent=31 // pred_check_branch
            %219 = sbr.rel (0) target = $region36
          $region35: #{attention_prop_forward.5} parent=31 // pred_region
            // Predicated region
            $region37: #{attention_prop_forward.5} parent=35 // pred_check
              _
            $region38: #{attention_prop_forward.5} parent=35 // pred_check_branch
              %221 = sbr.rel (0) target = $region40
            $region39: #{attention_prop_forward.5} parent=35 // pred_region
              loop: start=0, step=1, limit=1
              $region41: #{attention_prop_forward.5} parent=39 // loop_pre_header
                _
              $region42: #{attention_prop_forward.5} parent=39 // loop_header
                %s223 = sphi 0, %s227
                %p224 = scmp.ge.s32.totalorder %s223, 1
                %s228 = sphi %s217, %s217
                %s229 = sphi %s211, %s211
              $region43: #{attention_prop_forward.5} parent=39 // loop_header_branch
                %226 = sbr.rel (%p224) target = $region47
              $region44: #{attention_prop_forward.5} parent=39 // loop_body
                %v230 = vld [vmem:[%s228] sm:$0xff]
                %231 = vst [vmem:[%s229] sm:$0xff] %v230
                %v232 = vld [vmem:[%s228 + $0x8] sm:$0xff]
                %233 = vst [vmem:[%s229 + $0x8] sm:$0xff] %v232
                %v234 = vld [vmem:[%s228 + $0x10] sm:$0xff]
                %235 = vst [vmem:[%s229 + $0x10] sm:$0xff] %v234
                %v236 = vld [vmem:[%s228 + $0x30] sm:$0xff]
                %237 = vst [vmem:[%s229 + $0x18] sm:$0xff] %v236
                %v238 = vld [vmem:[%s228 + $0x38] sm:$0xff]
                %239 = vst [vmem:[%s229 + $0x20] sm:$0xff] %v238
                %v240 = vld [vmem:[%s228 + $0x40] sm:$0xff]
                %241 = vst [vmem:[%s229 + $0x28] sm:$0xff] %v240
                %v242 = vld [vmem:[%s228 + $0x60] sm:$0xff]
                %243 = vst [vmem:[%s229 + $0x30] sm:$0xff] %v242
                %v244 = vld [vmem:[%s228 + $0x68] sm:$0xff]
                %245 = vst [vmem:[%s229 + $0x38] sm:$0xff] %v244
                %v246 = vld [vmem:[%s228 + $0x70] sm:$0xff]
                %247 = vst [vmem:[%s229 + $0x40] sm:$0xff] %v246
                %v248 = vld [vmem:[%s228 + $0x90] sm:$0xff]
                %249 = vst [vmem:[%s229 + $0x48] sm:$0xff] %v248
                %v250 = vld [vmem:[%s228 + $0x98] sm:$0xff]
                %251 = vst [vmem:[%s229 + $0x50] sm:$0xff] %v250
                %v252 = vld [vmem:[%s228 + $0xa0] sm:$0xff]
                %253 = vst [vmem:[%s229 + $0x58] sm:$0xff] %v252
              $region45: #{attention_prop_forward.5} parent=39 // loop_footer
                %s227 = sadd.s32 1, %s223
              $region46: #{attention_prop_forward.5} parent=39 // loop_footer_branch
                %222 = sbr.rel target = $region42
              $region47: #{attention_prop_forward.5} parent=39 // loop_exit
                _
            $region40: #{attention_prop_forward.5} parent=35 // pred_fallthru
              _
            // Predicated region
            $region48: #{attention_prop_forward.5} parent=35 // pred_check
              _
            $region49: #{attention_prop_forward.5} parent=35 // pred_check_branch
              %255 = sbr.rel target = $region51
            $region50: #{attention_prop_forward.5} parent=35 // pred_region
              _
            $region51: #{attention_prop_forward.5} parent=35 // pred_fallthru
              _
          $region36: #{attention_prop_forward.5} parent=31 // pred_fallthru
            _
          %256 = vnop
        $region32: #{attention_prop_forward.5} parent=23 // pred_fallthru
          _
        // Predicated region
        $region52: #{attention_prop_forward.5} parent=23 // pred_check
          %p257 = pneg %p139
        $region53: #{attention_prop_forward.5} parent=23 // pred_check_branch
          %259 = sbr.rel (%p257) target = $region55
        $region54: #{attention_prop_forward.5} parent=23 // pred_region
          %s260 = smul.u32 3, %s19
          %p261 = scmp.lt.s32.totalorder %s260, 5
          %s262 = scalar_select %p261, %s260, 5
          %s263 = scalar_lea.vmem %s4, %s262
          %s264 = smul.u32 3, %s19
        $region55: #{attention_prop_forward.5} parent=23 // pred_fallthru
          _
      $region24: #{attention_prop_forward.5} parent=5 // pred_fallthru
        _
      %p265 = scmp.le.s32.totalorder 1, %s11
      %p266 = scmp.lt.s32.totalorder %s11, 5
      %p267 = pnand %p265, %p266
      %p268 = pneg %p267
      // Predicated region
      $region56: #{attention_prop_forward.5} parent=5 // pred_check
        _
      $region57: #{attention_prop_forward.5} parent=5 // pred_check_branch
        %270 = sbr.rel (%p267) target = $region59
      $region58: #{attention_prop_forward.5} parent=5 // pred_region
        %s271 = ssub.s32 %s11, 1
        %s272 = sand.u32 %s106, 1
        %s273 = sand.u32 %s106, 1
        %s274 = smul.addr %s273, 96
        %s275 = scalar_lea.vmem [#allocation4], %s274
        // Predicated region
        $region60: #{attention_prop_forward.5} parent=58 // pred_check
          %p276 = pneg %p119
        $region61: #{attention_prop_forward.5} parent=58 // pred_check_branch
          %278 = sbr.rel (%p276) target = $region63
        $region62: #{attention_prop_forward.5} parent=58 // pred_region
          _
        $region63: #{attention_prop_forward.5} parent=58 // pred_fallthru
          _
        %s279 = smul.u32 16, %s20
        %p280 = scmp.lt.s32.totalorder %s279, 31
        %s281 = scalar_select %p280, %s279, 31
        %s282 = smul.addr %s281, 4
        %s283 = scalar_lea.vmem %s0, %s282
        %p284 = pneg %p49
        %p285 = pneg %p46
        %p286 = pneg %p70
        %p287 = pneg %p67
        %p288 = pneg %p91
        %p289 = pneg %p88
        %s290 = sand.u32 %s106, 1
        %s291 = sand.u32 %s106, 1
        %s292 = smul.addr %s291, 96
        %s293 = scalar_lea.vmem [#allocation4], %s292
        %p294 = pneg %p119
        %p295 = pneg %p116
        %s296 = smul.u32 3, %s21
        %p297 = scmp.lt.s32.totalorder %s296, 5
        %s298 = scalar_select %p297, %s296, 5
        %s299 = scalar_lea.vmem %s4, %s298
        %p300 = pneg %p145
        %p301 = pneg %p142
        %p302 = pneg %p171
        %p303 = pneg %p168
        %s304 = smul.u32 16, %s20
        %p305 = scmp.lt.s32.totalorder %s304, 31
        %s306 = scalar_select %p305, %s304, 31
        %s307 = smul.addr %s306, 8
        %s308 = scalar_lea.vmem %s5, %s307
        %s309 = smul.u32 16, %s20
        %p310 = scmp.lt.s32.totalorder %s309, 31
        %s311 = scalar_select %p310, %s309, 31
        %s312 = smul.addr %s311, 4
        %s313 = scalar_lea.vmem %s0, %s312
        %s314 = smul.u32 16, %s20
        %s315 = smul.u32 4, %s20
        %s316 = smul.u32 3, %s21
        %s317 = smul.u32 3, %s21
        %p318 = scmp.lt.s32.totalorder %s317, 5
        %s319 = scalar_select %p318, %s317, 5
        %s320 = scalar_lea.vmem %s4, %s319
        %s321 = smul.u32 3, %s21
        %s322 = smul.u32 16, %s20
        %p323 = scmp.lt.s32.totalorder %s322, 31
        %s324 = scalar_select %p323, %s322, 31
        %s325 = smul.addr %s324, 8
        %s326 = scalar_lea.vmem %s5, %s325
        %s327 = smul.u32 16, %s20
        %p329 = scmp.eq.s32.totalorder %s21, 0
        // Predicated region
        $region64: #{attention_prop_forward.5} parent=58 // pred_check
          %p330 = pneg %p329
        $region65: #{attention_prop_forward.5} parent=58 // pred_check_branch
          %332 = sbr.rel (%p330) target = $region67
        $region66: #{attention_prop_forward.5} parent=58 // pred_region
          %333 = vst [vmem:[#allocation2] sm:$0xff] -inf
          %334 = vst [vmem:[#allocation2 + $0x8] sm:$0xff] -inf
          %335 = vst [vmem:[#allocation2 + $0x10] sm:$0xff] -inf
          %336 = vst [vmem:[#allocation2 + $0x18] sm:$0xff] -inf
          %337 = vst [vmem:[#allocation2 + $0x20] sm:$0xff] -inf
          %338 = vst [vmem:[#allocation2 + $0x28] sm:$0xff] -inf
          %339 = vst [vmem:[#allocation2 + $0x30] sm:$0xff] -inf
          %340 = vst [vmem:[#allocation2 + $0x38] sm:$0xff] -inf
          %341 = vst [vmem:[#allocation2 + $0x40] sm:$0xff] -inf
          %342 = vst [vmem:[#allocation2 + $0x48] sm:$0xff] -inf
          %343 = vst [vmem:[#allocation2 + $0x50] sm:$0xff] -inf
          %344 = vst [vmem:[#allocation2 + $0x58] sm:$0xff] -inf
          %345 = vst [vmem:[#allocation2 + $0x60] sm:$0xff] -inf
          %346 = vst [vmem:[#allocation2 + $0x68] sm:$0xff] -inf
          %347 = vst [vmem:[#allocation2 + $0x70] sm:$0xff] -inf
          %348 = vst [vmem:[#allocation2 + $0x78] sm:$0xff] -inf
          %349 = vst [vmem:[#allocation3] sm:$0xff] 0.0
          %350 = vst [vmem:[#allocation3 + $0x8] sm:$0xff] 0.0
          %351 = vst [vmem:[#allocation3 + $0x10] sm:$0xff] 0.0
          %352 = vst [vmem:[#allocation3 + $0x18] sm:$0xff] 0.0
          %353 = vst [vmem:[#allocation3 + $0x20] sm:$0xff] 0.0
          %354 = vst [vmem:[#allocation3 + $0x28] sm:$0xff] 0.0
          %355 = vst [vmem:[#allocation3 + $0x30] sm:$0xff] 0.0
          %356 = vst [vmem:[#allocation3 + $0x38] sm:$0xff] 0.0
          %357 = vst [vmem:[#allocation3 + $0x40] sm:$0xff] 0.0
          %358 = vst [vmem:[#allocation3 + $0x48] sm:$0xff] 0.0
          %359 = vst [vmem:[#allocation3 + $0x50] sm:$0xff] 0.0
          %360 = vst [vmem:[#allocation3 + $0x58] sm:$0xff] 0.0
          %361 = vst [vmem:[#allocation3 + $0x60] sm:$0xff] 0.0
          %362 = vst [vmem:[#allocation3 + $0x68] sm:$0xff] 0.0
          %363 = vst [vmem:[#allocation3 + $0x70] sm:$0xff] 0.0
          %364 = vst [vmem:[#allocation3 + $0x78] sm:$0xff] 0.0
          %365 = vst [vmem:[%s326] sm:$0xff] 0.0
          %366 = vst [vmem:[%s326 + $0x8] sm:$0xff] 0.0
          %367 = vst [vmem:[%s326 + $0x10] sm:$0xff] 0.0
          %368 = vst [vmem:[%s326 + $0x18] sm:$0xff] 0.0
          %369 = vst [vmem:[%s326 + $0x20] sm:$0xff] 0.0
          %370 = vst [vmem:[%s326 + $0x28] sm:$0xff] 0.0
          %371 = vst [vmem:[%s326 + $0x30] sm:$0xff] 0.0
          %372 = vst [vmem:[%s326 + $0x38] sm:$0xff] 0.0
          %373 = vst [vmem:[%s326 + $0x40] sm:$0xff] 0.0
          %374 = vst [vmem:[%s326 + $0x48] sm:$0xff] 0.0
          %375 = vst [vmem:[%s326 + $0x50] sm:$0xff] 0.0
          %376 = vst [vmem:[%s326 + $0x58] sm:$0xff] 0.0
          %377 = vst [vmem:[%s326 + $0x60] sm:$0xff] 0.0
          %378 = vst [vmem:[%s326 + $0x68] sm:$0xff] 0.0
          %379 = vst [vmem:[%s326 + $0x70] sm:$0xff] 0.0
          %380 = vst [vmem:[%s326 + $0x78] sm:$0xff] 0.0
        $region67: #{attention_prop_forward.5} parent=58 // pred_fallthru
          _
        %s381 = smul.u32 %s21, 384
        %s382 = sshra.s32 %s381, 3
        %s383 = sand.u32 %s381, 7
        %s384 = smul.addr %s382, 4
        %s385 = scalar_lea.vmem %s1, %s384
        %v386 = vld [vmem:[%s385] sm:$0xf]
        %v387 = vld [vmem:[%s385 + $0x4] sm:$0xf]
        %v388 = vld [vmem:[%s385 + $0x8] sm:$0xf]
        %v389 = vld [vmem:[%s385 + $0xc] sm:$0xf]
        %v390 = vld [vmem:[%s385 + $0x10] sm:$0xf]
        %v391 = vld [vmem:[%s385 + $0x14] sm:$0xf]
        %v392 = vld [vmem:[%s385 + $0x18] sm:$0xf]
        %v393 = vld [vmem:[%s385 + $0x1c] sm:$0xf]
        %v394 = vld [vmem:[%s385 + $0x20] sm:$0xf]
        %v395 = vld [vmem:[%s385 + $0x24] sm:$0xf]
        %v396 = vld [vmem:[%s385 + $0x28] sm:$0xf]
        %v397 = vld [vmem:[%s385 + $0x2c] sm:$0xf]
        %v398 = vld [vmem:[%s385 + $0x30] sm:$0xf]
        %v399 = vld [vmem:[%s385 + $0x34] sm:$0xf]
        %v400 = vld [vmem:[%s385 + $0x38] sm:$0xf]
        %v401 = vld [vmem:[%s385 + $0x3c] sm:$0xf]
        %v402 = vld [vmem:[%s385 + $0x40] sm:$0xf]
        %v403 = vld [vmem:[%s385 + $0x44] sm:$0xf]
        %v404 = vld [vmem:[%s385 + $0x48] sm:$0xf]
        %v405 = vld [vmem:[%s385 + $0x4c] sm:$0xf]
        %v406 = vld [vmem:[%s385 + $0x50] sm:$0xf]
        %v407 = vld [vmem:[%s385 + $0x54] sm:$0xf]
        %v408 = vld [vmem:[%s385 + $0x58] sm:$0xf]
        %v409 = vld [vmem:[%s385 + $0x5c] sm:$0xf]
        %v410 = vld [vmem:[%s385 + $0x60] sm:$0xf]
        %v411 = vld [vmem:[%s385 + $0x64] sm:$0xf]
        %v412 = vld [vmem:[%s385 + $0x68] sm:$0xf]
        %v413 = vld [vmem:[%s385 + $0x6c] sm:$0xf]
        %v414 = vld [vmem:[%s385 + $0x70] sm:$0xf]
        %v415 = vld [vmem:[%s385 + $0x74] sm:$0xf]
        %v416 = vld [vmem:[%s385 + $0x78] sm:$0xf]
        %v417 = vld [vmem:[%s385 + $0x7c] sm:$0xf]
        %v418 = vld [vmem:[%s385 + $0x80] sm:$0xf]
        %v419 = vld [vmem:[%s385 + $0x84] sm:$0xf]
        %v420 = vld [vmem:[%s385 + $0x88] sm:$0xf]
        %v421 = vld [vmem:[%s385 + $0x8c] sm:$0xf]
        %v422 = vld [vmem:[%s385 + $0x90] sm:$0xf]
        %v423 = vld [vmem:[%s385 + $0x94] sm:$0xf]
        %v424 = vld [vmem:[%s385 + $0x98] sm:$0xf]
        %v425 = vld [vmem:[%s385 + $0x9c] sm:$0xf]
        %v426 = vld [vmem:[%s385 + $0xa0] sm:$0xf]
        %v427 = vld [vmem:[%s385 + $0xa4] sm:$0xf]
        %v428 = vld [vmem:[%s385 + $0xa8] sm:$0xf]
        %v429 = vld [vmem:[%s385 + $0xac] sm:$0xf]
        %v430 = vld [vmem:[%s385 + $0xb0] sm:$0xf]
        %v431 = vld [vmem:[%s385 + $0xb4] sm:$0xf]
        %v432 = vld [vmem:[%s385 + $0xb8] sm:$0xf]
        %v433 = vld [vmem:[%s385 + $0xbc] sm:$0xf]
        %s434 = smul.addr %s382, 4
        %s435 = scalar_lea.vmem %s2, %s434
        %v436 = vld [vmem:[%s435] sm:$0xf]
        %v437 = vld [vmem:[%s435 + $0x4] sm:$0xf]
        %v438 = vld [vmem:[%s435 + $0x8] sm:$0xf]
        %v439 = vld [vmem:[%s435 + $0xc] sm:$0xf]
        %v440 = vld [vmem:[%s435 + $0x10] sm:$0xf]
        %v441 = vld [vmem:[%s435 + $0x14] sm:$0xf]
        %v442 = vld [vmem:[%s435 + $0x18] sm:$0xf]
        %v443 = vld [vmem:[%s435 + $0x1c] sm:$0xf]
        %v444 = vld [vmem:[%s435 + $0x20] sm:$0xf]
        %v445 = vld [vmem:[%s435 + $0x24] sm:$0xf]
        %v446 = vld [vmem:[%s435 + $0x28] sm:$0xf]
        %v447 = vld [vmem:[%s435 + $0x2c] sm:$0xf]
        %v448 = vld [vmem:[%s435 + $0x30] sm:$0xf]
        %v449 = vld [vmem:[%s435 + $0x34] sm:$0xf]
        %v450 = vld [vmem:[%s435 + $0x38] sm:$0xf]
        %v451 = vld [vmem:[%s435 + $0x3c] sm:$0xf]
        %v452 = vld [vmem:[%s435 + $0x40] sm:$0xf]
        %v453 = vld [vmem:[%s435 + $0x44] sm:$0xf]
        %v454 = vld [vmem:[%s435 + $0x48] sm:$0xf]
        %v455 = vld [vmem:[%s435 + $0x4c] sm:$0xf]
        %v456 = vld [vmem:[%s435 + $0x50] sm:$0xf]
        %v457 = vld [vmem:[%s435 + $0x54] sm:$0xf]
        %v458 = vld [vmem:[%s435 + $0x58] sm:$0xf]
        %v459 = vld [vmem:[%s435 + $0x5c] sm:$0xf]
        %v460 = vld [vmem:[%s435 + $0x60] sm:$0xf]
        %v461 = vld [vmem:[%s435 + $0x64] sm:$0xf]
        %v462 = vld [vmem:[%s435 + $0x68] sm:$0xf]
        %v463 = vld [vmem:[%s435 + $0x6c] sm:$0xf]
        %v464 = vld [vmem:[%s435 + $0x70] sm:$0xf]
        %v465 = vld [vmem:[%s435 + $0x74] sm:$0xf]
        %v466 = vld [vmem:[%s435 + $0x78] sm:$0xf]
        %v467 = vld [vmem:[%s435 + $0x7c] sm:$0xf]
        %v468 = vld [vmem:[%s435 + $0x80] sm:$0xf]
        %v469 = vld [vmem:[%s435 + $0x84] sm:$0xf]
        %v470 = vld [vmem:[%s435 + $0x88] sm:$0xf]
        %v471 = vld [vmem:[%s435 + $0x8c] sm:$0xf]
        %v472 = vld [vmem:[%s435 + $0x90] sm:$0xf]
        %v473 = vld [vmem:[%s435 + $0x94] sm:$0xf]
        %v474 = vld [vmem:[%s435 + $0x98] sm:$0xf]
        %v475 = vld [vmem:[%s435 + $0x9c] sm:$0xf]
        %v476 = vld [vmem:[%s435 + $0xa0] sm:$0xf]
        %v477 = vld [vmem:[%s435 + $0xa4] sm:$0xf]
        %v478 = vld [vmem:[%s435 + $0xa8] sm:$0xf]
        %v479 = vld [vmem:[%s435 + $0xac] sm:$0xf]
        %v480 = vld [vmem:[%s435 + $0xb0] sm:$0xf]
        %v481 = vld [vmem:[%s435 + $0xb4] sm:$0xf]
        %v482 = vld [vmem:[%s435 + $0xb8] sm:$0xf]
        %v483 = vld [vmem:[%s435 + $0xbc] sm:$0xf]
        %v484 = vld [vmem:[%s313] sm:$0xf]
        %v485 = vld [vmem:[%s313 + $0x4] sm:$0xf]
        %v486 = vld [vmem:[%s313 + $0x8] sm:$0xf]
        %v487 = vld [vmem:[%s313 + $0xc] sm:$0xf]
        %v488 = vld [vmem:[%s313 + $0x10] sm:$0xf]
        %v489 = vld [vmem:[%s313 + $0x14] sm:$0xf]
        %v490 = vld [vmem:[%s313 + $0x18] sm:$0xf]
        %v491 = vld [vmem:[%s313 + $0x1c] sm:$0xf]
        %v492 = vld [vmem:[%s313 + $0x20] sm:$0xf]
        %v493 = vld [vmem:[%s313 + $0x24] sm:$0xf]
        %v494 = vld [vmem:[%s313 + $0x28] sm:$0xf]
        %v495 = vld [vmem:[%s313 + $0x2c] sm:$0xf]
        %v496 = vld [vmem:[%s313 + $0x30] sm:$0xf]
        %v497 = vld [vmem:[%s313 + $0x34] sm:$0xf]
        %v498 = vld [vmem:[%s313 + $0x38] sm:$0xf]
        %v499 = vld [vmem:[%s313 + $0x3c] sm:$0xf]
        %v516 = vunpack.c.l.b16 %v484
        %v517 = vunpack.c.l.b16 %v485
        %v518 = vunpack.c.l.b16 %v486
        %v519 = vunpack.c.l.b16 %v487
        %v520 = vunpack.c.l.b16 %v488
        %v521 = vunpack.c.l.b16 %v489
        %v522 = vunpack.c.l.b16 %v490
        %v523 = vunpack.c.l.b16 %v491
        %v524 = vunpack.c.l.b16 %v492
        %v525 = vunpack.c.l.b16 %v493
        %v526 = vunpack.c.l.b16 %v494
        %v527 = vunpack.c.l.b16 %v495
        %v528 = vunpack.c.l.b16 %v496
        %v529 = vunpack.c.l.b16 %v497
        %v530 = vunpack.c.l.b16 %v498
        %v531 = vunpack.c.l.b16 %v499
        %v532 = vpack.c.b16 %v517, %v516
        %v533 = vpack.c.b16 %v519, %v518
        %v534 = vpack.c.b16 %v521, %v520
        %v535 = vpack.c.b16 %v523, %v522
        %v536 = vpack.c.b16 %v525, %v524
        %v537 = vpack.c.b16 %v527, %v526
        %v538 = vpack.c.b16 %v529, %v528
        %v539 = vpack.c.b16 %v531, %v530
        %v596 = vunpack.c.l.b16 %v386
        %v597 = vunpack.c.l.b16 %v387
        %v598 = vunpack.c.l.b16 %v388
        %v599 = vunpack.c.l.b16 %v389
        %v600 = vunpack.c.l.b16 %v390
        %v601 = vunpack.c.l.b16 %v391
        %v602 = vunpack.c.l.b16 %v392
        %v603 = vunpack.c.l.b16 %v393
        %v604 = vunpack.c.l.b16 %v394
        %v605 = vunpack.c.l.b16 %v395
        %v606 = vunpack.c.l.b16 %v396
        %v607 = vunpack.c.l.b16 %v397
        %v608 = vunpack.c.l.b16 %v398
        %v609 = vunpack.c.l.b16 %v399
        %v610 = vunpack.c.l.b16 %v400
        %v611 = vunpack.c.l.b16 %v401
        %v612 = vunpack.c.l.b16 %v402
        %v613 = vunpack.c.l.b16 %v403
        %v614 = vunpack.c.l.b16 %v404
        %v615 = vunpack.c.l.b16 %v405
        %v616 = vunpack.c.l.b16 %v406
        %v617 = vunpack.c.l.b16 %v407
        %v618 = vunpack.c.l.b16 %v408
        %v619 = vunpack.c.l.b16 %v409
        %v620 = vunpack.c.l.b16 %v410
        %v621 = vunpack.c.l.b16 %v411
        %v622 = vunpack.c.l.b16 %v412
        %v623 = vunpack.c.l.b16 %v413
        %v624 = vunpack.c.l.b16 %v414
        %v625 = vunpack.c.l.b16 %v415
        %v626 = vunpack.c.l.b16 %v416
        %v627 = vunpack.c.l.b16 %v417
        %v628 = vunpack.c.l.b16 %v418
        %v629 = vunpack.c.l.b16 %v419
        %v630 = vunpack.c.l.b16 %v420
        %v631 = vunpack.c.l.b16 %v421
        %v632 = vunpack.c.l.b16 %v422
        %v633 = vunpack.c.l.b16 %v423
        %v634 = vunpack.c.l.b16 %v424
        %v635 = vunpack.c.l.b16 %v425
        %v636 = vunpack.c.l.b16 %v426
        %v637 = vunpack.c.l.b16 %v427
        %v638 = vunpack.c.l.b16 %v428
        %v639 = vunpack.c.l.b16 %v429
        %v640 = vunpack.c.l.b16 %v430
        %v641 = vunpack.c.l.b16 %v431
        %v642 = vunpack.c.l.b16 %v432
        %v643 = vunpack.c.l.b16 %v433
        %v644 = vpack.c.b16 %v597, %v596
        %v645 = vpack.c.b16 %v599, %v598
        %v646 = vpack.c.b16 %v601, %v600
        %v647 = vpack.c.b16 %v603, %v602
        %v648 = vpack.c.b16 %v605, %v604
        %v649 = vpack.c.b16 %v607, %v606
        %v650 = vpack.c.b16 %v609, %v608
        %v651 = vpack.c.b16 %v611, %v610
        %v652 = vpack.c.b16 %v613, %v612
        %v653 = vpack.c.b16 %v615, %v614
        %v654 = vpack.c.b16 %v617, %v616
        %v655 = vpack.c.b16 %v619, %v618
        %v656 = vpack.c.b16 %v621, %v620
        %v657 = vpack.c.b16 %v623, %v622
        %v658 = vpack.c.b16 %v625, %v624
        %v659 = vpack.c.b16 %v627, %v626
        %v660 = vpack.c.b16 %v629, %v628
        %v661 = vpack.c.b16 %v631, %v630
        %v662 = vpack.c.b16 %v633, %v632
        %v663 = vpack.c.b16 %v635, %v634
        %v664 = vpack.c.b16 %v637, %v636
        %v665 = vpack.c.b16 %v639, %v638
        %v666 = vpack.c.b16 %v641, %v640
        %v667 = vpack.c.b16 %v643, %v642
        %692 = vmatprep.subr.bf16.mxu0 0
        %693 = vmatpush1.bf16.xpose.msra.mxu0 %v651
        %694 = vmatprep.subr.bf16.mxu0 0
        %695 = vmatpush1.bf16.xpose.msra.mxu0 %v650
        %696 = vmatprep.subr.bf16.mxu0 0
        %697 = vmatpush1.bf16.xpose.msra.mxu0 %v649
        %698 = vmatprep.subr.bf16.mxu0 0
        %699 = vmatpush1.bf16.xpose.msra.mxu0 %v648
        %700 = vmatprep.subr.bf16.mxu0 0
        %701 = vmatpush1.bf16.xpose.msra.mxu0 %v647
        %702 = vmatprep.subr.bf16.mxu0 0
        %703 = vmatpush1.bf16.xpose.msra.mxu0 %v646
        %704 = vmatprep.subr.bf16.mxu0 0
        %705 = vmatpush1.bf16.xpose.msra.mxu0 %v645
        %706 = vmatprep.subr.bf16.mxu0 0
        %707 = vmatpush1.bf16.xpose.msra.mxu0 %v644
        %708 = vmatprep.subr.bf16.mxu0 0
        %709 = vmatpush2.bf16.xpose.msra.mxu0 %v659
        %710 = vmatprep.subr.bf16.mxu0 0
        %711 = vmatpush2.bf16.xpose.msra.mxu0 %v658
        %712 = vmatprep.subr.bf16.mxu0 0
        %713 = vmatpush2.bf16.xpose.msra.mxu0 %v657
        %714 = vmatprep.subr.bf16.mxu0 0
        %715 = vmatpush2.bf16.xpose.msra.mxu0 %v656
        %716 = vmatprep.subr.bf16.mxu0 0
        %717 = vmatpush2.bf16.xpose.msra.mxu0 %v655
        %718 = vmatprep.subr.bf16.mxu0 0
        %719 = vmatpush2.bf16.xpose.msra.mxu0 %v654
        %720 = vmatprep.subr.bf16.mxu0 0
        %721 = vmatpush2.bf16.xpose.msra.mxu0 %v653
        %722 = vmatprep.subr.bf16.mxu0 0
        %723 = vmatpush2.bf16.xpose.msra.mxu0 %v652
        %724 = vmatprep.mubr.bf16.mxu0 0
        %725 = vmatmul.mubr.bf16.gmra.mxu0 %v532
        %v726 = vpop.f32.mrf.mxu0
        %v727 = vadd.f32 0.0, %v726
        %v728 = vpop.f32.mrf.mxu0
        %v729 = vadd.f32 0.0, %v728
        %v730 = vpop.f32.mrf.mxu0
        %v731 = vadd.f32 0.0, %v730
        %v732 = vpop.f32.mrf.mxu0
        %v733 = vadd.f32 0.0, %v732
        %734 = vmatprep.mubr.bf16.mxu0 0
        %735 = vmatmul.mubr.bf16.gmra.mxu0 %v533
        %v736 = vpop.f32.mrf.mxu0
        %v737 = vadd.f32 0.0, %v736
        %v738 = vpop.f32.mrf.mxu0
        %v739 = vadd.f32 0.0, %v738
        %v740 = vpop.f32.mrf.mxu0
        %v741 = vadd.f32 0.0, %v740
        %v742 = vpop.f32.mrf.mxu0
        %v743 = vadd.f32 0.0, %v742
        %744 = vmatprep.mubr.bf16.mxu0 0
        %745 = vmatmul.mubr.bf16.gmra.mxu0 %v534
        %v746 = vpop.f32.mrf.mxu0
        %v747 = vadd.f32 0.0, %v746
        %v748 = vpop.f32.mrf.mxu0
        %v749 = vadd.f32 0.0, %v748
        %v750 = vpop.f32.mrf.mxu0
        %v751 = vadd.f32 0.0, %v750
        %v752 = vpop.f32.mrf.mxu0
        %v753 = vadd.f32 0.0, %v752
        %754 = vmatprep.mubr.bf16.mxu0 0
        %755 = vmatmul.mubr.bf16.gmra.mxu0 %v535
        %v756 = vpop.f32.mrf.mxu0
        %v757 = vadd.f32 0.0, %v756
        %v758 = vpop.f32.mrf.mxu0
        %v759 = vadd.f32 0.0, %v758
        %v760 = vpop.f32.mrf.mxu0
        %v761 = vadd.f32 0.0, %v760
        %v762 = vpop.f32.mrf.mxu0
        %v763 = vadd.f32 0.0, %v762
        %764 = vmatprep.mubr.bf16.mxu0 0
        %765 = vmatmul.mubr.bf16.gmra.mxu0 %v536
        %v766 = vpop.f32.mrf.mxu0
        %v767 = vadd.f32 0.0, %v766
        %v768 = vpop.f32.mrf.mxu0
        %v769 = vadd.f32 0.0, %v768
        %v770 = vpop.f32.mrf.mxu0
        %v771 = vadd.f32 0.0, %v770
        %v772 = vpop.f32.mrf.mxu0
        %v773 = vadd.f32 0.0, %v772
        %774 = vmatprep.mubr.bf16.mxu0 0
        %775 = vmatmul.mubr.bf16.gmra.mxu0 %v537
        %v776 = vpop.f32.mrf.mxu0
        %v777 = vadd.f32 0.0, %v776
        %v778 = vpop.f32.mrf.mxu0
        %v779 = vadd.f32 0.0, %v778
        %v780 = vpop.f32.mrf.mxu0
        %v781 = vadd.f32 0.0, %v780
        %v782 = vpop.f32.mrf.mxu0
        %v783 = vadd.f32 0.0, %v782
        %784 = vmatprep.mubr.bf16.mxu0 0
        %785 = vmatmul.mubr.bf16.gmra.mxu0 %v538
        %v786 = vpop.f32.mrf.mxu0
        %v787 = vadd.f32 0.0, %v786
        %v788 = vpop.f32.mrf.mxu0
        %v789 = vadd.f32 0.0, %v788
        %v790 = vpop.f32.mrf.mxu0
        %v791 = vadd.f32 0.0, %v790
        %v792 = vpop.f32.mrf.mxu0
        %v793 = vadd.f32 0.0, %v792
        %794 = vmatprep.mubr.bf16.mxu0 0
        %795 = vmatmul.mubr.bf16.gmra.mxu0 %v539
        %v796 = vpop.f32.mrf.mxu0
        %v797 = vadd.f32 0.0, %v796
        %v798 = vpop.f32.mrf.mxu0
        %v799 = vadd.f32 0.0, %v798
        %v800 = vpop.f32.mrf.mxu0
        %v801 = vadd.f32 0.0, %v800
        %v802 = vpop.f32.mrf.mxu0
        %v803 = vadd.f32 0.0, %v802
        %804 = vdwg.mxu0
        %805 = vmatprep.subr.bf16.mxu0 0
        %806 = vmatpush1.bf16.xpose.msra.mxu0 %v667
        %807 = vmatprep.subr.bf16.mxu0 0
        %808 = vmatpush1.bf16.xpose.msra.mxu0 %v666
        %809 = vmatprep.subr.bf16.mxu0 0
        %810 = vmatpush1.bf16.xpose.msra.mxu0 %v665
        %811 = vmatprep.subr.bf16.mxu0 0
        %812 = vmatpush1.bf16.xpose.msra.mxu0 %v664
        %813 = vmatprep.subr.bf16.mxu0 0
        %814 = vmatpush1.bf16.xpose.msra.mxu0 %v663
        %815 = vmatprep.subr.bf16.mxu0 0
        %816 = vmatpush1.bf16.xpose.msra.mxu0 %v662
        %817 = vmatprep.subr.bf16.mxu0 0
        %818 = vmatpush1.bf16.xpose.msra.mxu0 %v661
        %819 = vmatprep.subr.bf16.mxu0 0
        %820 = vmatpush1.bf16.xpose.msra.mxu0 %v660
        %821 = vmatprep.subr.bf16.mxu0 0
        %822 = vmatpush2.bf16.xpose.msra.mxu0 0
        %823 = vmatprep.subr.bf16.mxu0 0
        %824 = vmatpush2.bf16.xpose.msra.mxu0 0
        %825 = vmatprep.subr.bf16.mxu0 0
        %826 = vmatpush2.bf16.xpose.msra.mxu0 0
        %827 = vmatprep.subr.bf16.mxu0 0
        %828 = vmatpush2.bf16.xpose.msra.mxu0 0
        %829 = vmatprep.subr.bf16.mxu0 0
        %830 = vmatpush2.bf16.xpose.msra.mxu0 0
        %831 = vmatprep.subr.bf16.mxu0 0
        %832 = vmatpush2.bf16.xpose.msra.mxu0 0
        %833 = vmatprep.subr.bf16.mxu0 0
        %834 = vmatpush2.bf16.xpose.msra.mxu0 0
        %835 = vmatprep.subr.bf16.mxu0 0
        %836 = vmatpush2.bf16.xpose.msra.mxu0 0
        %837 = vmatprep.mubr.bf16.mxu0 0
        %838 = vmatmul.mubr.bf16.gmra.mxu0 %v532
        %v839 = vpop.f32.mrf.mxu0
        %v840 = vadd.f32 0.0, %v839
        %v841 = vpop.f32.mrf.mxu0
        %v842 = vpop.f32.mrf.mxu0
        %v843 = vadd.f32 0.0, %v842
        %v844 = vpop.f32.mrf.mxu0
        %845 = vmatprep.mubr.bf16.mxu0 0
        %846 = vmatmul.mubr.bf16.gmra.mxu0 %v533
        %v847 = vpop.f32.mrf.mxu0
        %v848 = vadd.f32 0.0, %v847
        %v849 = vpop.f32.mrf.mxu0
        %v850 = vpop.f32.mrf.mxu0
        %v851 = vadd.f32 0.0, %v850
        %v852 = vpop.f32.mrf.mxu0
        %853 = vmatprep.mubr.bf16.mxu0 0
        %854 = vmatmul.mubr.bf16.gmra.mxu0 %v534
        %v855 = vpop.f32.mrf.mxu0
        %v856 = vadd.f32 0.0, %v855
        %v857 = vpop.f32.mrf.mxu0
        %v858 = vpop.f32.mrf.mxu0
        %v859 = vadd.f32 0.0, %v858
        %v860 = vpop.f32.mrf.mxu0
        %861 = vmatprep.mubr.bf16.mxu0 0
        %862 = vmatmul.mubr.bf16.gmra.mxu0 %v535
        %v863 = vpop.f32.mrf.mxu0
        %v864 = vadd.f32 0.0, %v863
        %v865 = vpop.f32.mrf.mxu0
        %v866 = vpop.f32.mrf.mxu0
        %v867 = vadd.f32 0.0, %v866
        %v868 = vpop.f32.mrf.mxu0
        %869 = vmatprep.mubr.bf16.mxu0 0
        %870 = vmatmul.mubr.bf16.gmra.mxu0 %v536
        %v871 = vpop.f32.mrf.mxu0
        %v872 = vadd.f32 0.0, %v871
        %v873 = vpop.f32.mrf.mxu0
        %v874 = vpop.f32.mrf.mxu0
        %v875 = vadd.f32 0.0, %v874
        %v876 = vpop.f32.mrf.mxu0
        %877 = vmatprep.mubr.bf16.mxu0 0
        %878 = vmatmul.mubr.bf16.gmra.mxu0 %v537
        %v879 = vpop.f32.mrf.mxu0
        %v880 = vadd.f32 0.0, %v879
        %v881 = vpop.f32.mrf.mxu0
        %v882 = vpop.f32.mrf.mxu0
        %v883 = vadd.f32 0.0, %v882
        %v884 = vpop.f32.mrf.mxu0
        %885 = vmatprep.mubr.bf16.mxu0 0
        %886 = vmatmul.mubr.bf16.gmra.mxu0 %v538
        %v887 = vpop.f32.mrf.mxu0
        %v888 = vadd.f32 0.0, %v887
        %v889 = vpop.f32.mrf.mxu0
        %v890 = vpop.f32.mrf.mxu0
        %v891 = vadd.f32 0.0, %v890
        %v892 = vpop.f32.mrf.mxu0
        %893 = vmatprep.mubr.bf16.mxu0 0
        %894 = vmatmul.mubr.bf16.gmra.mxu0 %v539
        %v895 = vpop.f32.mrf.mxu0
        %v896 = vadd.f32 0.0, %v895
        %v897 = vpop.f32.mrf.mxu0
        %v898 = vpop.f32.mrf.mxu0
        %v899 = vadd.f32 0.0, %v898
        %v900 = vpop.f32.mrf.mxu0
        %901 = vdwg.mxu0
        %v902 = vld [vmem:[%s275] sm:$0xff]
        %v903 = vld [vmem:[%s275 + $0x8] sm:$0xff]
        %v904 = vld [vmem:[%s275 + $0x10] sm:$0xff]
        %v905 = vld [vmem:[%s275 + $0x18] sm:$0xff]
        %v906 = vld [vmem:[%s275 + $0x20] sm:$0xff]
        %v907 = vld [vmem:[%s275 + $0x28] sm:$0xff]
        %v908 = vld [vmem:[%s275 + $0x30] sm:$0xff]
        %v909 = vld [vmem:[%s275 + $0x38] sm:$0xff]
        %v910 = vld [vmem:[%s275 + $0x40] sm:$0xff]
        %v911 = vld [vmem:[%s275 + $0x48] sm:$0xff]
        %v912 = vld [vmem:[%s275 + $0x50] sm:$0xff]
        %v913 = vld [vmem:[%s275 + $0x58] sm:$0xff]
        %v914 = vunpack.c.0.s8 %v902
        %v915 = vunpack.c.0.s8 %v903
        %v916 = vunpack.c.0.s8 %v904
        %v917 = vunpack.c.1.s8 %v902
        %v918 = vunpack.c.1.s8 %v903
        %v919 = vunpack.c.1.s8 %v904
        %v920 = vunpack.c.2.s8 %v902
        %v921 = vunpack.c.2.s8 %v903
        %v922 = vunpack.c.2.s8 %v904
        %v923 = vunpack.c.3.s8 %v902
        %v924 = vunpack.c.3.s8 %v903
        %v925 = vunpack.c.3.s8 %v904
        %v926 = vunpack.c.0.s8 %v905
        %v927 = vunpack.c.0.s8 %v906
        %v928 = vunpack.c.0.s8 %v907
        %v929 = vunpack.c.1.s8 %v905
        %v930 = vunpack.c.1.s8 %v906
        %v931 = vunpack.c.1.s8 %v907
        %v932 = vunpack.c.2.s8 %v905
        %v933 = vunpack.c.2.s8 %v906
        %v934 = vunpack.c.2.s8 %v907
        %v935 = vunpack.c.3.s8 %v905
        %v936 = vunpack.c.3.s8 %v906
        %v937 = vunpack.c.3.s8 %v907
        %v938 = vunpack.c.0.s8 %v908
        %v939 = vunpack.c.0.s8 %v909
        %v940 = vunpack.c.0.s8 %v910
        %v941 = vunpack.c.1.s8 %v908
        %v942 = vunpack.c.1.s8 %v909
        %v943 = vunpack.c.1.s8 %v910
        %v944 = vunpack.c.2.s8 %v908
        %v945 = vunpack.c.2.s8 %v909
        %v946 = vunpack.c.2.s8 %v910
        %v947 = vunpack.c.3.s8 %v908
        %v948 = vunpack.c.3.s8 %v909
        %v949 = vunpack.c.3.s8 %v910
        %v950 = vunpack.c.0.s8 %v911
        %v951 = vunpack.c.0.s8 %v912
        %v952 = vunpack.c.0.s8 %v913
        %v953 = vunpack.c.1.s8 %v911
        %v954 = vunpack.c.1.s8 %v912
        %v955 = vunpack.c.1.s8 %v913
        %v956 = vunpack.c.2.s8 %v911
        %v957 = vunpack.c.2.s8 %v912
        %v958 = vunpack.c.2.s8 %v913
        %v959 = vunpack.c.3.s8 %v911
        %v960 = vunpack.c.3.s8 %v912
        %v961 = vunpack.c.3.s8 %v913
        %v962 = vcvt.s32.f32 %v914
        %v963 = vcvt.s32.f32 %v915
        %v964 = vcvt.s32.f32 %v916
        %v965 = vcvt.s32.f32 %v917
        %v966 = vcvt.s32.f32 %v918
        %v967 = vcvt.s32.f32 %v919
        %v968 = vcvt.s32.f32 %v920
        %v969 = vcvt.s32.f32 %v921
        %v970 = vcvt.s32.f32 %v922
        %v971 = vcvt.s32.f32 %v923
        %v972 = vcvt.s32.f32 %v924
        %v973 = vcvt.s32.f32 %v925
        %v974 = vcvt.s32.f32 %v926
        %v975 = vcvt.s32.f32 %v927
        %v976 = vcvt.s32.f32 %v928
        %v977 = vcvt.s32.f32 %v929
        %v978 = vcvt.s32.f32 %v930
        %v979 = vcvt.s32.f32 %v931
        %v980 = vcvt.s32.f32 %v932
        %v981 = vcvt.s32.f32 %v933
        %v982 = vcvt.s32.f32 %v934
        %v983 = vcvt.s32.f32 %v935
        %v984 = vcvt.s32.f32 %v936
        %v985 = vcvt.s32.f32 %v937
        %v986 = vcvt.s32.f32 %v938
        %v987 = vcvt.s32.f32 %v939
        %v988 = vcvt.s32.f32 %v940
        %v989 = vcvt.s32.f32 %v941
        %v990 = vcvt.s32.f32 %v942
        %v991 = vcvt.s32.f32 %v943
        %v992 = vcvt.s32.f32 %v944
        %v993 = vcvt.s32.f32 %v945
        %v994 = vcvt.s32.f32 %v946
        %v995 = vcvt.s32.f32 %v947
        %v996 = vcvt.s32.f32 %v948
        %v997 = vcvt.s32.f32 %v949
        %v998 = vcvt.s32.f32 %v950
        %v999 = vcvt.s32.f32 %v951
        %v1000 = vcvt.s32.f32 %v952
        %v1001 = vcvt.s32.f32 %v953
        %v1002 = vcvt.s32.f32 %v954
        %v1003 = vcvt.s32.f32 %v955
        %v1004 = vcvt.s32.f32 %v956
        %v1005 = vcvt.s32.f32 %v957
        %v1006 = vcvt.s32.f32 %v958
        %v1007 = vcvt.s32.f32 %v959
        %v1008 = vcvt.s32.f32 %v960
        %v1009 = vcvt.s32.f32 %v961
        %v1010 = vmul.f32 %v962, %v727
        %v1011 = vmul.f32 %v963, %v729
        %v1012 = vmul.f32 %v964, %v840
        %v1013 = vmul.f32 %v965, %v731
        %v1014 = vmul.f32 %v966, %v733
        %v1015 = vmul.f32 %v967, %v843
        %v1016 = vmul.f32 %v968, %v737
        %v1017 = vmul.f32 %v969, %v739
        %v1018 = vmul.f32 %v970, %v848
        %v1019 = vmul.f32 %v971, %v741
        %v1020 = vmul.f32 %v972, %v743
        %v1021 = vmul.f32 %v973, %v851
        %v1022 = vmul.f32 %v974, %v747
        %v1023 = vmul.f32 %v975, %v749
        %v1024 = vmul.f32 %v976, %v856
        %v1025 = vmul.f32 %v977, %v751
        %v1026 = vmul.f32 %v978, %v753
        %v1027 = vmul.f32 %v979, %v859
        %v1028 = vmul.f32 %v980, %v757
        %v1029 = vmul.f32 %v981, %v759
        %v1030 = vmul.f32 %v982, %v864
        %v1031 = vmul.f32 %v983, %v761
        %v1032 = vmul.f32 %v984, %v763
        %v1033 = vmul.f32 %v985, %v867
        %v1034 = vmul.f32 %v986, %v767
        %v1035 = vmul.f32 %v987, %v769
        %v1036 = vmul.f32 %v988, %v872
        %v1037 = vmul.f32 %v989, %v771
        %v1038 = vmul.f32 %v990, %v773
        %v1039 = vmul.f32 %v991, %v875
        %v1040 = vmul.f32 %v992, %v777
        %v1041 = vmul.f32 %v993, %v779
        %v1042 = vmul.f32 %v994, %v880
        %v1043 = vmul.f32 %v995, %v781
        %v1044 = vmul.f32 %v996, %v783
        %v1045 = vmul.f32 %v997, %v883
        %v1046 = vmul.f32 %v998, %v787
        %v1047 = vmul.f32 %v999, %v789
        %v1048 = vmul.f32 %v1000, %v888
        %v1049 = vmul.f32 %v1001, %v791
        %v1050 = vmul.f32 %v1002, %v793
        %v1051 = vmul.f32 %v1003, %v891
        %v1052 = vmul.f32 %v1004, %v797
        %v1053 = vmul.f32 %v1005, %v799
        %v1054 = vmul.f32 %v1006, %v896
        %v1055 = vmul.f32 %v1007, %v801
        %v1056 = vmul.f32 %v1008, %v803
        %v1057 = vmul.f32 %v1009, %v899
        %v1058 = vld [vmem:[%s320] sm:$0x7]
        %v1060 = vlaneseq
        %v1061 = vshrl.u32 %v1060, 7
        %v1062 = vsub.s32 0, %v1061
        %v1063 = vrot.slane %v1058, %v1062
        %v1064 = vlaneseq
        %v1065 = vshrl.u32 %v1064, 7
        %v1066 = vsub.s32 1, %v1065
        %v1067 = vrot.slane %v1058, %v1066
        %v1068 = vlaneseq
        %v1069 = vshrl.u32 %v1068, 7
        %v1070 = vsub.s32 2, %v1069
        %v1071 = vrot.slane %v1058, %v1070
        %v1075 = vadd.f32 %v1010, %v1063
        %v1076 = vadd.f32 %v1011, %v1067
        %v1077 = vadd.f32 %v1012, %v1071
        %v1078 = vadd.f32 %v1013, %v1063
        %v1079 = vadd.f32 %v1014, %v1067
        %v1080 = vadd.f32 %v1015, %v1071
        %v1081 = vadd.f32 %v1016, %v1063
        %v1082 = vadd.f32 %v1017, %v1067
        %v1083 = vadd.f32 %v1018, %v1071
        %v1084 = vadd.f32 %v1019, %v1063
        %v1085 = vadd.f32 %v1020, %v1067
        %v1086 = vadd.f32 %v1021, %v1071
        %v1087 = vadd.f32 %v1022, %v1063
        %v1088 = vadd.f32 %v1023, %v1067
        %v1089 = vadd.f32 %v1024, %v1071
        %v1090 = vadd.f32 %v1025, %v1063
        %v1091 = vadd.f32 %v1026, %v1067
        %v1092 = vadd.f32 %v1027, %v1071
        %v1093 = vadd.f32 %v1028, %v1063
        %v1094 = vadd.f32 %v1029, %v1067
        %v1095 = vadd.f32 %v1030, %v1071
        %v1096 = vadd.f32 %v1031, %v1063
        %v1097 = vadd.f32 %v1032, %v1067
        %v1098 = vadd.f32 %v1033, %v1071
        %v1099 = vadd.f32 %v1034, %v1063
        %v1100 = vadd.f32 %v1035, %v1067
        %v1101 = vadd.f32 %v1036, %v1071
        %v1102 = vadd.f32 %v1037, %v1063
        %v1103 = vadd.f32 %v1038, %v1067
        %v1104 = vadd.f32 %v1039, %v1071
        %v1105 = vadd.f32 %v1040, %v1063
        %v1106 = vadd.f32 %v1041, %v1067
        %v1107 = vadd.f32 %v1042, %v1071
        %v1108 = vadd.f32 %v1043, %v1063
        %v1109 = vadd.f32 %v1044, %v1067
        %v1110 = vadd.f32 %v1045, %v1071
        %v1111 = vadd.f32 %v1046, %v1063
        %v1112 = vadd.f32 %v1047, %v1067
        %v1113 = vadd.f32 %v1048, %v1071
        %v1114 = vadd.f32 %v1049, %v1063
        %v1115 = vadd.f32 %v1050, %v1067
        %v1116 = vadd.f32 %v1051, %v1071
        %v1117 = vadd.f32 %v1052, %v1063
        %v1118 = vadd.f32 %v1053, %v1067
        %v1119 = vadd.f32 %v1054, %v1071
        %v1120 = vadd.f32 %v1055, %v1063
        %v1121 = vadd.f32 %v1056, %v1067
        %v1122 = vadd.f32 %v1057, %v1071
        %v1123 = vld [vmem:[#allocation2] sm:$0xff]
        %v1124 = vld [vmem:[#allocation2 + $0x8] sm:$0xff]
        %v1125 = vld [vmem:[#allocation2 + $0x10] sm:$0xff]
        %v1126 = vld [vmem:[#allocation2 + $0x18] sm:$0xff]
        %v1127 = vld [vmem:[#allocation2 + $0x20] sm:$0xff]
        %v1128 = vld [vmem:[#allocation2 + $0x28] sm:$0xff]
        %v1129 = vld [vmem:[#allocation2 + $0x30] sm:$0xff]
        %v1130 = vld [vmem:[#allocation2 + $0x38] sm:$0xff]
        %v1131 = vld [vmem:[#allocation2 + $0x40] sm:$0xff]
        %v1132 = vld [vmem:[#allocation2 + $0x48] sm:$0xff]
        %v1133 = vld [vmem:[#allocation2 + $0x50] sm:$0xff]
        %v1134 = vld [vmem:[#allocation2 + $0x58] sm:$0xff]
        %v1135 = vld [vmem:[#allocation2 + $0x60] sm:$0xff]
        %v1136 = vld [vmem:[#allocation2 + $0x68] sm:$0xff]
        %v1137 = vld [vmem:[#allocation2 + $0x70] sm:$0xff]
        %v1138 = vld [vmem:[#allocation2 + $0x78] sm:$0xff]
        %v1139 = vmax.f32 %v1075, %v1076
        %v1140 = vmax.f32 %v1139, %v1077
        %1141 = vmax.xlane.f32.xlu0 %v1140
        %v1142 = vpop.xlane.xlu0 %1141
        %v1143 = vmax.f32 %v1078, %v1079
        %v1144 = vmax.f32 %v1143, %v1080
        %1145 = vmax.xlane.f32.xlu0 %v1144
        %v1146 = vpop.xlane.xlu0 %1145
        %v1147 = vmax.f32 %v1081, %v1082
        %v1148 = vmax.f32 %v1147, %v1083
        %1149 = vmax.xlane.f32.xlu0 %v1148
        %v1150 = vpop.xlane.xlu0 %1149
        %v1151 = vmax.f32 %v1084, %v1085
        %v1152 = vmax.f32 %v1151, %v1086
        %1153 = vmax.xlane.f32.xlu0 %v1152
        %v1154 = vpop.xlane.xlu0 %1153
        %v1155 = vmax.f32 %v1087, %v1088
        %v1156 = vmax.f32 %v1155, %v1089
        %1157 = vmax.xlane.f32.xlu0 %v1156
        %v1158 = vpop.xlane.xlu0 %1157
        %v1159 = vmax.f32 %v1090, %v1091
        %v1160 = vmax.f32 %v1159, %v1092
        %1161 = vmax.xlane.f32.xlu0 %v1160
        %v1162 = vpop.xlane.xlu0 %1161
        %v1163 = vmax.f32 %v1093, %v1094
        %v1164 = vmax.f32 %v1163, %v1095
        %1165 = vmax.xlane.f32.xlu0 %v1164
        %v1166 = vpop.xlane.xlu0 %1165
        %v1167 = vmax.f32 %v1096, %v1097
        %v1168 = vmax.f32 %v1167, %v1098
        %1169 = vmax.xlane.f32.xlu0 %v1168
        %v1170 = vpop.xlane.xlu0 %1169
        %v1171 = vmax.f32 %v1099, %v1100
        %v1172 = vmax.f32 %v1171, %v1101
        %1173 = vmax.xlane.f32.xlu0 %v1172
        %v1174 = vpop.xlane.xlu0 %1173
        %v1175 = vmax.f32 %v1102, %v1103
        %v1176 = vmax.f32 %v1175, %v1104
        %1177 = vmax.xlane.f32.xlu0 %v1176
        %v1178 = vpop.xlane.xlu0 %1177
        %v1179 = vmax.f32 %v1105, %v1106
        %v1180 = vmax.f32 %v1179, %v1107
        %1181 = vmax.xlane.f32.xlu0 %v1180
        %v1182 = vpop.xlane.xlu0 %1181
        %v1183 = vmax.f32 %v1108, %v1109
        %v1184 = vmax.f32 %v1183, %v1110
        %1185 = vmax.xlane.f32.xlu0 %v1184
        %v1186 = vpop.xlane.xlu0 %1185
        %v1187 = vmax.f32 %v1111, %v1112
        %v1188 = vmax.f32 %v1187, %v1113
        %1189 = vmax.xlane.f32.xlu0 %v1188
        %v1190 = vpop.xlane.xlu0 %1189
        %v1191 = vmax.f32 %v1114, %v1115
        %v1192 = vmax.f32 %v1191, %v1116
        %1193 = vmax.xlane.f32.xlu0 %v1192
        %v1194 = vpop.xlane.xlu0 %1193
        %v1195 = vmax.f32 %v1117, %v1118
        %v1196 = vmax.f32 %v1195, %v1119
        %1197 = vmax.xlane.f32.xlu0 %v1196
        %v1198 = vpop.xlane.xlu0 %1197
        %v1199 = vmax.f32 %v1120, %v1121
        %v1200 = vmax.f32 %v1199, %v1122
        %1201 = vmax.xlane.f32.xlu0 %v1200
        %v1202 = vpop.xlane.xlu0 %1201
        %v1203 = vmax.f32 %v1123, %v1142
        %v1204 = vmax.f32 %v1124, %v1146
        %v1205 = vmax.f32 %v1125, %v1150
        %v1206 = vmax.f32 %v1126, %v1154
        %v1207 = vmax.f32 %v1127, %v1158
        %v1208 = vmax.f32 %v1128, %v1162
        %v1209 = vmax.f32 %v1129, %v1166
        %v1210 = vmax.f32 %v1130, %v1170
        %v1211 = vmax.f32 %v1131, %v1174
        %v1212 = vmax.f32 %v1132, %v1178
        %v1213 = vmax.f32 %v1133, %v1182
        %v1214 = vmax.f32 %v1134, %v1186
        %v1215 = vmax.f32 %v1135, %v1190
        %v1216 = vmax.f32 %v1136, %v1194
        %v1217 = vmax.f32 %v1137, %v1198
        %v1218 = vmax.f32 %v1138, %v1202
        %v1219 = vsub.f32 %v1123, %v1203
        %v1220 = vsub.f32 %v1124, %v1204
        %v1221 = vsub.f32 %v1125, %v1205
        %v1222 = vsub.f32 %v1126, %v1206
        %v1223 = vsub.f32 %v1127, %v1207
        %v1224 = vsub.f32 %v1128, %v1208
        %v1225 = vsub.f32 %v1129, %v1209
        %v1226 = vsub.f32 %v1130, %v1210
        %v1227 = vsub.f32 %v1131, %v1211
        %v1228 = vsub.f32 %v1132, %v1212
        %v1229 = vsub.f32 %v1133, %v1213
        %v1230 = vsub.f32 %v1134, %v1214
        %v1231 = vsub.f32 %v1135, %v1215
        %v1232 = vsub.f32 %v1136, %v1216
        %v1233 = vsub.f32 %v1137, %v1217
        %v1234 = vsub.f32 %v1138, %v1218
        %v1235 = vmul.f32 %v1219, 1.442695
        %v1236 = vpow.pop %v1235
        %v1237 = vmul.f32 %v1220, 1.442695
        %v1238 = vpow.pop %v1237
        %v1239 = vmul.f32 %v1221, 1.442695
        %v1240 = vpow.pop %v1239
        %v1241 = vmul.f32 %v1222, 1.442695
        %v1242 = vpow.pop %v1241
        %v1243 = vmul.f32 %v1223, 1.442695
        %v1244 = vpow.pop %v1243
        %v1245 = vmul.f32 %v1224, 1.442695
        %v1246 = vpow.pop %v1245
        %v1247 = vmul.f32 %v1225, 1.442695
        %v1248 = vpow.pop %v1247
        %v1249 = vmul.f32 %v1226, 1.442695
        %v1250 = vpow.pop %v1249
        %v1251 = vmul.f32 %v1227, 1.442695
        %v1252 = vpow.pop %v1251
        %v1253 = vmul.f32 %v1228, 1.442695
        %v1254 = vpow.pop %v1253
        %v1255 = vmul.f32 %v1229, 1.442695
        %v1256 = vpow.pop %v1255
        %v1257 = vmul.f32 %v1230, 1.442695
        %v1258 = vpow.pop %v1257
        %v1259 = vmul.f32 %v1231, 1.442695
        %v1260 = vpow.pop %v1259
        %v1261 = vmul.f32 %v1232, 1.442695
        %v1262 = vpow.pop %v1261
        %v1263 = vmul.f32 %v1233, 1.442695
        %v1264 = vpow.pop %v1263
        %v1265 = vmul.f32 %v1234, 1.442695
        %v1266 = vpow.pop %v1265
        %v1267 = vsub.f32 %v1075, %v1203
        %v1268 = vsub.f32 %v1076, %v1203
        %v1269 = vsub.f32 %v1077, %v1203
        %v1270 = vsub.f32 %v1078, %v1204
        %v1271 = vsub.f32 %v1079, %v1204
        %v1272 = vsub.f32 %v1080, %v1204
        %v1273 = vsub.f32 %v1081, %v1205
        %v1274 = vsub.f32 %v1082, %v1205
        %v1275 = vsub.f32 %v1083, %v1205
        %v1276 = vsub.f32 %v1084, %v1206
        %v1277 = vsub.f32 %v1085, %v1206
        %v1278 = vsub.f32 %v1086, %v1206
        %v1279 = vsub.f32 %v1087, %v1207
        %v1280 = vsub.f32 %v1088, %v1207
        %v1281 = vsub.f32 %v1089, %v1207
        %v1282 = vsub.f32 %v1090, %v1208
        %v1283 = vsub.f32 %v1091, %v1208
        %v1284 = vsub.f32 %v1092, %v1208
        %v1285 = vsub.f32 %v1093, %v1209
        %v1286 = vsub.f32 %v1094, %v1209
        %v1287 = vsub.f32 %v1095, %v1209
        %v1288 = vsub.f32 %v1096, %v1210
        %v1289 = vsub.f32 %v1097, %v1210
        %v1290 = vsub.f32 %v1098, %v1210
        %v1291 = vsub.f32 %v1099, %v1211
        %v1292 = vsub.f32 %v1100, %v1211
        %v1293 = vsub.f32 %v1101, %v1211
        %v1294 = vsub.f32 %v1102, %v1212
        %v1295 = vsub.f32 %v1103, %v1212
        %v1296 = vsub.f32 %v1104, %v1212
        %v1297 = vsub.f32 %v1105, %v1213
        %v1298 = vsub.f32 %v1106, %v1213
        %v1299 = vsub.f32 %v1107, %v1213
        %v1300 = vsub.f32 %v1108, %v1214
        %v1301 = vsub.f32 %v1109, %v1214
        %v1302 = vsub.f32 %v1110, %v1214
        %v1303 = vsub.f32 %v1111, %v1215
        %v1304 = vsub.f32 %v1112, %v1215
        %v1305 = vsub.f32 %v1113, %v1215
        %v1306 = vsub.f32 %v1114, %v1216
        %v1307 = vsub.f32 %v1115, %v1216
        %v1308 = vsub.f32 %v1116, %v1216
        %v1309 = vsub.f32 %v1117, %v1217
        %v1310 = vsub.f32 %v1118, %v1217
        %v1311 = vsub.f32 %v1119, %v1217
        %v1312 = vsub.f32 %v1120, %v1218
        %v1313 = vsub.f32 %v1121, %v1218
        %v1314 = vsub.f32 %v1122, %v1218
        %v1315 = vmul.f32 %v1267, 1.442695
        %v1316 = vpow.pop %v1315
        %v1317 = vmul.f32 %v1268, 1.442695
        %v1318 = vpow.pop %v1317
        %v1319 = vmul.f32 %v1269, 1.442695
        %v1320 = vpow.pop %v1319
        %v1321 = vmul.f32 %v1270, 1.442695
        %v1322 = vpow.pop %v1321
        %v1323 = vmul.f32 %v1271, 1.442695
        %v1324 = vpow.pop %v1323
        %v1325 = vmul.f32 %v1272, 1.442695
        %v1326 = vpow.pop %v1325
        %v1327 = vmul.f32 %v1273, 1.442695
        %v1328 = vpow.pop %v1327
        %v1329 = vmul.f32 %v1274, 1.442695
        %v1330 = vpow.pop %v1329
        %v1331 = vmul.f32 %v1275, 1.442695
        %v1332 = vpow.pop %v1331
        %v1333 = vmul.f32 %v1276, 1.442695
        %v1334 = vpow.pop %v1333
        %v1335 = vmul.f32 %v1277, 1.442695
        %v1336 = vpow.pop %v1335
        %v1337 = vmul.f32 %v1278, 1.442695
        %v1338 = vpow.pop %v1337
        %v1339 = vmul.f32 %v1279, 1.442695
        %v1340 = vpow.pop %v1339
        %v1341 = vmul.f32 %v1280, 1.442695
        %v1342 = vpow.pop %v1341
        %v1343 = vmul.f32 %v1281, 1.442695
        %v1344 = vpow.pop %v1343
        %v1345 = vmul.f32 %v1282, 1.442695
        %v1346 = vpow.pop %v1345
        %v1347 = vmul.f32 %v1283, 1.442695
        %v1348 = vpow.pop %v1347
        %v1349 = vmul.f32 %v1284, 1.442695
        %v1350 = vpow.pop %v1349
        %v1351 = vmul.f32 %v1285, 1.442695
        %v1352 = vpow.pop %v1351
        %v1353 = vmul.f32 %v1286, 1.442695
        %v1354 = vpow.pop %v1353
        %v1355 = vmul.f32 %v1287, 1.442695
        %v1356 = vpow.pop %v1355
        %v1357 = vmul.f32 %v1288, 1.442695
        %v1358 = vpow.pop %v1357
        %v1359 = vmul.f32 %v1289, 1.442695
        %v1360 = vpow.pop %v1359
        %v1361 = vmul.f32 %v1290, 1.442695
        %v1362 = vpow.pop %v1361
        %v1363 = vmul.f32 %v1291, 1.442695
        %v1364 = vpow.pop %v1363
        %v1365 = vmul.f32 %v1292, 1.442695
        %v1366 = vpow.pop %v1365
        %v1367 = vmul.f32 %v1293, 1.442695
        %v1368 = vpow.pop %v1367
        %v1369 = vmul.f32 %v1294, 1.442695
        %v1370 = vpow.pop %v1369
        %v1371 = vmul.f32 %v1295, 1.442695
        %v1372 = vpow.pop %v1371
        %v1373 = vmul.f32 %v1296, 1.442695
        %v1374 = vpow.pop %v1373
        %v1375 = vmul.f32 %v1297, 1.442695
        %v1376 = vpow.pop %v1375
        %v1377 = vmul.f32 %v1298, 1.442695
        %v1378 = vpow.pop %v1377
        %v1379 = vmul.f32 %v1299, 1.442695
        %v1380 = vpow.pop %v1379
        %v1381 = vmul.f32 %v1300, 1.442695
        %v1382 = vpow.pop %v1381
        %v1383 = vmul.f32 %v1301, 1.442695
        %v1384 = vpow.pop %v1383
        %v1385 = vmul.f32 %v1302, 1.442695
        %v1386 = vpow.pop %v1385
        %v1387 = vmul.f32 %v1303, 1.442695
        %v1388 = vpow.pop %v1387
        %v1389 = vmul.f32 %v1304, 1.442695
        %v1390 = vpow.pop %v1389
        %v1391 = vmul.f32 %v1305, 1.442695
        %v1392 = vpow.pop %v1391
        %v1393 = vmul.f32 %v1306, 1.442695
        %v1394 = vpow.pop %v1393
        %v1395 = vmul.f32 %v1307, 1.442695
        %v1396 = vpow.pop %v1395
        %v1397 = vmul.f32 %v1308, 1.442695
        %v1398 = vpow.pop %v1397
        %v1399 = vmul.f32 %v1309, 1.442695
        %v1400 = vpow.pop %v1399
        %v1401 = vmul.f32 %v1310, 1.442695
        %v1402 = vpow.pop %v1401
        %v1403 = vmul.f32 %v1311, 1.442695
        %v1404 = vpow.pop %v1403
        %v1405 = vmul.f32 %v1312, 1.442695
        %v1406 = vpow.pop %v1405
        %v1407 = vmul.f32 %v1313, 1.442695
        %v1408 = vpow.pop %v1407
        %v1409 = vmul.f32 %v1314, 1.442695
        %v1410 = vpow.pop %v1409
        %v1411 = vld [vmem:[#allocation3] sm:$0xff]
        %v1412 = vld [vmem:[#allocation3 + $0x8] sm:$0xff]
        %v1413 = vld [vmem:[#allocation3 + $0x10] sm:$0xff]
        %v1414 = vld [vmem:[#allocation3 + $0x18] sm:$0xff]
        %v1415 = vld [vmem:[#allocation3 + $0x20] sm:$0xff]
        %v1416 = vld [vmem:[#allocation3 + $0x28] sm:$0xff]
        %v1417 = vld [vmem:[#allocation3 + $0x30] sm:$0xff]
        %v1418 = vld [vmem:[#allocation3 + $0x38] sm:$0xff]
        %v1419 = vld [vmem:[#allocation3 + $0x40] sm:$0xff]
        %v1420 = vld [vmem:[#allocation3 + $0x48] sm:$0xff]
        %v1421 = vld [vmem:[#allocation3 + $0x50] sm:$0xff]
        %v1422 = vld [vmem:[#allocation3 + $0x58] sm:$0xff]
        %v1423 = vld [vmem:[#allocation3 + $0x60] sm:$0xff]
        %v1424 = vld [vmem:[#allocation3 + $0x68] sm:$0xff]
        %v1425 = vld [vmem:[#allocation3 + $0x70] sm:$0xff]
        %v1426 = vld [vmem:[#allocation3 + $0x78] sm:$0xff]
        %v1427 = vmul.f32 %v1236, %v1411
        %v1428 = vmul.f32 %v1238, %v1412
        %v1429 = vmul.f32 %v1240, %v1413
        %v1430 = vmul.f32 %v1242, %v1414
        %v1431 = vmul.f32 %v1244, %v1415
        %v1432 = vmul.f32 %v1246, %v1416
        %v1433 = vmul.f32 %v1248, %v1417
        %v1434 = vmul.f32 %v1250, %v1418
        %v1435 = vmul.f32 %v1252, %v1419
        %v1436 = vmul.f32 %v1254, %v1420
        %v1437 = vmul.f32 %v1256, %v1421
        %v1438 = vmul.f32 %v1258, %v1422
        %v1439 = vmul.f32 %v1260, %v1423
        %v1440 = vmul.f32 %v1262, %v1424
        %v1441 = vmul.f32 %v1264, %v1425
        %v1442 = vmul.f32 %v1266, %v1426
        %v1443 = vadd.f32 %v1316, %v1318
        %v1444 = vadd.f32 %v1443, %v1320
        %1445 = vadd.xlane.f32.xlu0 %v1444
        %v1446 = vpop.xlane.xlu0 %1445
        %v1447 = vadd.f32 %v1322, %v1324
        %v1448 = vadd.f32 %v1447, %v1326
        %1449 = vadd.xlane.f32.xlu0 %v1448
        %v1450 = vpop.xlane.xlu0 %1449
        %v1451 = vadd.f32 %v1328, %v1330
        %v1452 = vadd.f32 %v1451, %v1332
        %1453 = vadd.xlane.f32.xlu0 %v1452
        %v1454 = vpop.xlane.xlu0 %1453
        %v1455 = vadd.f32 %v1334, %v1336
        %v1456 = vadd.f32 %v1455, %v1338
        %1457 = vadd.xlane.f32.xlu0 %v1456
        %v1458 = vpop.xlane.xlu0 %1457
        %v1459 = vadd.f32 %v1340, %v1342
        %v1460 = vadd.f32 %v1459, %v1344
        %1461 = vadd.xlane.f32.xlu0 %v1460
        %v1462 = vpop.xlane.xlu0 %1461
        %v1463 = vadd.f32 %v1346, %v1348
        %v1464 = vadd.f32 %v1463, %v1350
        %1465 = vadd.xlane.f32.xlu0 %v1464
        %v1466 = vpop.xlane.xlu0 %1465
        %v1467 = vadd.f32 %v1352, %v1354
        %v1468 = vadd.f32 %v1467, %v1356
        %1469 = vadd.xlane.f32.xlu0 %v1468
        %v1470 = vpop.xlane.xlu0 %1469
        %v1471 = vadd.f32 %v1358, %v1360
        %v1472 = vadd.f32 %v1471, %v1362
        %1473 = vadd.xlane.f32.xlu0 %v1472
        %v1474 = vpop.xlane.xlu0 %1473
        %v1475 = vadd.f32 %v1364, %v1366
        %v1476 = vadd.f32 %v1475, %v1368
        %1477 = vadd.xlane.f32.xlu0 %v1476
        %v1478 = vpop.xlane.xlu0 %1477
        %v1479 = vadd.f32 %v1370, %v1372
        %v1480 = vadd.f32 %v1479, %v1374
        %1481 = vadd.xlane.f32.xlu0 %v1480
        %v1482 = vpop.xlane.xlu0 %1481
        %v1483 = vadd.f32 %v1376, %v1378
        %v1484 = vadd.f32 %v1483, %v1380
        %1485 = vadd.xlane.f32.xlu0 %v1484
        %v1486 = vpop.xlane.xlu0 %1485
        %v1487 = vadd.f32 %v1382, %v1384
        %v1488 = vadd.f32 %v1487, %v1386
        %1489 = vadd.xlane.f32.xlu0 %v1488
        %v1490 = vpop.xlane.xlu0 %1489
        %v1491 = vadd.f32 %v1388, %v1390
        %v1492 = vadd.f32 %v1491, %v1392
        %1493 = vadd.xlane.f32.xlu0 %v1492
        %v1494 = vpop.xlane.xlu0 %1493
        %v1495 = vadd.f32 %v1394, %v1396
        %v1496 = vadd.f32 %v1495, %v1398
        %1497 = vadd.xlane.f32.xlu0 %v1496
        %v1498 = vpop.xlane.xlu0 %1497
        %v1499 = vadd.f32 %v1400, %v1402
        %v1500 = vadd.f32 %v1499, %v1404
        %1501 = vadd.xlane.f32.xlu0 %v1500
        %v1502 = vpop.xlane.xlu0 %1501
        %v1503 = vadd.f32 %v1406, %v1408
        %v1504 = vadd.f32 %v1503, %v1410
        %1505 = vadd.xlane.f32.xlu0 %v1504
        %v1506 = vpop.xlane.xlu0 %1505
        %v1507 = vadd.f32 %v1427, %v1446
        %v1508 = vadd.f32 %v1428, %v1450
        %v1509 = vadd.f32 %v1429, %v1454
        %v1510 = vadd.f32 %v1430, %v1458
        %v1511 = vadd.f32 %v1431, %v1462
        %v1512 = vadd.f32 %v1432, %v1466
        %v1513 = vadd.f32 %v1433, %v1470
        %v1514 = vadd.f32 %v1434, %v1474
        %v1515 = vadd.f32 %v1435, %v1478
        %v1516 = vadd.f32 %v1436, %v1482
        %v1517 = vadd.f32 %v1437, %v1486
        %v1518 = vadd.f32 %v1438, %v1490
        %v1519 = vadd.f32 %v1439, %v1494
        %v1520 = vadd.f32 %v1440, %v1498
        %v1521 = vadd.f32 %v1441, %v1502
        %v1522 = vadd.f32 %v1442, %v1506
        %1523 = vst [vmem:[#allocation3] sm:$0xff] %v1507
        %1524 = vst [vmem:[#allocation3 + $0x8] sm:$0xff] %v1508
        %1525 = vst [vmem:[#allocation3 + $0x10] sm:$0xff] %v1509
        %1526 = vst [vmem:[#allocation3 + $0x18] sm:$0xff] %v1510
        %1527 = vst [vmem:[#allocation3 + $0x20] sm:$0xff] %v1511
        %1528 = vst [vmem:[#allocation3 + $0x28] sm:$0xff] %v1512
        %1529 = vst [vmem:[#allocation3 + $0x30] sm:$0xff] %v1513
        %1530 = vst [vmem:[#allocation3 + $0x38] sm:$0xff] %v1514
        %1531 = vst [vmem:[#allocation3 + $0x40] sm:$0xff] %v1515
        %1532 = vst [vmem:[#allocation3 + $0x48] sm:$0xff] %v1516
        %1533 = vst [vmem:[#allocation3 + $0x50] sm:$0xff] %v1517
        %1534 = vst [vmem:[#allocation3 + $0x58] sm:$0xff] %v1518
        %1535 = vst [vmem:[#allocation3 + $0x60] sm:$0xff] %v1519
        %1536 = vst [vmem:[#allocation3 + $0x68] sm:$0xff] %v1520
        %1537 = vst [vmem:[#allocation3 + $0x70] sm:$0xff] %v1521
        %1538 = vst [vmem:[#allocation3 + $0x78] sm:$0xff] %v1522
        %v1539 = vld [vmem:[%s326] sm:$0xff]
        %v1540 = vld [vmem:[%s326 + $0x8] sm:$0xff]
        %v1541 = vld [vmem:[%s326 + $0x10] sm:$0xff]
        %v1542 = vld [vmem:[%s326 + $0x18] sm:$0xff]
        %v1543 = vld [vmem:[%s326 + $0x20] sm:$0xff]
        %v1544 = vld [vmem:[%s326 + $0x28] sm:$0xff]
        %v1545 = vld [vmem:[%s326 + $0x30] sm:$0xff]
        %v1546 = vld [vmem:[%s326 + $0x38] sm:$0xff]
        %v1547 = vld [vmem:[%s326 + $0x40] sm:$0xff]
        %v1548 = vld [vmem:[%s326 + $0x48] sm:$0xff]
        %v1549 = vld [vmem:[%s326 + $0x50] sm:$0xff]
        %v1550 = vld [vmem:[%s326 + $0x58] sm:$0xff]
        %v1551 = vld [vmem:[%s326 + $0x60] sm:$0xff]
        %v1552 = vld [vmem:[%s326 + $0x68] sm:$0xff]
        %v1553 = vld [vmem:[%s326 + $0x70] sm:$0xff]
        %v1554 = vld [vmem:[%s326 + $0x78] sm:$0xff]
        %v1555 = vmul.f32 %v1236, %v1539
        %v1556 = vmul.f32 %v1238, %v1540
        %v1557 = vmul.f32 %v1240, %v1541
        %v1558 = vmul.f32 %v1242, %v1542
        %v1559 = vmul.f32 %v1244, %v1543
        %v1560 = vmul.f32 %v1246, %v1544
        %v1561 = vmul.f32 %v1248, %v1545
        %v1562 = vmul.f32 %v1250, %v1546
        %v1563 = vmul.f32 %v1252, %v1547
        %v1564 = vmul.f32 %v1254, %v1548
        %v1565 = vmul.f32 %v1256, %v1549
        %v1566 = vmul.f32 %v1258, %v1550
        %v1567 = vmul.f32 %v1260, %v1551
        %v1568 = vmul.f32 %v1262, %v1552
        %v1569 = vmul.f32 %v1264, %v1553
        %v1570 = vmul.f32 %v1266, %v1554
        %v1571 = vpack.c.bf16 %v1322, %v1316
        %v1572 = vpack.c.bf16 %v1324, %v1318
        %v1573 = vpack.c.bf16 %v1326, %v1320
        %v1574 = vpack.c.bf16 %v1334, %v1328
        %v1575 = vpack.c.bf16 %v1336, %v1330
        %v1576 = vpack.c.bf16 %v1338, %v1332
        %v1577 = vpack.c.bf16 %v1346, %v1340
        %v1578 = vpack.c.bf16 %v1348, %v1342
        %v1579 = vpack.c.bf16 %v1350, %v1344
        %v1580 = vpack.c.bf16 %v1358, %v1352
        %v1581 = vpack.c.bf16 %v1360, %v1354
        %v1582 = vpack.c.bf16 %v1362, %v1356
        %v1583 = vpack.c.bf16 %v1370, %v1364
        %v1584 = vpack.c.bf16 %v1372, %v1366
        %v1585 = vpack.c.bf16 %v1374, %v1368
        %v1586 = vpack.c.bf16 %v1382, %v1376
        %v1587 = vpack.c.bf16 %v1384, %v1378
        %v1588 = vpack.c.bf16 %v1386, %v1380
        %v1589 = vpack.c.bf16 %v1394, %v1388
        %v1590 = vpack.c.bf16 %v1396, %v1390
        %v1591 = vpack.c.bf16 %v1398, %v1392
        %v1592 = vpack.c.bf16 %v1406, %v1400
        %v1593 = vpack.c.bf16 %v1408, %v1402
        %v1594 = vpack.c.bf16 %v1410, %v1404
        %v1643 = vunpack.c.l.b16 %v436
        %v1644 = vunpack.c.l.b16 %v437
        %v1645 = vunpack.c.l.b16 %v438
        %v1646 = vunpack.c.l.b16 %v439
        %v1647 = vunpack.c.l.b16 %v440
        %v1648 = vunpack.c.l.b16 %v441
        %v1649 = vunpack.c.l.b16 %v442
        %v1650 = vunpack.c.l.b16 %v443
        %v1651 = vunpack.c.l.b16 %v444
        %v1652 = vunpack.c.l.b16 %v445
        %v1653 = vunpack.c.l.b16 %v446
        %v1654 = vunpack.c.l.b16 %v447
        %v1655 = vunpack.c.l.b16 %v448
        %v1656 = vunpack.c.l.b16 %v449
        %v1657 = vunpack.c.l.b16 %v450
        %v1658 = vunpack.c.l.b16 %v451
        %v1659 = vunpack.c.l.b16 %v452
        %v1660 = vunpack.c.l.b16 %v453
        %v1661 = vunpack.c.l.b16 %v454
        %v1662 = vunpack.c.l.b16 %v455
        %v1663 = vunpack.c.l.b16 %v456
        %v1664 = vunpack.c.l.b16 %v457
        %v1665 = vunpack.c.l.b16 %v458
        %v1666 = vunpack.c.l.b16 %v459
        %v1667 = vunpack.c.l.b16 %v460
        %v1668 = vunpack.c.l.b16 %v461
        %v1669 = vunpack.c.l.b16 %v462
        %v1670 = vunpack.c.l.b16 %v463
        %v1671 = vunpack.c.l.b16 %v464
        %v1672 = vunpack.c.l.b16 %v465
        %v1673 = vunpack.c.l.b16 %v466
        %v1674 = vunpack.c.l.b16 %v467
        %v1675 = vunpack.c.l.b16 %v468
        %v1676 = vunpack.c.l.b16 %v469
        %v1677 = vunpack.c.l.b16 %v470
        %v1678 = vunpack.c.l.b16 %v471
        %v1679 = vunpack.c.l.b16 %v472
        %v1680 = vunpack.c.l.b16 %v473
        %v1681 = vunpack.c.l.b16 %v474
        %v1682 = vunpack.c.l.b16 %v475
        %v1683 = vunpack.c.l.b16 %v476
        %v1684 = vunpack.c.l.b16 %v477
        %v1685 = vunpack.c.l.b16 %v478
        %v1686 = vunpack.c.l.b16 %v479
        %v1687 = vunpack.c.l.b16 %v480
        %v1688 = vunpack.c.l.b16 %v481
        %v1689 = vunpack.c.l.b16 %v482
        %v1690 = vunpack.c.l.b16 %v483
        %v1691 = vpack.c.b16 %v1644, %v1643
        %v1692 = vpack.c.b16 %v1646, %v1645
        %v1693 = vpack.c.b16 %v1648, %v1647
        %v1694 = vpack.c.b16 %v1650, %v1649
        %v1695 = vpack.c.b16 %v1652, %v1651
        %v1696 = vpack.c.b16 %v1654, %v1653
        %v1697 = vpack.c.b16 %v1656, %v1655
        %v1698 = vpack.c.b16 %v1658, %v1657
        %v1699 = vpack.c.b16 %v1660, %v1659
        %v1700 = vpack.c.b16 %v1662, %v1661
        %v1701 = vpack.c.b16 %v1664, %v1663
        %v1702 = vpack.c.b16 %v1666, %v1665
        %v1703 = vpack.c.b16 %v1668, %v1667
        %v1704 = vpack.c.b16 %v1670, %v1669
        %v1705 = vpack.c.b16 %v1672, %v1671
        %v1706 = vpack.c.b16 %v1674, %v1673
        %v1707 = vpack.c.b16 %v1676, %v1675
        %v1708 = vpack.c.b16 %v1678, %v1677
        %v1709 = vpack.c.b16 %v1680, %v1679
        %v1710 = vpack.c.b16 %v1682, %v1681
        %v1711 = vpack.c.b16 %v1684, %v1683
        %v1712 = vpack.c.b16 %v1686, %v1685
        %v1713 = vpack.c.b16 %v1688, %v1687
        %v1714 = vpack.c.b16 %v1690, %v1689
        %1739 = vmatprep.subr.bf16.mxu0 0
        %1740 = vmatpush1.bf16.msra.mxu0 %v1698
        %1741 = vmatprep.subr.bf16.mxu0 0
        %1742 = vmatpush1.bf16.msra.mxu0 %v1697
        %1743 = vmatprep.subr.bf16.mxu0 0
        %1744 = vmatpush1.bf16.msra.mxu0 %v1696
        %1745 = vmatprep.subr.bf16.mxu0 0
        %1746 = vmatpush1.bf16.msra.mxu0 %v1695
        %1747 = vmatprep.subr.bf16.mxu0 0
        %1748 = vmatpush1.bf16.msra.mxu0 %v1694
        %1749 = vmatprep.subr.bf16.mxu0 0
        %1750 = vmatpush1.bf16.msra.mxu0 %v1693
        %1751 = vmatprep.subr.bf16.mxu0 0
        %1752 = vmatpush1.bf16.msra.mxu0 %v1692
        %1753 = vmatprep.subr.bf16.mxu0 0
        %1754 = vmatpush1.bf16.msra.mxu0 %v1691
        %1755 = vmatprep.subr.bf16.mxu0 0
        %1756 = vmatpush2.bf16.msra.mxu0 %v1706
        %1757 = vmatprep.subr.bf16.mxu0 0
        %1758 = vmatpush2.bf16.msra.mxu0 %v1705
        %1759 = vmatprep.subr.bf16.mxu0 0
        %1760 = vmatpush2.bf16.msra.mxu0 %v1704
        %1761 = vmatprep.subr.bf16.mxu0 0
        %1762 = vmatpush2.bf16.msra.mxu0 %v1703
        %1763 = vmatprep.subr.bf16.mxu0 0
        %1764 = vmatpush2.bf16.msra.mxu0 %v1702
        %1765 = vmatprep.subr.bf16.mxu0 0
        %1766 = vmatpush2.bf16.msra.mxu0 %v1701
        %1767 = vmatprep.subr.bf16.mxu0 0
        %1768 = vmatpush2.bf16.msra.mxu0 %v1700
        %1769 = vmatprep.subr.bf16.mxu0 0
        %1770 = vmatpush2.bf16.msra.mxu0 %v1699
        %1771 = vmatprep.mubr.bf16.mxu0 %v1572
        %1772 = vmatmul.mubr.bf16.gmra.mxu0 %v1571
        %v1773 = vpop.f32.mrf.mxu0
        %v1774 = vadd.f32 0.0, %v1773
        %v1775 = vpop.f32.mrf.mxu0
        %v1776 = vpop.f32.mrf.mxu0
        %v1777 = vadd.f32 0.0, %v1776
        %v1778 = vpop.f32.mrf.mxu0
        %1779 = vmatprep.mubr.bf16.mxu0 %v1575
        %1780 = vmatmul.mubr.bf16.gmra.mxu0 %v1574
        %v1781 = vpop.f32.mrf.mxu0
        %v1782 = vadd.f32 0.0, %v1781
        %v1783 = vpop.f32.mrf.mxu0
        %v1784 = vpop.f32.mrf.mxu0
        %v1785 = vadd.f32 0.0, %v1784
        %v1786 = vpop.f32.mrf.mxu0
        %1787 = vmatprep.mubr.bf16.mxu0 %v1578
        %1788 = vmatmul.mubr.bf16.gmra.mxu0 %v1577
        %v1789 = vpop.f32.mrf.mxu0
        %v1790 = vadd.f32 0.0, %v1789
        %v1791 = vpop.f32.mrf.mxu0
        %v1792 = vpop.f32.mrf.mxu0
        %v1793 = vadd.f32 0.0, %v1792
        %v1794 = vpop.f32.mrf.mxu0
        %1795 = vmatprep.mubr.bf16.mxu0 %v1581
        %1796 = vmatmul.mubr.bf16.gmra.mxu0 %v1580
        %v1797 = vpop.f32.mrf.mxu0
        %v1798 = vadd.f32 0.0, %v1797
        %v1799 = vpop.f32.mrf.mxu0
        %v1800 = vpop.f32.mrf.mxu0
        %v1801 = vadd.f32 0.0, %v1800
        %v1802 = vpop.f32.mrf.mxu0
        %1803 = vmatprep.mubr.bf16.mxu0 %v1584
        %1804 = vmatmul.mubr.bf16.gmra.mxu0 %v1583
        %v1805 = vpop.f32.mrf.mxu0
        %v1806 = vadd.f32 0.0, %v1805
        %v1807 = vpop.f32.mrf.mxu0
        %v1808 = vpop.f32.mrf.mxu0
        %v1809 = vadd.f32 0.0, %v1808
        %v1810 = vpop.f32.mrf.mxu0
        %1811 = vmatprep.mubr.bf16.mxu0 %v1587
        %1812 = vmatmul.mubr.bf16.gmra.mxu0 %v1586
        %v1813 = vpop.f32.mrf.mxu0
        %v1814 = vadd.f32 0.0, %v1813
        %v1815 = vpop.f32.mrf.mxu0
        %v1816 = vpop.f32.mrf.mxu0
        %v1817 = vadd.f32 0.0, %v1816
        %v1818 = vpop.f32.mrf.mxu0
        %1819 = vmatprep.mubr.bf16.mxu0 %v1590
        %1820 = vmatmul.mubr.bf16.gmra.mxu0 %v1589
        %v1821 = vpop.f32.mrf.mxu0
        %v1822 = vadd.f32 0.0, %v1821
        %v1823 = vpop.f32.mrf.mxu0
        %v1824 = vpop.f32.mrf.mxu0
        %v1825 = vadd.f32 0.0, %v1824
        %v1826 = vpop.f32.mrf.mxu0
        %1827 = vmatprep.mubr.bf16.mxu0 %v1593
        %1828 = vmatmul.mubr.bf16.gmra.mxu0 %v1592
        %v1829 = vpop.f32.mrf.mxu0
        %v1830 = vadd.f32 0.0, %v1829
        %v1831 = vpop.f32.mrf.mxu0
        %v1832 = vpop.f32.mrf.mxu0
        %v1833 = vadd.f32 0.0, %v1832
        %v1834 = vpop.f32.mrf.mxu0
        %1835 = vdwg.mxu0
        %1836 = vmatprep.subr.bf16.mxu0 0
        %1837 = vmatpush1.bf16.msra.mxu0 %v1714
        %1838 = vmatprep.subr.bf16.mxu0 0
        %1839 = vmatpush1.bf16.msra.mxu0 %v1713
        %1840 = vmatprep.subr.bf16.mxu0 0
        %1841 = vmatpush1.bf16.msra.mxu0 %v1712
        %1842 = vmatprep.subr.bf16.mxu0 0
        %1843 = vmatpush1.bf16.msra.mxu0 %v1711
        %1844 = vmatprep.subr.bf16.mxu0 0
        %1845 = vmatpush1.bf16.msra.mxu0 %v1710
        %1846 = vmatprep.subr.bf16.mxu0 0
        %1847 = vmatpush1.bf16.msra.mxu0 %v1709
        %1848 = vmatprep.subr.bf16.mxu0 0
        %1849 = vmatpush1.bf16.msra.mxu0 %v1708
        %1850 = vmatprep.subr.bf16.mxu0 0
        %1851 = vmatpush1.bf16.msra.mxu0 %v1707
        %1852 = vmatprep.subr.bf16.mxu0 0
        %1853 = vmatpush2.bf16.msra.mxu0 0
        %1854 = vmatprep.subr.bf16.mxu0 0
        %1855 = vmatpush2.bf16.msra.mxu0 0
        %1856 = vmatprep.subr.bf16.mxu0 0
        %1857 = vmatpush2.bf16.msra.mxu0 0
        %1858 = vmatprep.subr.bf16.mxu0 0
        %1859 = vmatpush2.bf16.msra.mxu0 0
        %1860 = vmatprep.subr.bf16.mxu0 0
        %1861 = vmatpush2.bf16.msra.mxu0 0
        %1862 = vmatprep.subr.bf16.mxu0 0
        %1863 = vmatpush2.bf16.msra.mxu0 0
        %1864 = vmatprep.subr.bf16.mxu0 0
        %1865 = vmatpush2.bf16.msra.mxu0 0
        %1866 = vmatprep.subr.bf16.mxu0 0
        %1867 = vmatpush2.bf16.msra.mxu0 0
        %1868 = vmatprep.mubr.bf16.mxu0 0
        %1869 = vmatmul.mubr.bf16.gmra.mxu0 %v1573
        %v1870 = vpop.f32.mrf.mxu0
        %v1871 = vadd.f32 %v1774, %v1870
        %v1872 = vpop.f32.mrf.mxu0
        %v1873 = vpop.f32.mrf.mxu0
        %v1874 = vadd.f32 %v1777, %v1873
        %v1875 = vpop.f32.mrf.mxu0
        %1876 = vmatprep.mubr.bf16.mxu0 0
        %1877 = vmatmul.mubr.bf16.gmra.mxu0 %v1576
        %v1878 = vpop.f32.mrf.mxu0
        %v1879 = vadd.f32 %v1782, %v1878
        %v1880 = vpop.f32.mrf.mxu0
        %v1881 = vpop.f32.mrf.mxu0
        %v1882 = vadd.f32 %v1785, %v1881
        %v1883 = vpop.f32.mrf.mxu0
        %1884 = vmatprep.mubr.bf16.mxu0 0
        %1885 = vmatmul.mubr.bf16.gmra.mxu0 %v1579
        %v1886 = vpop.f32.mrf.mxu0
        %v1887 = vadd.f32 %v1790, %v1886
        %v1888 = vpop.f32.mrf.mxu0
        %v1889 = vpop.f32.mrf.mxu0
        %v1890 = vadd.f32 %v1793, %v1889
        %v1891 = vpop.f32.mrf.mxu0
        %1892 = vmatprep.mubr.bf16.mxu0 0
        %1893 = vmatmul.mubr.bf16.gmra.mxu0 %v1582
        %v1894 = vpop.f32.mrf.mxu0
        %v1895 = vadd.f32 %v1798, %v1894
        %v1896 = vpop.f32.mrf.mxu0
        %v1897 = vpop.f32.mrf.mxu0
        %v1898 = vadd.f32 %v1801, %v1897
        %v1899 = vpop.f32.mrf.mxu0
        %1900 = vmatprep.mubr.bf16.mxu0 0
        %1901 = vmatmul.mubr.bf16.gmra.mxu0 %v1585
        %v1902 = vpop.f32.mrf.mxu0
        %v1903 = vadd.f32 %v1806, %v1902
        %v1904 = vpop.f32.mrf.mxu0
        %v1905 = vpop.f32.mrf.mxu0
        %v1906 = vadd.f32 %v1809, %v1905
        %v1907 = vpop.f32.mrf.mxu0
        %1908 = vmatprep.mubr.bf16.mxu0 0
        %1909 = vmatmul.mubr.bf16.gmra.mxu0 %v1588
        %v1910 = vpop.f32.mrf.mxu0
        %v1911 = vadd.f32 %v1814, %v1910
        %v1912 = vpop.f32.mrf.mxu0
        %v1913 = vpop.f32.mrf.mxu0
        %v1914 = vadd.f32 %v1817, %v1913
        %v1915 = vpop.f32.mrf.mxu0
        %1916 = vmatprep.mubr.bf16.mxu0 0
        %1917 = vmatmul.mubr.bf16.gmra.mxu0 %v1591
        %v1918 = vpop.f32.mrf.mxu0
        %v1919 = vadd.f32 %v1822, %v1918
        %v1920 = vpop.f32.mrf.mxu0
        %v1921 = vpop.f32.mrf.mxu0
        %v1922 = vadd.f32 %v1825, %v1921
        %v1923 = vpop.f32.mrf.mxu0
        %1924 = vmatprep.mubr.bf16.mxu0 0
        %1925 = vmatmul.mubr.bf16.gmra.mxu0 %v1594
        %v1926 = vpop.f32.mrf.mxu0
        %v1927 = vadd.f32 %v1830, %v1926
        %v1928 = vpop.f32.mrf.mxu0
        %v1929 = vpop.f32.mrf.mxu0
        %v1930 = vadd.f32 %v1833, %v1929
        %v1931 = vpop.f32.mrf.mxu0
        %1932 = vdwg.mxu0
        %v1933 = vadd.f32 %v1555, %v1871
        %v1934 = vadd.f32 %v1556, %v1874
        %v1935 = vadd.f32 %v1557, %v1879
        %v1936 = vadd.f32 %v1558, %v1882
        %v1937 = vadd.f32 %v1559, %v1887
        %v1938 = vadd.f32 %v1560, %v1890
        %v1939 = vadd.f32 %v1561, %v1895
        %v1940 = vadd.f32 %v1562, %v1898
        %v1941 = vadd.f32 %v1563, %v1903
        %v1942 = vadd.f32 %v1564, %v1906
        %v1943 = vadd.f32 %v1565, %v1911
        %v1944 = vadd.f32 %v1566, %v1914
        %v1945 = vadd.f32 %v1567, %v1919
        %v1946 = vadd.f32 %v1568, %v1922
        %v1947 = vadd.f32 %v1569, %v1927
        %v1948 = vadd.f32 %v1570, %v1930
        %1949 = vst [vmem:[%s326] sm:$0xff] %v1933
        %1950 = vst [vmem:[%s326 + $0x8] sm:$0xff] %v1934
        %1951 = vst [vmem:[%s326 + $0x10] sm:$0xff] %v1935
        %1952 = vst [vmem:[%s326 + $0x18] sm:$0xff] %v1936
        %1953 = vst [vmem:[%s326 + $0x20] sm:$0xff] %v1937
        %1954 = vst [vmem:[%s326 + $0x28] sm:$0xff] %v1938
        %1955 = vst [vmem:[%s326 + $0x30] sm:$0xff] %v1939
        %1956 = vst [vmem:[%s326 + $0x38] sm:$0xff] %v1940
        %1957 = vst [vmem:[%s326 + $0x40] sm:$0xff] %v1941
        %1958 = vst [vmem:[%s326 + $0x48] sm:$0xff] %v1942
        %1959 = vst [vmem:[%s326 + $0x50] sm:$0xff] %v1943
        %1960 = vst [vmem:[%s326 + $0x58] sm:$0xff] %v1944
        %1961 = vst [vmem:[%s326 + $0x60] sm:$0xff] %v1945
        %1962 = vst [vmem:[%s326 + $0x68] sm:$0xff] %v1946
        %1963 = vst [vmem:[%s326 + $0x70] sm:$0xff] %v1947
        %1964 = vst [vmem:[%s326 + $0x78] sm:$0xff] %v1948
        %1965 = vst [vmem:[#allocation2] sm:$0xff] %v1203
        %1966 = vst [vmem:[#allocation2 + $0x8] sm:$0xff] %v1204
        %1967 = vst [vmem:[#allocation2 + $0x10] sm:$0xff] %v1205
        %1968 = vst [vmem:[#allocation2 + $0x18] sm:$0xff] %v1206
        %1969 = vst [vmem:[#allocation2 + $0x20] sm:$0xff] %v1207
        %1970 = vst [vmem:[#allocation2 + $0x28] sm:$0xff] %v1208
        %1971 = vst [vmem:[#allocation2 + $0x30] sm:$0xff] %v1209
        %1972 = vst [vmem:[#allocation2 + $0x38] sm:$0xff] %v1210
        %1973 = vst [vmem:[#allocation2 + $0x40] sm:$0xff] %v1211
        %1974 = vst [vmem:[#allocation2 + $0x48] sm:$0xff] %v1212
        %1975 = vst [vmem:[#allocation2 + $0x50] sm:$0xff] %v1213
        %1976 = vst [vmem:[#allocation2 + $0x58] sm:$0xff] %v1214
        %1977 = vst [vmem:[#allocation2 + $0x60] sm:$0xff] %v1215
        %1978 = vst [vmem:[#allocation2 + $0x68] sm:$0xff] %v1216
        %1979 = vst [vmem:[#allocation2 + $0x70] sm:$0xff] %v1217
        %1980 = vst [vmem:[#allocation2 + $0x78] sm:$0xff] %v1218
        %p1981 = scmp.eq.s32.totalorder %s21, 1
        // Predicated region
        $region68: #{attention_prop_forward.5} parent=58 // pred_check
          %p1982 = pneg %p1981
        $region69: #{attention_prop_forward.5} parent=58 // pred_check_branch
          %1984 = sbr.rel (%p1982) target = $region71
        $region70: #{attention_prop_forward.5} parent=58 // pred_region
          %v1985 = vld [vmem:[#allocation3] sm:$0xff]
          %v1986 = vld [vmem:[#allocation3 + $0x8] sm:$0xff]
          %v1987 = vld [vmem:[#allocation3 + $0x10] sm:$0xff]
          %v1988 = vld [vmem:[#allocation3 + $0x18] sm:$0xff]
          %v1989 = vld [vmem:[#allocation3 + $0x20] sm:$0xff]
          %v1990 = vld [vmem:[#allocation3 + $0x28] sm:$0xff]
          %v1991 = vld [vmem:[#allocation3 + $0x30] sm:$0xff]
          %v1992 = vld [vmem:[#allocation3 + $0x38] sm:$0xff]
          %v1993 = vld [vmem:[#allocation3 + $0x40] sm:$0xff]
          %v1994 = vld [vmem:[#allocation3 + $0x48] sm:$0xff]
          %v1995 = vld [vmem:[#allocation3 + $0x50] sm:$0xff]
          %v1996 = vld [vmem:[#allocation3 + $0x58] sm:$0xff]
          %v1997 = vld [vmem:[#allocation3 + $0x60] sm:$0xff]
          %v1998 = vld [vmem:[#allocation3 + $0x68] sm:$0xff]
          %v1999 = vld [vmem:[#allocation3 + $0x70] sm:$0xff]
          %v2000 = vld [vmem:[#allocation3 + $0x78] sm:$0xff]
          %v2001 = vrcp.pop %v1985
          %v2002 = vrcp.pop %v1986
          %v2003 = vrcp.pop %v1987
          %v2004 = vrcp.pop %v1988
          %v2005 = vrcp.pop %v1989
          %v2006 = vrcp.pop %v1990
          %v2007 = vrcp.pop %v1991
          %v2008 = vrcp.pop %v1992
          %v2009 = vrcp.pop %v1993
          %v2010 = vrcp.pop %v1994
          %v2011 = vrcp.pop %v1995
          %v2012 = vrcp.pop %v1996
          %v2013 = vrcp.pop %v1997
          %v2014 = vrcp.pop %v1998
          %v2015 = vrcp.pop %v1999
          %v2016 = vrcp.pop %v2000
          %v2017 = vld [vmem:[%s326] sm:$0xff]
          %v2018 = vld [vmem:[%s326 + $0x8] sm:$0xff]
          %v2019 = vld [vmem:[%s326 + $0x10] sm:$0xff]
          %v2020 = vld [vmem:[%s326 + $0x18] sm:$0xff]
          %v2021 = vld [vmem:[%s326 + $0x20] sm:$0xff]
          %v2022 = vld [vmem:[%s326 + $0x28] sm:$0xff]
          %v2023 = vld [vmem:[%s326 + $0x30] sm:$0xff]
          %v2024 = vld [vmem:[%s326 + $0x38] sm:$0xff]
          %v2025 = vld [vmem:[%s326 + $0x40] sm:$0xff]
          %v2026 = vld [vmem:[%s326 + $0x48] sm:$0xff]
          %v2027 = vld [vmem:[%s326 + $0x50] sm:$0xff]
          %v2028 = vld [vmem:[%s326 + $0x58] sm:$0xff]
          %v2029 = vld [vmem:[%s326 + $0x60] sm:$0xff]
          %v2030 = vld [vmem:[%s326 + $0x68] sm:$0xff]
          %v2031 = vld [vmem:[%s326 + $0x70] sm:$0xff]
          %v2032 = vld [vmem:[%s326 + $0x78] sm:$0xff]
          %v2033 = vmul.f32 %v2017, %v2001
          %v2034 = vmul.f32 %v2018, %v2002
          %v2035 = vmul.f32 %v2019, %v2003
          %v2036 = vmul.f32 %v2020, %v2004
          %v2037 = vmul.f32 %v2021, %v2005
          %v2038 = vmul.f32 %v2022, %v2006
          %v2039 = vmul.f32 %v2023, %v2007
          %v2040 = vmul.f32 %v2024, %v2008
          %v2041 = vmul.f32 %v2025, %v2009
          %v2042 = vmul.f32 %v2026, %v2010
          %v2043 = vmul.f32 %v2027, %v2011
          %v2044 = vmul.f32 %v2028, %v2012
          %v2045 = vmul.f32 %v2029, %v2013
          %v2046 = vmul.f32 %v2030, %v2014
          %v2047 = vmul.f32 %v2031, %v2015
          %v2048 = vmul.f32 %v2032, %v2016
          %2049 = vst [vmem:[%s326] sm:$0xff] %v2033
          %2050 = vst [vmem:[%s326 + $0x8] sm:$0xff] %v2034
          %2051 = vst [vmem:[%s326 + $0x10] sm:$0xff] %v2035
          %2052 = vst [vmem:[%s326 + $0x18] sm:$0xff] %v2036
          %2053 = vst [vmem:[%s326 + $0x20] sm:$0xff] %v2037
          %2054 = vst [vmem:[%s326 + $0x28] sm:$0xff] %v2038
          %2055 = vst [vmem:[%s326 + $0x30] sm:$0xff] %v2039
          %2056 = vst [vmem:[%s326 + $0x38] sm:$0xff] %v2040
          %2057 = vst [vmem:[%s326 + $0x40] sm:$0xff] %v2041
          %2058 = vst [vmem:[%s326 + $0x48] sm:$0xff] %v2042
          %2059 = vst [vmem:[%s326 + $0x50] sm:$0xff] %v2043
          %2060 = vst [vmem:[%s326 + $0x58] sm:$0xff] %v2044
          %2061 = vst [vmem:[%s326 + $0x60] sm:$0xff] %v2045
          %2062 = vst [vmem:[%s326 + $0x68] sm:$0xff] %v2046
          %2063 = vst [vmem:[%s326 + $0x70] sm:$0xff] %v2047
          %2064 = vst [vmem:[%s326 + $0x78] sm:$0xff] %v2048
        $region71: #{attention_prop_forward.5} parent=58 // pred_fallthru
          _
        %s2065 = smul.u32 16, %s20
        %p2066 = scmp.lt.s32.totalorder %s2065, 31
        %s2067 = scalar_select %p2066, %s2065, 31
        %s2068 = smul.addr %s2067, 8
        %s2069 = scalar_lea.vmem %s5, %s2068
        // Predicated region
        $region72: #{attention_prop_forward.5} parent=58 // pred_check
          %p2070 = pneg %p168
        $region73: #{attention_prop_forward.5} parent=58 // pred_check_branch
          %2072 = sbr.rel (%p2070) target = $region75
        $region74: #{attention_prop_forward.5} parent=58 // pred_region
          %s2073 = smul.u32 16, %s20
        $region75: #{attention_prop_forward.5} parent=58 // pred_fallthru
          _
      $region59: #{attention_prop_forward.5} parent=5 // pred_fallthru
        _
      %p2074 = scmp.le.s32.totalorder 2, %s11
      // Predicated region
      $region76: #{attention_prop_forward.5} parent=5 // pred_check
        %p2075 = pneg %p2074
      $region77: #{attention_prop_forward.5} parent=5 // pred_check_branch
        %2077 = sbr.rel (%p2075) target = $region79
      $region78: #{attention_prop_forward.5} parent=5 // pred_region
        %s2078 = ssub.s32 %s11, 2
        // Predicated region
        $region80: #{attention_prop_forward.5} parent=78 // pred_check
          %p2079 = pneg %p174
        $region81: #{attention_prop_forward.5} parent=78 // pred_check_branch
          %2081 = sbr.rel (%p2079) target = $region83
        $region82: #{attention_prop_forward.5} parent=78 // pred_region
          %s2082 = smul.u32 16, %s22
          %p2083 = scmp.lt.s32.totalorder %s2082, 31
          %s2084 = scalar_select %p2083, %s2082, 31
          %s2085 = smul.addr %s2084, 8
          %s2086 = scalar_lea.vmem %s5, %s2085
        $region83: #{attention_prop_forward.5} parent=78 // pred_fallthru
          _
      $region79: #{attention_prop_forward.5} parent=5 // pred_fallthru
        _
    $region6: #{attention_prop_forward.5} parent=1 // loop_footer
      %s15 = sadd.s32 1, %s11
    $region7: #{attention_prop_forward.5} parent=1 // loop_footer_branch
      %10 = sbr.rel target = $region3
    $region8: #{attention_prop_forward.5} parent=1 // loop_exit
      _

// kernel: attention_prop_forward.4
$region0: #{attention_prop_forward.4}
  #allocation0 [shape = 'u32[]', space=smem, size = 0x4, offset = 0x4, fixed_abs, tag = 'smem constant byte address 0x4 - core index']
  #allocation1 [shape = 'u32[144,128]{1,0:T(1,128)}', space=vmem, size = 0x12000, scoped, tag = 'internal scratch']
  %s0 = inlined_call_operand.vmem [shape: bf16[768,128], index: 0, kind: input, shape index: {}]
  %s1 = inlined_call_operand.vmem [shape: bf16[128,256], index: 1, kind: input, shape index: {}]
  %s2 = inlined_call_operand.vmem [shape: f32[1,256], index: 2, kind: input, shape index: {}]
  %s3 = inlined_call_operand.vmem [shape: bf16[128,128], index: 3, kind: input, shape index: {}]
  %s4 = inlined_call_operand.vmem [shape: f32[1,128], index: 4, kind: input, shape index: {}]
  %s5 = inlined_call_operand.vmem [shape: f32[1,128], index: 5, kind: input, shape index: {}]
  %s6 = inlined_call_operand.vmem [shape: f32[1,128], index: 6, kind: input, shape index: {}]
  %s7 = inlined_call_operand.vmem [shape: bf16[128,128], index: 7, kind: input, shape index: {}]
  %s8 = inlined_call_operand.vmem [shape: f32[1,128], index: 8, kind: input, shape index: {}]
  %s9 = inlined_call_operand.vmem [shape: f32[1,128], index: 9, kind: input, shape index: {}]
  %s10 = inlined_call_operand.vmem [shape: f32[1,128], index: 10, kind: input, shape index: {}]
  %s11 = inlined_call_operand.vmem [shape: bf16[768,128], index: 11, kind: output, shape index: {0}]
  %s12 = inlined_call_operand.vmem [shape: bf16[768,128], index: 12, kind: output, shape index: {1}]
  %13 = xla_tuple %s11, %s12
  %s14 = sld [smem:[#allocation0]]
  $region62: #{attention_prop_forward.4} parent=0
    _
  %s16 = ssub.s32 1, %s14
  %s17 = scalar_select 0, %s16, %s14
  // Predicated region
  $region2: #{attention_prop_forward.4} parent=0 // pred_check
    _
  $region3: #{attention_prop_forward.4} parent=0 // pred_check_branch
    %19 = sbr.rel (0) target = $region5
  $region4: #{attention_prop_forward.4} parent=0 // pred_region
    _
  $region5: #{attention_prop_forward.4} parent=0 // pred_fallthru
    _
  // Predicated region
  $region6: #{attention_prop_forward.4} parent=0 // pred_check
    _
  $region7: #{attention_prop_forward.4} parent=0 // pred_check_branch
    %21 = sbr.rel (0) target = $region9
  $region8: #{attention_prop_forward.4} parent=0 // pred_region
    _
  $region9: #{attention_prop_forward.4} parent=0 // pred_fallthru
    _
  // Predicated region
  $region10: #{attention_prop_forward.4} parent=0 // pred_check
    _
  $region11: #{attention_prop_forward.4} parent=0 // pred_check_branch
    %23 = sbr.rel (0) target = $region13
  $region12: #{attention_prop_forward.4} parent=0 // pred_region
    _
  $region13: #{attention_prop_forward.4} parent=0 // pred_fallthru
    _
  // Predicated region
  $region14: #{attention_prop_forward.4} parent=0 // pred_check
    _
  $region15: #{attention_prop_forward.4} parent=0 // pred_check_branch
    %25 = sbr.rel (0) target = $region17
  $region16: #{attention_prop_forward.4} parent=0 // pred_region
    _
  $region17: #{attention_prop_forward.4} parent=0 // pred_fallthru
    _
  // Predicated region
  $region18: #{attention_prop_forward.4} parent=0 // pred_check
    _
  $region19: #{attention_prop_forward.4} parent=0 // pred_check_branch
    %27 = sbr.rel (0) target = $region21
  $region20: #{attention_prop_forward.4} parent=0 // pred_region
    _
  $region21: #{attention_prop_forward.4} parent=0 // pred_fallthru
    _
  // Predicated region
  $region22: #{attention_prop_forward.4} parent=0 // pred_check
    _
  $region23: #{attention_prop_forward.4} parent=0 // pred_check_branch
    %29 = sbr.rel (0) target = $region25
  $region24: #{attention_prop_forward.4} parent=0 // pred_region
    _
  $region25: #{attention_prop_forward.4} parent=0 // pred_fallthru
    _
  // Predicated region
  $region26: #{attention_prop_forward.4} parent=0 // pred_check
    _
  $region27: #{attention_prop_forward.4} parent=0 // pred_check_branch
    %31 = sbr.rel (0) target = $region29
  $region28: #{attention_prop_forward.4} parent=0 // pred_region
    _
  $region29: #{attention_prop_forward.4} parent=0 // pred_fallthru
    _
  // Predicated region
  $region30: #{attention_prop_forward.4} parent=0 // pred_check
    _
  $region31: #{attention_prop_forward.4} parent=0 // pred_check_branch
    %33 = sbr.rel (0) target = $region33
  $region32: #{attention_prop_forward.4} parent=0 // pred_region
    _
  $region33: #{attention_prop_forward.4} parent=0 // pred_fallthru
    _
  // Predicated region
  $region34: #{attention_prop_forward.4} parent=0 // pred_check
    _
  $region35: #{attention_prop_forward.4} parent=0 // pred_check_branch
    %35 = sbr.rel (0) target = $region37
  $region36: #{attention_prop_forward.4} parent=0 // pred_region
    _
  $region37: #{attention_prop_forward.4} parent=0 // pred_fallthru
    _
  // Predicated region
  $region38: #{attention_prop_forward.4} parent=0 // pred_check
    _
  $region39: #{attention_prop_forward.4} parent=0 // pred_check_branch
    %37 = sbr.rel (0) target = $region41
  $region40: #{attention_prop_forward.4} parent=0 // pred_region
    _
  $region41: #{attention_prop_forward.4} parent=0 // pred_fallthru
    _
  // Predicated region
  $region42: #{attention_prop_forward.4} parent=0 // pred_check
    _
  $region43: #{attention_prop_forward.4} parent=0 // pred_check_branch
    %39 = sbr.rel (0) target = $region45
  $region44: #{attention_prop_forward.4} parent=0 // pred_region
    _
  $region45: #{attention_prop_forward.4} parent=0 // pred_fallthru
    _
  %v41 = vld [vmem:[%s0] sm:$0xf]
  %v42 = vld [vmem:[%s0 + $0x4] sm:$0xf]
  %v43 = vld [vmem:[%s0 + $0x8] sm:$0xf]
  %v44 = vld [vmem:[%s0 + $0xc] sm:$0xf]
  %v45 = vld [vmem:[%s0 + $0x10] sm:$0xf]
  %v46 = vld [vmem:[%s0 + $0x14] sm:$0xf]
  %v47 = vld [vmem:[%s0 + $0x18] sm:$0xf]
  %v48 = vld [vmem:[%s0 + $0x1c] sm:$0xf]
  %v49 = vld [vmem:[%s0 + $0x20] sm:$0xf]
  %v50 = vld [vmem:[%s0 + $0x24] sm:$0xf]
  %v51 = vld [vmem:[%s0 + $0x28] sm:$0xf]
  %v52 = vld [vmem:[%s0 + $0x2c] sm:$0xf]
  %v53 = vld [vmem:[%s0 + $0x30] sm:$0xf]
  %v54 = vld [vmem:[%s0 + $0x34] sm:$0xf]
  %v55 = vld [vmem:[%s0 + $0x38] sm:$0xf]
  %v56 = vld [vmem:[%s0 + $0x3c] sm:$0xf]
  %v57 = vld [vmem:[%s0 + $0x40] sm:$0xf]
  %v58 = vld [vmem:[%s0 + $0x44] sm:$0xf]
  %v59 = vld [vmem:[%s0 + $0x48] sm:$0xf]
  %v60 = vld [vmem:[%s0 + $0x4c] sm:$0xf]
  %v61 = vld [vmem:[%s0 + $0x50] sm:$0xf]
  %v62 = vld [vmem:[%s0 + $0x54] sm:$0xf]
  %v63 = vld [vmem:[%s0 + $0x58] sm:$0xf]
  %v64 = vld [vmem:[%s0 + $0x5c] sm:$0xf]
  %v65 = vld [vmem:[%s0 + $0x60] sm:$0xf]
  %v66 = vld [vmem:[%s0 + $0x64] sm:$0xf]
  %v67 = vld [vmem:[%s0 + $0x68] sm:$0xf]
  %v68 = vld [vmem:[%s0 + $0x6c] sm:$0xf]
  %v69 = vld [vmem:[%s0 + $0x70] sm:$0xf]
  %v70 = vld [vmem:[%s0 + $0x74] sm:$0xf]
  %v71 = vld [vmem:[%s0 + $0x78] sm:$0xf]
  %v72 = vld [vmem:[%s0 + $0x7c] sm:$0xf]
  %v73 = vld [vmem:[%s0 + $0x80] sm:$0xf]
  %v74 = vld [vmem:[%s0 + $0x84] sm:$0xf]
  %v75 = vld [vmem:[%s0 + $0x88] sm:$0xf]
  %v76 = vld [vmem:[%s0 + $0x8c] sm:$0xf]
  %v77 = vld [vmem:[%s0 + $0x90] sm:$0xf]
  %v78 = vld [vmem:[%s0 + $0x94] sm:$0xf]
  %v79 = vld [vmem:[%s0 + $0x98] sm:$0xf]
  %v80 = vld [vmem:[%s0 + $0x9c] sm:$0xf]
  %v81 = vld [vmem:[%s0 + $0xa0] sm:$0xf]
  %v82 = vld [vmem:[%s0 + $0xa4] sm:$0xf]
  %v83 = vld [vmem:[%s0 + $0xa8] sm:$0xf]
  %v84 = vld [vmem:[%s0 + $0xac] sm:$0xf]
  %v85 = vld [vmem:[%s0 + $0xb0] sm:$0xf]
  %v86 = vld [vmem:[%s0 + $0xb4] sm:$0xf]
  %v87 = vld [vmem:[%s0 + $0xb8] sm:$0xf]
  %v88 = vld [vmem:[%s0 + $0xbc] sm:$0xf]
  %v89 = vld [vmem:[%s0 + $0xc0] sm:$0xf]
  %v90 = vld [vmem:[%s0 + $0xc4] sm:$0xf]
  %v91 = vld [vmem:[%s0 + $0xc8] sm:$0xf]
  %v92 = vld [vmem:[%s0 + $0xcc] sm:$0xf]
  %v93 = vld [vmem:[%s0 + $0xd0] sm:$0xf]
  %v94 = vld [vmem:[%s0 + $0xd4] sm:$0xf]
  %v95 = vld [vmem:[%s0 + $0xd8] sm:$0xf]
  %v96 = vld [vmem:[%s0 + $0xdc] sm:$0xf]
  %v97 = vld [vmem:[%s0 + $0xe0] sm:$0xf]
  %v98 = vld [vmem:[%s0 + $0xe4] sm:$0xf]
  %v99 = vld [vmem:[%s0 + $0xe8] sm:$0xf]
  %v100 = vld [vmem:[%s0 + $0xec] sm:$0xf]
  %v101 = vld [vmem:[%s0 + $0xf0] sm:$0xf]
  %v102 = vld [vmem:[%s0 + $0xf4] sm:$0xf]
  %v103 = vld [vmem:[%s0 + $0xf8] sm:$0xf]
  %v104 = vld [vmem:[%s0 + $0xfc] sm:$0xf]
  %v105 = vld [vmem:[%s0 + $0x100] sm:$0xf]
  %v106 = vld [vmem:[%s0 + $0x104] sm:$0xf]
  %v107 = vld [vmem:[%s0 + $0x108] sm:$0xf]
  %v108 = vld [vmem:[%s0 + $0x10c] sm:$0xf]
  %v109 = vld [vmem:[%s0 + $0x110] sm:$0xf]
  %v110 = vld [vmem:[%s0 + $0x114] sm:$0xf]
  %v111 = vld [vmem:[%s0 + $0x118] sm:$0xf]
  %v112 = vld [vmem:[%s0 + $0x11c] sm:$0xf]
  %v113 = vld [vmem:[%s0 + $0x120] sm:$0xf]
  %v114 = vld [vmem:[%s0 + $0x124] sm:$0xf]
  %v115 = vld [vmem:[%s0 + $0x128] sm:$0xf]
  %v116 = vld [vmem:[%s0 + $0x12c] sm:$0xf]
  %v117 = vld [vmem:[%s0 + $0x130] sm:$0xf]
  %v118 = vld [vmem:[%s0 + $0x134] sm:$0xf]
  %v119 = vld [vmem:[%s0 + $0x138] sm:$0xf]
  %v120 = vld [vmem:[%s0 + $0x13c] sm:$0xf]
  %v121 = vld [vmem:[%s0 + $0x140] sm:$0xf]
  %v122 = vld [vmem:[%s0 + $0x144] sm:$0xf]
  %v123 = vld [vmem:[%s0 + $0x148] sm:$0xf]
  %v124 = vld [vmem:[%s0 + $0x14c] sm:$0xf]
  %v125 = vld [vmem:[%s0 + $0x150] sm:$0xf]
  %v126 = vld [vmem:[%s0 + $0x154] sm:$0xf]
  %v127 = vld [vmem:[%s0 + $0x158] sm:$0xf]
  %v128 = vld [vmem:[%s0 + $0x15c] sm:$0xf]
  %v129 = vld [vmem:[%s0 + $0x160] sm:$0xf]
  %v130 = vld [vmem:[%s0 + $0x164] sm:$0xf]
  %v131 = vld [vmem:[%s0 + $0x168] sm:$0xf]
  %v132 = vld [vmem:[%s0 + $0x16c] sm:$0xf]
  %v133 = vld [vmem:[%s0 + $0x170] sm:$0xf]
  %v134 = vld [vmem:[%s0 + $0x174] sm:$0xf]
  %v135 = vld [vmem:[%s0 + $0x178] sm:$0xf]
  %v136 = vld [vmem:[%s0 + $0x17c] sm:$0xf]
  %v137 = vld [vmem:[%s1] sm:$0xff]
  %v138 = vld [vmem:[%s1 + $0x8] sm:$0xff]
  %v139 = vld [vmem:[%s1 + $0x10] sm:$0xff]
  %v140 = vld [vmem:[%s1 + $0x18] sm:$0xff]
  %v141 = vld [vmem:[%s1 + $0x20] sm:$0xff]
  %v142 = vld [vmem:[%s1 + $0x28] sm:$0xff]
  %v143 = vld [vmem:[%s1 + $0x30] sm:$0xff]
  %v144 = vld [vmem:[%s1 + $0x38] sm:$0xff]
  %v145 = vld [vmem:[%s1 + $0x40] sm:$0xff]
  %v146 = vld [vmem:[%s1 + $0x48] sm:$0xff]
  %v147 = vld [vmem:[%s1 + $0x50] sm:$0xff]
  %v148 = vld [vmem:[%s1 + $0x58] sm:$0xff]
  %v149 = vld [vmem:[%s1 + $0x60] sm:$0xff]
  %v150 = vld [vmem:[%s1 + $0x68] sm:$0xff]
  %v151 = vld [vmem:[%s1 + $0x70] sm:$0xff]
  %v152 = vld [vmem:[%s1 + $0x78] sm:$0xff]
  %v153 = vld [vmem:[%s2] sm:$0x3]
  %v155 = vlaneseq
  %v156 = vshrl.u32 %v155, 7
  %v157 = vsub.s32 0, %v156
  %v158 = vrot.slane %v153, %v157
  %v159 = vlaneseq
  %v160 = vshrl.u32 %v159, 7
  %v161 = vsub.s32 1, %v160
  %v162 = vrot.slane %v153, %v161
  %v261 = vunpack.c.l.b16 %v41
  %v262 = vunpack.c.l.b16 %v42
  %v263 = vunpack.c.l.b16 %v43
  %v264 = vunpack.c.l.b16 %v44
  %v265 = vunpack.c.l.b16 %v45
  %v266 = vunpack.c.l.b16 %v46
  %v267 = vunpack.c.l.b16 %v47
  %v268 = vunpack.c.l.b16 %v48
  %v269 = vunpack.c.l.b16 %v49
  %v270 = vunpack.c.l.b16 %v50
  %v271 = vunpack.c.l.b16 %v51
  %v272 = vunpack.c.l.b16 %v52
  %v273 = vunpack.c.l.b16 %v53
  %v274 = vunpack.c.l.b16 %v54
  %v275 = vunpack.c.l.b16 %v55
  %v276 = vunpack.c.l.b16 %v56
  %v277 = vunpack.c.l.b16 %v57
  %v278 = vunpack.c.l.b16 %v58
  %v279 = vunpack.c.l.b16 %v59
  %v280 = vunpack.c.l.b16 %v60
  %v281 = vunpack.c.l.b16 %v61
  %v282 = vunpack.c.l.b16 %v62
  %v283 = vunpack.c.l.b16 %v63
  %v284 = vunpack.c.l.b16 %v64
  %v285 = vunpack.c.l.b16 %v65
  %v286 = vunpack.c.l.b16 %v66
  %v287 = vunpack.c.l.b16 %v67
  %v288 = vunpack.c.l.b16 %v68
  %v289 = vunpack.c.l.b16 %v69
  %v290 = vunpack.c.l.b16 %v70
  %v291 = vunpack.c.l.b16 %v71
  %v292 = vunpack.c.l.b16 %v72
  %v293 = vunpack.c.l.b16 %v73
  %v294 = vunpack.c.l.b16 %v74
  %v295 = vunpack.c.l.b16 %v75
  %v296 = vunpack.c.l.b16 %v76
  %v297 = vunpack.c.l.b16 %v77
  %v298 = vunpack.c.l.b16 %v78
  %v299 = vunpack.c.l.b16 %v79
  %v300 = vunpack.c.l.b16 %v80
  %v301 = vunpack.c.l.b16 %v81
  %v302 = vunpack.c.l.b16 %v82
  %v303 = vunpack.c.l.b16 %v83
  %v304 = vunpack.c.l.b16 %v84
  %v305 = vunpack.c.l.b16 %v85
  %v306 = vunpack.c.l.b16 %v86
  %v307 = vunpack.c.l.b16 %v87
  %v308 = vunpack.c.l.b16 %v88
  %v309 = vunpack.c.l.b16 %v89
  %v310 = vunpack.c.l.b16 %v90
  %v311 = vunpack.c.l.b16 %v91
  %v312 = vunpack.c.l.b16 %v92
  %v313 = vunpack.c.l.b16 %v93
  %v314 = vunpack.c.l.b16 %v94
  %v315 = vunpack.c.l.b16 %v95
  %v316 = vunpack.c.l.b16 %v96
  %v317 = vunpack.c.l.b16 %v97
  %v318 = vunpack.c.l.b16 %v98
  %v319 = vunpack.c.l.b16 %v99
  %v320 = vunpack.c.l.b16 %v100
  %v321 = vunpack.c.l.b16 %v101
  %v322 = vunpack.c.l.b16 %v102
  %v323 = vunpack.c.l.b16 %v103
  %v324 = vunpack.c.l.b16 %v104
  %v325 = vunpack.c.l.b16 %v105
  %v326 = vunpack.c.l.b16 %v106
  %v327 = vunpack.c.l.b16 %v107
  %v328 = vunpack.c.l.b16 %v108
  %v329 = vunpack.c.l.b16 %v109
  %v330 = vunpack.c.l.b16 %v110
  %v331 = vunpack.c.l.b16 %v111
  %v332 = vunpack.c.l.b16 %v112
  %v333 = vunpack.c.l.b16 %v113
  %v334 = vunpack.c.l.b16 %v114
  %v335 = vunpack.c.l.b16 %v115
  %v336 = vunpack.c.l.b16 %v116
  %v337 = vunpack.c.l.b16 %v117
  %v338 = vunpack.c.l.b16 %v118
  %v339 = vunpack.c.l.b16 %v119
  %v340 = vunpack.c.l.b16 %v120
  %v341 = vunpack.c.l.b16 %v121
  %v342 = vunpack.c.l.b16 %v122
  %v343 = vunpack.c.l.b16 %v123
  %v344 = vunpack.c.l.b16 %v124
  %v345 = vunpack.c.l.b16 %v125
  %v346 = vunpack.c.l.b16 %v126
  %v347 = vunpack.c.l.b16 %v127
  %v348 = vunpack.c.l.b16 %v128
  %v349 = vunpack.c.l.b16 %v129
  %v350 = vunpack.c.l.b16 %v130
  %v351 = vunpack.c.l.b16 %v131
  %v352 = vunpack.c.l.b16 %v132
  %v353 = vunpack.c.l.b16 %v133
  %v354 = vunpack.c.l.b16 %v134
  %v355 = vunpack.c.l.b16 %v135
  %v356 = vunpack.c.l.b16 %v136
  %v357 = vpack.c.b16 %v262, %v261
  %v358 = vpack.c.b16 %v264, %v263
  %v359 = vpack.c.b16 %v266, %v265
  %v360 = vpack.c.b16 %v268, %v267
  %v361 = vpack.c.b16 %v270, %v269
  %v362 = vpack.c.b16 %v272, %v271
  %v363 = vpack.c.b16 %v274, %v273
  %v364 = vpack.c.b16 %v276, %v275
  %v365 = vpack.c.b16 %v278, %v277
  %v366 = vpack.c.b16 %v280, %v279
  %v367 = vpack.c.b16 %v282, %v281
  %v368 = vpack.c.b16 %v284, %v283
  %v369 = vpack.c.b16 %v286, %v285
  %v370 = vpack.c.b16 %v288, %v287
  %v371 = vpack.c.b16 %v290, %v289
  %v372 = vpack.c.b16 %v292, %v291
  %v373 = vpack.c.b16 %v294, %v293
  %v374 = vpack.c.b16 %v296, %v295
  %v375 = vpack.c.b16 %v298, %v297
  %v376 = vpack.c.b16 %v300, %v299
  %v377 = vpack.c.b16 %v302, %v301
  %v378 = vpack.c.b16 %v304, %v303
  %v379 = vpack.c.b16 %v306, %v305
  %v380 = vpack.c.b16 %v308, %v307
  %v381 = vpack.c.b16 %v310, %v309
  %v382 = vpack.c.b16 %v312, %v311
  %v383 = vpack.c.b16 %v314, %v313
  %v384 = vpack.c.b16 %v316, %v315
  %v385 = vpack.c.b16 %v318, %v317
  %v386 = vpack.c.b16 %v320, %v319
  %v387 = vpack.c.b16 %v322, %v321
  %v388 = vpack.c.b16 %v324, %v323
  %v389 = vpack.c.b16 %v326, %v325
  %v390 = vpack.c.b16 %v328, %v327
  %v391 = vpack.c.b16 %v330, %v329
  %v392 = vpack.c.b16 %v332, %v331
  %v393 = vpack.c.b16 %v334, %v333
  %v394 = vpack.c.b16 %v336, %v335
  %v395 = vpack.c.b16 %v338, %v337
  %v396 = vpack.c.b16 %v340, %v339
  %v397 = vpack.c.b16 %v342, %v341
  %v398 = vpack.c.b16 %v344, %v343
  %v399 = vpack.c.b16 %v346, %v345
  %v400 = vpack.c.b16 %v348, %v347
  %v401 = vpack.c.b16 %v350, %v349
  %v402 = vpack.c.b16 %v352, %v351
  %v403 = vpack.c.b16 %v354, %v353
  %v404 = vpack.c.b16 %v356, %v355
  %v469 = vunpack.c.l.b16 %v137
  %v470 = vunpack.c.h.b16 %v137
  %v471 = vunpack.c.l.b16 %v138
  %v472 = vunpack.c.h.b16 %v138
  %v473 = vunpack.c.l.b16 %v139
  %v474 = vunpack.c.h.b16 %v139
  %v475 = vunpack.c.l.b16 %v140
  %v476 = vunpack.c.h.b16 %v140
  %v477 = vunpack.c.l.b16 %v141
  %v478 = vunpack.c.h.b16 %v141
  %v479 = vunpack.c.l.b16 %v142
  %v480 = vunpack.c.h.b16 %v142
  %v481 = vunpack.c.l.b16 %v143
  %v482 = vunpack.c.h.b16 %v143
  %v483 = vunpack.c.l.b16 %v144
  %v484 = vunpack.c.h.b16 %v144
  %v485 = vunpack.c.l.b16 %v145
  %v486 = vunpack.c.h.b16 %v145
  %v487 = vunpack.c.l.b16 %v146
  %v488 = vunpack.c.h.b16 %v146
  %v489 = vunpack.c.l.b16 %v147
  %v490 = vunpack.c.h.b16 %v147
  %v491 = vunpack.c.l.b16 %v148
  %v492 = vunpack.c.h.b16 %v148
  %v493 = vunpack.c.l.b16 %v149
  %v494 = vunpack.c.h.b16 %v149
  %v495 = vunpack.c.l.b16 %v150
  %v496 = vunpack.c.h.b16 %v150
  %v497 = vunpack.c.l.b16 %v151
  %v498 = vunpack.c.h.b16 %v151
  %v499 = vunpack.c.l.b16 %v152
  %v500 = vunpack.c.h.b16 %v152
  %v501 = vpack.c.b16 %v471, %v469
  %v502 = vpack.c.b16 %v472, %v470
  %v503 = vpack.c.b16 %v475, %v473
  %v504 = vpack.c.b16 %v476, %v474
  %v505 = vpack.c.b16 %v479, %v477
  %v506 = vpack.c.b16 %v480, %v478
  %v507 = vpack.c.b16 %v483, %v481
  %v508 = vpack.c.b16 %v484, %v482
  %v509 = vpack.c.b16 %v487, %v485
  %v510 = vpack.c.b16 %v488, %v486
  %v511 = vpack.c.b16 %v491, %v489
  %v512 = vpack.c.b16 %v492, %v490
  %v513 = vpack.c.b16 %v495, %v493
  %v514 = vpack.c.b16 %v496, %v494
  %v515 = vpack.c.b16 %v499, %v497
  %v516 = vpack.c.b16 %v500, %v498
  %533 = vmatprep.subr.bf16.mxu0 %v516
  %534 = vmatpush1.bf16.msra.mxu0 %v515
  %535 = vmatprep.subr.bf16.mxu0 %v514
  %536 = vmatpush1.bf16.msra.mxu0 %v513
  %537 = vmatprep.subr.bf16.mxu0 %v512
  %538 = vmatpush1.bf16.msra.mxu0 %v511
  %539 = vmatprep.subr.bf16.mxu0 %v510
  %540 = vmatpush1.bf16.msra.mxu0 %v509
  %541 = vmatprep.subr.bf16.mxu0 %v508
  %542 = vmatpush1.bf16.msra.mxu0 %v507
  %543 = vmatprep.subr.bf16.mxu0 %v506
  %544 = vmatpush1.bf16.msra.mxu0 %v505
  %545 = vmatprep.subr.bf16.mxu0 %v504
  %546 = vmatpush1.bf16.msra.mxu0 %v503
  %547 = vmatprep.subr.bf16.mxu0 %v502
  %548 = vmatpush1.bf16.msra.mxu0 %v501
  %549 = vmatprep.subr.bf16.mxu0 0
  %550 = vmatpush2.bf16.msra.mxu0 0
  %551 = vmatprep.subr.bf16.mxu0 0
  %552 = vmatpush2.bf16.msra.mxu0 0
  %553 = vmatprep.subr.bf16.mxu0 0
  %554 = vmatpush2.bf16.msra.mxu0 0
  %555 = vmatprep.subr.bf16.mxu0 0
  %556 = vmatpush2.bf16.msra.mxu0 0
  %557 = vmatprep.subr.bf16.mxu0 0
  %558 = vmatpush2.bf16.msra.mxu0 0
  %559 = vmatprep.subr.bf16.mxu0 0
  %560 = vmatpush2.bf16.msra.mxu0 0
  %561 = vmatprep.subr.bf16.mxu0 0
  %562 = vmatpush2.bf16.msra.mxu0 0
  %563 = vmatprep.subr.bf16.mxu0 0
  %564 = vmatpush2.bf16.msra.mxu0 0
  %565 = vmatprep.mubr.bf16.mxu0 0
  %566 = vmatmul.mubr.bf16.gmra.mxu0 %v357
  %v567 = vpop.f32.mrf.mxu0
  %v568 = vadd.f32 %v158, %v567
  %v569 = vpop.f32.mrf.mxu0
  %v570 = vadd.f32 %v162, %v569
  %v571 = vpop.f32.mrf.mxu0
  %v572 = vadd.f32 %v158, %v571
  %v573 = vpop.f32.mrf.mxu0
  %v574 = vadd.f32 %v162, %v573
  %575 = vmatprep.mubr.bf16.mxu0 0
  %576 = vmatmul.mubr.bf16.gmra.mxu0 %v358
  %v577 = vpop.f32.mrf.mxu0
  %v578 = vadd.f32 %v158, %v577
  %v579 = vpop.f32.mrf.mxu0
  %v580 = vadd.f32 %v162, %v579
  %v581 = vpop.f32.mrf.mxu0
  %v582 = vadd.f32 %v158, %v581
  %v583 = vpop.f32.mrf.mxu0
  %v584 = vadd.f32 %v162, %v583
  %585 = vmatprep.mubr.bf16.mxu0 0
  %586 = vmatmul.mubr.bf16.gmra.mxu0 %v359
  %v587 = vpop.f32.mrf.mxu0
  %v588 = vadd.f32 %v158, %v587
  %v589 = vpop.f32.mrf.mxu0
  %v590 = vadd.f32 %v162, %v589
  %v591 = vpop.f32.mrf.mxu0
  %v592 = vadd.f32 %v158, %v591
  %v593 = vpop.f32.mrf.mxu0
  %v594 = vadd.f32 %v162, %v593
  %595 = vmatprep.mubr.bf16.mxu0 0
  %596 = vmatmul.mubr.bf16.gmra.mxu0 %v360
  %v597 = vpop.f32.mrf.mxu0
  %v598 = vadd.f32 %v158, %v597
  %v599 = vpop.f32.mrf.mxu0
  %v600 = vadd.f32 %v162, %v599
  %v601 = vpop.f32.mrf.mxu0
  %v602 = vadd.f32 %v158, %v601
  %v603 = vpop.f32.mrf.mxu0
  %v604 = vadd.f32 %v162, %v603
  %605 = vmatprep.mubr.bf16.mxu0 0
  %606 = vmatmul.mubr.bf16.gmra.mxu0 %v361
  %v607 = vpop.f32.mrf.mxu0
  %v608 = vadd.f32 %v158, %v607
  %v609 = vpop.f32.mrf.mxu0
  %v610 = vadd.f32 %v162, %v609
  %v611 = vpop.f32.mrf.mxu0
  %v612 = vadd.f32 %v158, %v611
  %v613 = vpop.f32.mrf.mxu0
  %v614 = vadd.f32 %v162, %v613
  %615 = vmatprep.mubr.bf16.mxu0 0
  %616 = vmatmul.mubr.bf16.gmra.mxu0 %v362
  %v617 = vpop.f32.mrf.mxu0
  %v618 = vadd.f32 %v158, %v617
  %v619 = vpop.f32.mrf.mxu0
  %v620 = vadd.f32 %v162, %v619
  %v621 = vpop.f32.mrf.mxu0
  %v622 = vadd.f32 %v158, %v621
  %v623 = vpop.f32.mrf.mxu0
  %v624 = vadd.f32 %v162, %v623
  %625 = vmatprep.mubr.bf16.mxu0 0
  %626 = vmatmul.mubr.bf16.gmra.mxu0 %v363
  %v627 = vpop.f32.mrf.mxu0
  %v628 = vadd.f32 %v158, %v627
  %v629 = vpop.f32.mrf.mxu0
  %v630 = vadd.f32 %v162, %v629
  %v631 = vpop.f32.mrf.mxu0
  %v632 = vadd.f32 %v158, %v631
  %v633 = vpop.f32.mrf.mxu0
  %v634 = vadd.f32 %v162, %v633
  %635 = vmatprep.mubr.bf16.mxu0 0
  %636 = vmatmul.mubr.bf16.gmra.mxu0 %v364
  %v637 = vpop.f32.mrf.mxu0
  %v638 = vadd.f32 %v158, %v637
  %v639 = vpop.f32.mrf.mxu0
  %v640 = vadd.f32 %v162, %v639
  %v641 = vpop.f32.mrf.mxu0
  %v642 = vadd.f32 %v158, %v641
  %v643 = vpop.f32.mrf.mxu0
  %v644 = vadd.f32 %v162, %v643
  %645 = vmatprep.mubr.bf16.mxu0 0
  %646 = vmatmul.mubr.bf16.gmra.mxu0 %v365
  %v647 = vpop.f32.mrf.mxu0
  %v648 = vadd.f32 %v158, %v647
  %v649 = vpop.f32.mrf.mxu0
  %v650 = vadd.f32 %v162, %v649
  %v651 = vpop.f32.mrf.mxu0
  %v652 = vadd.f32 %v158, %v651
  %v653 = vpop.f32.mrf.mxu0
  %v654 = vadd.f32 %v162, %v653
  %655 = vmatprep.mubr.bf16.mxu0 0
  %656 = vmatmul.mubr.bf16.gmra.mxu0 %v366
  %v657 = vpop.f32.mrf.mxu0
  %v658 = vadd.f32 %v158, %v657
  %v659 = vpop.f32.mrf.mxu0
  %v660 = vadd.f32 %v162, %v659
  %v661 = vpop.f32.mrf.mxu0
  %v662 = vadd.f32 %v158, %v661
  %v663 = vpop.f32.mrf.mxu0
  %v664 = vadd.f32 %v162, %v663
  %665 = vmatprep.mubr.bf16.mxu0 0
  %666 = vmatmul.mubr.bf16.gmra.mxu0 %v367
  %v667 = vpop.f32.mrf.mxu0
  %v668 = vadd.f32 %v158, %v667
  %v669 = vpop.f32.mrf.mxu0
  %v670 = vadd.f32 %v162, %v669
  %v671 = vpop.f32.mrf.mxu0
  %v672 = vadd.f32 %v158, %v671
  %v673 = vpop.f32.mrf.mxu0
  %v674 = vadd.f32 %v162, %v673
  %675 = vmatprep.mubr.bf16.mxu0 0
  %676 = vmatmul.mubr.bf16.gmra.mxu0 %v368
  %v677 = vpop.f32.mrf.mxu0
  %v678 = vadd.f32 %v158, %v677
  %v679 = vpop.f32.mrf.mxu0
  %v680 = vadd.f32 %v162, %v679
  %v681 = vpop.f32.mrf.mxu0
  %v682 = vadd.f32 %v158, %v681
  %v683 = vpop.f32.mrf.mxu0
  %v684 = vadd.f32 %v162, %v683
  %685 = vmatprep.mubr.bf16.mxu0 0
  %686 = vmatmul.mubr.bf16.gmra.mxu0 %v369
  %v687 = vpop.f32.mrf.mxu0
  %v688 = vadd.f32 %v158, %v687
  %v689 = vpop.f32.mrf.mxu0
  %v690 = vadd.f32 %v162, %v689
  %v691 = vpop.f32.mrf.mxu0
  %v692 = vadd.f32 %v158, %v691
  %v693 = vpop.f32.mrf.mxu0
  %v694 = vadd.f32 %v162, %v693
  %695 = vmatprep.mubr.bf16.mxu0 0
  %696 = vmatmul.mubr.bf16.gmra.mxu0 %v370
  %v697 = vpop.f32.mrf.mxu0
  %v698 = vadd.f32 %v158, %v697
  %v699 = vpop.f32.mrf.mxu0
  %v700 = vadd.f32 %v162, %v699
  %v701 = vpop.f32.mrf.mxu0
  %v702 = vadd.f32 %v158, %v701
  %v703 = vpop.f32.mrf.mxu0
  %v704 = vadd.f32 %v162, %v703
  %705 = vmatprep.mubr.bf16.mxu0 0
  %706 = vmatmul.mubr.bf16.gmra.mxu0 %v371
  %v707 = vpop.f32.mrf.mxu0
  %v708 = vadd.f32 %v158, %v707
  %v709 = vpop.f32.mrf.mxu0
  %v710 = vadd.f32 %v162, %v709
  %v711 = vpop.f32.mrf.mxu0
  %v712 = vadd.f32 %v158, %v711
  %v713 = vpop.f32.mrf.mxu0
  %v714 = vadd.f32 %v162, %v713
  %715 = vmatprep.mubr.bf16.mxu0 0
  %716 = vmatmul.mubr.bf16.gmra.mxu0 %v372
  %v717 = vpop.f32.mrf.mxu0
  %v718 = vadd.f32 %v158, %v717
  %v719 = vpop.f32.mrf.mxu0
  %v720 = vadd.f32 %v162, %v719
  %v721 = vpop.f32.mrf.mxu0
  %v722 = vadd.f32 %v158, %v721
  %v723 = vpop.f32.mrf.mxu0
  %v724 = vadd.f32 %v162, %v723
  %725 = vmatprep.mubr.bf16.mxu0 0
  %726 = vmatmul.mubr.bf16.gmra.mxu0 %v373
  %v727 = vpop.f32.mrf.mxu0
  %v728 = vadd.f32 %v158, %v727
  %v729 = vpop.f32.mrf.mxu0
  %v730 = vadd.f32 %v162, %v729
  %v731 = vpop.f32.mrf.mxu0
  %v732 = vadd.f32 %v158, %v731
  %v733 = vpop.f32.mrf.mxu0
  %v734 = vadd.f32 %v162, %v733
  %735 = vmatprep.mubr.bf16.mxu0 0
  %736 = vmatmul.mubr.bf16.gmra.mxu0 %v374
  %v737 = vpop.f32.mrf.mxu0
  %v738 = vadd.f32 %v158, %v737
  %v739 = vpop.f32.mrf.mxu0
  %v740 = vadd.f32 %v162, %v739
  %v741 = vpop.f32.mrf.mxu0
  %v742 = vadd.f32 %v158, %v741
  %v743 = vpop.f32.mrf.mxu0
  %v744 = vadd.f32 %v162, %v743
  %745 = vmatprep.mubr.bf16.mxu0 0
  %746 = vmatmul.mubr.bf16.gmra.mxu0 %v375
  %v747 = vpop.f32.mrf.mxu0
  %v748 = vadd.f32 %v158, %v747
  %v749 = vpop.f32.mrf.mxu0
  %v750 = vadd.f32 %v162, %v749
  %v751 = vpop.f32.mrf.mxu0
  %v752 = vadd.f32 %v158, %v751
  %v753 = vpop.f32.mrf.mxu0
  %v754 = vadd.f32 %v162, %v753
  %755 = vmatprep.mubr.bf16.mxu0 0
  %756 = vmatmul.mubr.bf16.gmra.mxu0 %v376
  %v757 = vpop.f32.mrf.mxu0
  %v758 = vadd.f32 %v158, %v757
  %v759 = vpop.f32.mrf.mxu0
  %v760 = vadd.f32 %v162, %v759
  %v761 = vpop.f32.mrf.mxu0
  %v762 = vadd.f32 %v158, %v761
  %v763 = vpop.f32.mrf.mxu0
  %v764 = vadd.f32 %v162, %v763
  %765 = vmatprep.mubr.bf16.mxu0 0
  %766 = vmatmul.mubr.bf16.gmra.mxu0 %v377
  %v767 = vpop.f32.mrf.mxu0
  %v768 = vadd.f32 %v158, %v767
  %v769 = vpop.f32.mrf.mxu0
  %v770 = vadd.f32 %v162, %v769
  %v771 = vpop.f32.mrf.mxu0
  %v772 = vadd.f32 %v158, %v771
  %v773 = vpop.f32.mrf.mxu0
  %v774 = vadd.f32 %v162, %v773
  %775 = vmatprep.mubr.bf16.mxu0 0
  %776 = vmatmul.mubr.bf16.gmra.mxu0 %v378
  %v777 = vpop.f32.mrf.mxu0
  %v778 = vadd.f32 %v158, %v777
  %v779 = vpop.f32.mrf.mxu0
  %v780 = vadd.f32 %v162, %v779
  %v781 = vpop.f32.mrf.mxu0
  %v782 = vadd.f32 %v158, %v781
  %v783 = vpop.f32.mrf.mxu0
  %v784 = vadd.f32 %v162, %v783
  %785 = vmatprep.mubr.bf16.mxu0 0
  %786 = vmatmul.mubr.bf16.gmra.mxu0 %v379
  %v787 = vpop.f32.mrf.mxu0
  %v788 = vadd.f32 %v158, %v787
  %v789 = vpop.f32.mrf.mxu0
  %v790 = vadd.f32 %v162, %v789
  %v791 = vpop.f32.mrf.mxu0
  %v792 = vadd.f32 %v158, %v791
  %v793 = vpop.f32.mrf.mxu0
  %v794 = vadd.f32 %v162, %v793
  %795 = vmatprep.mubr.bf16.mxu0 0
  %796 = vmatmul.mubr.bf16.gmra.mxu0 %v380
  %v797 = vpop.f32.mrf.mxu0
  %v798 = vadd.f32 %v158, %v797
  %v799 = vpop.f32.mrf.mxu0
  %v800 = vadd.f32 %v162, %v799
  %v801 = vpop.f32.mrf.mxu0
  %v802 = vadd.f32 %v158, %v801
  %v803 = vpop.f32.mrf.mxu0
  %v804 = vadd.f32 %v162, %v803
  %805 = vmatprep.mubr.bf16.mxu0 0
  %806 = vmatmul.mubr.bf16.gmra.mxu0 %v381
  %v807 = vpop.f32.mrf.mxu0
  %v808 = vadd.f32 %v158, %v807
  %v809 = vpop.f32.mrf.mxu0
  %v810 = vadd.f32 %v162, %v809
  %v811 = vpop.f32.mrf.mxu0
  %v812 = vadd.f32 %v158, %v811
  %v813 = vpop.f32.mrf.mxu0
  %v814 = vadd.f32 %v162, %v813
  %815 = vmatprep.mubr.bf16.mxu0 0
  %816 = vmatmul.mubr.bf16.gmra.mxu0 %v382
  %v817 = vpop.f32.mrf.mxu0
  %v818 = vadd.f32 %v158, %v817
  %v819 = vpop.f32.mrf.mxu0
  %v820 = vadd.f32 %v162, %v819
  %v821 = vpop.f32.mrf.mxu0
  %v822 = vadd.f32 %v158, %v821
  %v823 = vpop.f32.mrf.mxu0
  %v824 = vadd.f32 %v162, %v823
  %825 = vmatprep.mubr.bf16.mxu0 0
  %826 = vmatmul.mubr.bf16.gmra.mxu0 %v383
  %v827 = vpop.f32.mrf.mxu0
  %v828 = vadd.f32 %v158, %v827
  %v829 = vpop.f32.mrf.mxu0
  %v830 = vadd.f32 %v162, %v829
  %v831 = vpop.f32.mrf.mxu0
  %v832 = vadd.f32 %v158, %v831
  %v833 = vpop.f32.mrf.mxu0
  %v834 = vadd.f32 %v162, %v833
  %835 = vmatprep.mubr.bf16.mxu0 0
  %836 = vmatmul.mubr.bf16.gmra.mxu0 %v384
  %v837 = vpop.f32.mrf.mxu0
  %v838 = vadd.f32 %v158, %v837
  %v839 = vpop.f32.mrf.mxu0
  %v840 = vadd.f32 %v162, %v839
  %v841 = vpop.f32.mrf.mxu0
  %v842 = vadd.f32 %v158, %v841
  %v843 = vpop.f32.mrf.mxu0
  %v844 = vadd.f32 %v162, %v843
  %845 = vmatprep.mubr.bf16.mxu0 0
  %846 = vmatmul.mubr.bf16.gmra.mxu0 %v385
  %v847 = vpop.f32.mrf.mxu0
  %v848 = vadd.f32 %v158, %v847
  %v849 = vpop.f32.mrf.mxu0
  %v850 = vadd.f32 %v162, %v849
  %v851 = vpop.f32.mrf.mxu0
  %v852 = vadd.f32 %v158, %v851
  %v853 = vpop.f32.mrf.mxu0
  %v854 = vadd.f32 %v162, %v853
  %855 = vmatprep.mubr.bf16.mxu0 0
  %856 = vmatmul.mubr.bf16.gmra.mxu0 %v386
  %v857 = vpop.f32.mrf.mxu0
  %v858 = vadd.f32 %v158, %v857
  %v859 = vpop.f32.mrf.mxu0
  %v860 = vadd.f32 %v162, %v859
  %v861 = vpop.f32.mrf.mxu0
  %v862 = vadd.f32 %v158, %v861
  %v863 = vpop.f32.mrf.mxu0
  %v864 = vadd.f32 %v162, %v863
  %865 = vmatprep.mubr.bf16.mxu0 0
  %866 = vmatmul.mubr.bf16.gmra.mxu0 %v387
  %v867 = vpop.f32.mrf.mxu0
  %v868 = vadd.f32 %v158, %v867
  %v869 = vpop.f32.mrf.mxu0
  %v870 = vadd.f32 %v162, %v869
  %v871 = vpop.f32.mrf.mxu0
  %v872 = vadd.f32 %v158, %v871
  %v873 = vpop.f32.mrf.mxu0
  %v874 = vadd.f32 %v162, %v873
  %875 = vmatprep.mubr.bf16.mxu0 0
  %876 = vmatmul.mubr.bf16.gmra.mxu0 %v388
  %v877 = vpop.f32.mrf.mxu0
  %v878 = vadd.f32 %v158, %v877
  %v879 = vpop.f32.mrf.mxu0
  %v880 = vadd.f32 %v162, %v879
  %v881 = vpop.f32.mrf.mxu0
  %v882 = vadd.f32 %v158, %v881
  %v883 = vpop.f32.mrf.mxu0
  %v884 = vadd.f32 %v162, %v883
  %885 = vmatprep.mubr.bf16.mxu0 0
  %886 = vmatmul.mubr.bf16.gmra.mxu0 %v389
  %v887 = vpop.f32.mrf.mxu0
  %v888 = vadd.f32 %v158, %v887
  %v889 = vpop.f32.mrf.mxu0
  %v890 = vadd.f32 %v162, %v889
  %v891 = vpop.f32.mrf.mxu0
  %v892 = vadd.f32 %v158, %v891
  %v893 = vpop.f32.mrf.mxu0
  %v894 = vadd.f32 %v162, %v893
  %895 = vmatprep.mubr.bf16.mxu0 0
  %896 = vmatmul.mubr.bf16.gmra.mxu0 %v390
  %v897 = vpop.f32.mrf.mxu0
  %v898 = vadd.f32 %v158, %v897
  %v899 = vpop.f32.mrf.mxu0
  %v900 = vadd.f32 %v162, %v899
  %v901 = vpop.f32.mrf.mxu0
  %v902 = vadd.f32 %v158, %v901
  %v903 = vpop.f32.mrf.mxu0
  %v904 = vadd.f32 %v162, %v903
  %905 = vmatprep.mubr.bf16.mxu0 0
  %906 = vmatmul.mubr.bf16.gmra.mxu0 %v391
  %v907 = vpop.f32.mrf.mxu0
  %v908 = vadd.f32 %v158, %v907
  %v909 = vpop.f32.mrf.mxu0
  %v910 = vadd.f32 %v162, %v909
  %v911 = vpop.f32.mrf.mxu0
  %v912 = vadd.f32 %v158, %v911
  %v913 = vpop.f32.mrf.mxu0
  %v914 = vadd.f32 %v162, %v913
  %915 = vmatprep.mubr.bf16.mxu0 0
  %916 = vmatmul.mubr.bf16.gmra.mxu0 %v392
  %v917 = vpop.f32.mrf.mxu0
  %v918 = vadd.f32 %v158, %v917
  %v919 = vpop.f32.mrf.mxu0
  %v920 = vadd.f32 %v162, %v919
  %v921 = vpop.f32.mrf.mxu0
  %v922 = vadd.f32 %v158, %v921
  %v923 = vpop.f32.mrf.mxu0
  %v924 = vadd.f32 %v162, %v923
  %925 = vmatprep.mubr.bf16.mxu0 0
  %926 = vmatmul.mubr.bf16.gmra.mxu0 %v393
  %v927 = vpop.f32.mrf.mxu0
  %v928 = vadd.f32 %v158, %v927
  %v929 = vpop.f32.mrf.mxu0
  %v930 = vadd.f32 %v162, %v929
  %v931 = vpop.f32.mrf.mxu0
  %v932 = vadd.f32 %v158, %v931
  %v933 = vpop.f32.mrf.mxu0
  %v934 = vadd.f32 %v162, %v933
  %935 = vmatprep.mubr.bf16.mxu0 0
  %936 = vmatmul.mubr.bf16.gmra.mxu0 %v394
  %v937 = vpop.f32.mrf.mxu0
  %v938 = vadd.f32 %v158, %v937
  %v939 = vpop.f32.mrf.mxu0
  %v940 = vadd.f32 %v162, %v939
  %v941 = vpop.f32.mrf.mxu0
  %v942 = vadd.f32 %v158, %v941
  %v943 = vpop.f32.mrf.mxu0
  %v944 = vadd.f32 %v162, %v943
  %945 = vmatprep.mubr.bf16.mxu0 0
  %946 = vmatmul.mubr.bf16.gmra.mxu0 %v395
  %v947 = vpop.f32.mrf.mxu0
  %v948 = vadd.f32 %v158, %v947
  %v949 = vpop.f32.mrf.mxu0
  %v950 = vadd.f32 %v162, %v949
  %v951 = vpop.f32.mrf.mxu0
  %v952 = vadd.f32 %v158, %v951
  %v953 = vpop.f32.mrf.mxu0
  %v954 = vadd.f32 %v162, %v953
  %955 = vmatprep.mubr.bf16.mxu0 0
  %956 = vmatmul.mubr.bf16.gmra.mxu0 %v396
  %v957 = vpop.f32.mrf.mxu0
  %v958 = vadd.f32 %v158, %v957
  %v959 = vpop.f32.mrf.mxu0
  %v960 = vadd.f32 %v162, %v959
  %v961 = vpop.f32.mrf.mxu0
  %v962 = vadd.f32 %v158, %v961
  %v963 = vpop.f32.mrf.mxu0
  %v964 = vadd.f32 %v162, %v963
  %965 = vmatprep.mubr.bf16.mxu0 0
  %966 = vmatmul.mubr.bf16.gmra.mxu0 %v397
  %v967 = vpop.f32.mrf.mxu0
  %v968 = vadd.f32 %v158, %v967
  %v969 = vpop.f32.mrf.mxu0
  %v970 = vadd.f32 %v162, %v969
  %v971 = vpop.f32.mrf.mxu0
  %v972 = vadd.f32 %v158, %v971
  %v973 = vpop.f32.mrf.mxu0
  %v974 = vadd.f32 %v162, %v973
  %975 = vmatprep.mubr.bf16.mxu0 0
  %976 = vmatmul.mubr.bf16.gmra.mxu0 %v398
  %v977 = vpop.f32.mrf.mxu0
  %v978 = vadd.f32 %v158, %v977
  %v979 = vpop.f32.mrf.mxu0
  %v980 = vadd.f32 %v162, %v979
  %v981 = vpop.f32.mrf.mxu0
  %v982 = vadd.f32 %v158, %v981
  %v983 = vpop.f32.mrf.mxu0
  %v984 = vadd.f32 %v162, %v983
  %985 = vmatprep.mubr.bf16.mxu0 0
  %986 = vmatmul.mubr.bf16.gmra.mxu0 %v399
  %v987 = vpop.f32.mrf.mxu0
  %v988 = vadd.f32 %v158, %v987
  %v989 = vpop.f32.mrf.mxu0
  %v990 = vadd.f32 %v162, %v989
  %v991 = vpop.f32.mrf.mxu0
  %v992 = vadd.f32 %v158, %v991
  %v993 = vpop.f32.mrf.mxu0
  %v994 = vadd.f32 %v162, %v993
  %995 = vmatprep.mubr.bf16.mxu0 0
  %996 = vmatmul.mubr.bf16.gmra.mxu0 %v400
  %v997 = vpop.f32.mrf.mxu0
  %v998 = vadd.f32 %v158, %v997
  %v999 = vpop.f32.mrf.mxu0
  %v1000 = vadd.f32 %v162, %v999
  %v1001 = vpop.f32.mrf.mxu0
  %v1002 = vadd.f32 %v158, %v1001
  %v1003 = vpop.f32.mrf.mxu0
  %v1004 = vadd.f32 %v162, %v1003
  %1005 = vmatprep.mubr.bf16.mxu0 0
  %1006 = vmatmul.mubr.bf16.gmra.mxu0 %v401
  %v1007 = vpop.f32.mrf.mxu0
  %v1008 = vadd.f32 %v158, %v1007
  %v1009 = vpop.f32.mrf.mxu0
  %v1010 = vadd.f32 %v162, %v1009
  %v1011 = vpop.f32.mrf.mxu0
  %v1012 = vadd.f32 %v158, %v1011
  %v1013 = vpop.f32.mrf.mxu0
  %v1014 = vadd.f32 %v162, %v1013
  %1015 = vmatprep.mubr.bf16.mxu0 0
  %1016 = vmatmul.mubr.bf16.gmra.mxu0 %v402
  %v1017 = vpop.f32.mrf.mxu0
  %v1018 = vadd.f32 %v158, %v1017
  %v1019 = vpop.f32.mrf.mxu0
  %v1020 = vadd.f32 %v162, %v1019
  %v1021 = vpop.f32.mrf.mxu0
  %v1022 = vadd.f32 %v158, %v1021
  %v1023 = vpop.f32.mrf.mxu0
  %v1024 = vadd.f32 %v162, %v1023
  %1025 = vmatprep.mubr.bf16.mxu0 0
  %1026 = vmatmul.mubr.bf16.gmra.mxu0 %v403
  %v1027 = vpop.f32.mrf.mxu0
  %v1028 = vadd.f32 %v158, %v1027
  %v1029 = vpop.f32.mrf.mxu0
  %v1030 = vadd.f32 %v162, %v1029
  %v1031 = vpop.f32.mrf.mxu0
  %v1032 = vadd.f32 %v158, %v1031
  %v1033 = vpop.f32.mrf.mxu0
  %v1034 = vadd.f32 %v162, %v1033
  %1035 = vmatprep.mubr.bf16.mxu0 0
  %1036 = vmatmul.mubr.bf16.gmra.mxu0 %v404
  %v1037 = vpop.f32.mrf.mxu0
  %v1038 = vadd.f32 %v158, %v1037
  %v1039 = vpop.f32.mrf.mxu0
  %v1040 = vadd.f32 %v162, %v1039
  %v1041 = vpop.f32.mrf.mxu0
  %v1042 = vadd.f32 %v158, %v1041
  %v1043 = vpop.f32.mrf.mxu0
  %v1044 = vadd.f32 %v162, %v1043
  %1045 = vdwg.mxu0
  %vm1046 = vcmp.ge.f32.partialorder %v568, 0.0
  %vm1047 = vcmp.ge.f32.partialorder %v570, 0.0
  %vm1048 = vcmp.ge.f32.partialorder %v572, 0.0
  %vm1049 = vcmp.ge.f32.partialorder %v574, 0.0
  %vm1050 = vcmp.ge.f32.partialorder %v578, 0.0
  %vm1051 = vcmp.ge.f32.partialorder %v580, 0.0
  %vm1052 = vcmp.ge.f32.partialorder %v582, 0.0
  %vm1053 = vcmp.ge.f32.partialorder %v584, 0.0
  %vm1054 = vcmp.ge.f32.partialorder %v588, 0.0
  %vm1055 = vcmp.ge.f32.partialorder %v590, 0.0
  %vm1056 = vcmp.ge.f32.partialorder %v592, 0.0
  %vm1057 = vcmp.ge.f32.partialorder %v594, 0.0
  %vm1058 = vcmp.ge.f32.partialorder %v598, 0.0
  %vm1059 = vcmp.ge.f32.partialorder %v600, 0.0
  %vm1060 = vcmp.ge.f32.partialorder %v602, 0.0
  %vm1061 = vcmp.ge.f32.partialorder %v604, 0.0
  %vm1062 = vcmp.ge.f32.partialorder %v608, 0.0
  %vm1063 = vcmp.ge.f32.partialorder %v610, 0.0
  %vm1064 = vcmp.ge.f32.partialorder %v612, 0.0
  %vm1065 = vcmp.ge.f32.partialorder %v614, 0.0
  %vm1066 = vcmp.ge.f32.partialorder %v618, 0.0
  %vm1067 = vcmp.ge.f32.partialorder %v620, 0.0
  %vm1068 = vcmp.ge.f32.partialorder %v622, 0.0
  %vm1069 = vcmp.ge.f32.partialorder %v624, 0.0
  %vm1070 = vcmp.ge.f32.partialorder %v628, 0.0
  %vm1071 = vcmp.ge.f32.partialorder %v630, 0.0
  %vm1072 = vcmp.ge.f32.partialorder %v632, 0.0
  %vm1073 = vcmp.ge.f32.partialorder %v634, 0.0
  %vm1074 = vcmp.ge.f32.partialorder %v638, 0.0
  %vm1075 = vcmp.ge.f32.partialorder %v640, 0.0
  %vm1076 = vcmp.ge.f32.partialorder %v642, 0.0
  %vm1077 = vcmp.ge.f32.partialorder %v644, 0.0
  %vm1078 = vcmp.ge.f32.partialorder %v648, 0.0
  %vm1079 = vcmp.ge.f32.partialorder %v650, 0.0
  %vm1080 = vcmp.ge.f32.partialorder %v652, 0.0
  %vm1081 = vcmp.ge.f32.partialorder %v654, 0.0
  %vm1082 = vcmp.ge.f32.partialorder %v658, 0.0
  %vm1083 = vcmp.ge.f32.partialorder %v660, 0.0
  %vm1084 = vcmp.ge.f32.partialorder %v662, 0.0
  %vm1085 = vcmp.ge.f32.partialorder %v664, 0.0
  %vm1086 = vcmp.ge.f32.partialorder %v668, 0.0
  %vm1087 = vcmp.ge.f32.partialorder %v670, 0.0
  %vm1088 = vcmp.ge.f32.partialorder %v672, 0.0
  %vm1089 = vcmp.ge.f32.partialorder %v674, 0.0
  %vm1090 = vcmp.ge.f32.partialorder %v678, 0.0
  %vm1091 = vcmp.ge.f32.partialorder %v680, 0.0
  %vm1092 = vcmp.ge.f32.partialorder %v682, 0.0
  %vm1093 = vcmp.ge.f32.partialorder %v684, 0.0
  %vm1094 = vcmp.ge.f32.partialorder %v688, 0.0
  %vm1095 = vcmp.ge.f32.partialorder %v690, 0.0
  %vm1096 = vcmp.ge.f32.partialorder %v692, 0.0
  %vm1097 = vcmp.ge.f32.partialorder %v694, 0.0
  %vm1098 = vcmp.ge.f32.partialorder %v698, 0.0
  %vm1099 = vcmp.ge.f32.partialorder %v700, 0.0
  %vm1100 = vcmp.ge.f32.partialorder %v702, 0.0
  %vm1101 = vcmp.ge.f32.partialorder %v704, 0.0
  %vm1102 = vcmp.ge.f32.partialorder %v708, 0.0
  %vm1103 = vcmp.ge.f32.partialorder %v710, 0.0
  %vm1104 = vcmp.ge.f32.partialorder %v712, 0.0
  %vm1105 = vcmp.ge.f32.partialorder %v714, 0.0
  %vm1106 = vcmp.ge.f32.partialorder %v718, 0.0
  %vm1107 = vcmp.ge.f32.partialorder %v720, 0.0
  %vm1108 = vcmp.ge.f32.partialorder %v722, 0.0
  %vm1109 = vcmp.ge.f32.partialorder %v724, 0.0
  %vm1110 = vcmp.ge.f32.partialorder %v728, 0.0
  %vm1111 = vcmp.ge.f32.partialorder %v730, 0.0
  %vm1112 = vcmp.ge.f32.partialorder %v732, 0.0
  %vm1113 = vcmp.ge.f32.partialorder %v734, 0.0
  %vm1114 = vcmp.ge.f32.partialorder %v738, 0.0
  %vm1115 = vcmp.ge.f32.partialorder %v740, 0.0
  %vm1116 = vcmp.ge.f32.partialorder %v742, 0.0
  %vm1117 = vcmp.ge.f32.partialorder %v744, 0.0
  %vm1118 = vcmp.ge.f32.partialorder %v748, 0.0
  %vm1119 = vcmp.ge.f32.partialorder %v750, 0.0
  %vm1120 = vcmp.ge.f32.partialorder %v752, 0.0
  %vm1121 = vcmp.ge.f32.partialorder %v754, 0.0
  %vm1122 = vcmp.ge.f32.partialorder %v758, 0.0
  %vm1123 = vcmp.ge.f32.partialorder %v760, 0.0
  %vm1124 = vcmp.ge.f32.partialorder %v762, 0.0
  %vm1125 = vcmp.ge.f32.partialorder %v764, 0.0
  %vm1126 = vcmp.ge.f32.partialorder %v768, 0.0
  %vm1127 = vcmp.ge.f32.partialorder %v770, 0.0
  %vm1128 = vcmp.ge.f32.partialorder %v772, 0.0
  %vm1129 = vcmp.ge.f32.partialorder %v774, 0.0
  %vm1130 = vcmp.ge.f32.partialorder %v778, 0.0
  %vm1131 = vcmp.ge.f32.partialorder %v780, 0.0
  %vm1132 = vcmp.ge.f32.partialorder %v782, 0.0
  %vm1133 = vcmp.ge.f32.partialorder %v784, 0.0
  %vm1134 = vcmp.ge.f32.partialorder %v788, 0.0
  %vm1135 = vcmp.ge.f32.partialorder %v790, 0.0
  %vm1136 = vcmp.ge.f32.partialorder %v792, 0.0
  %vm1137 = vcmp.ge.f32.partialorder %v794, 0.0
  %vm1138 = vcmp.ge.f32.partialorder %v798, 0.0
  %vm1139 = vcmp.ge.f32.partialorder %v800, 0.0
  %vm1140 = vcmp.ge.f32.partialorder %v802, 0.0
  %vm1141 = vcmp.ge.f32.partialorder %v804, 0.0
  %vm1142 = vcmp.ge.f32.partialorder %v808, 0.0
  %vm1143 = vcmp.ge.f32.partialorder %v810, 0.0
  %vm1144 = vcmp.ge.f32.partialorder %v812, 0.0
  %vm1145 = vcmp.ge.f32.partialorder %v814, 0.0
  %vm1146 = vcmp.ge.f32.partialorder %v818, 0.0
  %vm1147 = vcmp.ge.f32.partialorder %v820, 0.0
  %vm1148 = vcmp.ge.f32.partialorder %v822, 0.0
  %vm1149 = vcmp.ge.f32.partialorder %v824, 0.0
  %vm1150 = vcmp.ge.f32.partialorder %v828, 0.0
  %vm1151 = vcmp.ge.f32.partialorder %v830, 0.0
  %vm1152 = vcmp.ge.f32.partialorder %v832, 0.0
  %vm1153 = vcmp.ge.f32.partialorder %v834, 0.0
  %vm1154 = vcmp.ge.f32.partialorder %v838, 0.0
  %vm1155 = vcmp.ge.f32.partialorder %v840, 0.0
  %vm1156 = vcmp.ge.f32.partialorder %v842, 0.0
  %vm1157 = vcmp.ge.f32.partialorder %v844, 0.0
  %vm1158 = vcmp.ge.f32.partialorder %v848, 0.0
  %vm1159 = vcmp.ge.f32.partialorder %v850, 0.0
  %vm1160 = vcmp.ge.f32.partialorder %v852, 0.0
  %vm1161 = vcmp.ge.f32.partialorder %v854, 0.0
  %vm1162 = vcmp.ge.f32.partialorder %v858, 0.0
  %vm1163 = vcmp.ge.f32.partialorder %v860, 0.0
  %vm1164 = vcmp.ge.f32.partialorder %v862, 0.0
  %vm1165 = vcmp.ge.f32.partialorder %v864, 0.0
  %vm1166 = vcmp.ge.f32.partialorder %v868, 0.0
  %vm1167 = vcmp.ge.f32.partialorder %v870, 0.0
  %vm1168 = vcmp.ge.f32.partialorder %v872, 0.0
  %vm1169 = vcmp.ge.f32.partialorder %v874, 0.0
  %vm1170 = vcmp.ge.f32.partialorder %v878, 0.0
  %vm1171 = vcmp.ge.f32.partialorder %v880, 0.0
  %vm1172 = vcmp.ge.f32.partialorder %v882, 0.0
  %vm1173 = vcmp.ge.f32.partialorder %v884, 0.0
  %vm1174 = vcmp.ge.f32.partialorder %v888, 0.0
  %vm1175 = vcmp.ge.f32.partialorder %v890, 0.0
  %vm1176 = vcmp.ge.f32.partialorder %v892, 0.0
  %vm1177 = vcmp.ge.f32.partialorder %v894, 0.0
  %vm1178 = vcmp.ge.f32.partialorder %v898, 0.0
  %vm1179 = vcmp.ge.f32.partialorder %v900, 0.0
  %vm1180 = vcmp.ge.f32.partialorder %v902, 0.0
  %vm1181 = vcmp.ge.f32.partialorder %v904, 0.0
  %vm1182 = vcmp.ge.f32.partialorder %v908, 0.0
  %vm1183 = vcmp.ge.f32.partialorder %v910, 0.0
  %vm1184 = vcmp.ge.f32.partialorder %v912, 0.0
  %vm1185 = vcmp.ge.f32.partialorder %v914, 0.0
  %vm1186 = vcmp.ge.f32.partialorder %v918, 0.0
  %vm1187 = vcmp.ge.f32.partialorder %v920, 0.0
  %vm1188 = vcmp.ge.f32.partialorder %v922, 0.0
  %vm1189 = vcmp.ge.f32.partialorder %v924, 0.0
  %vm1190 = vcmp.ge.f32.partialorder %v928, 0.0
  %vm1191 = vcmp.ge.f32.partialorder %v930, 0.0
  %vm1192 = vcmp.ge.f32.partialorder %v932, 0.0
  %vm1193 = vcmp.ge.f32.partialorder %v934, 0.0
  %vm1194 = vcmp.ge.f32.partialorder %v938, 0.0
  %vm1195 = vcmp.ge.f32.partialorder %v940, 0.0
  %vm1196 = vcmp.ge.f32.partialorder %v942, 0.0
  %vm1197 = vcmp.ge.f32.partialorder %v944, 0.0
  %vm1198 = vcmp.ge.f32.partialorder %v948, 0.0
  %vm1199 = vcmp.ge.f32.partialorder %v950, 0.0
  %vm1200 = vcmp.ge.f32.partialorder %v952, 0.0
  %vm1201 = vcmp.ge.f32.partialorder %v954, 0.0
  %vm1202 = vcmp.ge.f32.partialorder %v958, 0.0
  %vm1203 = vcmp.ge.f32.partialorder %v960, 0.0
  %vm1204 = vcmp.ge.f32.partialorder %v962, 0.0
  %vm1205 = vcmp.ge.f32.partialorder %v964, 0.0
  %vm1206 = vcmp.ge.f32.partialorder %v968, 0.0
  %vm1207 = vcmp.ge.f32.partialorder %v970, 0.0
  %vm1208 = vcmp.ge.f32.partialorder %v972, 0.0
  %vm1209 = vcmp.ge.f32.partialorder %v974, 0.0
  %vm1210 = vcmp.ge.f32.partialorder %v978, 0.0
  %vm1211 = vcmp.ge.f32.partialorder %v980, 0.0
  %vm1212 = vcmp.ge.f32.partialorder %v982, 0.0
  %vm1213 = vcmp.ge.f32.partialorder %v984, 0.0
  %vm1214 = vcmp.ge.f32.partialorder %v988, 0.0
  %vm1215 = vcmp.ge.f32.partialorder %v990, 0.0
  %vm1216 = vcmp.ge.f32.partialorder %v992, 0.0
  %vm1217 = vcmp.ge.f32.partialorder %v994, 0.0
  %vm1218 = vcmp.ge.f32.partialorder %v998, 0.0
  %vm1219 = vcmp.ge.f32.partialorder %v1000, 0.0
  %vm1220 = vcmp.ge.f32.partialorder %v1002, 0.0
  %vm1221 = vcmp.ge.f32.partialorder %v1004, 0.0
  %vm1222 = vcmp.ge.f32.partialorder %v1008, 0.0
  %vm1223 = vcmp.ge.f32.partialorder %v1010, 0.0
  %vm1224 = vcmp.ge.f32.partialorder %v1012, 0.0
  %vm1225 = vcmp.ge.f32.partialorder %v1014, 0.0
  %vm1226 = vcmp.ge.f32.partialorder %v1018, 0.0
  %vm1227 = vcmp.ge.f32.partialorder %v1020, 0.0
  %vm1228 = vcmp.ge.f32.partialorder %v1022, 0.0
  %vm1229 = vcmp.ge.f32.partialorder %v1024, 0.0
  %vm1230 = vcmp.ge.f32.partialorder %v1028, 0.0
  %vm1231 = vcmp.ge.f32.partialorder %v1030, 0.0
  %vm1232 = vcmp.ge.f32.partialorder %v1032, 0.0
  %vm1233 = vcmp.ge.f32.partialorder %v1034, 0.0
  %vm1234 = vcmp.ge.f32.partialorder %v1038, 0.0
  %vm1235 = vcmp.ge.f32.partialorder %v1040, 0.0
  %vm1236 = vcmp.ge.f32.partialorder %v1042, 0.0
  %vm1237 = vcmp.ge.f32.partialorder %v1044, 0.0
  %v1238 = vmul.f32 %v568, 0.01
  %v1239 = vmul.f32 %v570, 0.01
  %v1240 = vmul.f32 %v572, 0.01
  %v1241 = vmul.f32 %v574, 0.01
  %v1242 = vmul.f32 %v578, 0.01
  %v1243 = vmul.f32 %v580, 0.01
  %v1244 = vmul.f32 %v582, 0.01
  %v1245 = vmul.f32 %v584, 0.01
  %v1246 = vmul.f32 %v588, 0.01
  %v1247 = vmul.f32 %v590, 0.01
  %v1248 = vmul.f32 %v592, 0.01
  %v1249 = vmul.f32 %v594, 0.01
  %v1250 = vmul.f32 %v598, 0.01
  %v1251 = vmul.f32 %v600, 0.01
  %v1252 = vmul.f32 %v602, 0.01
  %v1253 = vmul.f32 %v604, 0.01
  %v1254 = vmul.f32 %v608, 0.01
  %v1255 = vmul.f32 %v610, 0.01
  %v1256 = vmul.f32 %v612, 0.01
  %v1257 = vmul.f32 %v614, 0.01
  %v1258 = vmul.f32 %v618, 0.01
  %v1259 = vmul.f32 %v620, 0.01
  %v1260 = vmul.f32 %v622, 0.01
  %v1261 = vmul.f32 %v624, 0.01
  %v1262 = vmul.f32 %v628, 0.01
  %v1263 = vmul.f32 %v630, 0.01
  %v1264 = vmul.f32 %v632, 0.01
  %v1265 = vmul.f32 %v634, 0.01
  %v1266 = vmul.f32 %v638, 0.01
  %v1267 = vmul.f32 %v640, 0.01
  %v1268 = vmul.f32 %v642, 0.01
  %v1269 = vmul.f32 %v644, 0.01
  %v1270 = vmul.f32 %v648, 0.01
  %v1271 = vmul.f32 %v650, 0.01
  %v1272 = vmul.f32 %v652, 0.01
  %v1273 = vmul.f32 %v654, 0.01
  %v1274 = vmul.f32 %v658, 0.01
  %v1275 = vmul.f32 %v660, 0.01
  %v1276 = vmul.f32 %v662, 0.01
  %v1277 = vmul.f32 %v664, 0.01
  %v1278 = vmul.f32 %v668, 0.01
  %v1279 = vmul.f32 %v670, 0.01
  %v1280 = vmul.f32 %v672, 0.01
  %v1281 = vmul.f32 %v674, 0.01
  %v1282 = vmul.f32 %v678, 0.01
  %v1283 = vmul.f32 %v680, 0.01
  %v1284 = vmul.f32 %v682, 0.01
  %v1285 = vmul.f32 %v684, 0.01
  %v1286 = vmul.f32 %v688, 0.01
  %v1287 = vmul.f32 %v690, 0.01
  %v1288 = vmul.f32 %v692, 0.01
  %v1289 = vmul.f32 %v694, 0.01
  %v1290 = vmul.f32 %v698, 0.01
  %v1291 = vmul.f32 %v700, 0.01
  %v1292 = vmul.f32 %v702, 0.01
  %v1293 = vmul.f32 %v704, 0.01
  %v1294 = vmul.f32 %v708, 0.01
  %v1295 = vmul.f32 %v710, 0.01
  %v1296 = vmul.f32 %v712, 0.01
  %v1297 = vmul.f32 %v714, 0.01
  %v1298 = vmul.f32 %v718, 0.01
  %v1299 = vmul.f32 %v720, 0.01
  %v1300 = vmul.f32 %v722, 0.01
  %v1301 = vmul.f32 %v724, 0.01
  %v1302 = vmul.f32 %v728, 0.01
  %v1303 = vmul.f32 %v730, 0.01
  %v1304 = vmul.f32 %v732, 0.01
  %v1305 = vmul.f32 %v734, 0.01
  %v1306 = vmul.f32 %v738, 0.01
  %v1307 = vmul.f32 %v740, 0.01
  %v1308 = vmul.f32 %v742, 0.01
  %v1309 = vmul.f32 %v744, 0.01
  %v1310 = vmul.f32 %v748, 0.01
  %v1311 = vmul.f32 %v750, 0.01
  %v1312 = vmul.f32 %v752, 0.01
  %v1313 = vmul.f32 %v754, 0.01
  %v1314 = vmul.f32 %v758, 0.01
  %v1315 = vmul.f32 %v760, 0.01
  %v1316 = vmul.f32 %v762, 0.01
  %v1317 = vmul.f32 %v764, 0.01
  %v1318 = vmul.f32 %v768, 0.01
  %v1319 = vmul.f32 %v770, 0.01
  %v1320 = vmul.f32 %v772, 0.01
  %v1321 = vmul.f32 %v774, 0.01
  %v1322 = vmul.f32 %v778, 0.01
  %v1323 = vmul.f32 %v780, 0.01
  %v1324 = vmul.f32 %v782, 0.01
  %v1325 = vmul.f32 %v784, 0.01
  %v1326 = vmul.f32 %v788, 0.01
  %v1327 = vmul.f32 %v790, 0.01
  %v1328 = vmul.f32 %v792, 0.01
  %v1329 = vmul.f32 %v794, 0.01
  %v1330 = vmul.f32 %v798, 0.01
  %v1331 = vmul.f32 %v800, 0.01
  %v1332 = vmul.f32 %v802, 0.01
  %v1333 = vmul.f32 %v804, 0.01
  %v1334 = vmul.f32 %v808, 0.01
  %v1335 = vmul.f32 %v810, 0.01
  %v1336 = vmul.f32 %v812, 0.01
  %v1337 = vmul.f32 %v814, 0.01
  %v1338 = vmul.f32 %v818, 0.01
  %v1339 = vmul.f32 %v820, 0.01
  %v1340 = vmul.f32 %v822, 0.01
  %v1341 = vmul.f32 %v824, 0.01
  %v1342 = vmul.f32 %v828, 0.01
  %v1343 = vmul.f32 %v830, 0.01
  %v1344 = vmul.f32 %v832, 0.01
  %v1345 = vmul.f32 %v834, 0.01
  %v1346 = vmul.f32 %v838, 0.01
  %v1347 = vmul.f32 %v840, 0.01
  %v1348 = vmul.f32 %v842, 0.01
  %v1349 = vmul.f32 %v844, 0.01
  %v1350 = vmul.f32 %v848, 0.01
  %v1351 = vmul.f32 %v850, 0.01
  %v1352 = vmul.f32 %v852, 0.01
  %v1353 = vmul.f32 %v854, 0.01
  %v1354 = vmul.f32 %v858, 0.01
  %v1355 = vmul.f32 %v860, 0.01
  %v1356 = vmul.f32 %v862, 0.01
  %v1357 = vmul.f32 %v864, 0.01
  %v1358 = vmul.f32 %v868, 0.01
  %v1359 = vmul.f32 %v870, 0.01
  %v1360 = vmul.f32 %v872, 0.01
  %v1361 = vmul.f32 %v874, 0.01
  %v1362 = vmul.f32 %v878, 0.01
  %v1363 = vmul.f32 %v880, 0.01
  %v1364 = vmul.f32 %v882, 0.01
  %v1365 = vmul.f32 %v884, 0.01
  %v1366 = vmul.f32 %v888, 0.01
  %v1367 = vmul.f32 %v890, 0.01
  %v1368 = vmul.f32 %v892, 0.01
  %v1369 = vmul.f32 %v894, 0.01
  %v1370 = vmul.f32 %v898, 0.01
  %v1371 = vmul.f32 %v900, 0.01
  %v1372 = vmul.f32 %v902, 0.01
  %v1373 = vmul.f32 %v904, 0.01
  %v1374 = vmul.f32 %v908, 0.01
  %v1375 = vmul.f32 %v910, 0.01
  %v1376 = vmul.f32 %v912, 0.01
  %v1377 = vmul.f32 %v914, 0.01
  %v1378 = vmul.f32 %v918, 0.01
  %v1379 = vmul.f32 %v920, 0.01
  %v1380 = vmul.f32 %v922, 0.01
  %v1381 = vmul.f32 %v924, 0.01
  %v1382 = vmul.f32 %v928, 0.01
  %v1383 = vmul.f32 %v930, 0.01
  %v1384 = vmul.f32 %v932, 0.01
  %v1385 = vmul.f32 %v934, 0.01
  %v1386 = vmul.f32 %v938, 0.01
  %v1387 = vmul.f32 %v940, 0.01
  %v1388 = vmul.f32 %v942, 0.01
  %v1389 = vmul.f32 %v944, 0.01
  %v1390 = vmul.f32 %v948, 0.01
  %v1391 = vmul.f32 %v950, 0.01
  %v1392 = vmul.f32 %v952, 0.01
  %v1393 = vmul.f32 %v954, 0.01
  %v1394 = vmul.f32 %v958, 0.01
  %v1395 = vmul.f32 %v960, 0.01
  %v1396 = vmul.f32 %v962, 0.01
  %v1397 = vmul.f32 %v964, 0.01
  %v1398 = vmul.f32 %v968, 0.01
  %v1399 = vmul.f32 %v970, 0.01
  %v1400 = vmul.f32 %v972, 0.01
  %v1401 = vmul.f32 %v974, 0.01
  %v1402 = vmul.f32 %v978, 0.01
  %v1403 = vmul.f32 %v980, 0.01
  %v1404 = vmul.f32 %v982, 0.01
  %v1405 = vmul.f32 %v984, 0.01
  %v1406 = vmul.f32 %v988, 0.01
  %v1407 = vmul.f32 %v990, 0.01
  %v1408 = vmul.f32 %v992, 0.01
  %v1409 = vmul.f32 %v994, 0.01
  %v1410 = vmul.f32 %v998, 0.01
  %v1411 = vmul.f32 %v1000, 0.01
  %v1412 = vmul.f32 %v1002, 0.01
  %v1413 = vmul.f32 %v1004, 0.01
  %v1414 = vmul.f32 %v1008, 0.01
  %v1415 = vmul.f32 %v1010, 0.01
  %v1416 = vmul.f32 %v1012, 0.01
  %v1417 = vmul.f32 %v1014, 0.01
  %v1418 = vmul.f32 %v1018, 0.01
  %v1419 = vmul.f32 %v1020, 0.01
  %v1420 = vmul.f32 %v1022, 0.01
  %v1421 = vmul.f32 %v1024, 0.01
  %v1422 = vmul.f32 %v1028, 0.01
  %v1423 = vmul.f32 %v1030, 0.01
  %v1424 = vmul.f32 %v1032, 0.01
  %v1425 = vmul.f32 %v1034, 0.01
  %v1426 = vmul.f32 %v1038, 0.01
  %v1427 = vmul.f32 %v1040, 0.01
  %v1428 = vmul.f32 %v1042, 0.01
  %v1429 = vmul.f32 %v1044, 0.01
  %v1430 = vsel %vm1046, %v568, %v1238
  %v1431 = vsel %vm1047, %v570, %v1239
  %v1432 = vsel %vm1048, %v572, %v1240
  %v1433 = vsel %vm1049, %v574, %v1241
  %v1434 = vsel %vm1050, %v578, %v1242
  %v1435 = vsel %vm1051, %v580, %v1243
  %v1436 = vsel %vm1052, %v582, %v1244
  %v1437 = vsel %vm1053, %v584, %v1245
  %v1438 = vsel %vm1054, %v588, %v1246
  %v1439 = vsel %vm1055, %v590, %v1247
  %v1440 = vsel %vm1056, %v592, %v1248
  %v1441 = vsel %vm1057, %v594, %v1249
  %v1442 = vsel %vm1058, %v598, %v1250
  %v1443 = vsel %vm1059, %v600, %v1251
  %v1444 = vsel %vm1060, %v602, %v1252
  %v1445 = vsel %vm1061, %v604, %v1253
  %v1446 = vsel %vm1062, %v608, %v1254
  %v1447 = vsel %vm1063, %v610, %v1255
  %v1448 = vsel %vm1064, %v612, %v1256
  %v1449 = vsel %vm1065, %v614, %v1257
  %v1450 = vsel %vm1066, %v618, %v1258
  %v1451 = vsel %vm1067, %v620, %v1259
  %v1452 = vsel %vm1068, %v622, %v1260
  %v1453 = vsel %vm1069, %v624, %v1261
  %v1454 = vsel %vm1070, %v628, %v1262
  %v1455 = vsel %vm1071, %v630, %v1263
  %v1456 = vsel %vm1072, %v632, %v1264
  %v1457 = vsel %vm1073, %v634, %v1265
  %v1458 = vsel %vm1074, %v638, %v1266
  %v1459 = vsel %vm1075, %v640, %v1267
  %v1460 = vsel %vm1076, %v642, %v1268
  %v1461 = vsel %vm1077, %v644, %v1269
  %v1462 = vsel %vm1078, %v648, %v1270
  %v1463 = vsel %vm1079, %v650, %v1271
  %v1464 = vsel %vm1080, %v652, %v1272
  %v1465 = vsel %vm1081, %v654, %v1273
  %v1466 = vsel %vm1082, %v658, %v1274
  %v1467 = vsel %vm1083, %v660, %v1275
  %v1468 = vsel %vm1084, %v662, %v1276
  %v1469 = vsel %vm1085, %v664, %v1277
  %v1470 = vsel %vm1086, %v668, %v1278
  %v1471 = vsel %vm1087, %v670, %v1279
  %v1472 = vsel %vm1088, %v672, %v1280
  %v1473 = vsel %vm1089, %v674, %v1281
  %v1474 = vsel %vm1090, %v678, %v1282
  %v1475 = vsel %vm1091, %v680, %v1283
  %v1476 = vsel %vm1092, %v682, %v1284
  %v1477 = vsel %vm1093, %v684, %v1285
  %v1478 = vsel %vm1094, %v688, %v1286
  %v1479 = vsel %vm1095, %v690, %v1287
  %v1480 = vsel %vm1096, %v692, %v1288
  %v1481 = vsel %vm1097, %v694, %v1289
  %v1482 = vsel %vm1098, %v698, %v1290
  %v1483 = vsel %vm1099, %v700, %v1291
  %v1484 = vsel %vm1100, %v702, %v1292
  %v1485 = vsel %vm1101, %v704, %v1293
  %v1486 = vsel %vm1102, %v708, %v1294
  %v1487 = vsel %vm1103, %v710, %v1295
  %v1488 = vsel %vm1104, %v712, %v1296
  %v1489 = vsel %vm1105, %v714, %v1297
  %v1490 = vsel %vm1106, %v718, %v1298
  %v1491 = vsel %vm1107, %v720, %v1299
  %v1492 = vsel %vm1108, %v722, %v1300
  %v1493 = vsel %vm1109, %v724, %v1301
  %v1494 = vsel %vm1110, %v728, %v1302
  %v1495 = vsel %vm1111, %v730, %v1303
  %v1496 = vsel %vm1112, %v732, %v1304
  %v1497 = vsel %vm1113, %v734, %v1305
  %v1498 = vsel %vm1114, %v738, %v1306
  %v1499 = vsel %vm1115, %v740, %v1307
  %v1500 = vsel %vm1116, %v742, %v1308
  %v1501 = vsel %vm1117, %v744, %v1309
  %v1502 = vsel %vm1118, %v748, %v1310
  %v1503 = vsel %vm1119, %v750, %v1311
  %v1504 = vsel %vm1120, %v752, %v1312
  %v1505 = vsel %vm1121, %v754, %v1313
  %v1506 = vsel %vm1122, %v758, %v1314
  %v1507 = vsel %vm1123, %v760, %v1315
  %v1508 = vsel %vm1124, %v762, %v1316
  %v1509 = vsel %vm1125, %v764, %v1317
  %v1510 = vsel %vm1126, %v768, %v1318
  %v1511 = vsel %vm1127, %v770, %v1319
  %v1512 = vsel %vm1128, %v772, %v1320
  %v1513 = vsel %vm1129, %v774, %v1321
  %v1514 = vsel %vm1130, %v778, %v1322
  %v1515 = vsel %vm1131, %v780, %v1323
  %v1516 = vsel %vm1132, %v782, %v1324
  %v1517 = vsel %vm1133, %v784, %v1325
  %v1518 = vsel %vm1134, %v788, %v1326
  %v1519 = vsel %vm1135, %v790, %v1327
  %v1520 = vsel %vm1136, %v792, %v1328
  %v1521 = vsel %vm1137, %v794, %v1329
  %v1522 = vsel %vm1138, %v798, %v1330
  %v1523 = vsel %vm1139, %v800, %v1331
  %v1524 = vsel %vm1140, %v802, %v1332
  %v1525 = vsel %vm1141, %v804, %v1333
  %v1526 = vsel %vm1142, %v808, %v1334
  %v1527 = vsel %vm1143, %v810, %v1335
  %v1528 = vsel %vm1144, %v812, %v1336
  %v1529 = vsel %vm1145, %v814, %v1337
  %v1530 = vsel %vm1146, %v818, %v1338
  %v1531 = vsel %vm1147, %v820, %v1339
  %v1532 = vsel %vm1148, %v822, %v1340
  %v1533 = vsel %vm1149, %v824, %v1341
  %v1534 = vsel %vm1150, %v828, %v1342
  %v1535 = vsel %vm1151, %v830, %v1343
  %v1536 = vsel %vm1152, %v832, %v1344
  %v1537 = vsel %vm1153, %v834, %v1345
  %v1538 = vsel %vm1154, %v838, %v1346
  %v1539 = vsel %vm1155, %v840, %v1347
  %v1540 = vsel %vm1156, %v842, %v1348
  %v1541 = vsel %vm1157, %v844, %v1349
  %v1542 = vsel %vm1158, %v848, %v1350
  %v1543 = vsel %vm1159, %v850, %v1351
  %v1544 = vsel %vm1160, %v852, %v1352
  %v1545 = vsel %vm1161, %v854, %v1353
  %v1546 = vsel %vm1162, %v858, %v1354
  %v1547 = vsel %vm1163, %v860, %v1355
  %v1548 = vsel %vm1164, %v862, %v1356
  %v1549 = vsel %vm1165, %v864, %v1357
  %v1550 = vsel %vm1166, %v868, %v1358
  %v1551 = vsel %vm1167, %v870, %v1359
  %v1552 = vsel %vm1168, %v872, %v1360
  %v1553 = vsel %vm1169, %v874, %v1361
  %v1554 = vsel %vm1170, %v878, %v1362
  %v1555 = vsel %vm1171, %v880, %v1363
  %v1556 = vsel %vm1172, %v882, %v1364
  %v1557 = vsel %vm1173, %v884, %v1365
  %v1558 = vsel %vm1174, %v888, %v1366
  %v1559 = vsel %vm1175, %v890, %v1367
  %v1560 = vsel %vm1176, %v892, %v1368
  %v1561 = vsel %vm1177, %v894, %v1369
  %v1562 = vsel %vm1178, %v898, %v1370
  %v1563 = vsel %vm1179, %v900, %v1371
  %v1564 = vsel %vm1180, %v902, %v1372
  %v1565 = vsel %vm1181, %v904, %v1373
  %v1566 = vsel %vm1182, %v908, %v1374
  %v1567 = vsel %vm1183, %v910, %v1375
  %v1568 = vsel %vm1184, %v912, %v1376
  %v1569 = vsel %vm1185, %v914, %v1377
  %v1570 = vsel %vm1186, %v918, %v1378
  %v1571 = vsel %vm1187, %v920, %v1379
  %v1572 = vsel %vm1188, %v922, %v1380
  %v1573 = vsel %vm1189, %v924, %v1381
  %v1574 = vsel %vm1190, %v928, %v1382
  %v1575 = vsel %vm1191, %v930, %v1383
  %v1576 = vsel %vm1192, %v932, %v1384
  %v1577 = vsel %vm1193, %v934, %v1385
  %v1578 = vsel %vm1194, %v938, %v1386
  %v1579 = vsel %vm1195, %v940, %v1387
  %v1580 = vsel %vm1196, %v942, %v1388
  %v1581 = vsel %vm1197, %v944, %v1389
  %v1582 = vsel %vm1198, %v948, %v1390
  %v1583 = vsel %vm1199, %v950, %v1391
  %v1584 = vsel %vm1200, %v952, %v1392
  %v1585 = vsel %vm1201, %v954, %v1393
  %v1586 = vsel %vm1202, %v958, %v1394
  %v1587 = vsel %vm1203, %v960, %v1395
  %v1588 = vsel %vm1204, %v962, %v1396
  %v1589 = vsel %vm1205, %v964, %v1397
  %v1590 = vsel %vm1206, %v968, %v1398
  %v1591 = vsel %vm1207, %v970, %v1399
  %v1592 = vsel %vm1208, %v972, %v1400
  %v1593 = vsel %vm1209, %v974, %v1401
  %v1594 = vsel %vm1210, %v978, %v1402
  %v1595 = vsel %vm1211, %v980, %v1403
  %v1596 = vsel %vm1212, %v982, %v1404
  %v1597 = vsel %vm1213, %v984, %v1405
  %v1598 = vsel %vm1214, %v988, %v1406
  %v1599 = vsel %vm1215, %v990, %v1407
  %v1600 = vsel %vm1216, %v992, %v1408
  %v1601 = vsel %vm1217, %v994, %v1409
  %v1602 = vsel %vm1218, %v998, %v1410
  %v1603 = vsel %vm1219, %v1000, %v1411
  %v1604 = vsel %vm1220, %v1002, %v1412
  %v1605 = vsel %vm1221, %v1004, %v1413
  %v1606 = vsel %vm1222, %v1008, %v1414
  %v1607 = vsel %vm1223, %v1010, %v1415
  %v1608 = vsel %vm1224, %v1012, %v1416
  %v1609 = vsel %vm1225, %v1014, %v1417
  %v1610 = vsel %vm1226, %v1018, %v1418
  %v1611 = vsel %vm1227, %v1020, %v1419
  %v1612 = vsel %vm1228, %v1022, %v1420
  %v1613 = vsel %vm1229, %v1024, %v1421
  %v1614 = vsel %vm1230, %v1028, %v1422
  %v1615 = vsel %vm1231, %v1030, %v1423
  %v1616 = vsel %vm1232, %v1032, %v1424
  %v1617 = vsel %vm1233, %v1034, %v1425
  %v1618 = vsel %vm1234, %v1038, %v1426
  %v1619 = vsel %vm1235, %v1040, %v1427
  %v1620 = vsel %vm1236, %v1042, %v1428
  %v1621 = vsel %vm1237, %v1044, %v1429
  %v1622 = vpack.c.bf16 %v1432, %v1430
  %v1623 = vpack.c.bf16 %v1433, %v1431
  %v1624 = vpack.c.bf16 %v1436, %v1434
  %v1625 = vpack.c.bf16 %v1437, %v1435
  %v1626 = vpack.c.bf16 %v1440, %v1438
  %v1627 = vpack.c.bf16 %v1441, %v1439
  %v1628 = vpack.c.bf16 %v1444, %v1442
  %v1629 = vpack.c.bf16 %v1445, %v1443
  %v1630 = vpack.c.bf16 %v1448, %v1446
  %v1631 = vpack.c.bf16 %v1449, %v1447
  %v1632 = vpack.c.bf16 %v1452, %v1450
  %v1633 = vpack.c.bf16 %v1453, %v1451
  %v1634 = vpack.c.bf16 %v1456, %v1454
  %v1635 = vpack.c.bf16 %v1457, %v1455
  %v1636 = vpack.c.bf16 %v1460, %v1458
  %v1637 = vpack.c.bf16 %v1461, %v1459
  %v1638 = vpack.c.bf16 %v1464, %v1462
  %v1639 = vpack.c.bf16 %v1465, %v1463
  %v1640 = vpack.c.bf16 %v1468, %v1466
  %v1641 = vpack.c.bf16 %v1469, %v1467
  %v1642 = vpack.c.bf16 %v1472, %v1470
  %v1643 = vpack.c.bf16 %v1473, %v1471
  %v1644 = vpack.c.bf16 %v1476, %v1474
  %v1645 = vpack.c.bf16 %v1477, %v1475
  %v1646 = vpack.c.bf16 %v1480, %v1478
  %v1647 = vpack.c.bf16 %v1481, %v1479
  %v1648 = vpack.c.bf16 %v1484, %v1482
  %v1649 = vpack.c.bf16 %v1485, %v1483
  %v1650 = vpack.c.bf16 %v1488, %v1486
  %v1651 = vpack.c.bf16 %v1489, %v1487
  %v1652 = vpack.c.bf16 %v1492, %v1490
  %v1653 = vpack.c.bf16 %v1493, %v1491
  %v1654 = vpack.c.bf16 %v1496, %v1494
  %v1655 = vpack.c.bf16 %v1497, %v1495
  %v1656 = vpack.c.bf16 %v1500, %v1498
  %v1657 = vpack.c.bf16 %v1501, %v1499
  %v1658 = vpack.c.bf16 %v1504, %v1502
  %v1659 = vpack.c.bf16 %v1505, %v1503
  %v1660 = vpack.c.bf16 %v1508, %v1506
  %v1661 = vpack.c.bf16 %v1509, %v1507
  %v1662 = vpack.c.bf16 %v1512, %v1510
  %v1663 = vpack.c.bf16 %v1513, %v1511
  %v1664 = vpack.c.bf16 %v1516, %v1514
  %v1665 = vpack.c.bf16 %v1517, %v1515
  %v1666 = vpack.c.bf16 %v1520, %v1518
  %v1667 = vpack.c.bf16 %v1521, %v1519
  %v1668 = vpack.c.bf16 %v1524, %v1522
  %v1669 = vpack.c.bf16 %v1525, %v1523
  %v1670 = vpack.c.bf16 %v1528, %v1526
  %v1671 = vpack.c.bf16 %v1529, %v1527
  %v1672 = vpack.c.bf16 %v1532, %v1530
  %v1673 = vpack.c.bf16 %v1533, %v1531
  %v1674 = vpack.c.bf16 %v1536, %v1534
  %v1675 = vpack.c.bf16 %v1537, %v1535
  %v1676 = vpack.c.bf16 %v1540, %v1538
  %v1677 = vpack.c.bf16 %v1541, %v1539
  %v1678 = vpack.c.bf16 %v1544, %v1542
  %v1679 = vpack.c.bf16 %v1545, %v1543
  %v1680 = vpack.c.bf16 %v1548, %v1546
  %v1681 = vpack.c.bf16 %v1549, %v1547
  %v1682 = vpack.c.bf16 %v1552, %v1550
  %v1683 = vpack.c.bf16 %v1553, %v1551
  %v1684 = vpack.c.bf16 %v1556, %v1554
  %v1685 = vpack.c.bf16 %v1557, %v1555
  %v1686 = vpack.c.bf16 %v1560, %v1558
  %v1687 = vpack.c.bf16 %v1561, %v1559
  %v1688 = vpack.c.bf16 %v1564, %v1562
  %v1689 = vpack.c.bf16 %v1565, %v1563
  %v1690 = vpack.c.bf16 %v1568, %v1566
  %v1691 = vpack.c.bf16 %v1569, %v1567
  %v1692 = vpack.c.bf16 %v1572, %v1570
  %v1693 = vpack.c.bf16 %v1573, %v1571
  %v1694 = vpack.c.bf16 %v1576, %v1574
  %v1695 = vpack.c.bf16 %v1577, %v1575
  %v1696 = vpack.c.bf16 %v1580, %v1578
  %v1697 = vpack.c.bf16 %v1581, %v1579
  %v1698 = vpack.c.bf16 %v1584, %v1582
  %v1699 = vpack.c.bf16 %v1585, %v1583
  %v1700 = vpack.c.bf16 %v1588, %v1586
  %v1701 = vpack.c.bf16 %v1589, %v1587
  %v1702 = vpack.c.bf16 %v1592, %v1590
  %v1703 = vpack.c.bf16 %v1593, %v1591
  %v1704 = vpack.c.bf16 %v1596, %v1594
  %v1705 = vpack.c.bf16 %v1597, %v1595
  %v1706 = vpack.c.bf16 %v1600, %v1598
  %v1707 = vpack.c.bf16 %v1601, %v1599
  %v1708 = vpack.c.bf16 %v1604, %v1602
  %v1709 = vpack.c.bf16 %v1605, %v1603
  %v1710 = vpack.c.bf16 %v1608, %v1606
  %v1711 = vpack.c.bf16 %v1609, %v1607
  %v1712 = vpack.c.bf16 %v1612, %v1610
  %v1713 = vpack.c.bf16 %v1613, %v1611
  %v1714 = vpack.c.bf16 %v1616, %v1614
  %v1715 = vpack.c.bf16 %v1617, %v1615
  %v1716 = vpack.c.bf16 %v1620, %v1618
  %v1717 = vpack.c.bf16 %v1621, %v1619
  %v1718 = vld [vmem:[%s3] sm:$0xf]
  %v1719 = vld [vmem:[%s3 + $0x4] sm:$0xf]
  %v1720 = vld [vmem:[%s3 + $0x8] sm:$0xf]
  %v1721 = vld [vmem:[%s3 + $0xc] sm:$0xf]
  %v1722 = vld [vmem:[%s3 + $0x10] sm:$0xf]
  %v1723 = vld [vmem:[%s3 + $0x14] sm:$0xf]
  %v1724 = vld [vmem:[%s3 + $0x18] sm:$0xf]
  %v1725 = vld [vmem:[%s3 + $0x1c] sm:$0xf]
  %v1726 = vld [vmem:[%s3 + $0x20] sm:$0xf]
  %v1727 = vld [vmem:[%s3 + $0x24] sm:$0xf]
  %v1728 = vld [vmem:[%s3 + $0x28] sm:$0xf]
  %v1729 = vld [vmem:[%s3 + $0x2c] sm:$0xf]
  %v1730 = vld [vmem:[%s3 + $0x30] sm:$0xf]
  %v1731 = vld [vmem:[%s3 + $0x34] sm:$0xf]
  %v1732 = vld [vmem:[%s3 + $0x38] sm:$0xf]
  %v1733 = vld [vmem:[%s3 + $0x3c] sm:$0xf]
  %v1734 = vld [vmem:[%s4] sm:$0x1]
  %v1736 = vlaneseq
  %v1737 = vshrl.u32 %v1736, 7
  %v1738 = vsub.s32 0, %v1737
  %v1739 = vrot.slane %v1734, %v1738
  %v1757 = vunpack.c.l.b16 %v1718
  %v1758 = vunpack.c.l.b16 %v1719
  %v1759 = vunpack.c.l.b16 %v1720
  %v1760 = vunpack.c.l.b16 %v1721
  %v1761 = vunpack.c.l.b16 %v1722
  %v1762 = vunpack.c.l.b16 %v1723
  %v1763 = vunpack.c.l.b16 %v1724
  %v1764 = vunpack.c.l.b16 %v1725
  %v1765 = vunpack.c.l.b16 %v1726
  %v1766 = vunpack.c.l.b16 %v1727
  %v1767 = vunpack.c.l.b16 %v1728
  %v1768 = vunpack.c.l.b16 %v1729
  %v1769 = vunpack.c.l.b16 %v1730
  %v1770 = vunpack.c.l.b16 %v1731
  %v1771 = vunpack.c.l.b16 %v1732
  %v1772 = vunpack.c.l.b16 %v1733
  %v1773 = vpack.c.b16 %v1758, %v1757
  %v1774 = vpack.c.b16 %v1760, %v1759
  %v1775 = vpack.c.b16 %v1762, %v1761
  %v1776 = vpack.c.b16 %v1764, %v1763
  %v1777 = vpack.c.b16 %v1766, %v1765
  %v1778 = vpack.c.b16 %v1768, %v1767
  %v1779 = vpack.c.b16 %v1770, %v1769
  %v1780 = vpack.c.b16 %v1772, %v1771
  %1789 = vmatprep.subr.bf16.mxu0 0
  %1790 = vmatpush1.bf16.msra.mxu0 %v1780
  %1791 = vmatprep.subr.bf16.mxu0 0
  %1792 = vmatpush1.bf16.msra.mxu0 %v1779
  %1793 = vmatprep.subr.bf16.mxu0 0
  %1794 = vmatpush1.bf16.msra.mxu0 %v1778
  %1795 = vmatprep.subr.bf16.mxu0 0
  %1796 = vmatpush1.bf16.msra.mxu0 %v1777
  %1797 = vmatprep.subr.bf16.mxu0 0
  %1798 = vmatpush1.bf16.msra.mxu0 %v1776
  %1799 = vmatprep.subr.bf16.mxu0 0
  %1800 = vmatpush1.bf16.msra.mxu0 %v1775
  %1801 = vmatprep.subr.bf16.mxu0 0
  %1802 = vmatpush1.bf16.msra.mxu0 %v1774
  %1803 = vmatprep.subr.bf16.mxu0 0
  %1804 = vmatpush1.bf16.msra.mxu0 %v1773
  %1805 = vmatprep.subr.bf16.mxu0 0
  %1806 = vmatpush2.bf16.msra.mxu0 0
  %1807 = vmatprep.subr.bf16.mxu0 0
  %1808 = vmatpush2.bf16.msra.mxu0 0
  %1809 = vmatprep.subr.bf16.mxu0 0
  %1810 = vmatpush2.bf16.msra.mxu0 0
  %1811 = vmatprep.subr.bf16.mxu0 0
  %1812 = vmatpush2.bf16.msra.mxu0 0
  %1813 = vmatprep.subr.bf16.mxu0 0
  %1814 = vmatpush2.bf16.msra.mxu0 0
  %1815 = vmatprep.subr.bf16.mxu0 0
  %1816 = vmatpush2.bf16.msra.mxu0 0
  %1817 = vmatprep.subr.bf16.mxu0 0
  %1818 = vmatpush2.bf16.msra.mxu0 0
  %1819 = vmatprep.subr.bf16.mxu0 0
  %1820 = vmatpush2.bf16.msra.mxu0 0
  %1821 = vmatprep.mubr.bf16.mxu0 0
  %1822 = vmatmul.mubr.bf16.gmra.mxu0 %v1622
  %v1823 = vpop.f32.mrf.mxu0
  %v1824 = vadd.f32 %v1739, %v1823
  %v1825 = vpop.f32.mrf.mxu0
  %v1826 = vpop.f32.mrf.mxu0
  %v1827 = vadd.f32 %v1739, %v1826
  %v1828 = vpop.f32.mrf.mxu0
  %1829 = vmatprep.mubr.bf16.mxu0 0
  %1830 = vmatmul.mubr.bf16.gmra.mxu0 %v1624
  %v1831 = vpop.f32.mrf.mxu0
  %v1832 = vadd.f32 %v1739, %v1831
  %v1833 = vpop.f32.mrf.mxu0
  %v1834 = vpop.f32.mrf.mxu0
  %v1835 = vadd.f32 %v1739, %v1834
  %v1836 = vpop.f32.mrf.mxu0
  %1837 = vmatprep.mubr.bf16.mxu0 0
  %1838 = vmatmul.mubr.bf16.gmra.mxu0 %v1626
  %v1839 = vpop.f32.mrf.mxu0
  %v1840 = vadd.f32 %v1739, %v1839
  %v1841 = vpop.f32.mrf.mxu0
  %v1842 = vpop.f32.mrf.mxu0
  %v1843 = vadd.f32 %v1739, %v1842
  %v1844 = vpop.f32.mrf.mxu0
  %1845 = vmatprep.mubr.bf16.mxu0 0
  %1846 = vmatmul.mubr.bf16.gmra.mxu0 %v1628
  %v1847 = vpop.f32.mrf.mxu0
  %v1848 = vadd.f32 %v1739, %v1847
  %v1849 = vpop.f32.mrf.mxu0
  %v1850 = vpop.f32.mrf.mxu0
  %v1851 = vadd.f32 %v1739, %v1850
  %v1852 = vpop.f32.mrf.mxu0
  %1853 = vmatprep.mubr.bf16.mxu0 0
  %1854 = vmatmul.mubr.bf16.gmra.mxu0 %v1630
  %v1855 = vpop.f32.mrf.mxu0
  %v1856 = vadd.f32 %v1739, %v1855
  %v1857 = vpop.f32.mrf.mxu0
  %v1858 = vpop.f32.mrf.mxu0
  %v1859 = vadd.f32 %v1739, %v1858
  %v1860 = vpop.f32.mrf.mxu0
  %1861 = vmatprep.mubr.bf16.mxu0 0
  %1862 = vmatmul.mubr.bf16.gmra.mxu0 %v1632
  %v1863 = vpop.f32.mrf.mxu0
  %v1864 = vadd.f32 %v1739, %v1863
  %v1865 = vpop.f32.mrf.mxu0
  %v1866 = vpop.f32.mrf.mxu0
  %v1867 = vadd.f32 %v1739, %v1866
  %v1868 = vpop.f32.mrf.mxu0
  %1869 = vmatprep.mubr.bf16.mxu0 0
  %1870 = vmatmul.mubr.bf16.gmra.mxu0 %v1634
  %v1871 = vpop.f32.mrf.mxu0
  %v1872 = vadd.f32 %v1739, %v1871
  %v1873 = vpop.f32.mrf.mxu0
  %v1874 = vpop.f32.mrf.mxu0
  %v1875 = vadd.f32 %v1739, %v1874
  %v1876 = vpop.f32.mrf.mxu0
  %1877 = vmatprep.mubr.bf16.mxu0 0
  %1878 = vmatmul.mubr.bf16.gmra.mxu0 %v1636
  %v1879 = vpop.f32.mrf.mxu0
  %v1880 = vadd.f32 %v1739, %v1879
  %v1881 = vpop.f32.mrf.mxu0
  %v1882 = vpop.f32.mrf.mxu0
  %v1883 = vadd.f32 %v1739, %v1882
  %v1884 = vpop.f32.mrf.mxu0
  %1885 = vmatprep.mubr.bf16.mxu0 0
  %1886 = vmatmul.mubr.bf16.gmra.mxu0 %v1638
  %v1887 = vpop.f32.mrf.mxu0
  %v1888 = vadd.f32 %v1739, %v1887
  %v1889 = vpop.f32.mrf.mxu0
  %v1890 = vpop.f32.mrf.mxu0
  %v1891 = vadd.f32 %v1739, %v1890
  %v1892 = vpop.f32.mrf.mxu0
  %1893 = vmatprep.mubr.bf16.mxu0 0
  %1894 = vmatmul.mubr.bf16.gmra.mxu0 %v1640
  %v1895 = vpop.f32.mrf.mxu0
  %v1896 = vadd.f32 %v1739, %v1895
  %v1897 = vpop.f32.mrf.mxu0
  %v1898 = vpop.f32.mrf.mxu0
  %v1899 = vadd.f32 %v1739, %v1898
  %v1900 = vpop.f32.mrf.mxu0
  %1901 = vmatprep.mubr.bf16.mxu0 0
  %1902 = vmatmul.mubr.bf16.gmra.mxu0 %v1642
  %v1903 = vpop.f32.mrf.mxu0
  %v1904 = vadd.f32 %v1739, %v1903
  %v1905 = vpop.f32.mrf.mxu0
  %v1906 = vpop.f32.mrf.mxu0
  %v1907 = vadd.f32 %v1739, %v1906
  %v1908 = vpop.f32.mrf.mxu0
  %1909 = vmatprep.mubr.bf16.mxu0 0
  %1910 = vmatmul.mubr.bf16.gmra.mxu0 %v1644
  %v1911 = vpop.f32.mrf.mxu0
  %v1912 = vadd.f32 %v1739, %v1911
  %v1913 = vpop.f32.mrf.mxu0
  %v1914 = vpop.f32.mrf.mxu0
  %v1915 = vadd.f32 %v1739, %v1914
  %v1916 = vpop.f32.mrf.mxu0
  %1917 = vmatprep.mubr.bf16.mxu0 0
  %1918 = vmatmul.mubr.bf16.gmra.mxu0 %v1646
  %v1919 = vpop.f32.mrf.mxu0
  %v1920 = vadd.f32 %v1739, %v1919
  %v1921 = vpop.f32.mrf.mxu0
  %v1922 = vpop.f32.mrf.mxu0
  %v1923 = vadd.f32 %v1739, %v1922
  %v1924 = vpop.f32.mrf.mxu0
  %1925 = vmatprep.mubr.bf16.mxu0 0
  %1926 = vmatmul.mubr.bf16.gmra.mxu0 %v1648
  %v1927 = vpop.f32.mrf.mxu0
  %v1928 = vadd.f32 %v1739, %v1927
  %v1929 = vpop.f32.mrf.mxu0
  %v1930 = vpop.f32.mrf.mxu0
  %v1931 = vadd.f32 %v1739, %v1930
  %v1932 = vpop.f32.mrf.mxu0
  %1933 = vmatprep.mubr.bf16.mxu0 0
  %1934 = vmatmul.mubr.bf16.gmra.mxu0 %v1650
  %v1935 = vpop.f32.mrf.mxu0
  %v1936 = vadd.f32 %v1739, %v1935
  %v1937 = vpop.f32.mrf.mxu0
  %v1938 = vpop.f32.mrf.mxu0
  %v1939 = vadd.f32 %v1739, %v1938
  %v1940 = vpop.f32.mrf.mxu0
  %1941 = vmatprep.mubr.bf16.mxu0 0
  %1942 = vmatmul.mubr.bf16.gmra.mxu0 %v1652
  %v1943 = vpop.f32.mrf.mxu0
  %v1944 = vadd.f32 %v1739, %v1943
  %v1945 = vpop.f32.mrf.mxu0
  %v1946 = vpop.f32.mrf.mxu0
  %v1947 = vadd.f32 %v1739, %v1946
  %v1948 = vpop.f32.mrf.mxu0
  %1949 = vmatprep.mubr.bf16.mxu0 0
  %1950 = vmatmul.mubr.bf16.gmra.mxu0 %v1654
  %v1951 = vpop.f32.mrf.mxu0
  %v1952 = vadd.f32 %v1739, %v1951
  %v1953 = vpop.f32.mrf.mxu0
  %v1954 = vpop.f32.mrf.mxu0
  %v1955 = vadd.f32 %v1739, %v1954
  %v1956 = vpop.f32.mrf.mxu0
  %1957 = vmatprep.mubr.bf16.mxu0 0
  %1958 = vmatmul.mubr.bf16.gmra.mxu0 %v1656
  %v1959 = vpop.f32.mrf.mxu0
  %v1960 = vadd.f32 %v1739, %v1959
  %v1961 = vpop.f32.mrf.mxu0
  %v1962 = vpop.f32.mrf.mxu0
  %v1963 = vadd.f32 %v1739, %v1962
  %v1964 = vpop.f32.mrf.mxu0
  %1965 = vmatprep.mubr.bf16.mxu0 0
  %1966 = vmatmul.mubr.bf16.gmra.mxu0 %v1658
  %v1967 = vpop.f32.mrf.mxu0
  %v1968 = vadd.f32 %v1739, %v1967
  %v1969 = vpop.f32.mrf.mxu0
  %v1970 = vpop.f32.mrf.mxu0
  %v1971 = vadd.f32 %v1739, %v1970
  %v1972 = vpop.f32.mrf.mxu0
  %1973 = vmatprep.mubr.bf16.mxu0 0
  %1974 = vmatmul.mubr.bf16.gmra.mxu0 %v1660
  %v1975 = vpop.f32.mrf.mxu0
  %v1976 = vadd.f32 %v1739, %v1975
  %v1977 = vpop.f32.mrf.mxu0
  %v1978 = vpop.f32.mrf.mxu0
  %v1979 = vadd.f32 %v1739, %v1978
  %v1980 = vpop.f32.mrf.mxu0
  %1981 = vmatprep.mubr.bf16.mxu0 0
  %1982 = vmatmul.mubr.bf16.gmra.mxu0 %v1662
  %v1983 = vpop.f32.mrf.mxu0
  %v1984 = vadd.f32 %v1739, %v1983
  %v1985 = vpop.f32.mrf.mxu0
  %v1986 = vpop.f32.mrf.mxu0
  %v1987 = vadd.f32 %v1739, %v1986
  %v1988 = vpop.f32.mrf.mxu0
  %1989 = vmatprep.mubr.bf16.mxu0 0
  %1990 = vmatmul.mubr.bf16.gmra.mxu0 %v1664
  %v1991 = vpop.f32.mrf.mxu0
  %v1992 = vadd.f32 %v1739, %v1991
  %v1993 = vpop.f32.mrf.mxu0
  %v1994 = vpop.f32.mrf.mxu0
  %v1995 = vadd.f32 %v1739, %v1994
  %v1996 = vpop.f32.mrf.mxu0
  %1997 = vmatprep.mubr.bf16.mxu0 0
  %1998 = vmatmul.mubr.bf16.gmra.mxu0 %v1666
  %v1999 = vpop.f32.mrf.mxu0
  %v2000 = vadd.f32 %v1739, %v1999
  %v2001 = vpop.f32.mrf.mxu0
  %v2002 = vpop.f32.mrf.mxu0
  %v2003 = vadd.f32 %v1739, %v2002
  %v2004 = vpop.f32.mrf.mxu0
  %2005 = vmatprep.mubr.bf16.mxu0 0
  %2006 = vmatmul.mubr.bf16.gmra.mxu0 %v1668
  %v2007 = vpop.f32.mrf.mxu0
  %v2008 = vadd.f32 %v1739, %v2007
  %v2009 = vpop.f32.mrf.mxu0
  %v2010 = vpop.f32.mrf.mxu0
  %v2011 = vadd.f32 %v1739, %v2010
  %v2012 = vpop.f32.mrf.mxu0
  %2013 = vmatprep.mubr.bf16.mxu0 0
  %2014 = vmatmul.mubr.bf16.gmra.mxu0 %v1670
  %v2015 = vpop.f32.mrf.mxu0
  %v2016 = vadd.f32 %v1739, %v2015
  %v2017 = vpop.f32.mrf.mxu0
  %v2018 = vpop.f32.mrf.mxu0
  %v2019 = vadd.f32 %v1739, %v2018
  %v2020 = vpop.f32.mrf.mxu0
  %2021 = vmatprep.mubr.bf16.mxu0 0
  %2022 = vmatmul.mubr.bf16.gmra.mxu0 %v1672
  %v2023 = vpop.f32.mrf.mxu0
  %v2024 = vadd.f32 %v1739, %v2023
  %v2025 = vpop.f32.mrf.mxu0
  %v2026 = vpop.f32.mrf.mxu0
  %v2027 = vadd.f32 %v1739, %v2026
  %v2028 = vpop.f32.mrf.mxu0
  %2029 = vmatprep.mubr.bf16.mxu0 0
  %2030 = vmatmul.mubr.bf16.gmra.mxu0 %v1674
  %v2031 = vpop.f32.mrf.mxu0
  %v2032 = vadd.f32 %v1739, %v2031
  %v2033 = vpop.f32.mrf.mxu0
  %v2034 = vpop.f32.mrf.mxu0
  %v2035 = vadd.f32 %v1739, %v2034
  %v2036 = vpop.f32.mrf.mxu0
  %2037 = vmatprep.mubr.bf16.mxu0 0
  %2038 = vmatmul.mubr.bf16.gmra.mxu0 %v1676
  %v2039 = vpop.f32.mrf.mxu0
  %v2040 = vadd.f32 %v1739, %v2039
  %v2041 = vpop.f32.mrf.mxu0
  %v2042 = vpop.f32.mrf.mxu0
  %v2043 = vadd.f32 %v1739, %v2042
  %v2044 = vpop.f32.mrf.mxu0
  %2045 = vmatprep.mubr.bf16.mxu0 0
  %2046 = vmatmul.mubr.bf16.gmra.mxu0 %v1678
  %v2047 = vpop.f32.mrf.mxu0
  %v2048 = vadd.f32 %v1739, %v2047
  %v2049 = vpop.f32.mrf.mxu0
  %v2050 = vpop.f32.mrf.mxu0
  %v2051 = vadd.f32 %v1739, %v2050
  %v2052 = vpop.f32.mrf.mxu0
  %2053 = vmatprep.mubr.bf16.mxu0 0
  %2054 = vmatmul.mubr.bf16.gmra.mxu0 %v1680
  %v2055 = vpop.f32.mrf.mxu0
  %v2056 = vadd.f32 %v1739, %v2055
  %v2057 = vpop.f32.mrf.mxu0
  %v2058 = vpop.f32.mrf.mxu0
  %v2059 = vadd.f32 %v1739, %v2058
  %v2060 = vpop.f32.mrf.mxu0
  %2061 = vmatprep.mubr.bf16.mxu0 0
  %2062 = vmatmul.mubr.bf16.gmra.mxu0 %v1682
  %v2063 = vpop.f32.mrf.mxu0
  %v2064 = vadd.f32 %v1739, %v2063
  %v2065 = vpop.f32.mrf.mxu0
  %v2066 = vpop.f32.mrf.mxu0
  %v2067 = vadd.f32 %v1739, %v2066
  %v2068 = vpop.f32.mrf.mxu0
  %2069 = vmatprep.mubr.bf16.mxu0 0
  %2070 = vmatmul.mubr.bf16.gmra.mxu0 %v1684
  %v2071 = vpop.f32.mrf.mxu0
  %v2072 = vadd.f32 %v1739, %v2071
  %v2073 = vpop.f32.mrf.mxu0
  %v2074 = vpop.f32.mrf.mxu0
  %v2075 = vadd.f32 %v1739, %v2074
  %v2076 = vpop.f32.mrf.mxu0
  %2077 = vmatprep.mubr.bf16.mxu0 0
  %2078 = vmatmul.mubr.bf16.gmra.mxu0 %v1686
  %v2079 = vpop.f32.mrf.mxu0
  %v2080 = vadd.f32 %v1739, %v2079
  %v2081 = vpop.f32.mrf.mxu0
  %v2082 = vpop.f32.mrf.mxu0
  %v2083 = vadd.f32 %v1739, %v2082
  %v2084 = vpop.f32.mrf.mxu0
  %2085 = vmatprep.mubr.bf16.mxu0 0
  %2086 = vmatmul.mubr.bf16.gmra.mxu0 %v1688
  %v2087 = vpop.f32.mrf.mxu0
  %v2088 = vadd.f32 %v1739, %v2087
  %v2089 = vpop.f32.mrf.mxu0
  %v2090 = vpop.f32.mrf.mxu0
  %v2091 = vadd.f32 %v1739, %v2090
  %v2092 = vpop.f32.mrf.mxu0
  %2093 = vmatprep.mubr.bf16.mxu0 0
  %2094 = vmatmul.mubr.bf16.gmra.mxu0 %v1690
  %v2095 = vpop.f32.mrf.mxu0
  %v2096 = vadd.f32 %v1739, %v2095
  %v2097 = vpop.f32.mrf.mxu0
  %v2098 = vpop.f32.mrf.mxu0
  %v2099 = vadd.f32 %v1739, %v2098
  %v2100 = vpop.f32.mrf.mxu0
  %2101 = vmatprep.mubr.bf16.mxu0 0
  %2102 = vmatmul.mubr.bf16.gmra.mxu0 %v1692
  %v2103 = vpop.f32.mrf.mxu0
  %v2104 = vadd.f32 %v1739, %v2103
  %v2105 = vpop.f32.mrf.mxu0
  %v2106 = vpop.f32.mrf.mxu0
  %v2107 = vadd.f32 %v1739, %v2106
  %v2108 = vpop.f32.mrf.mxu0
  %2109 = vmatprep.mubr.bf16.mxu0 0
  %2110 = vmatmul.mubr.bf16.gmra.mxu0 %v1694
  %v2111 = vpop.f32.mrf.mxu0
  %v2112 = vadd.f32 %v1739, %v2111
  %v2113 = vpop.f32.mrf.mxu0
  %v2114 = vpop.f32.mrf.mxu0
  %v2115 = vadd.f32 %v1739, %v2114
  %v2116 = vpop.f32.mrf.mxu0
  %2117 = vmatprep.mubr.bf16.mxu0 0
  %2118 = vmatmul.mubr.bf16.gmra.mxu0 %v1696
  %v2119 = vpop.f32.mrf.mxu0
  %v2120 = vadd.f32 %v1739, %v2119
  %v2121 = vpop.f32.mrf.mxu0
  %v2122 = vpop.f32.mrf.mxu0
  %v2123 = vadd.f32 %v1739, %v2122
  %v2124 = vpop.f32.mrf.mxu0
  %2125 = vmatprep.mubr.bf16.mxu0 0
  %2126 = vmatmul.mubr.bf16.gmra.mxu0 %v1698
  %v2127 = vpop.f32.mrf.mxu0
  %v2128 = vadd.f32 %v1739, %v2127
  %v2129 = vpop.f32.mrf.mxu0
  %v2130 = vpop.f32.mrf.mxu0
  %v2131 = vadd.f32 %v1739, %v2130
  %v2132 = vpop.f32.mrf.mxu0
  %2133 = vmatprep.mubr.bf16.mxu0 0
  %2134 = vmatmul.mubr.bf16.gmra.mxu0 %v1700
  %v2135 = vpop.f32.mrf.mxu0
  %v2136 = vadd.f32 %v1739, %v2135
  %v2137 = vpop.f32.mrf.mxu0
  %v2138 = vpop.f32.mrf.mxu0
  %v2139 = vadd.f32 %v1739, %v2138
  %v2140 = vpop.f32.mrf.mxu0
  %2141 = vmatprep.mubr.bf16.mxu0 0
  %2142 = vmatmul.mubr.bf16.gmra.mxu0 %v1702
  %v2143 = vpop.f32.mrf.mxu0
  %v2144 = vadd.f32 %v1739, %v2143
  %v2145 = vpop.f32.mrf.mxu0
  %v2146 = vpop.f32.mrf.mxu0
  %v2147 = vadd.f32 %v1739, %v2146
  %v2148 = vpop.f32.mrf.mxu0
  %2149 = vmatprep.mubr.bf16.mxu0 0
  %2150 = vmatmul.mubr.bf16.gmra.mxu0 %v1704
  %v2151 = vpop.f32.mrf.mxu0
  %v2152 = vadd.f32 %v1739, %v2151
  %v2153 = vpop.f32.mrf.mxu0
  %v2154 = vpop.f32.mrf.mxu0
  %v2155 = vadd.f32 %v1739, %v2154
  %v2156 = vpop.f32.mrf.mxu0
  %2157 = vmatprep.mubr.bf16.mxu0 0
  %2158 = vmatmul.mubr.bf16.gmra.mxu0 %v1706
  %v2159 = vpop.f32.mrf.mxu0
  %v2160 = vadd.f32 %v1739, %v2159
  %v2161 = vpop.f32.mrf.mxu0
  %v2162 = vpop.f32.mrf.mxu0
  %v2163 = vadd.f32 %v1739, %v2162
  %v2164 = vpop.f32.mrf.mxu0
  %2165 = vmatprep.mubr.bf16.mxu0 0
  %2166 = vmatmul.mubr.bf16.gmra.mxu0 %v1708
  %v2167 = vpop.f32.mrf.mxu0
  %v2168 = vadd.f32 %v1739, %v2167
  %v2169 = vpop.f32.mrf.mxu0
  %v2170 = vpop.f32.mrf.mxu0
  %v2171 = vadd.f32 %v1739, %v2170
  %v2172 = vpop.f32.mrf.mxu0
  %2173 = vmatprep.mubr.bf16.mxu0 0
  %2174 = vmatmul.mubr.bf16.gmra.mxu0 %v1710
  %v2175 = vpop.f32.mrf.mxu0
  %v2176 = vadd.f32 %v1739, %v2175
  %v2177 = vpop.f32.mrf.mxu0
  %v2178 = vpop.f32.mrf.mxu0
  %v2179 = vadd.f32 %v1739, %v2178
  %v2180 = vpop.f32.mrf.mxu0
  %2181 = vmatprep.mubr.bf16.mxu0 0
  %2182 = vmatmul.mubr.bf16.gmra.mxu0 %v1712
  %v2183 = vpop.f32.mrf.mxu0
  %v2184 = vadd.f32 %v1739, %v2183
  %v2185 = vpop.f32.mrf.mxu0
  %v2186 = vpop.f32.mrf.mxu0
  %v2187 = vadd.f32 %v1739, %v2186
  %v2188 = vpop.f32.mrf.mxu0
  %2189 = vmatprep.mubr.bf16.mxu0 0
  %2190 = vmatmul.mubr.bf16.gmra.mxu0 %v1714
  %v2191 = vpop.f32.mrf.mxu0
  %v2192 = vadd.f32 %v1739, %v2191
  %v2193 = vpop.f32.mrf.mxu0
  %v2194 = vpop.f32.mrf.mxu0
  %v2195 = vadd.f32 %v1739, %v2194
  %v2196 = vpop.f32.mrf.mxu0
  %2197 = vmatprep.mubr.bf16.mxu0 0
  %2198 = vmatmul.mubr.bf16.gmra.mxu0 %v1716
  %v2199 = vpop.f32.mrf.mxu0
  %v2200 = vadd.f32 %v1739, %v2199
  %v2201 = vpop.f32.mrf.mxu0
  %v2202 = vpop.f32.mrf.mxu0
  %v2203 = vadd.f32 %v1739, %v2202
  %v2204 = vpop.f32.mrf.mxu0
  %2205 = vdwg.mxu0
  %vm2206 = vcmp.ge.f32.partialorder %v1824, 0.0
  %vm2207 = vcmp.ge.f32.partialorder %v1827, 0.0
  %vm2208 = vcmp.ge.f32.partialorder %v1832, 0.0
  %vm2209 = vcmp.ge.f32.partialorder %v1835, 0.0
  %vm2210 = vcmp.ge.f32.partialorder %v1840, 0.0
  %vm2211 = vcmp.ge.f32.partialorder %v1843, 0.0
  %vm2212 = vcmp.ge.f32.partialorder %v1848, 0.0
  %vm2213 = vcmp.ge.f32.partialorder %v1851, 0.0
  %vm2214 = vcmp.ge.f32.partialorder %v1856, 0.0
  %vm2215 = vcmp.ge.f32.partialorder %v1859, 0.0
  %vm2216 = vcmp.ge.f32.partialorder %v1864, 0.0
  %vm2217 = vcmp.ge.f32.partialorder %v1867, 0.0
  %vm2218 = vcmp.ge.f32.partialorder %v1872, 0.0
  %vm2219 = vcmp.ge.f32.partialorder %v1875, 0.0
  %vm2220 = vcmp.ge.f32.partialorder %v1880, 0.0
  %vm2221 = vcmp.ge.f32.partialorder %v1883, 0.0
  %vm2222 = vcmp.ge.f32.partialorder %v1888, 0.0
  %vm2223 = vcmp.ge.f32.partialorder %v1891, 0.0
  %vm2224 = vcmp.ge.f32.partialorder %v1896, 0.0
  %vm2225 = vcmp.ge.f32.partialorder %v1899, 0.0
  %vm2226 = vcmp.ge.f32.partialorder %v1904, 0.0
  %vm2227 = vcmp.ge.f32.partialorder %v1907, 0.0
  %vm2228 = vcmp.ge.f32.partialorder %v1912, 0.0
  %vm2229 = vcmp.ge.f32.partialorder %v1915, 0.0
  %vm2230 = vcmp.ge.f32.partialorder %v1920, 0.0
  %vm2231 = vcmp.ge.f32.partialorder %v1923, 0.0
  %vm2232 = vcmp.ge.f32.partialorder %v1928, 0.0
  %vm2233 = vcmp.ge.f32.partialorder %v1931, 0.0
  %vm2234 = vcmp.ge.f32.partialorder %v1936, 0.0
  %vm2235 = vcmp.ge.f32.partialorder %v1939, 0.0
  %vm2236 = vcmp.ge.f32.partialorder %v1944, 0.0
  %vm2237 = vcmp.ge.f32.partialorder %v1947, 0.0
  %vm2238 = vcmp.ge.f32.partialorder %v1952, 0.0
  %vm2239 = vcmp.ge.f32.partialorder %v1955, 0.0
  %vm2240 = vcmp.ge.f32.partialorder %v1960, 0.0
  %vm2241 = vcmp.ge.f32.partialorder %v1963, 0.0
  %vm2242 = vcmp.ge.f32.partialorder %v1968, 0.0
  %vm2243 = vcmp.ge.f32.partialorder %v1971, 0.0
  %vm2244 = vcmp.ge.f32.partialorder %v1976, 0.0
  %vm2245 = vcmp.ge.f32.partialorder %v1979, 0.0
  %vm2246 = vcmp.ge.f32.partialorder %v1984, 0.0
  %vm2247 = vcmp.ge.f32.partialorder %v1987, 0.0
  %vm2248 = vcmp.ge.f32.partialorder %v1992, 0.0
  %vm2249 = vcmp.ge.f32.partialorder %v1995, 0.0
  %vm2250 = vcmp.ge.f32.partialorder %v2000, 0.0
  %vm2251 = vcmp.ge.f32.partialorder %v2003, 0.0
  %vm2252 = vcmp.ge.f32.partialorder %v2008, 0.0
  %vm2253 = vcmp.ge.f32.partialorder %v2011, 0.0
  %vm2254 = vcmp.ge.f32.partialorder %v2016, 0.0
  %vm2255 = vcmp.ge.f32.partialorder %v2019, 0.0
  %vm2256 = vcmp.ge.f32.partialorder %v2024, 0.0
  %vm2257 = vcmp.ge.f32.partialorder %v2027, 0.0
  %vm2258 = vcmp.ge.f32.partialorder %v2032, 0.0
  %vm2259 = vcmp.ge.f32.partialorder %v2035, 0.0
  %vm2260 = vcmp.ge.f32.partialorder %v2040, 0.0
  %vm2261 = vcmp.ge.f32.partialorder %v2043, 0.0
  %vm2262 = vcmp.ge.f32.partialorder %v2048, 0.0
  %vm2263 = vcmp.ge.f32.partialorder %v2051, 0.0
  %vm2264 = vcmp.ge.f32.partialorder %v2056, 0.0
  %vm2265 = vcmp.ge.f32.partialorder %v2059, 0.0
  %vm2266 = vcmp.ge.f32.partialorder %v2064, 0.0
  %vm2267 = vcmp.ge.f32.partialorder %v2067, 0.0
  %vm2268 = vcmp.ge.f32.partialorder %v2072, 0.0
  %vm2269 = vcmp.ge.f32.partialorder %v2075, 0.0
  %vm2270 = vcmp.ge.f32.partialorder %v2080, 0.0
  %vm2271 = vcmp.ge.f32.partialorder %v2083, 0.0
  %vm2272 = vcmp.ge.f32.partialorder %v2088, 0.0
  %vm2273 = vcmp.ge.f32.partialorder %v2091, 0.0
  %vm2274 = vcmp.ge.f32.partialorder %v2096, 0.0
  %vm2275 = vcmp.ge.f32.partialorder %v2099, 0.0
  %vm2276 = vcmp.ge.f32.partialorder %v2104, 0.0
  %vm2277 = vcmp.ge.f32.partialorder %v2107, 0.0
  %vm2278 = vcmp.ge.f32.partialorder %v2112, 0.0
  %vm2279 = vcmp.ge.f32.partialorder %v2115, 0.0
  %vm2280 = vcmp.ge.f32.partialorder %v2120, 0.0
  %vm2281 = vcmp.ge.f32.partialorder %v2123, 0.0
  %vm2282 = vcmp.ge.f32.partialorder %v2128, 0.0
  %vm2283 = vcmp.ge.f32.partialorder %v2131, 0.0
  %vm2284 = vcmp.ge.f32.partialorder %v2136, 0.0
  %vm2285 = vcmp.ge.f32.partialorder %v2139, 0.0
  %vm2286 = vcmp.ge.f32.partialorder %v2144, 0.0
  %vm2287 = vcmp.ge.f32.partialorder %v2147, 0.0
  %vm2288 = vcmp.ge.f32.partialorder %v2152, 0.0
  %vm2289 = vcmp.ge.f32.partialorder %v2155, 0.0
  %vm2290 = vcmp.ge.f32.partialorder %v2160, 0.0
  %vm2291 = vcmp.ge.f32.partialorder %v2163, 0.0
  %vm2292 = vcmp.ge.f32.partialorder %v2168, 0.0
  %vm2293 = vcmp.ge.f32.partialorder %v2171, 0.0
  %vm2294 = vcmp.ge.f32.partialorder %v2176, 0.0
  %vm2295 = vcmp.ge.f32.partialorder %v2179, 0.0
  %vm2296 = vcmp.ge.f32.partialorder %v2184, 0.0
  %vm2297 = vcmp.ge.f32.partialorder %v2187, 0.0
  %vm2298 = vcmp.ge.f32.partialorder %v2192, 0.0
  %vm2299 = vcmp.ge.f32.partialorder %v2195, 0.0
  %vm2300 = vcmp.ge.f32.partialorder %v2200, 0.0
  %vm2301 = vcmp.ge.f32.partialorder %v2203, 0.0
  %v2302 = vmul.f32 %v1824, 0.01
  %v2303 = vmul.f32 %v1827, 0.01
  %v2304 = vmul.f32 %v1832, 0.01
  %v2305 = vmul.f32 %v1835, 0.01
  %v2306 = vmul.f32 %v1840, 0.01
  %v2307 = vmul.f32 %v1843, 0.01
  %v2308 = vmul.f32 %v1848, 0.01
  %v2309 = vmul.f32 %v1851, 0.01
  %v2310 = vmul.f32 %v1856, 0.01
  %v2311 = vmul.f32 %v1859, 0.01
  %v2312 = vmul.f32 %v1864, 0.01
  %v2313 = vmul.f32 %v1867, 0.01
  %v2314 = vmul.f32 %v1872, 0.01
  %v2315 = vmul.f32 %v1875, 0.01
  %v2316 = vmul.f32 %v1880, 0.01
  %v2317 = vmul.f32 %v1883, 0.01
  %v2318 = vmul.f32 %v1888, 0.01
  %v2319 = vmul.f32 %v1891, 0.01
  %v2320 = vmul.f32 %v1896, 0.01
  %v2321 = vmul.f32 %v1899, 0.01
  %v2322 = vmul.f32 %v1904, 0.01
  %v2323 = vmul.f32 %v1907, 0.01
  %v2324 = vmul.f32 %v1912, 0.01
  %v2325 = vmul.f32 %v1915, 0.01
  %v2326 = vmul.f32 %v1920, 0.01
  %v2327 = vmul.f32 %v1923, 0.01
  %v2328 = vmul.f32 %v1928, 0.01
  %v2329 = vmul.f32 %v1931, 0.01
  %v2330 = vmul.f32 %v1936, 0.01
  %v2331 = vmul.f32 %v1939, 0.01
  %v2332 = vmul.f32 %v1944, 0.01
  %v2333 = vmul.f32 %v1947, 0.01
  %v2334 = vmul.f32 %v1952, 0.01
  %v2335 = vmul.f32 %v1955, 0.01
  %v2336 = vmul.f32 %v1960, 0.01
  %v2337 = vmul.f32 %v1963, 0.01
  %v2338 = vmul.f32 %v1968, 0.01
  %v2339 = vmul.f32 %v1971, 0.01
  %v2340 = vmul.f32 %v1976, 0.01
  %v2341 = vmul.f32 %v1979, 0.01
  %v2342 = vmul.f32 %v1984, 0.01
  %v2343 = vmul.f32 %v1987, 0.01
  %v2344 = vmul.f32 %v1992, 0.01
  %v2345 = vmul.f32 %v1995, 0.01
  %v2346 = vmul.f32 %v2000, 0.01
  %v2347 = vmul.f32 %v2003, 0.01
  %v2348 = vmul.f32 %v2008, 0.01
  %v2349 = vmul.f32 %v2011, 0.01
  %v2350 = vmul.f32 %v2016, 0.01
  %v2351 = vmul.f32 %v2019, 0.01
  %v2352 = vmul.f32 %v2024, 0.01
  %v2353 = vmul.f32 %v2027, 0.01
  %v2354 = vmul.f32 %v2032, 0.01
  %v2355 = vmul.f32 %v2035, 0.01
  %v2356 = vmul.f32 %v2040, 0.01
  %v2357 = vmul.f32 %v2043, 0.01
  %v2358 = vmul.f32 %v2048, 0.01
  %v2359 = vmul.f32 %v2051, 0.01
  %v2360 = vmul.f32 %v2056, 0.01
  %v2361 = vmul.f32 %v2059, 0.01
  %v2362 = vmul.f32 %v2064, 0.01
  %v2363 = vmul.f32 %v2067, 0.01
  %v2364 = vmul.f32 %v2072, 0.01
  %v2365 = vmul.f32 %v2075, 0.01
  %v2366 = vmul.f32 %v2080, 0.01
  %v2367 = vmul.f32 %v2083, 0.01
  %v2368 = vmul.f32 %v2088, 0.01
  %v2369 = vmul.f32 %v2091, 0.01
  %v2370 = vmul.f32 %v2096, 0.01
  %v2371 = vmul.f32 %v2099, 0.01
  %v2372 = vmul.f32 %v2104, 0.01
  %v2373 = vmul.f32 %v2107, 0.01
  %v2374 = vmul.f32 %v2112, 0.01
  %v2375 = vmul.f32 %v2115, 0.01
  %v2376 = vmul.f32 %v2120, 0.01
  %v2377 = vmul.f32 %v2123, 0.01
  %v2378 = vmul.f32 %v2128, 0.01
  %v2379 = vmul.f32 %v2131, 0.01
  %v2380 = vmul.f32 %v2136, 0.01
  %v2381 = vmul.f32 %v2139, 0.01
  %v2382 = vmul.f32 %v2144, 0.01
  %v2383 = vmul.f32 %v2147, 0.01
  %v2384 = vmul.f32 %v2152, 0.01
  %v2385 = vmul.f32 %v2155, 0.01
  %v2386 = vmul.f32 %v2160, 0.01
  %v2387 = vmul.f32 %v2163, 0.01
  %v2388 = vmul.f32 %v2168, 0.01
  %v2389 = vmul.f32 %v2171, 0.01
  %v2390 = vmul.f32 %v2176, 0.01
  %v2391 = vmul.f32 %v2179, 0.01
  %v2392 = vmul.f32 %v2184, 0.01
  %v2393 = vmul.f32 %v2187, 0.01
  %v2394 = vmul.f32 %v2192, 0.01
  %v2395 = vmul.f32 %v2195, 0.01
  %v2396 = vmul.f32 %v2200, 0.01
  %v2397 = vmul.f32 %v2203, 0.01
  %v2398 = vsel %vm2206, %v1824, %v2302
  %v2399 = vsel %vm2207, %v1827, %v2303
  %v2400 = vsel %vm2208, %v1832, %v2304
  %v2401 = vsel %vm2209, %v1835, %v2305
  %v2402 = vsel %vm2210, %v1840, %v2306
  %v2403 = vsel %vm2211, %v1843, %v2307
  %v2404 = vsel %vm2212, %v1848, %v2308
  %v2405 = vsel %vm2213, %v1851, %v2309
  %v2406 = vsel %vm2214, %v1856, %v2310
  %v2407 = vsel %vm2215, %v1859, %v2311
  %v2408 = vsel %vm2216, %v1864, %v2312
  %v2409 = vsel %vm2217, %v1867, %v2313
  %v2410 = vsel %vm2218, %v1872, %v2314
  %v2411 = vsel %vm2219, %v1875, %v2315
  %v2412 = vsel %vm2220, %v1880, %v2316
  %v2413 = vsel %vm2221, %v1883, %v2317
  %v2414 = vsel %vm2222, %v1888, %v2318
  %v2415 = vsel %vm2223, %v1891, %v2319
  %v2416 = vsel %vm2224, %v1896, %v2320
  %v2417 = vsel %vm2225, %v1899, %v2321
  %v2418 = vsel %vm2226, %v1904, %v2322
  %v2419 = vsel %vm2227, %v1907, %v2323
  %v2420 = vsel %vm2228, %v1912, %v2324
  %v2421 = vsel %vm2229, %v1915, %v2325
  %v2422 = vsel %vm2230, %v1920, %v2326
  %v2423 = vsel %vm2231, %v1923, %v2327
  %v2424 = vsel %vm2232, %v1928, %v2328
  %v2425 = vsel %vm2233, %v1931, %v2329
  %v2426 = vsel %vm2234, %v1936, %v2330
  %v2427 = vsel %vm2235, %v1939, %v2331
  %v2428 = vsel %vm2236, %v1944, %v2332
  %v2429 = vsel %vm2237, %v1947, %v2333
  %v2430 = vsel %vm2238, %v1952, %v2334
  %v2431 = vsel %vm2239, %v1955, %v2335
  %v2432 = vsel %vm2240, %v1960, %v2336
  %v2433 = vsel %vm2241, %v1963, %v2337
  %v2434 = vsel %vm2242, %v1968, %v2338
  %v2435 = vsel %vm2243, %v1971, %v2339
  %v2436 = vsel %vm2244, %v1976, %v2340
  %v2437 = vsel %vm2245, %v1979, %v2341
  %v2438 = vsel %vm2246, %v1984, %v2342
  %v2439 = vsel %vm2247, %v1987, %v2343
  %v2440 = vsel %vm2248, %v1992, %v2344
  %v2441 = vsel %vm2249, %v1995, %v2345
  %v2442 = vsel %vm2250, %v2000, %v2346
  %v2443 = vsel %vm2251, %v2003, %v2347
  %v2444 = vsel %vm2252, %v2008, %v2348
  %v2445 = vsel %vm2253, %v2011, %v2349
  %v2446 = vsel %vm2254, %v2016, %v2350
  %v2447 = vsel %vm2255, %v2019, %v2351
  %v2448 = vsel %vm2256, %v2024, %v2352
  %v2449 = vsel %vm2257, %v2027, %v2353
  %v2450 = vsel %vm2258, %v2032, %v2354
  %v2451 = vsel %vm2259, %v2035, %v2355
  %v2452 = vsel %vm2260, %v2040, %v2356
  %v2453 = vsel %vm2261, %v2043, %v2357
  %v2454 = vsel %vm2262, %v2048, %v2358
  %v2455 = vsel %vm2263, %v2051, %v2359
  %v2456 = vsel %vm2264, %v2056, %v2360
  %v2457 = vsel %vm2265, %v2059, %v2361
  %v2458 = vsel %vm2266, %v2064, %v2362
  %v2459 = vsel %vm2267, %v2067, %v2363
  %v2460 = vsel %vm2268, %v2072, %v2364
  %v2461 = vsel %vm2269, %v2075, %v2365
  %v2462 = vsel %vm2270, %v2080, %v2366
  %v2463 = vsel %vm2271, %v2083, %v2367
  %v2464 = vsel %vm2272, %v2088, %v2368
  %v2465 = vsel %vm2273, %v2091, %v2369
  %v2466 = vsel %vm2274, %v2096, %v2370
  %v2467 = vsel %vm2275, %v2099, %v2371
  %v2468 = vsel %vm2276, %v2104, %v2372
  %v2469 = vsel %vm2277, %v2107, %v2373
  %v2470 = vsel %vm2278, %v2112, %v2374
  %v2471 = vsel %vm2279, %v2115, %v2375
  %v2472 = vsel %vm2280, %v2120, %v2376
  %v2473 = vsel %vm2281, %v2123, %v2377
  %v2474 = vsel %vm2282, %v2128, %v2378
  %v2475 = vsel %vm2283, %v2131, %v2379
  %v2476 = vsel %vm2284, %v2136, %v2380
  %v2477 = vsel %vm2285, %v2139, %v2381
  %v2478 = vsel %vm2286, %v2144, %v2382
  %v2479 = vsel %vm2287, %v2147, %v2383
  %v2480 = vsel %vm2288, %v2152, %v2384
  %v2481 = vsel %vm2289, %v2155, %v2385
  %v2482 = vsel %vm2290, %v2160, %v2386
  %v2483 = vsel %vm2291, %v2163, %v2387
  %v2484 = vsel %vm2292, %v2168, %v2388
  %v2485 = vsel %vm2293, %v2171, %v2389
  %v2486 = vsel %vm2294, %v2176, %v2390
  %v2487 = vsel %vm2295, %v2179, %v2391
  %v2488 = vsel %vm2296, %v2184, %v2392
  %v2489 = vsel %vm2297, %v2187, %v2393
  %v2490 = vsel %vm2298, %v2192, %v2394
  %v2491 = vsel %vm2299, %v2195, %v2395
  %v2492 = vsel %vm2300, %v2200, %v2396
  %v2493 = vsel %vm2301, %v2203, %v2397
  %v2494 = vld [vmem:[%s5] sm:$0x1]
  %v2495 = vld [vmem:[%s6] sm:$0x1]
  %v2496 = vlaneseq
  %v2497 = vshrl.u32 %v2496, 7
  %v2498 = vadd.s32 %v2497, 8
  %v2499 = vadd.s32 %v2497, 16
  %v2500 = vadd.s32 %v2497, 24
  %v2501 = vadd.s32 %v2497, 32
  %v2502 = vadd.s32 %v2497, 40
  %v2503 = vadd.s32 %v2497, 48
  %v2504 = vadd.s32 %v2497, 56
  %v2505 = vadd.s32 %v2497, 64
  %v2506 = vadd.s32 %v2497, 72
  %v2507 = vadd.s32 %v2497, 80
  %v2508 = vadd.s32 %v2497, 88
  %v2509 = vadd.s32 %v2497, 96
  %v2510 = vadd.s32 %v2497, 104
  %v2511 = vadd.s32 %v2497, 112
  %v2512 = vadd.s32 %v2497, 120
  %v2513 = vadd.s32 %v2497, 128
  %v2514 = vadd.s32 %v2497, 136
  %v2515 = vadd.s32 %v2497, 144
  %v2516 = vadd.s32 %v2497, 152
  %v2517 = vadd.s32 %v2497, 160
  %v2518 = vadd.s32 %v2497, 168
  %v2519 = vadd.s32 %v2497, 176
  %v2520 = vadd.s32 %v2497, 184
  %v2521 = vadd.s32 %v2497, 192
  %v2522 = vadd.s32 %v2497, 200
  %v2523 = vadd.s32 %v2497, 208
  %v2524 = vadd.s32 %v2497, 216
  %v2525 = vadd.s32 %v2497, 224
  %v2526 = vadd.s32 %v2497, 232
  %v2527 = vadd.s32 %v2497, 240
  %v2528 = vadd.s32 %v2497, 248
  %v2529 = vadd.s32 %v2497, 256
  %v2530 = vadd.s32 %v2497, 264
  %v2531 = vadd.s32 %v2497, 272
  %v2532 = vadd.s32 %v2497, 280
  %v2533 = vadd.s32 %v2497, 288
  %v2534 = vadd.s32 %v2497, 296
  %v2535 = vadd.s32 %v2497, 304
  %v2536 = vadd.s32 %v2497, 312
  %v2537 = vadd.s32 %v2497, 320
  %v2538 = vadd.s32 %v2497, 328
  %v2539 = vadd.s32 %v2497, 336
  %v2540 = vadd.s32 %v2497, 344
  %v2541 = vadd.s32 %v2497, 352
  %v2542 = vadd.s32 %v2497, 360
  %v2543 = vadd.s32 %v2497, 368
  %v2544 = vadd.s32 %v2497, 376
  %v2545 = vadd.s32 %v2497, 384
  %v2546 = vadd.s32 %v2497, 392
  %v2547 = vadd.s32 %v2497, 400
  %v2548 = vadd.s32 %v2497, 408
  %v2549 = vadd.s32 %v2497, 416
  %v2550 = vadd.s32 %v2497, 424
  %v2551 = vadd.s32 %v2497, 432
  %v2552 = vadd.s32 %v2497, 440
  %v2553 = vadd.s32 %v2497, 448
  %v2554 = vadd.s32 %v2497, 456
  %v2555 = vadd.s32 %v2497, 464
  %v2556 = vadd.s32 %v2497, 472
  %v2557 = vadd.s32 %v2497, 480
  %v2558 = vadd.s32 %v2497, 488
  %v2559 = vadd.s32 %v2497, 496
  %v2560 = vadd.s32 %v2497, 504
  %v2561 = vadd.s32 %v2497, 512
  %v2562 = vadd.s32 %v2497, 520
  %v2563 = vadd.s32 %v2497, 528
  %v2564 = vadd.s32 %v2497, 536
  %v2565 = vadd.s32 %v2497, 544
  %v2566 = vadd.s32 %v2497, 552
  %v2567 = vadd.s32 %v2497, 560
  %v2568 = vadd.s32 %v2497, 568
  %v2569 = vadd.s32 %v2497, 576
  %v2570 = vadd.s32 %v2497, 584
  %v2571 = vadd.s32 %v2497, 592
  %v2572 = vadd.s32 %v2497, 600
  %v2573 = vadd.s32 %v2497, 608
  %v2574 = vadd.s32 %v2497, 616
  %v2575 = vadd.s32 %v2497, 624
  %v2576 = vadd.s32 %v2497, 632
  %v2577 = vadd.s32 %v2497, 640
  %v2578 = vadd.s32 %v2497, 648
  %v2579 = vadd.s32 %v2497, 656
  %v2580 = vadd.s32 %v2497, 664
  %v2581 = vadd.s32 %v2497, 672
  %v2582 = vadd.s32 %v2497, 680
  %v2583 = vadd.s32 %v2497, 688
  %v2584 = vadd.s32 %v2497, 696
  %v2585 = vadd.s32 %v2497, 704
  %v2586 = vadd.s32 %v2497, 712
  %v2587 = vadd.s32 %v2497, 720
  %v2588 = vadd.s32 %v2497, 728
  %v2589 = vadd.s32 %v2497, 736
  %v2590 = vadd.s32 %v2497, 744
  %v2591 = vadd.s32 %v2497, 752
  %v2592 = vadd.s32 %v2497, 760
  %vm2593 = vcmp.lt.s32.totalorder %v2497, 760
  %vm2594 = vcmp.lt.s32.totalorder %v2498, 760
  %vm2595 = vcmp.lt.s32.totalorder %v2499, 760
  %vm2596 = vcmp.lt.s32.totalorder %v2500, 760
  %vm2597 = vcmp.lt.s32.totalorder %v2501, 760
  %vm2598 = vcmp.lt.s32.totalorder %v2502, 760
  %vm2599 = vcmp.lt.s32.totalorder %v2503, 760
  %vm2600 = vcmp.lt.s32.totalorder %v2504, 760
  %vm2601 = vcmp.lt.s32.totalorder %v2505, 760
  %vm2602 = vcmp.lt.s32.totalorder %v2506, 760
  %vm2603 = vcmp.lt.s32.totalorder %v2507, 760
  %vm2604 = vcmp.lt.s32.totalorder %v2508, 760
  %vm2605 = vcmp.lt.s32.totalorder %v2509, 760
  %vm2606 = vcmp.lt.s32.totalorder %v2510, 760
  %vm2607 = vcmp.lt.s32.totalorder %v2511, 760
  %vm2608 = vcmp.lt.s32.totalorder %v2512, 760
  %vm2609 = vcmp.lt.s32.totalorder %v2513, 760
  %vm2610 = vcmp.lt.s32.totalorder %v2514, 760
  %vm2611 = vcmp.lt.s32.totalorder %v2515, 760
  %vm2612 = vcmp.lt.s32.totalorder %v2516, 760
  %vm2613 = vcmp.lt.s32.totalorder %v2517, 760
  %vm2614 = vcmp.lt.s32.totalorder %v2518, 760
  %vm2615 = vcmp.lt.s32.totalorder %v2519, 760
  %vm2616 = vcmp.lt.s32.totalorder %v2520, 760
  %vm2617 = vcmp.lt.s32.totalorder %v2521, 760
  %vm2618 = vcmp.lt.s32.totalorder %v2522, 760
  %vm2619 = vcmp.lt.s32.totalorder %v2523, 760
  %vm2620 = vcmp.lt.s32.totalorder %v2524, 760
  %vm2621 = vcmp.lt.s32.totalorder %v2525, 760
  %vm2622 = vcmp.lt.s32.totalorder %v2526, 760
  %vm2623 = vcmp.lt.s32.totalorder %v2527, 760
  %vm2624 = vcmp.lt.s32.totalorder %v2528, 760
  %vm2625 = vcmp.lt.s32.totalorder %v2529, 760
  %vm2626 = vcmp.lt.s32.totalorder %v2530, 760
  %vm2627 = vcmp.lt.s32.totalorder %v2531, 760
  %vm2628 = vcmp.lt.s32.totalorder %v2532, 760
  %vm2629 = vcmp.lt.s32.totalorder %v2533, 760
  %vm2630 = vcmp.lt.s32.totalorder %v2534, 760
  %vm2631 = vcmp.lt.s32.totalorder %v2535, 760
  %vm2632 = vcmp.lt.s32.totalorder %v2536, 760
  %vm2633 = vcmp.lt.s32.totalorder %v2537, 760
  %vm2634 = vcmp.lt.s32.totalorder %v2538, 760
  %vm2635 = vcmp.lt.s32.totalorder %v2539, 760
  %vm2636 = vcmp.lt.s32.totalorder %v2540, 760
  %vm2637 = vcmp.lt.s32.totalorder %v2541, 760
  %vm2638 = vcmp.lt.s32.totalorder %v2542, 760
  %vm2639 = vcmp.lt.s32.totalorder %v2543, 760
  %vm2640 = vcmp.lt.s32.totalorder %v2544, 760
  %vm2641 = vcmp.lt.s32.totalorder %v2545, 760
  %vm2642 = vcmp.lt.s32.totalorder %v2546, 760
  %vm2643 = vcmp.lt.s32.totalorder %v2547, 760
  %vm2644 = vcmp.lt.s32.totalorder %v2548, 760
  %vm2645 = vcmp.lt.s32.totalorder %v2549, 760
  %vm2646 = vcmp.lt.s32.totalorder %v2550, 760
  %vm2647 = vcmp.lt.s32.totalorder %v2551, 760
  %vm2648 = vcmp.lt.s32.totalorder %v2552, 760
  %vm2649 = vcmp.lt.s32.totalorder %v2553, 760
  %vm2650 = vcmp.lt.s32.totalorder %v2554, 760
  %vm2651 = vcmp.lt.s32.totalorder %v2555, 760
  %vm2652 = vcmp.lt.s32.totalorder %v2556, 760
  %vm2653 = vcmp.lt.s32.totalorder %v2557, 760
  %vm2654 = vcmp.lt.s32.totalorder %v2558, 760
  %vm2655 = vcmp.lt.s32.totalorder %v2559, 760
  %vm2656 = vcmp.lt.s32.totalorder %v2560, 760
  %vm2657 = vcmp.lt.s32.totalorder %v2561, 760
  %vm2658 = vcmp.lt.s32.totalorder %v2562, 760
  %vm2659 = vcmp.lt.s32.totalorder %v2563, 760
  %vm2660 = vcmp.lt.s32.totalorder %v2564, 760
  %vm2661 = vcmp.lt.s32.totalorder %v2565, 760
  %vm2662 = vcmp.lt.s32.totalorder %v2566, 760
  %vm2663 = vcmp.lt.s32.totalorder %v2567, 760
  %vm2664 = vcmp.lt.s32.totalorder %v2568, 760
  %vm2665 = vcmp.lt.s32.totalorder %v2569, 760
  %vm2666 = vcmp.lt.s32.totalorder %v2570, 760
  %vm2667 = vcmp.lt.s32.totalorder %v2571, 760
  %vm2668 = vcmp.lt.s32.totalorder %v2572, 760
  %vm2669 = vcmp.lt.s32.totalorder %v2573, 760
  %vm2670 = vcmp.lt.s32.totalorder %v2574, 760
  %vm2671 = vcmp.lt.s32.totalorder %v2575, 760
  %vm2672 = vcmp.lt.s32.totalorder %v2576, 760
  %vm2673 = vcmp.lt.s32.totalorder %v2577, 760
  %vm2674 = vcmp.lt.s32.totalorder %v2578, 760
  %vm2675 = vcmp.lt.s32.totalorder %v2579, 760
  %vm2676 = vcmp.lt.s32.totalorder %v2580, 760
  %vm2677 = vcmp.lt.s32.totalorder %v2581, 760
  %vm2678 = vcmp.lt.s32.totalorder %v2582, 760
  %vm2679 = vcmp.lt.s32.totalorder %v2583, 760
  %vm2680 = vcmp.lt.s32.totalorder %v2584, 760
  %vm2681 = vcmp.lt.s32.totalorder %v2585, 760
  %vm2682 = vcmp.lt.s32.totalorder %v2586, 760
  %vm2683 = vcmp.lt.s32.totalorder %v2587, 760
  %vm2684 = vcmp.lt.s32.totalorder %v2588, 760
  %vm2685 = vcmp.lt.s32.totalorder %v2589, 760
  %vm2686 = vcmp.lt.s32.totalorder %v2590, 760
  %vm2687 = vcmp.lt.s32.totalorder %v2591, 760
  %vm2688 = vcmp.lt.s32.totalorder %v2592, 760
  %v2689 = vsel %vm2593, %v2398, 0.0
  %v2690 = vsel %vm2594, %v2399, 0.0
  %v2691 = vsel %vm2595, %v2400, 0.0
  %v2692 = vsel %vm2596, %v2401, 0.0
  %v2693 = vsel %vm2597, %v2402, 0.0
  %v2694 = vsel %vm2598, %v2403, 0.0
  %v2695 = vsel %vm2599, %v2404, 0.0
  %v2696 = vsel %vm2600, %v2405, 0.0
  %v2697 = vsel %vm2601, %v2406, 0.0
  %v2698 = vsel %vm2602, %v2407, 0.0
  %v2699 = vsel %vm2603, %v2408, 0.0
  %v2700 = vsel %vm2604, %v2409, 0.0
  %v2701 = vsel %vm2605, %v2410, 0.0
  %v2702 = vsel %vm2606, %v2411, 0.0
  %v2703 = vsel %vm2607, %v2412, 0.0
  %v2704 = vsel %vm2608, %v2413, 0.0
  %v2705 = vsel %vm2609, %v2414, 0.0
  %v2706 = vsel %vm2610, %v2415, 0.0
  %v2707 = vsel %vm2611, %v2416, 0.0
  %v2708 = vsel %vm2612, %v2417, 0.0
  %v2709 = vsel %vm2613, %v2418, 0.0
  %v2710 = vsel %vm2614, %v2419, 0.0
  %v2711 = vsel %vm2615, %v2420, 0.0
  %v2712 = vsel %vm2616, %v2421, 0.0
  %v2713 = vsel %vm2617, %v2422, 0.0
  %v2714 = vsel %vm2618, %v2423, 0.0
  %v2715 = vsel %vm2619, %v2424, 0.0
  %v2716 = vsel %vm2620, %v2425, 0.0
  %v2717 = vsel %vm2621, %v2426, 0.0
  %v2718 = vsel %vm2622, %v2427, 0.0
  %v2719 = vsel %vm2623, %v2428, 0.0
  %v2720 = vsel %vm2624, %v2429, 0.0
  %v2721 = vsel %vm2625, %v2430, 0.0
  %v2722 = vsel %vm2626, %v2431, 0.0
  %v2723 = vsel %vm2627, %v2432, 0.0
  %v2724 = vsel %vm2628, %v2433, 0.0
  %v2725 = vsel %vm2629, %v2434, 0.0
  %v2726 = vsel %vm2630, %v2435, 0.0
  %v2727 = vsel %vm2631, %v2436, 0.0
  %v2728 = vsel %vm2632, %v2437, 0.0
  %v2729 = vsel %vm2633, %v2438, 0.0
  %v2730 = vsel %vm2634, %v2439, 0.0
  %v2731 = vsel %vm2635, %v2440, 0.0
  %v2732 = vsel %vm2636, %v2441, 0.0
  %v2733 = vsel %vm2637, %v2442, 0.0
  %v2734 = vsel %vm2638, %v2443, 0.0
  %v2735 = vsel %vm2639, %v2444, 0.0
  %v2736 = vsel %vm2640, %v2445, 0.0
  %v2737 = vsel %vm2641, %v2446, 0.0
  %v2738 = vsel %vm2642, %v2447, 0.0
  %v2739 = vsel %vm2643, %v2448, 0.0
  %v2740 = vsel %vm2644, %v2449, 0.0
  %v2741 = vsel %vm2645, %v2450, 0.0
  %v2742 = vsel %vm2646, %v2451, 0.0
  %v2743 = vsel %vm2647, %v2452, 0.0
  %v2744 = vsel %vm2648, %v2453, 0.0
  %v2745 = vsel %vm2649, %v2454, 0.0
  %v2746 = vsel %vm2650, %v2455, 0.0
  %v2747 = vsel %vm2651, %v2456, 0.0
  %v2748 = vsel %vm2652, %v2457, 0.0
  %v2749 = vsel %vm2653, %v2458, 0.0
  %v2750 = vsel %vm2654, %v2459, 0.0
  %v2751 = vsel %vm2655, %v2460, 0.0
  %v2752 = vsel %vm2656, %v2461, 0.0
  %v2753 = vsel %vm2657, %v2462, 0.0
  %v2754 = vsel %vm2658, %v2463, 0.0
  %v2755 = vsel %vm2659, %v2464, 0.0
  %v2756 = vsel %vm2660, %v2465, 0.0
  %v2757 = vsel %vm2661, %v2466, 0.0
  %v2758 = vsel %vm2662, %v2467, 0.0
  %v2759 = vsel %vm2663, %v2468, 0.0
  %v2760 = vsel %vm2664, %v2469, 0.0
  %v2761 = vsel %vm2665, %v2470, 0.0
  %v2762 = vsel %vm2666, %v2471, 0.0
  %v2763 = vsel %vm2667, %v2472, 0.0
  %v2764 = vsel %vm2668, %v2473, 0.0
  %v2765 = vsel %vm2669, %v2474, 0.0
  %v2766 = vsel %vm2670, %v2475, 0.0
  %v2767 = vsel %vm2671, %v2476, 0.0
  %v2768 = vsel %vm2672, %v2477, 0.0
  %v2769 = vsel %vm2673, %v2478, 0.0
  %v2770 = vsel %vm2674, %v2479, 0.0
  %v2771 = vsel %vm2675, %v2480, 0.0
  %v2772 = vsel %vm2676, %v2481, 0.0
  %v2773 = vsel %vm2677, %v2482, 0.0
  %v2774 = vsel %vm2678, %v2483, 0.0
  %v2775 = vsel %vm2679, %v2484, 0.0
  %v2776 = vsel %vm2680, %v2485, 0.0
  %v2777 = vsel %vm2681, %v2486, 0.0
  %v2778 = vsel %vm2682, %v2487, 0.0
  %v2779 = vsel %vm2683, %v2488, 0.0
  %v2780 = vsel %vm2684, %v2489, 0.0
  %v2781 = vsel %vm2685, %v2490, 0.0
  %v2782 = vsel %vm2686, %v2491, 0.0
  %v2783 = vsel %vm2687, %v2492, 0.0
  %v2784 = vsel %vm2688, %v2493, 0.0
  %v2785 = vadd.f32 %v2689, %v2690
  %v2786 = vadd.f32 %v2785, %v2691
  %v2787 = vadd.f32 %v2786, %v2692
  %v2788 = vadd.f32 %v2787, %v2693
  %v2789 = vadd.f32 %v2788, %v2694
  %v2790 = vadd.f32 %v2789, %v2695
  %v2791 = vadd.f32 %v2790, %v2696
  %v2792 = vadd.f32 %v2791, %v2697
  %v2793 = vadd.f32 %v2792, %v2698
  %v2794 = vadd.f32 %v2793, %v2699
  %v2795 = vadd.f32 %v2794, %v2700
  %v2796 = vadd.f32 %v2795, %v2701
  %v2797 = vadd.f32 %v2796, %v2702
  %v2798 = vadd.f32 %v2797, %v2703
  %v2799 = vadd.f32 %v2798, %v2704
  %v2800 = vadd.f32 %v2799, %v2705
  %v2801 = vadd.f32 %v2800, %v2706
  %v2802 = vadd.f32 %v2801, %v2707
  %v2803 = vadd.f32 %v2802, %v2708
  %v2804 = vadd.f32 %v2803, %v2709
  %v2805 = vadd.f32 %v2804, %v2710
  %v2806 = vadd.f32 %v2805, %v2711
  %v2807 = vadd.f32 %v2806, %v2712
  %v2808 = vadd.f32 %v2807, %v2713
  %v2809 = vadd.f32 %v2808, %v2714
  %v2810 = vadd.f32 %v2809, %v2715
  %v2811 = vadd.f32 %v2810, %v2716
  %v2812 = vadd.f32 %v2811, %v2717
  %v2813 = vadd.f32 %v2812, %v2718
  %v2814 = vadd.f32 %v2813, %v2719
  %v2815 = vadd.f32 %v2814, %v2720
  %v2816 = vadd.f32 %v2815, %v2721
  %v2817 = vadd.f32 %v2816, %v2722
  %v2818 = vadd.f32 %v2817, %v2723
  %v2819 = vadd.f32 %v2818, %v2724
  %v2820 = vadd.f32 %v2819, %v2725
  %v2821 = vadd.f32 %v2820, %v2726
  %v2822 = vadd.f32 %v2821, %v2727
  %v2823 = vadd.f32 %v2822, %v2728
  %v2824 = vadd.f32 %v2823, %v2729
  %v2825 = vadd.f32 %v2824, %v2730
  %v2826 = vadd.f32 %v2825, %v2731
  %v2827 = vadd.f32 %v2826, %v2732
  %v2828 = vadd.f32 %v2827, %v2733
  %v2829 = vadd.f32 %v2828, %v2734
  %v2830 = vadd.f32 %v2829, %v2735
  %v2831 = vadd.f32 %v2830, %v2736
  %v2832 = vadd.f32 %v2831, %v2737
  %v2833 = vadd.f32 %v2832, %v2738
  %v2834 = vadd.f32 %v2833, %v2739
  %v2835 = vadd.f32 %v2834, %v2740
  %v2836 = vadd.f32 %v2835, %v2741
  %v2837 = vadd.f32 %v2836, %v2742
  %v2838 = vadd.f32 %v2837, %v2743
  %v2839 = vadd.f32 %v2838, %v2744
  %v2840 = vadd.f32 %v2839, %v2745
  %v2841 = vadd.f32 %v2840, %v2746
  %v2842 = vadd.f32 %v2841, %v2747
  %v2843 = vadd.f32 %v2842, %v2748
  %v2844 = vadd.f32 %v2843, %v2749
  %v2845 = vadd.f32 %v2844, %v2750
  %v2846 = vadd.f32 %v2845, %v2751
  %v2847 = vadd.f32 %v2846, %v2752
  %v2848 = vadd.f32 %v2847, %v2753
  %v2849 = vadd.f32 %v2848, %v2754
  %v2850 = vadd.f32 %v2849, %v2755
  %v2851 = vadd.f32 %v2850, %v2756
  %v2852 = vadd.f32 %v2851, %v2757
  %v2853 = vadd.f32 %v2852, %v2758
  %v2854 = vadd.f32 %v2853, %v2759
  %v2855 = vadd.f32 %v2854, %v2760
  %v2856 = vadd.f32 %v2855, %v2761
  %v2857 = vadd.f32 %v2856, %v2762
  %v2858 = vadd.f32 %v2857, %v2763
  %v2859 = vadd.f32 %v2858, %v2764
  %v2860 = vadd.f32 %v2859, %v2765
  %v2861 = vadd.f32 %v2860, %v2766
  %v2862 = vadd.f32 %v2861, %v2767
  %v2863 = vadd.f32 %v2862, %v2768
  %v2864 = vadd.f32 %v2863, %v2769
  %v2865 = vadd.f32 %v2864, %v2770
  %v2866 = vadd.f32 %v2865, %v2771
  %v2867 = vadd.f32 %v2866, %v2772
  %v2868 = vadd.f32 %v2867, %v2773
  %v2869 = vadd.f32 %v2868, %v2774
  %v2870 = vadd.f32 %v2869, %v2775
  %v2871 = vadd.f32 %v2870, %v2776
  %v2872 = vadd.f32 %v2871, %v2777
  %v2873 = vadd.f32 %v2872, %v2778
  %v2874 = vadd.f32 %v2873, %v2779
  %v2875 = vadd.f32 %v2874, %v2780
  %v2876 = vadd.f32 %v2875, %v2781
  %v2877 = vadd.f32 %v2876, %v2782
  %v2878 = vadd.f32 %v2877, %v2783
  %v2879 = vadd.f32 %v2878, %v2784
  %v2880 = vrot.slane %v2879, 4
  %v2881 = vadd.f32 %v2879, %v2880
  %v2882 = vrot.slane %v2881, 2
  %v2883 = vadd.f32 %v2881, %v2882
  %v2884 = vrot.slane %v2883, 1
  %v2885 = vadd.f32 %v2883, %v2884
  %v2886 = vmul.f32 %v2885, 0.0013157895
  %v2887 = vsub.f32 %v2398, %v2886
  %v2888 = vsub.f32 %v2399, %v2886
  %v2889 = vsub.f32 %v2400, %v2886
  %v2890 = vsub.f32 %v2401, %v2886
  %v2891 = vsub.f32 %v2402, %v2886
  %v2892 = vsub.f32 %v2403, %v2886
  %v2893 = vsub.f32 %v2404, %v2886
  %v2894 = vsub.f32 %v2405, %v2886
  %v2895 = vsub.f32 %v2406, %v2886
  %v2896 = vsub.f32 %v2407, %v2886
  %v2897 = vsub.f32 %v2408, %v2886
  %v2898 = vsub.f32 %v2409, %v2886
  %v2899 = vsub.f32 %v2410, %v2886
  %v2900 = vsub.f32 %v2411, %v2886
  %v2901 = vsub.f32 %v2412, %v2886
  %v2902 = vsub.f32 %v2413, %v2886
  %v2903 = vsub.f32 %v2414, %v2886
  %v2904 = vsub.f32 %v2415, %v2886
  %v2905 = vsub.f32 %v2416, %v2886
  %v2906 = vsub.f32 %v2417, %v2886
  %v2907 = vsub.f32 %v2418, %v2886
  %v2908 = vsub.f32 %v2419, %v2886
  %v2909 = vsub.f32 %v2420, %v2886
  %v2910 = vsub.f32 %v2421, %v2886
  %v2911 = vsub.f32 %v2422, %v2886
  %v2912 = vsub.f32 %v2423, %v2886
  %v2913 = vsub.f32 %v2424, %v2886
  %v2914 = vsub.f32 %v2425, %v2886
  %v2915 = vsub.f32 %v2426, %v2886
  %v2916 = vsub.f32 %v2427, %v2886
  %v2917 = vsub.f32 %v2428, %v2886
  %v2918 = vsub.f32 %v2429, %v2886
  %v2919 = vsub.f32 %v2430, %v2886
  %v2920 = vsub.f32 %v2431, %v2886
  %v2921 = vsub.f32 %v2432, %v2886
  %v2922 = vsub.f32 %v2433, %v2886
  %v2923 = vsub.f32 %v2434, %v2886
  %v2924 = vsub.f32 %v2435, %v2886
  %v2925 = vsub.f32 %v2436, %v2886
  %v2926 = vsub.f32 %v2437, %v2886
  %v2927 = vsub.f32 %v2438, %v2886
  %v2928 = vsub.f32 %v2439, %v2886
  %v2929 = vsub.f32 %v2440, %v2886
  %v2930 = vsub.f32 %v2441, %v2886
  %v2931 = vsub.f32 %v2442, %v2886
  %v2932 = vsub.f32 %v2443, %v2886
  %v2933 = vsub.f32 %v2444, %v2886
  %v2934 = vsub.f32 %v2445, %v2886
  %v2935 = vsub.f32 %v2446, %v2886
  %v2936 = vsub.f32 %v2447, %v2886
  %v2937 = vsub.f32 %v2448, %v2886
  %v2938 = vsub.f32 %v2449, %v2886
  %v2939 = vsub.f32 %v2450, %v2886
  %v2940 = vsub.f32 %v2451, %v2886
  %v2941 = vsub.f32 %v2452, %v2886
  %v2942 = vsub.f32 %v2453, %v2886
  %v2943 = vsub.f32 %v2454, %v2886
  %v2944 = vsub.f32 %v2455, %v2886
  %v2945 = vsub.f32 %v2456, %v2886
  %v2946 = vsub.f32 %v2457, %v2886
  %v2947 = vsub.f32 %v2458, %v2886
  %v2948 = vsub.f32 %v2459, %v2886
  %v2949 = vsub.f32 %v2460, %v2886
  %v2950 = vsub.f32 %v2461, %v2886
  %v2951 = vsub.f32 %v2462, %v2886
  %v2952 = vsub.f32 %v2463, %v2886
  %v2953 = vsub.f32 %v2464, %v2886
  %v2954 = vsub.f32 %v2465, %v2886
  %v2955 = vsub.f32 %v2466, %v2886
  %v2956 = vsub.f32 %v2467, %v2886
  %v2957 = vsub.f32 %v2468, %v2886
  %v2958 = vsub.f32 %v2469, %v2886
  %v2959 = vsub.f32 %v2470, %v2886
  %v2960 = vsub.f32 %v2471, %v2886
  %v2961 = vsub.f32 %v2472, %v2886
  %v2962 = vsub.f32 %v2473, %v2886
  %v2963 = vsub.f32 %v2474, %v2886
  %v2964 = vsub.f32 %v2475, %v2886
  %v2965 = vsub.f32 %v2476, %v2886
  %v2966 = vsub.f32 %v2477, %v2886
  %v2967 = vsub.f32 %v2478, %v2886
  %v2968 = vsub.f32 %v2479, %v2886
  %v2969 = vsub.f32 %v2480, %v2886
  %v2970 = vsub.f32 %v2481, %v2886
  %v2971 = vsub.f32 %v2482, %v2886
  %v2972 = vsub.f32 %v2483, %v2886
  %v2973 = vsub.f32 %v2484, %v2886
  %v2974 = vsub.f32 %v2485, %v2886
  %v2975 = vsub.f32 %v2486, %v2886
  %v2976 = vsub.f32 %v2487, %v2886
  %v2977 = vsub.f32 %v2488, %v2886
  %v2978 = vsub.f32 %v2489, %v2886
  %v2979 = vsub.f32 %v2490, %v2886
  %v2980 = vsub.f32 %v2491, %v2886
  %v2981 = vsub.f32 %v2492, %v2886
  %v2982 = vsub.f32 %v2493, %v2886
  %v2983 = vmul.f32 %v2887, %v2887
  %v2984 = vmul.f32 %v2888, %v2888
  %v2985 = vmul.f32 %v2889, %v2889
  %v2986 = vmul.f32 %v2890, %v2890
  %v2987 = vmul.f32 %v2891, %v2891
  %v2988 = vmul.f32 %v2892, %v2892
  %v2989 = vmul.f32 %v2893, %v2893
  %v2990 = vmul.f32 %v2894, %v2894
  %v2991 = vmul.f32 %v2895, %v2895
  %v2992 = vmul.f32 %v2896, %v2896
  %v2993 = vmul.f32 %v2897, %v2897
  %v2994 = vmul.f32 %v2898, %v2898
  %v2995 = vmul.f32 %v2899, %v2899
  %v2996 = vmul.f32 %v2900, %v2900
  %v2997 = vmul.f32 %v2901, %v2901
  %v2998 = vmul.f32 %v2902, %v2902
  %v2999 = vmul.f32 %v2903, %v2903
  %v3000 = vmul.f32 %v2904, %v2904
  %v3001 = vmul.f32 %v2905, %v2905
  %v3002 = vmul.f32 %v2906, %v2906
  %v3003 = vmul.f32 %v2907, %v2907
  %v3004 = vmul.f32 %v2908, %v2908
  %v3005 = vmul.f32 %v2909, %v2909
  %v3006 = vmul.f32 %v2910, %v2910
  %v3007 = vmul.f32 %v2911, %v2911
  %v3008 = vmul.f32 %v2912, %v2912
  %v3009 = vmul.f32 %v2913, %v2913
  %v3010 = vmul.f32 %v2914, %v2914
  %v3011 = vmul.f32 %v2915, %v2915
  %v3012 = vmul.f32 %v2916, %v2916
  %v3013 = vmul.f32 %v2917, %v2917
  %v3014 = vmul.f32 %v2918, %v2918
  %v3015 = vmul.f32 %v2919, %v2919
  %v3016 = vmul.f32 %v2920, %v2920
  %v3017 = vmul.f32 %v2921, %v2921
  %v3018 = vmul.f32 %v2922, %v2922
  %v3019 = vmul.f32 %v2923, %v2923
  %v3020 = vmul.f32 %v2924, %v2924
  %v3021 = vmul.f32 %v2925, %v2925
  %v3022 = vmul.f32 %v2926, %v2926
  %v3023 = vmul.f32 %v2927, %v2927
  %v3024 = vmul.f32 %v2928, %v2928
  %v3025 = vmul.f32 %v2929, %v2929
  %v3026 = vmul.f32 %v2930, %v2930
  %v3027 = vmul.f32 %v2931, %v2931
  %v3028 = vmul.f32 %v2932, %v2932
  %v3029 = vmul.f32 %v2933, %v2933
  %v3030 = vmul.f32 %v2934, %v2934
  %v3031 = vmul.f32 %v2935, %v2935
  %v3032 = vmul.f32 %v2936, %v2936
  %v3033 = vmul.f32 %v2937, %v2937
  %v3034 = vmul.f32 %v2938, %v2938
  %v3035 = vmul.f32 %v2939, %v2939
  %v3036 = vmul.f32 %v2940, %v2940
  %v3037 = vmul.f32 %v2941, %v2941
  %v3038 = vmul.f32 %v2942, %v2942
  %v3039 = vmul.f32 %v2943, %v2943
  %v3040 = vmul.f32 %v2944, %v2944
  %v3041 = vmul.f32 %v2945, %v2945
  %v3042 = vmul.f32 %v2946, %v2946
  %v3043 = vmul.f32 %v2947, %v2947
  %v3044 = vmul.f32 %v2948, %v2948
  %v3045 = vmul.f32 %v2949, %v2949
  %v3046 = vmul.f32 %v2950, %v2950
  %v3047 = vmul.f32 %v2951, %v2951
  %v3048 = vmul.f32 %v2952, %v2952
  %v3049 = vmul.f32 %v2953, %v2953
  %v3050 = vmul.f32 %v2954, %v2954
  %v3051 = vmul.f32 %v2955, %v2955
  %v3052 = vmul.f32 %v2956, %v2956
  %v3053 = vmul.f32 %v2957, %v2957
  %v3054 = vmul.f32 %v2958, %v2958
  %v3055 = vmul.f32 %v2959, %v2959
  %v3056 = vmul.f32 %v2960, %v2960
  %v3057 = vmul.f32 %v2961, %v2961
  %v3058 = vmul.f32 %v2962, %v2962
  %v3059 = vmul.f32 %v2963, %v2963
  %v3060 = vmul.f32 %v2964, %v2964
  %v3061 = vmul.f32 %v2965, %v2965
  %v3062 = vmul.f32 %v2966, %v2966
  %v3063 = vmul.f32 %v2967, %v2967
  %v3064 = vmul.f32 %v2968, %v2968
  %v3065 = vmul.f32 %v2969, %v2969
  %v3066 = vmul.f32 %v2970, %v2970
  %v3067 = vmul.f32 %v2971, %v2971
  %v3068 = vmul.f32 %v2972, %v2972
  %v3069 = vmul.f32 %v2973, %v2973
  %v3070 = vmul.f32 %v2974, %v2974
  %v3071 = vmul.f32 %v2975, %v2975
  %v3072 = vmul.f32 %v2976, %v2976
  %v3073 = vmul.f32 %v2977, %v2977
  %v3074 = vmul.f32 %v2978, %v2978
  %v3075 = vmul.f32 %v2979, %v2979
  %v3076 = vmul.f32 %v2980, %v2980
  %v3077 = vmul.f32 %v2981, %v2981
  %v3078 = vmul.f32 %v2982, %v2982
  %v3079 = vsel %vm2593, %v2983, 0.0
  %v3080 = vsel %vm2594, %v2984, 0.0
  %v3081 = vsel %vm2595, %v2985, 0.0
  %v3082 = vsel %vm2596, %v2986, 0.0
  %v3083 = vsel %vm2597, %v2987, 0.0
  %v3084 = vsel %vm2598, %v2988, 0.0
  %v3085 = vsel %vm2599, %v2989, 0.0
  %v3086 = vsel %vm2600, %v2990, 0.0
  %v3087 = vsel %vm2601, %v2991, 0.0
  %v3088 = vsel %vm2602, %v2992, 0.0
  %v3089 = vsel %vm2603, %v2993, 0.0
  %v3090 = vsel %vm2604, %v2994, 0.0
  %v3091 = vsel %vm2605, %v2995, 0.0
  %v3092 = vsel %vm2606, %v2996, 0.0
  %v3093 = vsel %vm2607, %v2997, 0.0
  %v3094 = vsel %vm2608, %v2998, 0.0
  %v3095 = vsel %vm2609, %v2999, 0.0
  %v3096 = vsel %vm2610, %v3000, 0.0
  %v3097 = vsel %vm2611, %v3001, 0.0
  %v3098 = vsel %vm2612, %v3002, 0.0
  %v3099 = vsel %vm2613, %v3003, 0.0
  %v3100 = vsel %vm2614, %v3004, 0.0
  %v3101 = vsel %vm2615, %v3005, 0.0
  %v3102 = vsel %vm2616, %v3006, 0.0
  %v3103 = vsel %vm2617, %v3007, 0.0
  %v3104 = vsel %vm2618, %v3008, 0.0
  %v3105 = vsel %vm2619, %v3009, 0.0
  %v3106 = vsel %vm2620, %v3010, 0.0
  %v3107 = vsel %vm2621, %v3011, 0.0
  %v3108 = vsel %vm2622, %v3012, 0.0
  %v3109 = vsel %vm2623, %v3013, 0.0
  %v3110 = vsel %vm2624, %v3014, 0.0
  %v3111 = vsel %vm2625, %v3015, 0.0
  %v3112 = vsel %vm2626, %v3016, 0.0
  %v3113 = vsel %vm2627, %v3017, 0.0
  %v3114 = vsel %vm2628, %v3018, 0.0
  %v3115 = vsel %vm2629, %v3019, 0.0
  %v3116 = vsel %vm2630, %v3020, 0.0
  %v3117 = vsel %vm2631, %v3021, 0.0
  %v3118 = vsel %vm2632, %v3022, 0.0
  %v3119 = vsel %vm2633, %v3023, 0.0
  %v3120 = vsel %vm2634, %v3024, 0.0
  %v3121 = vsel %vm2635, %v3025, 0.0
  %v3122 = vsel %vm2636, %v3026, 0.0
  %v3123 = vsel %vm2637, %v3027, 0.0
  %v3124 = vsel %vm2638, %v3028, 0.0
  %v3125 = vsel %vm2639, %v3029, 0.0
  %v3126 = vsel %vm2640, %v3030, 0.0
  %v3127 = vsel %vm2641, %v3031, 0.0
  %v3128 = vsel %vm2642, %v3032, 0.0
  %v3129 = vsel %vm2643, %v3033, 0.0
  %v3130 = vsel %vm2644, %v3034, 0.0
  %v3131 = vsel %vm2645, %v3035, 0.0
  %v3132 = vsel %vm2646, %v3036, 0.0
  %v3133 = vsel %vm2647, %v3037, 0.0
  %v3134 = vsel %vm2648, %v3038, 0.0
  %v3135 = vsel %vm2649, %v3039, 0.0
  %v3136 = vsel %vm2650, %v3040, 0.0
  %v3137 = vsel %vm2651, %v3041, 0.0
  %v3138 = vsel %vm2652, %v3042, 0.0
  %v3139 = vsel %vm2653, %v3043, 0.0
  %v3140 = vsel %vm2654, %v3044, 0.0
  %v3141 = vsel %vm2655, %v3045, 0.0
  %v3142 = vsel %vm2656, %v3046, 0.0
  %v3143 = vsel %vm2657, %v3047, 0.0
  %v3144 = vsel %vm2658, %v3048, 0.0
  %v3145 = vsel %vm2659, %v3049, 0.0
  %v3146 = vsel %vm2660, %v3050, 0.0
  %v3147 = vsel %vm2661, %v3051, 0.0
  %v3148 = vsel %vm2662, %v3052, 0.0
  %v3149 = vsel %vm2663, %v3053, 0.0
  %v3150 = vsel %vm2664, %v3054, 0.0
  %v3151 = vsel %vm2665, %v3055, 0.0
  %v3152 = vsel %vm2666, %v3056, 0.0
  %v3153 = vsel %vm2667, %v3057, 0.0
  %v3154 = vsel %vm2668, %v3058, 0.0
  %v3155 = vsel %vm2669, %v3059, 0.0
  %v3156 = vsel %vm2670, %v3060, 0.0
  %v3157 = vsel %vm2671, %v3061, 0.0
  %v3158 = vsel %vm2672, %v3062, 0.0
  %v3159 = vsel %vm2673, %v3063, 0.0
  %v3160 = vsel %vm2674, %v3064, 0.0
  %v3161 = vsel %vm2675, %v3065, 0.0
  %v3162 = vsel %vm2676, %v3066, 0.0
  %v3163 = vsel %vm2677, %v3067, 0.0
  %v3164 = vsel %vm2678, %v3068, 0.0
  %v3165 = vsel %vm2679, %v3069, 0.0
  %v3166 = vsel %vm2680, %v3070, 0.0
  %v3167 = vsel %vm2681, %v3071, 0.0
  %v3168 = vsel %vm2682, %v3072, 0.0
  %v3169 = vsel %vm2683, %v3073, 0.0
  %v3170 = vsel %vm2684, %v3074, 0.0
  %v3171 = vsel %vm2685, %v3075, 0.0
  %v3172 = vsel %vm2686, %v3076, 0.0
  %v3173 = vsel %vm2687, %v3077, 0.0
  %v3174 = vsel %vm2688, %v3078, 0.0
  %v3175 = vadd.f32 %v3079, %v3080
  %v3176 = vadd.f32 %v3175, %v3081
  %v3177 = vadd.f32 %v3176, %v3082
  %v3178 = vadd.f32 %v3177, %v3083
  %v3179 = vadd.f32 %v3178, %v3084
  %v3180 = vadd.f32 %v3179, %v3085
  %v3181 = vadd.f32 %v3180, %v3086
  %v3182 = vadd.f32 %v3181, %v3087
  %v3183 = vadd.f32 %v3182, %v3088
  %v3184 = vadd.f32 %v3183, %v3089
  %v3185 = vadd.f32 %v3184, %v3090
  %v3186 = vadd.f32 %v3185, %v3091
  %v3187 = vadd.f32 %v3186, %v3092
  %v3188 = vadd.f32 %v3187, %v3093
  %v3189 = vadd.f32 %v3188, %v3094
  %v3190 = vadd.f32 %v3189, %v3095
  %v3191 = vadd.f32 %v3190, %v3096
  %v3192 = vadd.f32 %v3191, %v3097
  %v3193 = vadd.f32 %v3192, %v3098
  %v3194 = vadd.f32 %v3193, %v3099
  %v3195 = vadd.f32 %v3194, %v3100
  %v3196 = vadd.f32 %v3195, %v3101
  %v3197 = vadd.f32 %v3196, %v3102
  %v3198 = vadd.f32 %v3197, %v3103
  %v3199 = vadd.f32 %v3198, %v3104
  %v3200 = vadd.f32 %v3199, %v3105
  %v3201 = vadd.f32 %v3200, %v3106
  %v3202 = vadd.f32 %v3201, %v3107
  %v3203 = vadd.f32 %v3202, %v3108
  %v3204 = vadd.f32 %v3203, %v3109
  %v3205 = vadd.f32 %v3204, %v3110
  %v3206 = vadd.f32 %v3205, %v3111
  %v3207 = vadd.f32 %v3206, %v3112
  %v3208 = vadd.f32 %v3207, %v3113
  %v3209 = vadd.f32 %v3208, %v3114
  %v3210 = vadd.f32 %v3209, %v3115
  %v3211 = vadd.f32 %v3210, %v3116
  %v3212 = vadd.f32 %v3211, %v3117
  %v3213 = vadd.f32 %v3212, %v3118
  %v3214 = vadd.f32 %v3213, %v3119
  %v3215 = vadd.f32 %v3214, %v3120
  %v3216 = vadd.f32 %v3215, %v3121
  %v3217 = vadd.f32 %v3216, %v3122
  %v3218 = vadd.f32 %v3217, %v3123
  %v3219 = vadd.f32 %v3218, %v3124
  %v3220 = vadd.f32 %v3219, %v3125
  %v3221 = vadd.f32 %v3220, %v3126
  %v3222 = vadd.f32 %v3221, %v3127
  %v3223 = vadd.f32 %v3222, %v3128
  %v3224 = vadd.f32 %v3223, %v3129
  %v3225 = vadd.f32 %v3224, %v3130
  %v3226 = vadd.f32 %v3225, %v3131
  %v3227 = vadd.f32 %v3226, %v3132
  %v3228 = vadd.f32 %v3227, %v3133
  %v3229 = vadd.f32 %v3228, %v3134
  %v3230 = vadd.f32 %v3229, %v3135
  %v3231 = vadd.f32 %v3230, %v3136
  %v3232 = vadd.f32 %v3231, %v3137
  %v3233 = vadd.f32 %v3232, %v3138
  %v3234 = vadd.f32 %v3233, %v3139
  %v3235 = vadd.f32 %v3234, %v3140
  %v3236 = vadd.f32 %v3235, %v3141
  %v3237 = vadd.f32 %v3236, %v3142
  %v3238 = vadd.f32 %v3237, %v3143
  %v3239 = vadd.f32 %v3238, %v3144
  %v3240 = vadd.f32 %v3239, %v3145
  %v3241 = vadd.f32 %v3240, %v3146
  %v3242 = vadd.f32 %v3241, %v3147
  %v3243 = vadd.f32 %v3242, %v3148
  %v3244 = vadd.f32 %v3243, %v3149
  %v3245 = vadd.f32 %v3244, %v3150
  %v3246 = vadd.f32 %v3245, %v3151
  %v3247 = vadd.f32 %v3246, %v3152
  %v3248 = vadd.f32 %v3247, %v3153
  %v3249 = vadd.f32 %v3248, %v3154
  %v3250 = vadd.f32 %v3249, %v3155
  %v3251 = vadd.f32 %v3250, %v3156
  %v3252 = vadd.f32 %v3251, %v3157
  %v3253 = vadd.f32 %v3252, %v3158
  %v3254 = vadd.f32 %v3253, %v3159
  %v3255 = vadd.f32 %v3254, %v3160
  %v3256 = vadd.f32 %v3255, %v3161
  %v3257 = vadd.f32 %v3256, %v3162
  %v3258 = vadd.f32 %v3257, %v3163
  %v3259 = vadd.f32 %v3258, %v3164
  %v3260 = vadd.f32 %v3259, %v3165
  %v3261 = vadd.f32 %v3260, %v3166
  %v3262 = vadd.f32 %v3261, %v3167
  %v3263 = vadd.f32 %v3262, %v3168
  %v3264 = vadd.f32 %v3263, %v3169
  %v3265 = vadd.f32 %v3264, %v3170
  %v3266 = vadd.f32 %v3265, %v3171
  %v3267 = vadd.f32 %v3266, %v3172
  %v3268 = vadd.f32 %v3267, %v3173
  %v3269 = vadd.f32 %v3268, %v3174
  %v3270 = vrot.slane %v3269, 4
  %v3271 = vadd.f32 %v3269, %v3270
  %v3272 = vrot.slane %v3271, 2
  %v3273 = vadd.f32 %v3271, %v3272
  %v3274 = vrot.slane %v3273, 1
  %v3275 = vadd.f32 %v3273, %v3274
  %v3276 = vmul.f32 %v3275, 0.0013157895
  %v3277 = vadd.f32 %v3276, 1e-05
  %v3278 = vrsqrt.pop %v3277
  %v3279 = vmul.f32 %v2887, %v3278
  %v3280 = vmul.f32 %v2888, %v3278
  %v3281 = vmul.f32 %v2889, %v3278
  %v3282 = vmul.f32 %v2890, %v3278
  %v3283 = vmul.f32 %v2891, %v3278
  %v3284 = vmul.f32 %v2892, %v3278
  %v3285 = vmul.f32 %v2893, %v3278
  %v3286 = vmul.f32 %v2894, %v3278
  %v3287 = vmul.f32 %v2895, %v3278
  %v3288 = vmul.f32 %v2896, %v3278
  %v3289 = vmul.f32 %v2897, %v3278
  %v3290 = vmul.f32 %v2898, %v3278
  %v3291 = vmul.f32 %v2899, %v3278
  %v3292 = vmul.f32 %v2900, %v3278
  %v3293 = vmul.f32 %v2901, %v3278
  %v3294 = vmul.f32 %v2902, %v3278
  %v3295 = vmul.f32 %v2903, %v3278
  %v3296 = vmul.f32 %v2904, %v3278
  %v3297 = vmul.f32 %v2905, %v3278
  %v3298 = vmul.f32 %v2906, %v3278
  %v3299 = vmul.f32 %v2907, %v3278
  %v3300 = vmul.f32 %v2908, %v3278
  %v3301 = vmul.f32 %v2909, %v3278
  %v3302 = vmul.f32 %v2910, %v3278
  %v3303 = vmul.f32 %v2911, %v3278
  %v3304 = vmul.f32 %v2912, %v3278
  %v3305 = vmul.f32 %v2913, %v3278
  %v3306 = vmul.f32 %v2914, %v3278
  %v3307 = vmul.f32 %v2915, %v3278
  %v3308 = vmul.f32 %v2916, %v3278
  %v3309 = vmul.f32 %v2917, %v3278
  %v3310 = vmul.f32 %v2918, %v3278
  %v3311 = vmul.f32 %v2919, %v3278
  %v3312 = vmul.f32 %v2920, %v3278
  %v3313 = vmul.f32 %v2921, %v3278
  %v3314 = vmul.f32 %v2922, %v3278
  %v3315 = vmul.f32 %v2923, %v3278
  %v3316 = vmul.f32 %v2924, %v3278
  %v3317 = vmul.f32 %v2925, %v3278
  %v3318 = vmul.f32 %v2926, %v3278
  %v3319 = vmul.f32 %v2927, %v3278
  %v3320 = vmul.f32 %v2928, %v3278
  %v3321 = vmul.f32 %v2929, %v3278
  %v3322 = vmul.f32 %v2930, %v3278
  %v3323 = vmul.f32 %v2931, %v3278
  %v3324 = vmul.f32 %v2932, %v3278
  %v3325 = vmul.f32 %v2933, %v3278
  %v3326 = vmul.f32 %v2934, %v3278
  %v3327 = vmul.f32 %v2935, %v3278
  %v3328 = vmul.f32 %v2936, %v3278
  %v3329 = vmul.f32 %v2937, %v3278
  %v3330 = vmul.f32 %v2938, %v3278
  %v3331 = vmul.f32 %v2939, %v3278
  %v3332 = vmul.f32 %v2940, %v3278
  %v3333 = vmul.f32 %v2941, %v3278
  %v3334 = vmul.f32 %v2942, %v3278
  %v3335 = vmul.f32 %v2943, %v3278
  %v3336 = vmul.f32 %v2944, %v3278
  %v3337 = vmul.f32 %v2945, %v3278
  %v3338 = vmul.f32 %v2946, %v3278
  %v3339 = vmul.f32 %v2947, %v3278
  %v3340 = vmul.f32 %v2948, %v3278
  %v3341 = vmul.f32 %v2949, %v3278
  %v3342 = vmul.f32 %v2950, %v3278
  %v3343 = vmul.f32 %v2951, %v3278
  %v3344 = vmul.f32 %v2952, %v3278
  %v3345 = vmul.f32 %v2953, %v3278
  %v3346 = vmul.f32 %v2954, %v3278
  %v3347 = vmul.f32 %v2955, %v3278
  %v3348 = vmul.f32 %v2956, %v3278
  %v3349 = vmul.f32 %v2957, %v3278
  %v3350 = vmul.f32 %v2958, %v3278
  %v3351 = vmul.f32 %v2959, %v3278
  %v3352 = vmul.f32 %v2960, %v3278
  %v3353 = vmul.f32 %v2961, %v3278
  %v3354 = vmul.f32 %v2962, %v3278
  %v3355 = vmul.f32 %v2963, %v3278
  %v3356 = vmul.f32 %v2964, %v3278
  %v3357 = vmul.f32 %v2965, %v3278
  %v3358 = vmul.f32 %v2966, %v3278
  %v3359 = vmul.f32 %v2967, %v3278
  %v3360 = vmul.f32 %v2968, %v3278
  %v3361 = vmul.f32 %v2969, %v3278
  %v3362 = vmul.f32 %v2970, %v3278
  %v3363 = vmul.f32 %v2971, %v3278
  %v3364 = vmul.f32 %v2972, %v3278
  %v3365 = vmul.f32 %v2973, %v3278
  %v3366 = vmul.f32 %v2974, %v3278
  %v3367 = vmul.f32 %v2975, %v3278
  %v3368 = vmul.f32 %v2976, %v3278
  %v3369 = vmul.f32 %v2977, %v3278
  %v3370 = vmul.f32 %v2978, %v3278
  %v3371 = vmul.f32 %v2979, %v3278
  %v3372 = vmul.f32 %v2980, %v3278
  %v3373 = vmul.f32 %v2981, %v3278
  %v3374 = vmul.f32 %v2982, %v3278
  %v3376 = vlaneseq
  %v3377 = vshrl.u32 %v3376, 7
  %v3378 = vsub.s32 0, %v3377
  %v3379 = vrot.slane %v2494, %v3378
  %v3381 = vmul.f32 %v3279, %v3379
  %v3382 = vmul.f32 %v3280, %v3379
  %v3383 = vmul.f32 %v3281, %v3379
  %v3384 = vmul.f32 %v3282, %v3379
  %v3385 = vmul.f32 %v3283, %v3379
  %v3386 = vmul.f32 %v3284, %v3379
  %v3387 = vmul.f32 %v3285, %v3379
  %v3388 = vmul.f32 %v3286, %v3379
  %v3389 = vmul.f32 %v3287, %v3379
  %v3390 = vmul.f32 %v3288, %v3379
  %v3391 = vmul.f32 %v3289, %v3379
  %v3392 = vmul.f32 %v3290, %v3379
  %v3393 = vmul.f32 %v3291, %v3379
  %v3394 = vmul.f32 %v3292, %v3379
  %v3395 = vmul.f32 %v3293, %v3379
  %v3396 = vmul.f32 %v3294, %v3379
  %v3397 = vmul.f32 %v3295, %v3379
  %v3398 = vmul.f32 %v3296, %v3379
  %v3399 = vmul.f32 %v3297, %v3379
  %v3400 = vmul.f32 %v3298, %v3379
  %v3401 = vmul.f32 %v3299, %v3379
  %v3402 = vmul.f32 %v3300, %v3379
  %v3403 = vmul.f32 %v3301, %v3379
  %v3404 = vmul.f32 %v3302, %v3379
  %v3405 = vmul.f32 %v3303, %v3379
  %v3406 = vmul.f32 %v3304, %v3379
  %v3407 = vmul.f32 %v3305, %v3379
  %v3408 = vmul.f32 %v3306, %v3379
  %v3409 = vmul.f32 %v3307, %v3379
  %v3410 = vmul.f32 %v3308, %v3379
  %v3411 = vmul.f32 %v3309, %v3379
  %v3412 = vmul.f32 %v3310, %v3379
  %v3413 = vmul.f32 %v3311, %v3379
  %v3414 = vmul.f32 %v3312, %v3379
  %v3415 = vmul.f32 %v3313, %v3379
  %v3416 = vmul.f32 %v3314, %v3379
  %v3417 = vmul.f32 %v3315, %v3379
  %v3418 = vmul.f32 %v3316, %v3379
  %v3419 = vmul.f32 %v3317, %v3379
  %v3420 = vmul.f32 %v3318, %v3379
  %v3421 = vmul.f32 %v3319, %v3379
  %v3422 = vmul.f32 %v3320, %v3379
  %v3423 = vmul.f32 %v3321, %v3379
  %v3424 = vmul.f32 %v3322, %v3379
  %v3425 = vmul.f32 %v3323, %v3379
  %v3426 = vmul.f32 %v3324, %v3379
  %v3427 = vmul.f32 %v3325, %v3379
  %v3428 = vmul.f32 %v3326, %v3379
  %v3429 = vmul.f32 %v3327, %v3379
  %v3430 = vmul.f32 %v3328, %v3379
  %v3431 = vmul.f32 %v3329, %v3379
  %v3432 = vmul.f32 %v3330, %v3379
  %v3433 = vmul.f32 %v3331, %v3379
  %v3434 = vmul.f32 %v3332, %v3379
  %v3435 = vmul.f32 %v3333, %v3379
  %v3436 = vmul.f32 %v3334, %v3379
  %v3437 = vmul.f32 %v3335, %v3379
  %v3438 = vmul.f32 %v3336, %v3379
  %v3439 = vmul.f32 %v3337, %v3379
  %v3440 = vmul.f32 %v3338, %v3379
  %v3441 = vmul.f32 %v3339, %v3379
  %v3442 = vmul.f32 %v3340, %v3379
  %v3443 = vmul.f32 %v3341, %v3379
  %v3444 = vmul.f32 %v3342, %v3379
  %v3445 = vmul.f32 %v3343, %v3379
  %v3446 = vmul.f32 %v3344, %v3379
  %v3447 = vmul.f32 %v3345, %v3379
  %v3448 = vmul.f32 %v3346, %v3379
  %v3449 = vmul.f32 %v3347, %v3379
  %v3450 = vmul.f32 %v3348, %v3379
  %v3451 = vmul.f32 %v3349, %v3379
  %v3452 = vmul.f32 %v3350, %v3379
  %v3453 = vmul.f32 %v3351, %v3379
  %v3454 = vmul.f32 %v3352, %v3379
  %v3455 = vmul.f32 %v3353, %v3379
  %v3456 = vmul.f32 %v3354, %v3379
  %v3457 = vmul.f32 %v3355, %v3379
  %v3458 = vmul.f32 %v3356, %v3379
  %v3459 = vmul.f32 %v3357, %v3379
  %v3460 = vmul.f32 %v3358, %v3379
  %v3461 = vmul.f32 %v3359, %v3379
  %v3462 = vmul.f32 %v3360, %v3379
  %v3463 = vmul.f32 %v3361, %v3379
  %v3464 = vmul.f32 %v3362, %v3379
  %v3465 = vmul.f32 %v3363, %v3379
  %v3466 = vmul.f32 %v3364, %v3379
  %v3467 = vmul.f32 %v3365, %v3379
  %v3468 = vmul.f32 %v3366, %v3379
  %v3469 = vmul.f32 %v3367, %v3379
  %v3470 = vmul.f32 %v3368, %v3379
  %v3471 = vmul.f32 %v3369, %v3379
  %v3472 = vmul.f32 %v3370, %v3379
  %v3473 = vmul.f32 %v3371, %v3379
  %v3474 = vmul.f32 %v3372, %v3379
  %v3475 = vmul.f32 %v3373, %v3379
  %v3476 = vmul.f32 %v3374, %v3379
  %v3478 = vlaneseq
  %v3479 = vshrl.u32 %v3478, 7
  %v3480 = vsub.s32 0, %v3479
  %v3481 = vrot.slane %v2495, %v3480
  %v3483 = vadd.f32 %v3381, %v3481
  %v3484 = vadd.f32 %v3382, %v3481
  %v3485 = vadd.f32 %v3383, %v3481
  %v3486 = vadd.f32 %v3384, %v3481
  %v3487 = vadd.f32 %v3385, %v3481
  %v3488 = vadd.f32 %v3386, %v3481
  %v3489 = vadd.f32 %v3387, %v3481
  %v3490 = vadd.f32 %v3388, %v3481
  %v3491 = vadd.f32 %v3389, %v3481
  %v3492 = vadd.f32 %v3390, %v3481
  %v3493 = vadd.f32 %v3391, %v3481
  %v3494 = vadd.f32 %v3392, %v3481
  %v3495 = vadd.f32 %v3393, %v3481
  %v3496 = vadd.f32 %v3394, %v3481
  %v3497 = vadd.f32 %v3395, %v3481
  %v3498 = vadd.f32 %v3396, %v3481
  %v3499 = vadd.f32 %v3397, %v3481
  %v3500 = vadd.f32 %v3398, %v3481
  %v3501 = vadd.f32 %v3399, %v3481
  %v3502 = vadd.f32 %v3400, %v3481
  %v3503 = vadd.f32 %v3401, %v3481
  %v3504 = vadd.f32 %v3402, %v3481
  %v3505 = vadd.f32 %v3403, %v3481
  %v3506 = vadd.f32 %v3404, %v3481
  %v3507 = vadd.f32 %v3405, %v3481
  %v3508 = vadd.f32 %v3406, %v3481
  %v3509 = vadd.f32 %v3407, %v3481
  %v3510 = vadd.f32 %v3408, %v3481
  %v3511 = vadd.f32 %v3409, %v3481
  %v3512 = vadd.f32 %v3410, %v3481
  %v3513 = vadd.f32 %v3411, %v3481
  %v3514 = vadd.f32 %v3412, %v3481
  %v3515 = vadd.f32 %v3413, %v3481
  %v3516 = vadd.f32 %v3414, %v3481
  %v3517 = vadd.f32 %v3415, %v3481
  %v3518 = vadd.f32 %v3416, %v3481
  %v3519 = vadd.f32 %v3417, %v3481
  %v3520 = vadd.f32 %v3418, %v3481
  %v3521 = vadd.f32 %v3419, %v3481
  %v3522 = vadd.f32 %v3420, %v3481
  %v3523 = vadd.f32 %v3421, %v3481
  %v3524 = vadd.f32 %v3422, %v3481
  %v3525 = vadd.f32 %v3423, %v3481
  %v3526 = vadd.f32 %v3424, %v3481
  %v3527 = vadd.f32 %v3425, %v3481
  %v3528 = vadd.f32 %v3426, %v3481
  %v3529 = vadd.f32 %v3427, %v3481
  %v3530 = vadd.f32 %v3428, %v3481
  %v3531 = vadd.f32 %v3429, %v3481
  %v3532 = vadd.f32 %v3430, %v3481
  %v3533 = vadd.f32 %v3431, %v3481
  %v3534 = vadd.f32 %v3432, %v3481
  %v3535 = vadd.f32 %v3433, %v3481
  %v3536 = vadd.f32 %v3434, %v3481
  %v3537 = vadd.f32 %v3435, %v3481
  %v3538 = vadd.f32 %v3436, %v3481
  %v3539 = vadd.f32 %v3437, %v3481
  %v3540 = vadd.f32 %v3438, %v3481
  %v3541 = vadd.f32 %v3439, %v3481
  %v3542 = vadd.f32 %v3440, %v3481
  %v3543 = vadd.f32 %v3441, %v3481
  %v3544 = vadd.f32 %v3442, %v3481
  %v3545 = vadd.f32 %v3443, %v3481
  %v3546 = vadd.f32 %v3444, %v3481
  %v3547 = vadd.f32 %v3445, %v3481
  %v3548 = vadd.f32 %v3446, %v3481
  %v3549 = vadd.f32 %v3447, %v3481
  %v3550 = vadd.f32 %v3448, %v3481
  %v3551 = vadd.f32 %v3449, %v3481
  %v3552 = vadd.f32 %v3450, %v3481
  %v3553 = vadd.f32 %v3451, %v3481
  %v3554 = vadd.f32 %v3452, %v3481
  %v3555 = vadd.f32 %v3453, %v3481
  %v3556 = vadd.f32 %v3454, %v3481
  %v3557 = vadd.f32 %v3455, %v3481
  %v3558 = vadd.f32 %v3456, %v3481
  %v3559 = vadd.f32 %v3457, %v3481
  %v3560 = vadd.f32 %v3458, %v3481
  %v3561 = vadd.f32 %v3459, %v3481
  %v3562 = vadd.f32 %v3460, %v3481
  %v3563 = vadd.f32 %v3461, %v3481
  %v3564 = vadd.f32 %v3462, %v3481
  %v3565 = vadd.f32 %v3463, %v3481
  %v3566 = vadd.f32 %v3464, %v3481
  %v3567 = vadd.f32 %v3465, %v3481
  %v3568 = vadd.f32 %v3466, %v3481
  %v3569 = vadd.f32 %v3467, %v3481
  %v3570 = vadd.f32 %v3468, %v3481
  %v3571 = vadd.f32 %v3469, %v3481
  %v3572 = vadd.f32 %v3470, %v3481
  %v3573 = vadd.f32 %v3471, %v3481
  %v3574 = vadd.f32 %v3472, %v3481
  %v3575 = vadd.f32 %v3473, %v3481
  %v3576 = vadd.f32 %v3474, %v3481
  %v3577 = vadd.f32 %v3475, %v3481
  %v3578 = vadd.f32 %v3476, %v3481
  %v3579 = vsel %vm2593, %v3483, 0.0
  %v3580 = vsel %vm2594, %v3484, 0.0
  %v3581 = vsel %vm2595, %v3485, 0.0
  %v3582 = vsel %vm2596, %v3486, 0.0
  %v3583 = vsel %vm2597, %v3487, 0.0
  %v3584 = vsel %vm2598, %v3488, 0.0
  %v3585 = vsel %vm2599, %v3489, 0.0
  %v3586 = vsel %vm2600, %v3490, 0.0
  %v3587 = vsel %vm2601, %v3491, 0.0
  %v3588 = vsel %vm2602, %v3492, 0.0
  %v3589 = vsel %vm2603, %v3493, 0.0
  %v3590 = vsel %vm2604, %v3494, 0.0
  %v3591 = vsel %vm2605, %v3495, 0.0
  %v3592 = vsel %vm2606, %v3496, 0.0
  %v3593 = vsel %vm2607, %v3497, 0.0
  %v3594 = vsel %vm2608, %v3498, 0.0
  %v3595 = vsel %vm2609, %v3499, 0.0
  %v3596 = vsel %vm2610, %v3500, 0.0
  %v3597 = vsel %vm2611, %v3501, 0.0
  %v3598 = vsel %vm2612, %v3502, 0.0
  %v3599 = vsel %vm2613, %v3503, 0.0
  %v3600 = vsel %vm2614, %v3504, 0.0
  %v3601 = vsel %vm2615, %v3505, 0.0
  %v3602 = vsel %vm2616, %v3506, 0.0
  %v3603 = vsel %vm2617, %v3507, 0.0
  %v3604 = vsel %vm2618, %v3508, 0.0
  %v3605 = vsel %vm2619, %v3509, 0.0
  %v3606 = vsel %vm2620, %v3510, 0.0
  %v3607 = vsel %vm2621, %v3511, 0.0
  %v3608 = vsel %vm2622, %v3512, 0.0
  %v3609 = vsel %vm2623, %v3513, 0.0
  %v3610 = vsel %vm2624, %v3514, 0.0
  %v3611 = vsel %vm2625, %v3515, 0.0
  %v3612 = vsel %vm2626, %v3516, 0.0
  %v3613 = vsel %vm2627, %v3517, 0.0
  %v3614 = vsel %vm2628, %v3518, 0.0
  %v3615 = vsel %vm2629, %v3519, 0.0
  %v3616 = vsel %vm2630, %v3520, 0.0
  %v3617 = vsel %vm2631, %v3521, 0.0
  %v3618 = vsel %vm2632, %v3522, 0.0
  %v3619 = vsel %vm2633, %v3523, 0.0
  %v3620 = vsel %vm2634, %v3524, 0.0
  %v3621 = vsel %vm2635, %v3525, 0.0
  %v3622 = vsel %vm2636, %v3526, 0.0
  %v3623 = vsel %vm2637, %v3527, 0.0
  %v3624 = vsel %vm2638, %v3528, 0.0
  %v3625 = vsel %vm2639, %v3529, 0.0
  %v3626 = vsel %vm2640, %v3530, 0.0
  %v3627 = vsel %vm2641, %v3531, 0.0
  %v3628 = vsel %vm2642, %v3532, 0.0
  %v3629 = vsel %vm2643, %v3533, 0.0
  %v3630 = vsel %vm2644, %v3534, 0.0
  %v3631 = vsel %vm2645, %v3535, 0.0
  %v3632 = vsel %vm2646, %v3536, 0.0
  %v3633 = vsel %vm2647, %v3537, 0.0
  %v3634 = vsel %vm2648, %v3538, 0.0
  %v3635 = vsel %vm2649, %v3539, 0.0
  %v3636 = vsel %vm2650, %v3540, 0.0
  %v3637 = vsel %vm2651, %v3541, 0.0
  %v3638 = vsel %vm2652, %v3542, 0.0
  %v3639 = vsel %vm2653, %v3543, 0.0
  %v3640 = vsel %vm2654, %v3544, 0.0
  %v3641 = vsel %vm2655, %v3545, 0.0
  %v3642 = vsel %vm2656, %v3546, 0.0
  %v3643 = vsel %vm2657, %v3547, 0.0
  %v3644 = vsel %vm2658, %v3548, 0.0
  %v3645 = vsel %vm2659, %v3549, 0.0
  %v3646 = vsel %vm2660, %v3550, 0.0
  %v3647 = vsel %vm2661, %v3551, 0.0
  %v3648 = vsel %vm2662, %v3552, 0.0
  %v3649 = vsel %vm2663, %v3553, 0.0
  %v3650 = vsel %vm2664, %v3554, 0.0
  %v3651 = vsel %vm2665, %v3555, 0.0
  %v3652 = vsel %vm2666, %v3556, 0.0
  %v3653 = vsel %vm2667, %v3557, 0.0
  %v3654 = vsel %vm2668, %v3558, 0.0
  %v3655 = vsel %vm2669, %v3559, 0.0
  %v3656 = vsel %vm2670, %v3560, 0.0
  %v3657 = vsel %vm2671, %v3561, 0.0
  %v3658 = vsel %vm2672, %v3562, 0.0
  %v3659 = vsel %vm2673, %v3563, 0.0
  %v3660 = vsel %vm2674, %v3564, 0.0
  %v3661 = vsel %vm2675, %v3565, 0.0
  %v3662 = vsel %vm2676, %v3566, 0.0
  %v3663 = vsel %vm2677, %v3567, 0.0
  %v3664 = vsel %vm2678, %v3568, 0.0
  %v3665 = vsel %vm2679, %v3569, 0.0
  %v3666 = vsel %vm2680, %v3570, 0.0
  %v3667 = vsel %vm2681, %v3571, 0.0
  %v3668 = vsel %vm2682, %v3572, 0.0
  %v3669 = vsel %vm2683, %v3573, 0.0
  %v3670 = vsel %vm2684, %v3574, 0.0
  %v3671 = vsel %vm2685, %v3575, 0.0
  %v3672 = vsel %vm2686, %v3576, 0.0
  %v3673 = vsel %vm2687, %v3577, 0.0
  %v3674 = vsel %vm2688, %v3578, 0.0
  %v3675 = vpack.c.bf16 %v3580, %v3579
  %v3676 = vpack.c.bf16 %v3582, %v3581
  %v3677 = vpack.c.bf16 %v3584, %v3583
  %v3678 = vpack.c.bf16 %v3586, %v3585
  %v3679 = vpack.c.bf16 %v3588, %v3587
  %v3680 = vpack.c.bf16 %v3590, %v3589
  %v3681 = vpack.c.bf16 %v3592, %v3591
  %v3682 = vpack.c.bf16 %v3594, %v3593
  %v3683 = vpack.c.bf16 %v3596, %v3595
  %v3684 = vpack.c.bf16 %v3598, %v3597
  %v3685 = vpack.c.bf16 %v3600, %v3599
  %v3686 = vpack.c.bf16 %v3602, %v3601
  %v3687 = vpack.c.bf16 %v3604, %v3603
  %v3688 = vpack.c.bf16 %v3606, %v3605
  %v3689 = vpack.c.bf16 %v3608, %v3607
  %v3690 = vpack.c.bf16 %v3610, %v3609
  %v3691 = vpack.c.bf16 %v3612, %v3611
  %v3692 = vpack.c.bf16 %v3614, %v3613
  %v3693 = vpack.c.bf16 %v3616, %v3615
  %v3694 = vpack.c.bf16 %v3618, %v3617
  %v3695 = vpack.c.bf16 %v3620, %v3619
  %v3696 = vpack.c.bf16 %v3622, %v3621
  %v3697 = vpack.c.bf16 %v3624, %v3623
  %v3698 = vpack.c.bf16 %v3626, %v3625
  %v3699 = vpack.c.bf16 %v3628, %v3627
  %v3700 = vpack.c.bf16 %v3630, %v3629
  %v3701 = vpack.c.bf16 %v3632, %v3631
  %v3702 = vpack.c.bf16 %v3634, %v3633
  %v3703 = vpack.c.bf16 %v3636, %v3635
  %v3704 = vpack.c.bf16 %v3638, %v3637
  %v3705 = vpack.c.bf16 %v3640, %v3639
  %v3706 = vpack.c.bf16 %v3642, %v3641
  %v3707 = vpack.c.bf16 %v3644, %v3643
  %v3708 = vpack.c.bf16 %v3646, %v3645
  %v3709 = vpack.c.bf16 %v3648, %v3647
  %v3710 = vpack.c.bf16 %v3650, %v3649
  %v3711 = vpack.c.bf16 %v3652, %v3651
  %v3712 = vpack.c.bf16 %v3654, %v3653
  %v3713 = vpack.c.bf16 %v3656, %v3655
  %v3714 = vpack.c.bf16 %v3658, %v3657
  %v3715 = vpack.c.bf16 %v3660, %v3659
  %v3716 = vpack.c.bf16 %v3662, %v3661
  %v3717 = vpack.c.bf16 %v3664, %v3663
  %v3718 = vpack.c.bf16 %v3666, %v3665
  %v3719 = vpack.c.bf16 %v3668, %v3667
  %v3720 = vpack.c.bf16 %v3670, %v3669
  %v3721 = vpack.c.bf16 %v3672, %v3671
  %v3722 = vpack.c.bf16 %v3674, %v3673
  %v3771 = vunpack.c.l.b16 %v3675
  %v3772 = vunpack.c.h.b16 %v3675
  %v3773 = vunpack.c.l.b16 %v3676
  %v3774 = vunpack.c.h.b16 %v3676
  %v3775 = vunpack.c.l.b16 %v3677
  %v3776 = vunpack.c.h.b16 %v3677
  %v3777 = vunpack.c.l.b16 %v3678
  %v3778 = vunpack.c.h.b16 %v3678
  %v3779 = vunpack.c.l.b16 %v3679
  %v3780 = vunpack.c.h.b16 %v3679
  %v3781 = vunpack.c.l.b16 %v3680
  %v3782 = vunpack.c.h.b16 %v3680
  %v3783 = vunpack.c.l.b16 %v3681
  %v3784 = vunpack.c.h.b16 %v3681
  %v3785 = vunpack.c.l.b16 %v3682
  %v3786 = vunpack.c.h.b16 %v3682
  %v3787 = vunpack.c.l.b16 %v3683
  %v3788 = vunpack.c.h.b16 %v3683
  %v3789 = vunpack.c.l.b16 %v3684
  %v3790 = vunpack.c.h.b16 %v3684
  %v3791 = vunpack.c.l.b16 %v3685
  %v3792 = vunpack.c.h.b16 %v3685
  %v3793 = vunpack.c.l.b16 %v3686
  %v3794 = vunpack.c.h.b16 %v3686
  %v3795 = vunpack.c.l.b16 %v3687
  %v3796 = vunpack.c.h.b16 %v3687
  %v3797 = vunpack.c.l.b16 %v3688
  %v3798 = vunpack.c.h.b16 %v3688
  %v3799 = vunpack.c.l.b16 %v3689
  %v3800 = vunpack.c.h.b16 %v3689
  %v3801 = vunpack.c.l.b16 %v3690
  %v3802 = vunpack.c.h.b16 %v3690
  %v3803 = vunpack.c.l.b16 %v3691
  %v3804 = vunpack.c.h.b16 %v3691
  %v3805 = vunpack.c.l.b16 %v3692
  %v3806 = vunpack.c.h.b16 %v3692
  %v3807 = vunpack.c.l.b16 %v3693
  %v3808 = vunpack.c.h.b16 %v3693
  %v3809 = vunpack.c.l.b16 %v3694
  %v3810 = vunpack.c.h.b16 %v3694
  %v3811 = vunpack.c.l.b16 %v3695
  %v3812 = vunpack.c.h.b16 %v3695
  %v3813 = vunpack.c.l.b16 %v3696
  %v3814 = vunpack.c.h.b16 %v3696
  %v3815 = vunpack.c.l.b16 %v3697
  %v3816 = vunpack.c.h.b16 %v3697
  %v3817 = vunpack.c.l.b16 %v3698
  %v3818 = vunpack.c.h.b16 %v3698
  %v3819 = vunpack.c.l.b16 %v3699
  %v3820 = vunpack.c.h.b16 %v3699
  %v3821 = vunpack.c.l.b16 %v3700
  %v3822 = vunpack.c.h.b16 %v3700
  %v3823 = vunpack.c.l.b16 %v3701
  %v3824 = vunpack.c.h.b16 %v3701
  %v3825 = vunpack.c.l.b16 %v3702
  %v3826 = vunpack.c.h.b16 %v3702
  %v3827 = vunpack.c.l.b16 %v3703
  %v3828 = vunpack.c.h.b16 %v3703
  %v3829 = vunpack.c.l.b16 %v3704
  %v3830 = vunpack.c.h.b16 %v3704
  %v3831 = vunpack.c.l.b16 %v3705
  %v3832 = vunpack.c.h.b16 %v3705
  %v3833 = vunpack.c.l.b16 %v3706
  %v3834 = vunpack.c.h.b16 %v3706
  %v3835 = vunpack.c.l.b16 %v3707
  %v3836 = vunpack.c.h.b16 %v3707
  %v3837 = vunpack.c.l.b16 %v3708
  %v3838 = vunpack.c.h.b16 %v3708
  %v3839 = vunpack.c.l.b16 %v3709
  %v3840 = vunpack.c.h.b16 %v3709
  %v3841 = vunpack.c.l.b16 %v3710
  %v3842 = vunpack.c.h.b16 %v3710
  %v3843 = vunpack.c.l.b16 %v3711
  %v3844 = vunpack.c.h.b16 %v3711
  %v3845 = vunpack.c.l.b16 %v3712
  %v3846 = vunpack.c.h.b16 %v3712
  %v3847 = vunpack.c.l.b16 %v3713
  %v3848 = vunpack.c.h.b16 %v3713
  %v3849 = vunpack.c.l.b16 %v3714
  %v3850 = vunpack.c.h.b16 %v3714
  %v3851 = vunpack.c.l.b16 %v3715
  %v3852 = vunpack.c.h.b16 %v3715
  %v3853 = vunpack.c.l.b16 %v3716
  %v3854 = vunpack.c.h.b16 %v3716
  %v3855 = vunpack.c.l.b16 %v3717
  %v3856 = vunpack.c.h.b16 %v3717
  %v3857 = vunpack.c.l.b16 %v3718
  %v3858 = vunpack.c.h.b16 %v3718
  %v3859 = vunpack.c.l.b16 %v3719
  %v3860 = vunpack.c.h.b16 %v3719
  %v3861 = vunpack.c.l.b16 %v3720
  %v3862 = vunpack.c.h.b16 %v3720
  %v3863 = vunpack.c.l.b16 %v3721
  %v3864 = vunpack.c.h.b16 %v3721
  %v3865 = vunpack.c.l.b16 %v3722
  %v3866 = vunpack.c.h.b16 %v3722
  %v3867 = vpack.c.b16 %v3771, %v3771
  %v3868 = vpack.c.b16 %v3772, %v3772
  %v3869 = vpack.c.b16 %v3773, %v3773
  %v3870 = vpack.c.b16 %v3774, %v3774
  %v3871 = vpack.c.b16 %v3775, %v3775
  %v3872 = vpack.c.b16 %v3776, %v3776
  %v3873 = vpack.c.b16 %v3777, %v3777
  %v3874 = vpack.c.b16 %v3778, %v3778
  %v3875 = vpack.c.b16 %v3779, %v3779
  %v3876 = vpack.c.b16 %v3780, %v3780
  %v3877 = vpack.c.b16 %v3781, %v3781
  %v3878 = vpack.c.b16 %v3782, %v3782
  %v3879 = vpack.c.b16 %v3783, %v3783
  %v3880 = vpack.c.b16 %v3784, %v3784
  %v3881 = vpack.c.b16 %v3785, %v3785
  %v3882 = vpack.c.b16 %v3786, %v3786
  %v3883 = vpack.c.b16 %v3787, %v3787
  %v3884 = vpack.c.b16 %v3788, %v3788
  %v3885 = vpack.c.b16 %v3789, %v3789
  %v3886 = vpack.c.b16 %v3790, %v3790
  %v3887 = vpack.c.b16 %v3791, %v3791
  %v3888 = vpack.c.b16 %v3792, %v3792
  %v3889 = vpack.c.b16 %v3793, %v3793
  %v3890 = vpack.c.b16 %v3794, %v3794
  %v3891 = vpack.c.b16 %v3795, %v3795
  %v3892 = vpack.c.b16 %v3796, %v3796
  %v3893 = vpack.c.b16 %v3797, %v3797
  %v3894 = vpack.c.b16 %v3798, %v3798
  %v3895 = vpack.c.b16 %v3799, %v3799
  %v3896 = vpack.c.b16 %v3800, %v3800
  %v3897 = vpack.c.b16 %v3801, %v3801
  %v3898 = vpack.c.b16 %v3802, %v3802
  %v3899 = vpack.c.b16 %v3803, %v3803
  %v3900 = vpack.c.b16 %v3804, %v3804
  %v3901 = vpack.c.b16 %v3805, %v3805
  %v3902 = vpack.c.b16 %v3806, %v3806
  %v3903 = vpack.c.b16 %v3807, %v3807
  %v3904 = vpack.c.b16 %v3808, %v3808
  %v3905 = vpack.c.b16 %v3809, %v3809
  %v3906 = vpack.c.b16 %v3810, %v3810
  %v3907 = vpack.c.b16 %v3811, %v3811
  %v3908 = vpack.c.b16 %v3812, %v3812
  %v3909 = vpack.c.b16 %v3813, %v3813
  %v3910 = vpack.c.b16 %v3814, %v3814
  %v3911 = vpack.c.b16 %v3815, %v3815
  %v3912 = vpack.c.b16 %v3816, %v3816
  %v3913 = vpack.c.b16 %v3817, %v3817
  %v3914 = vpack.c.b16 %v3818, %v3818
  %v3915 = vpack.c.b16 %v3819, %v3819
  %v3916 = vpack.c.b16 %v3820, %v3820
  %v3917 = vpack.c.b16 %v3821, %v3821
  %v3918 = vpack.c.b16 %v3822, %v3822
  %v3919 = vpack.c.b16 %v3823, %v3823
  %v3920 = vpack.c.b16 %v3824, %v3824
  %v3921 = vpack.c.b16 %v3825, %v3825
  %v3922 = vpack.c.b16 %v3826, %v3826
  %v3923 = vpack.c.b16 %v3827, %v3827
  %v3924 = vpack.c.b16 %v3828, %v3828
  %v3925 = vpack.c.b16 %v3829, %v3829
  %v3926 = vpack.c.b16 %v3830, %v3830
  %v3927 = vpack.c.b16 %v3831, %v3831
  %v3928 = vpack.c.b16 %v3832, %v3832
  %v3929 = vpack.c.b16 %v3833, %v3833
  %v3930 = vpack.c.b16 %v3834, %v3834
  %v3931 = vpack.c.b16 %v3835, %v3835
  %v3932 = vpack.c.b16 %v3836, %v3836
  %v3933 = vpack.c.b16 %v3837, %v3837
  %v3934 = vpack.c.b16 %v3838, %v3838
  %v3935 = vpack.c.b16 %v3839, %v3839
  %v3936 = vpack.c.b16 %v3840, %v3840
  %v3937 = vpack.c.b16 %v3841, %v3841
  %v3938 = vpack.c.b16 %v3842, %v3842
  %v3939 = vpack.c.b16 %v3843, %v3843
  %v3940 = vpack.c.b16 %v3844, %v3844
  %v3941 = vpack.c.b16 %v3845, %v3845
  %v3942 = vpack.c.b16 %v3846, %v3846
  %v3943 = vpack.c.b16 %v3847, %v3847
  %v3944 = vpack.c.b16 %v3848, %v3848
  %v3945 = vpack.c.b16 %v3849, %v3849
  %v3946 = vpack.c.b16 %v3850, %v3850
  %v3947 = vpack.c.b16 %v3851, %v3851
  %v3948 = vpack.c.b16 %v3852, %v3852
  %v3949 = vpack.c.b16 %v3853, %v3853
  %v3950 = vpack.c.b16 %v3854, %v3854
  %v3951 = vpack.c.b16 %v3855, %v3855
  %v3952 = vpack.c.b16 %v3856, %v3856
  %v3953 = vpack.c.b16 %v3857, %v3857
  %v3954 = vpack.c.b16 %v3858, %v3858
  %v3955 = vpack.c.b16 %v3859, %v3859
  %v3956 = vpack.c.b16 %v3860, %v3860
  %v3957 = vpack.c.b16 %v3861, %v3861
  %v3958 = vpack.c.b16 %v3862, %v3862
  %v3959 = vpack.c.b16 %v3863, %v3863
  %v3960 = vpack.c.b16 %v3864, %v3864
  %v3961 = vpack.c.b16 %v3865, %v3865
  %v3962 = vpack.c.b16 %v3866, %v3866
  %4059 = vst [vmem:[%s11] sm:$0xf] %v3867
  %4060 = vst [vmem:[%s11 + $0x4] sm:$0xf] %v3868
  %4061 = vst [vmem:[%s11 + $0x8] sm:$0xf] %v3869
  %4062 = vst [vmem:[%s11 + $0xc] sm:$0xf] %v3870
  %4063 = vst [vmem:[%s11 + $0x10] sm:$0xf] %v3871
  %4064 = vst [vmem:[%s11 + $0x14] sm:$0xf] %v3872
  %4065 = vst [vmem:[%s11 + $0x18] sm:$0xf] %v3873
  %4066 = vst [vmem:[%s11 + $0x1c] sm:$0xf] %v3874
  %4067 = vst [vmem:[%s11 + $0x20] sm:$0xf] %v3875
  %4068 = vst [vmem:[%s11 + $0x24] sm:$0xf] %v3876
  %4069 = vst [vmem:[%s11 + $0x28] sm:$0xf] %v3877
  %4070 = vst [vmem:[%s11 + $0x2c] sm:$0xf] %v3878
  %4071 = vst [vmem:[%s11 + $0x30] sm:$0xf] %v3879
  %4072 = vst [vmem:[%s11 + $0x34] sm:$0xf] %v3880
  %4073 = vst [vmem:[%s11 + $0x38] sm:$0xf] %v3881
  %4074 = vst [vmem:[%s11 + $0x3c] sm:$0xf] %v3882
  %4075 = vst [vmem:[%s11 + $0x40] sm:$0xf] %v3883
  %4076 = vst [vmem:[%s11 + $0x44] sm:$0xf] %v3884
  %4077 = vst [vmem:[%s11 + $0x48] sm:$0xf] %v3885
  %4078 = vst [vmem:[%s11 + $0x4c] sm:$0xf] %v3886
  %4079 = vst [vmem:[%s11 + $0x50] sm:$0xf] %v3887
  %4080 = vst [vmem:[%s11 + $0x54] sm:$0xf] %v3888
  %4081 = vst [vmem:[%s11 + $0x58] sm:$0xf] %v3889
  %4082 = vst [vmem:[%s11 + $0x5c] sm:$0xf] %v3890
  %4083 = vst [vmem:[%s11 + $0x60] sm:$0xf] %v3891
  %4084 = vst [vmem:[%s11 + $0x64] sm:$0xf] %v3892
  %4085 = vst [vmem:[%s11 + $0x68] sm:$0xf] %v3893
  %4086 = vst [vmem:[%s11 + $0x6c] sm:$0xf] %v3894
  %4087 = vst [vmem:[%s11 + $0x70] sm:$0xf] %v3895
  %4088 = vst [vmem:[%s11 + $0x74] sm:$0xf] %v3896
  %4089 = vst [vmem:[%s11 + $0x78] sm:$0xf] %v3897
  %4090 = vst [vmem:[%s11 + $0x7c] sm:$0xf] %v3898
  %4091 = vst [vmem:[%s11 + $0x80] sm:$0xf] %v3899
  %4092 = vst [vmem:[%s11 + $0x84] sm:$0xf] %v3900
  %4093 = vst [vmem:[%s11 + $0x88] sm:$0xf] %v3901
  %4094 = vst [vmem:[%s11 + $0x8c] sm:$0xf] %v3902
  %4095 = vst [vmem:[%s11 + $0x90] sm:$0xf] %v3903
  %4096 = vst [vmem:[%s11 + $0x94] sm:$0xf] %v3904
  %4097 = vst [vmem:[%s11 + $0x98] sm:$0xf] %v3905
  %4098 = vst [vmem:[%s11 + $0x9c] sm:$0xf] %v3906
  %4099 = vst [vmem:[%s11 + $0xa0] sm:$0xf] %v3907
  %4100 = vst [vmem:[%s11 + $0xa4] sm:$0xf] %v3908
  %4101 = vst [vmem:[%s11 + $0xa8] sm:$0xf] %v3909
  %4102 = vst [vmem:[%s11 + $0xac] sm:$0xf] %v3910
  %4103 = vst [vmem:[%s11 + $0xb0] sm:$0xf] %v3911
  %4104 = vst [vmem:[%s11 + $0xb4] sm:$0xf] %v3912
  %4105 = vst [vmem:[%s11 + $0xb8] sm:$0xf] %v3913
  %4106 = vst [vmem:[%s11 + $0xbc] sm:$0xf] %v3914
  %4107 = vst [vmem:[%s11 + $0xc0] sm:$0xf] %v3915
  %4108 = vst [vmem:[%s11 + $0xc4] sm:$0xf] %v3916
  %4109 = vst [vmem:[%s11 + $0xc8] sm:$0xf] %v3917
  %4110 = vst [vmem:[%s11 + $0xcc] sm:$0xf] %v3918
  %4111 = vst [vmem:[%s11 + $0xd0] sm:$0xf] %v3919
  %4112 = vst [vmem:[%s11 + $0xd4] sm:$0xf] %v3920
  %4113 = vst [vmem:[%s11 + $0xd8] sm:$0xf] %v3921
  %4114 = vst [vmem:[%s11 + $0xdc] sm:$0xf] %v3922
  %4115 = vst [vmem:[%s11 + $0xe0] sm:$0xf] %v3923
  %4116 = vst [vmem:[%s11 + $0xe4] sm:$0xf] %v3924
  %4117 = vst [vmem:[%s11 + $0xe8] sm:$0xf] %v3925
  %4118 = vst [vmem:[%s11 + $0xec] sm:$0xf] %v3926
  %4119 = vst [vmem:[%s11 + $0xf0] sm:$0xf] %v3927
  %4120 = vst [vmem:[%s11 + $0xf4] sm:$0xf] %v3928
  %4121 = vst [vmem:[%s11 + $0xf8] sm:$0xf] %v3929
  %4122 = vst [vmem:[%s11 + $0xfc] sm:$0xf] %v3930
  %4123 = vst [vmem:[%s11 + $0x100] sm:$0xf] %v3931
  %4124 = vst [vmem:[%s11 + $0x104] sm:$0xf] %v3932
  %4125 = vst [vmem:[%s11 + $0x108] sm:$0xf] %v3933
  %4126 = vst [vmem:[%s11 + $0x10c] sm:$0xf] %v3934
  %4127 = vst [vmem:[%s11 + $0x110] sm:$0xf] %v3935
  %4128 = vst [vmem:[%s11 + $0x114] sm:$0xf] %v3936
  %4129 = vst [vmem:[%s11 + $0x118] sm:$0xf] %v3937
  %4130 = vst [vmem:[%s11 + $0x11c] sm:$0xf] %v3938
  %4131 = vst [vmem:[%s11 + $0x120] sm:$0xf] %v3939
  %4132 = vst [vmem:[%s11 + $0x124] sm:$0xf] %v3940
  %4133 = vst [vmem:[%s11 + $0x128] sm:$0xf] %v3941
  %4134 = vst [vmem:[%s11 + $0x12c] sm:$0xf] %v3942
  %4135 = vst [vmem:[%s11 + $0x130] sm:$0xf] %v3943
  %4136 = vst [vmem:[%s11 + $0x134] sm:$0xf] %v3944
  %4137 = vst [vmem:[%s11 + $0x138] sm:$0xf] %v3945
  %4138 = vst [vmem:[%s11 + $0x13c] sm:$0xf] %v3946
  %4139 = vst [vmem:[%s11 + $0x140] sm:$0xf] %v3947
  %4140 = vst [vmem:[%s11 + $0x144] sm:$0xf] %v3948
  %4141 = vst [vmem:[%s11 + $0x148] sm:$0xf] %v3949
  %4142 = vst [vmem:[%s11 + $0x14c] sm:$0xf] %v3950
  %4143 = vst [vmem:[%s11 + $0x150] sm:$0xf] %v3951
  %4144 = vst [vmem:[%s11 + $0x154] sm:$0xf] %v3952
  %4145 = vst [vmem:[%s11 + $0x158] sm:$0xf] %v3953
  %4146 = vst [vmem:[%s11 + $0x15c] sm:$0xf] %v3954
  %4147 = vst [vmem:[%s11 + $0x160] sm:$0xf] %v3955
  %4148 = vst [vmem:[%s11 + $0x164] sm:$0xf] %v3956
  %4149 = vst [vmem:[%s11 + $0x168] sm:$0xf] %v3957
  %4150 = vst [vmem:[%s11 + $0x16c] sm:$0xf] %v3958
  %4151 = vst [vmem:[%s11 + $0x170] sm:$0xf] %v3959
  %4152 = vst [vmem:[%s11 + $0x174] sm:$0xf] %v3960
  %4153 = vst [vmem:[%s11 + $0x178] sm:$0xf] %v3961
  %4154 = vst [vmem:[%s11 + $0x17c] sm:$0xf] %v3962
  %v4155 = vld [vmem:[%s7] sm:$0xf]
  %v4156 = vld [vmem:[%s7 + $0x4] sm:$0xf]
  %v4157 = vld [vmem:[%s7 + $0x8] sm:$0xf]
  %v4158 = vld [vmem:[%s7 + $0xc] sm:$0xf]
  %v4159 = vld [vmem:[%s7 + $0x10] sm:$0xf]
  %v4160 = vld [vmem:[%s7 + $0x14] sm:$0xf]
  %v4161 = vld [vmem:[%s7 + $0x18] sm:$0xf]
  %v4162 = vld [vmem:[%s7 + $0x1c] sm:$0xf]
  %v4163 = vld [vmem:[%s7 + $0x20] sm:$0xf]
  %v4164 = vld [vmem:[%s7 + $0x24] sm:$0xf]
  %v4165 = vld [vmem:[%s7 + $0x28] sm:$0xf]
  %v4166 = vld [vmem:[%s7 + $0x2c] sm:$0xf]
  %v4167 = vld [vmem:[%s7 + $0x30] sm:$0xf]
  %v4168 = vld [vmem:[%s7 + $0x34] sm:$0xf]
  %v4169 = vld [vmem:[%s7 + $0x38] sm:$0xf]
  %v4170 = vld [vmem:[%s7 + $0x3c] sm:$0xf]
  %v4171 = vld [vmem:[%s8] sm:$0x1]
  %v4173 = vlaneseq
  %v4174 = vshrl.u32 %v4173, 7
  %v4175 = vsub.s32 0, %v4174
  %v4176 = vrot.slane %v4171, %v4175
  %v4194 = vunpack.c.l.b16 %v4155
  %v4195 = vunpack.c.l.b16 %v4156
  %v4196 = vunpack.c.l.b16 %v4157
  %v4197 = vunpack.c.l.b16 %v4158
  %v4198 = vunpack.c.l.b16 %v4159
  %v4199 = vunpack.c.l.b16 %v4160
  %v4200 = vunpack.c.l.b16 %v4161
  %v4201 = vunpack.c.l.b16 %v4162
  %v4202 = vunpack.c.l.b16 %v4163
  %v4203 = vunpack.c.l.b16 %v4164
  %v4204 = vunpack.c.l.b16 %v4165
  %v4205 = vunpack.c.l.b16 %v4166
  %v4206 = vunpack.c.l.b16 %v4167
  %v4207 = vunpack.c.l.b16 %v4168
  %v4208 = vunpack.c.l.b16 %v4169
  %v4209 = vunpack.c.l.b16 %v4170
  %v4210 = vpack.c.b16 %v4195, %v4194
  %v4211 = vpack.c.b16 %v4197, %v4196
  %v4212 = vpack.c.b16 %v4199, %v4198
  %v4213 = vpack.c.b16 %v4201, %v4200
  %v4214 = vpack.c.b16 %v4203, %v4202
  %v4215 = vpack.c.b16 %v4205, %v4204
  %v4216 = vpack.c.b16 %v4207, %v4206
  %v4217 = vpack.c.b16 %v4209, %v4208
  %4226 = vmatprep.subr.bf16.mxu0 0
  %4227 = vmatpush1.bf16.msra.mxu0 %v4217
  %4228 = vmatprep.subr.bf16.mxu0 0
  %4229 = vmatpush1.bf16.msra.mxu0 %v4216
  %4230 = vmatprep.subr.bf16.mxu0 0
  %4231 = vmatpush1.bf16.msra.mxu0 %v4215
  %4232 = vmatprep.subr.bf16.mxu0 0
  %4233 = vmatpush1.bf16.msra.mxu0 %v4214
  %4234 = vmatprep.subr.bf16.mxu0 0
  %4235 = vmatpush1.bf16.msra.mxu0 %v4213
  %4236 = vmatprep.subr.bf16.mxu0 0
  %4237 = vmatpush1.bf16.msra.mxu0 %v4212
  %4238 = vmatprep.subr.bf16.mxu0 0
  %4239 = vmatpush1.bf16.msra.mxu0 %v4211
  %4240 = vmatprep.subr.bf16.mxu0 0
  %4241 = vmatpush1.bf16.msra.mxu0 %v4210
  %4242 = vmatprep.subr.bf16.mxu0 0
  %4243 = vmatpush2.bf16.msra.mxu0 0
  %4244 = vmatprep.subr.bf16.mxu0 0
  %4245 = vmatpush2.bf16.msra.mxu0 0
  %4246 = vmatprep.subr.bf16.mxu0 0
  %4247 = vmatpush2.bf16.msra.mxu0 0
  %4248 = vmatprep.subr.bf16.mxu0 0
  %4249 = vmatpush2.bf16.msra.mxu0 0
  %4250 = vmatprep.subr.bf16.mxu0 0
  %4251 = vmatpush2.bf16.msra.mxu0 0
  %4252 = vmatprep.subr.bf16.mxu0 0
  %4253 = vmatpush2.bf16.msra.mxu0 0
  %4254 = vmatprep.subr.bf16.mxu0 0
  %4255 = vmatpush2.bf16.msra.mxu0 0
  %4256 = vmatprep.subr.bf16.mxu0 0
  %4257 = vmatpush2.bf16.msra.mxu0 0
  %4258 = vmatprep.mubr.bf16.mxu0 0
  %4259 = vmatmul.mubr.bf16.gmra.mxu0 %v1623
  %v4260 = vpop.f32.mrf.mxu0
  %v4261 = vadd.f32 %v4176, %v4260
  %v4262 = vpop.f32.mrf.mxu0
  %v4263 = vpop.f32.mrf.mxu0
  %v4264 = vadd.f32 %v4176, %v4263
  %v4265 = vpop.f32.mrf.mxu0
  %4266 = vmatprep.mubr.bf16.mxu0 0
  %4267 = vmatmul.mubr.bf16.gmra.mxu0 %v1625
  %v4268 = vpop.f32.mrf.mxu0
  %v4269 = vadd.f32 %v4176, %v4268
  %v4270 = vpop.f32.mrf.mxu0
  %v4271 = vpop.f32.mrf.mxu0
  %v4272 = vadd.f32 %v4176, %v4271
  %v4273 = vpop.f32.mrf.mxu0
  %4274 = vmatprep.mubr.bf16.mxu0 0
  %4275 = vmatmul.mubr.bf16.gmra.mxu0 %v1627
  %v4276 = vpop.f32.mrf.mxu0
  %v4277 = vadd.f32 %v4176, %v4276
  %v4278 = vpop.f32.mrf.mxu0
  %v4279 = vpop.f32.mrf.mxu0
  %v4280 = vadd.f32 %v4176, %v4279
  %v4281 = vpop.f32.mrf.mxu0
  %4282 = vmatprep.mubr.bf16.mxu0 0
  %4283 = vmatmul.mubr.bf16.gmra.mxu0 %v1629
  %v4284 = vpop.f32.mrf.mxu0
  %v4285 = vadd.f32 %v4176, %v4284
  %v4286 = vpop.f32.mrf.mxu0
  %v4287 = vpop.f32.mrf.mxu0
  %v4288 = vadd.f32 %v4176, %v4287
  %v4289 = vpop.f32.mrf.mxu0
  %4290 = vmatprep.mubr.bf16.mxu0 0
  %4291 = vmatmul.mubr.bf16.gmra.mxu0 %v1631
  %v4292 = vpop.f32.mrf.mxu0
  %v4293 = vadd.f32 %v4176, %v4292
  %v4294 = vpop.f32.mrf.mxu0
  %v4295 = vpop.f32.mrf.mxu0
  %v4296 = vadd.f32 %v4176, %v4295
  %v4297 = vpop.f32.mrf.mxu0
  %4298 = vmatprep.mubr.bf16.mxu0 0
  %4299 = vmatmul.mubr.bf16.gmra.mxu0 %v1633
  %v4300 = vpop.f32.mrf.mxu0
  %v4301 = vadd.f32 %v4176, %v4300
  %v4302 = vpop.f32.mrf.mxu0
  %v4303 = vpop.f32.mrf.mxu0
  %v4304 = vadd.f32 %v4176, %v4303
  %v4305 = vpop.f32.mrf.mxu0
  %4306 = vmatprep.mubr.bf16.mxu0 0
  %4307 = vmatmul.mubr.bf16.gmra.mxu0 %v1635
  %v4308 = vpop.f32.mrf.mxu0
  %v4309 = vadd.f32 %v4176, %v4308
  %v4310 = vpop.f32.mrf.mxu0
  %v4311 = vpop.f32.mrf.mxu0
  %v4312 = vadd.f32 %v4176, %v4311
  %v4313 = vpop.f32.mrf.mxu0
  %4314 = vmatprep.mubr.bf16.mxu0 0
  %4315 = vmatmul.mubr.bf16.gmra.mxu0 %v1637
  %v4316 = vpop.f32.mrf.mxu0
  %v4317 = vadd.f32 %v4176, %v4316
  %v4318 = vpop.f32.mrf.mxu0
  %v4319 = vpop.f32.mrf.mxu0
  %v4320 = vadd.f32 %v4176, %v4319
  %v4321 = vpop.f32.mrf.mxu0
  %4322 = vmatprep.mubr.bf16.mxu0 0
  %4323 = vmatmul.mubr.bf16.gmra.mxu0 %v1639
  %v4324 = vpop.f32.mrf.mxu0
  %v4325 = vadd.f32 %v4176, %v4324
  %v4326 = vpop.f32.mrf.mxu0
  %v4327 = vpop.f32.mrf.mxu0
  %v4328 = vadd.f32 %v4176, %v4327
  %v4329 = vpop.f32.mrf.mxu0
  %4330 = vmatprep.mubr.bf16.mxu0 0
  %4331 = vmatmul.mubr.bf16.gmra.mxu0 %v1641
  %v4332 = vpop.f32.mrf.mxu0
  %v4333 = vadd.f32 %v4176, %v4332
  %v4334 = vpop.f32.mrf.mxu0
  %v4335 = vpop.f32.mrf.mxu0
  %v4336 = vadd.f32 %v4176, %v4335
  %v4337 = vpop.f32.mrf.mxu0
  %4338 = vmatprep.mubr.bf16.mxu0 0
  %4339 = vmatmul.mubr.bf16.gmra.mxu0 %v1643
  %v4340 = vpop.f32.mrf.mxu0
  %v4341 = vadd.f32 %v4176, %v4340
  %v4342 = vpop.f32.mrf.mxu0
  %v4343 = vpop.f32.mrf.mxu0
  %v4344 = vadd.f32 %v4176, %v4343
  %v4345 = vpop.f32.mrf.mxu0
  %4346 = vmatprep.mubr.bf16.mxu0 0
  %4347 = vmatmul.mubr.bf16.gmra.mxu0 %v1645
  %v4348 = vpop.f32.mrf.mxu0
  %v4349 = vadd.f32 %v4176, %v4348
  %v4350 = vpop.f32.mrf.mxu0
  %v4351 = vpop.f32.mrf.mxu0
  %v4352 = vadd.f32 %v4176, %v4351
  %v4353 = vpop.f32.mrf.mxu0
  %4354 = vmatprep.mubr.bf16.mxu0 0
  %4355 = vmatmul.mubr.bf16.gmra.mxu0 %v1647
  %v4356 = vpop.f32.mrf.mxu0
  %v4357 = vadd.f32 %v4176, %v4356
  %v4358 = vpop.f32.mrf.mxu0
  %v4359 = vpop.f32.mrf.mxu0
  %v4360 = vadd.f32 %v4176, %v4359
  %v4361 = vpop.f32.mrf.mxu0
  %4362 = vmatprep.mubr.bf16.mxu0 0
  %4363 = vmatmul.mubr.bf16.gmra.mxu0 %v1649
  %v4364 = vpop.f32.mrf.mxu0
  %v4365 = vadd.f32 %v4176, %v4364
  %v4366 = vpop.f32.mrf.mxu0
  %v4367 = vpop.f32.mrf.mxu0
  %v4368 = vadd.f32 %v4176, %v4367
  %v4369 = vpop.f32.mrf.mxu0
  %4370 = vmatprep.mubr.bf16.mxu0 0
  %4371 = vmatmul.mubr.bf16.gmra.mxu0 %v1651
  %v4372 = vpop.f32.mrf.mxu0
  %v4373 = vadd.f32 %v4176, %v4372
  %v4374 = vpop.f32.mrf.mxu0
  %v4375 = vpop.f32.mrf.mxu0
  %v4376 = vadd.f32 %v4176, %v4375
  %v4377 = vpop.f32.mrf.mxu0
  %4378 = vmatprep.mubr.bf16.mxu0 0
  %4379 = vmatmul.mubr.bf16.gmra.mxu0 %v1653
  %v4380 = vpop.f32.mrf.mxu0
  %v4381 = vadd.f32 %v4176, %v4380
  %v4382 = vpop.f32.mrf.mxu0
  %v4383 = vpop.f32.mrf.mxu0
  %v4384 = vadd.f32 %v4176, %v4383
  %v4385 = vpop.f32.mrf.mxu0
  %4386 = vmatprep.mubr.bf16.mxu0 0
  %4387 = vmatmul.mubr.bf16.gmra.mxu0 %v1655
  %v4388 = vpop.f32.mrf.mxu0
  %v4389 = vadd.f32 %v4176, %v4388
  %v4390 = vpop.f32.mrf.mxu0
  %v4391 = vpop.f32.mrf.mxu0
  %v4392 = vadd.f32 %v4176, %v4391
  %v4393 = vpop.f32.mrf.mxu0
  %4394 = vmatprep.mubr.bf16.mxu0 0
  %4395 = vmatmul.mubr.bf16.gmra.mxu0 %v1657
  %v4396 = vpop.f32.mrf.mxu0
  %v4397 = vadd.f32 %v4176, %v4396
  %v4398 = vpop.f32.mrf.mxu0
  %v4399 = vpop.f32.mrf.mxu0
  %v4400 = vadd.f32 %v4176, %v4399
  %v4401 = vpop.f32.mrf.mxu0
  %4402 = vmatprep.mubr.bf16.mxu0 0
  %4403 = vmatmul.mubr.bf16.gmra.mxu0 %v1659
  %v4404 = vpop.f32.mrf.mxu0
  %v4405 = vadd.f32 %v4176, %v4404
  %v4406 = vpop.f32.mrf.mxu0
  %v4407 = vpop.f32.mrf.mxu0
  %v4408 = vadd.f32 %v4176, %v4407
  %v4409 = vpop.f32.mrf.mxu0
  %4410 = vmatprep.mubr.bf16.mxu0 0
  %4411 = vmatmul.mubr.bf16.gmra.mxu0 %v1661
  %v4412 = vpop.f32.mrf.mxu0
  %v4413 = vadd.f32 %v4176, %v4412
  %v4414 = vpop.f32.mrf.mxu0
  %v4415 = vpop.f32.mrf.mxu0
  %v4416 = vadd.f32 %v4176, %v4415
  %v4417 = vpop.f32.mrf.mxu0
  %4418 = vmatprep.mubr.bf16.mxu0 0
  %4419 = vmatmul.mubr.bf16.gmra.mxu0 %v1663
  %v4420 = vpop.f32.mrf.mxu0
  %v4421 = vadd.f32 %v4176, %v4420
  %v4422 = vpop.f32.mrf.mxu0
  %v4423 = vpop.f32.mrf.mxu0
  %v4424 = vadd.f32 %v4176, %v4423
  %v4425 = vpop.f32.mrf.mxu0
  %4426 = vmatprep.mubr.bf16.mxu0 0
  %4427 = vmatmul.mubr.bf16.gmra.mxu0 %v1665
  %v4428 = vpop.f32.mrf.mxu0
  %v4429 = vadd.f32 %v4176, %v4428
  %v4430 = vpop.f32.mrf.mxu0
  %v4431 = vpop.f32.mrf.mxu0
  %v4432 = vadd.f32 %v4176, %v4431
  %v4433 = vpop.f32.mrf.mxu0
  %4434 = vmatprep.mubr.bf16.mxu0 0
  %4435 = vmatmul.mubr.bf16.gmra.mxu0 %v1667
  %v4436 = vpop.f32.mrf.mxu0
  %v4437 = vadd.f32 %v4176, %v4436
  %v4438 = vpop.f32.mrf.mxu0
  %v4439 = vpop.f32.mrf.mxu0
  %v4440 = vadd.f32 %v4176, %v4439
  %v4441 = vpop.f32.mrf.mxu0
  %4442 = vmatprep.mubr.bf16.mxu0 0
  %4443 = vmatmul.mubr.bf16.gmra.mxu0 %v1669
  %v4444 = vpop.f32.mrf.mxu0
  %v4445 = vadd.f32 %v4176, %v4444
  %v4446 = vpop.f32.mrf.mxu0
  %v4447 = vpop.f32.mrf.mxu0
  %v4448 = vadd.f32 %v4176, %v4447
  %v4449 = vpop.f32.mrf.mxu0
  %4450 = vmatprep.mubr.bf16.mxu0 0
  %4451 = vmatmul.mubr.bf16.gmra.mxu0 %v1671
  %v4452 = vpop.f32.mrf.mxu0
  %v4453 = vadd.f32 %v4176, %v4452
  %v4454 = vpop.f32.mrf.mxu0
  %v4455 = vpop.f32.mrf.mxu0
  %v4456 = vadd.f32 %v4176, %v4455
  %v4457 = vpop.f32.mrf.mxu0
  %4458 = vmatprep.mubr.bf16.mxu0 0
  %4459 = vmatmul.mubr.bf16.gmra.mxu0 %v1673
  %v4460 = vpop.f32.mrf.mxu0
  %v4461 = vadd.f32 %v4176, %v4460
  %v4462 = vpop.f32.mrf.mxu0
  %v4463 = vpop.f32.mrf.mxu0
  %v4464 = vadd.f32 %v4176, %v4463
  %v4465 = vpop.f32.mrf.mxu0
  %4466 = vmatprep.mubr.bf16.mxu0 0
  %4467 = vmatmul.mubr.bf16.gmra.mxu0 %v1675
  %v4468 = vpop.f32.mrf.mxu0
  %v4469 = vadd.f32 %v4176, %v4468
  %v4470 = vpop.f32.mrf.mxu0
  %v4471 = vpop.f32.mrf.mxu0
  %v4472 = vadd.f32 %v4176, %v4471
  %v4473 = vpop.f32.mrf.mxu0
  %4474 = vmatprep.mubr.bf16.mxu0 0
  %4475 = vmatmul.mubr.bf16.gmra.mxu0 %v1677
  %v4476 = vpop.f32.mrf.mxu0
  %v4477 = vadd.f32 %v4176, %v4476
  %v4478 = vpop.f32.mrf.mxu0
  %v4479 = vpop.f32.mrf.mxu0
  %v4480 = vadd.f32 %v4176, %v4479
  %v4481 = vpop.f32.mrf.mxu0
  %4482 = vmatprep.mubr.bf16.mxu0 0
  %4483 = vmatmul.mubr.bf16.gmra.mxu0 %v1679
  %v4484 = vpop.f32.mrf.mxu0
  %v4485 = vadd.f32 %v4176, %v4484
  %v4486 = vpop.f32.mrf.mxu0
  %v4487 = vpop.f32.mrf.mxu0
  %v4488 = vadd.f32 %v4176, %v4487
  %v4489 = vpop.f32.mrf.mxu0
  %4490 = vmatprep.mubr.bf16.mxu0 0
  %4491 = vmatmul.mubr.bf16.gmra.mxu0 %v1681
  %v4492 = vpop.f32.mrf.mxu0
  %v4493 = vadd.f32 %v4176, %v4492
  %v4494 = vpop.f32.mrf.mxu0
  %v4495 = vpop.f32.mrf.mxu0
  %v4496 = vadd.f32 %v4176, %v4495
  %v4497 = vpop.f32.mrf.mxu0
  %4498 = vmatprep.mubr.bf16.mxu0 0
  %4499 = vmatmul.mubr.bf16.gmra.mxu0 %v1683
  %v4500 = vpop.f32.mrf.mxu0
  %v4501 = vadd.f32 %v4176, %v4500
  %v4502 = vpop.f32.mrf.mxu0
  %v4503 = vpop.f32.mrf.mxu0
  %v4504 = vadd.f32 %v4176, %v4503
  %v4505 = vpop.f32.mrf.mxu0
  %4506 = vmatprep.mubr.bf16.mxu0 0
  %4507 = vmatmul.mubr.bf16.gmra.mxu0 %v1685
  %v4508 = vpop.f32.mrf.mxu0
  %v4509 = vadd.f32 %v4176, %v4508
  %v4510 = vpop.f32.mrf.mxu0
  %v4511 = vpop.f32.mrf.mxu0
  %v4512 = vadd.f32 %v4176, %v4511
  %v4513 = vpop.f32.mrf.mxu0
  %4514 = vmatprep.mubr.bf16.mxu0 0
  %4515 = vmatmul.mubr.bf16.gmra.mxu0 %v1687
  %v4516 = vpop.f32.mrf.mxu0
  %v4517 = vadd.f32 %v4176, %v4516
  %v4518 = vpop.f32.mrf.mxu0
  %v4519 = vpop.f32.mrf.mxu0
  %v4520 = vadd.f32 %v4176, %v4519
  %v4521 = vpop.f32.mrf.mxu0
  %4522 = vmatprep.mubr.bf16.mxu0 0
  %4523 = vmatmul.mubr.bf16.gmra.mxu0 %v1689
  %v4524 = vpop.f32.mrf.mxu0
  %v4525 = vadd.f32 %v4176, %v4524
  %v4526 = vpop.f32.mrf.mxu0
  %v4527 = vpop.f32.mrf.mxu0
  %v4528 = vadd.f32 %v4176, %v4527
  %v4529 = vpop.f32.mrf.mxu0
  %4530 = vmatprep.mubr.bf16.mxu0 0
  %4531 = vmatmul.mubr.bf16.gmra.mxu0 %v1691
  %v4532 = vpop.f32.mrf.mxu0
  %v4533 = vadd.f32 %v4176, %v4532
  %v4534 = vpop.f32.mrf.mxu0
  %v4535 = vpop.f32.mrf.mxu0
  %v4536 = vadd.f32 %v4176, %v4535
  %v4537 = vpop.f32.mrf.mxu0
  %4538 = vmatprep.mubr.bf16.mxu0 0
  %4539 = vmatmul.mubr.bf16.gmra.mxu0 %v1693
  %v4540 = vpop.f32.mrf.mxu0
  %v4541 = vadd.f32 %v4176, %v4540
  %v4542 = vpop.f32.mrf.mxu0
  %v4543 = vpop.f32.mrf.mxu0
  %v4544 = vadd.f32 %v4176, %v4543
  %v4545 = vpop.f32.mrf.mxu0
  %4546 = vmatprep.mubr.bf16.mxu0 0
  %4547 = vmatmul.mubr.bf16.gmra.mxu0 %v1695
  %v4548 = vpop.f32.mrf.mxu0
  %v4549 = vadd.f32 %v4176, %v4548
  %v4550 = vpop.f32.mrf.mxu0
  %v4551 = vpop.f32.mrf.mxu0
  %v4552 = vadd.f32 %v4176, %v4551
  %v4553 = vpop.f32.mrf.mxu0
  %4554 = vmatprep.mubr.bf16.mxu0 0
  %4555 = vmatmul.mubr.bf16.gmra.mxu0 %v1697
  %v4556 = vpop.f32.mrf.mxu0
  %v4557 = vadd.f32 %v4176, %v4556
  %v4558 = vpop.f32.mrf.mxu0
  %v4559 = vpop.f32.mrf.mxu0
  %v4560 = vadd.f32 %v4176, %v4559
  %v4561 = vpop.f32.mrf.mxu0
  %4562 = vmatprep.mubr.bf16.mxu0 0
  %4563 = vmatmul.mubr.bf16.gmra.mxu0 %v1699
  %v4564 = vpop.f32.mrf.mxu0
  %v4565 = vadd.f32 %v4176, %v4564
  %v4566 = vpop.f32.mrf.mxu0
  %v4567 = vpop.f32.mrf.mxu0
  %v4568 = vadd.f32 %v4176, %v4567
  %v4569 = vpop.f32.mrf.mxu0
  %4570 = vmatprep.mubr.bf16.mxu0 0
  %4571 = vmatmul.mubr.bf16.gmra.mxu0 %v1701
  %v4572 = vpop.f32.mrf.mxu0
  %v4573 = vadd.f32 %v4176, %v4572
  %v4574 = vpop.f32.mrf.mxu0
  %v4575 = vpop.f32.mrf.mxu0
  %v4576 = vadd.f32 %v4176, %v4575
  %v4577 = vpop.f32.mrf.mxu0
  %4578 = vmatprep.mubr.bf16.mxu0 0
  %4579 = vmatmul.mubr.bf16.gmra.mxu0 %v1703
  %v4580 = vpop.f32.mrf.mxu0
  %v4581 = vadd.f32 %v4176, %v4580
  %v4582 = vpop.f32.mrf.mxu0
  %v4583 = vpop.f32.mrf.mxu0
  %v4584 = vadd.f32 %v4176, %v4583
  %v4585 = vpop.f32.mrf.mxu0
  %4586 = vmatprep.mubr.bf16.mxu0 0
  %4587 = vmatmul.mubr.bf16.gmra.mxu0 %v1705
  %v4588 = vpop.f32.mrf.mxu0
  %v4589 = vadd.f32 %v4176, %v4588
  %v4590 = vpop.f32.mrf.mxu0
  %v4591 = vpop.f32.mrf.mxu0
  %v4592 = vadd.f32 %v4176, %v4591
  %v4593 = vpop.f32.mrf.mxu0
  %4594 = vmatprep.mubr.bf16.mxu0 0
  %4595 = vmatmul.mubr.bf16.gmra.mxu0 %v1707
  %v4596 = vpop.f32.mrf.mxu0
  %v4597 = vadd.f32 %v4176, %v4596
  %v4598 = vpop.f32.mrf.mxu0
  %v4599 = vpop.f32.mrf.mxu0
  %v4600 = vadd.f32 %v4176, %v4599
  %v4601 = vpop.f32.mrf.mxu0
  %4602 = vmatprep.mubr.bf16.mxu0 0
  %4603 = vmatmul.mubr.bf16.gmra.mxu0 %v1709
  %v4604 = vpop.f32.mrf.mxu0
  %v4605 = vadd.f32 %v4176, %v4604
  %v4606 = vpop.f32.mrf.mxu0
  %v4607 = vpop.f32.mrf.mxu0
  %v4608 = vadd.f32 %v4176, %v4607
  %v4609 = vpop.f32.mrf.mxu0
  %4610 = vmatprep.mubr.bf16.mxu0 0
  %4611 = vmatmul.mubr.bf16.gmra.mxu0 %v1711
  %v4612 = vpop.f32.mrf.mxu0
  %v4613 = vadd.f32 %v4176, %v4612
  %v4614 = vpop.f32.mrf.mxu0
  %v4615 = vpop.f32.mrf.mxu0
  %v4616 = vadd.f32 %v4176, %v4615
  %v4617 = vpop.f32.mrf.mxu0
  %4618 = vmatprep.mubr.bf16.mxu0 0
  %4619 = vmatmul.mubr.bf16.gmra.mxu0 %v1713
  %v4620 = vpop.f32.mrf.mxu0
  %v4621 = vadd.f32 %v4176, %v4620
  %v4622 = vpop.f32.mrf.mxu0
  %v4623 = vpop.f32.mrf.mxu0
  %v4624 = vadd.f32 %v4176, %v4623
  %v4625 = vpop.f32.mrf.mxu0
  %4626 = vmatprep.mubr.bf16.mxu0 0
  %4627 = vmatmul.mubr.bf16.gmra.mxu0 %v1715
  %v4628 = vpop.f32.mrf.mxu0
  %v4629 = vadd.f32 %v4176, %v4628
  %v4630 = vpop.f32.mrf.mxu0
  %v4631 = vpop.f32.mrf.mxu0
  %v4632 = vadd.f32 %v4176, %v4631
  %v4633 = vpop.f32.mrf.mxu0
  %4634 = vmatprep.mubr.bf16.mxu0 0
  %4635 = vmatmul.mubr.bf16.gmra.mxu0 %v1717
  %v4636 = vpop.f32.mrf.mxu0
  %v4637 = vadd.f32 %v4176, %v4636
  %v4638 = vpop.f32.mrf.mxu0
  %v4639 = vpop.f32.mrf.mxu0
  %v4640 = vadd.f32 %v4176, %v4639
  %v4641 = vpop.f32.mrf.mxu0
  %4642 = vdwg.mxu0
  %vm4643 = vcmp.ge.f32.partialorder %v4261, 0.0
  %vm4644 = vcmp.ge.f32.partialorder %v4264, 0.0
  %vm4645 = vcmp.ge.f32.partialorder %v4269, 0.0
  %vm4646 = vcmp.ge.f32.partialorder %v4272, 0.0
  %vm4647 = vcmp.ge.f32.partialorder %v4277, 0.0
  %vm4648 = vcmp.ge.f32.partialorder %v4280, 0.0
  %vm4649 = vcmp.ge.f32.partialorder %v4285, 0.0
  %vm4650 = vcmp.ge.f32.partialorder %v4288, 0.0
  %vm4651 = vcmp.ge.f32.partialorder %v4293, 0.0
  %vm4652 = vcmp.ge.f32.partialorder %v4296, 0.0
  %vm4653 = vcmp.ge.f32.partialorder %v4301, 0.0
  %vm4654 = vcmp.ge.f32.partialorder %v4304, 0.0
  %vm4655 = vcmp.ge.f32.partialorder %v4309, 0.0
  %vm4656 = vcmp.ge.f32.partialorder %v4312, 0.0
  %vm4657 = vcmp.ge.f32.partialorder %v4317, 0.0
  %vm4658 = vcmp.ge.f32.partialorder %v4320, 0.0
  %vm4659 = vcmp.ge.f32.partialorder %v4325, 0.0
  %vm4660 = vcmp.ge.f32.partialorder %v4328, 0.0
  %vm4661 = vcmp.ge.f32.partialorder %v4333, 0.0
  %vm4662 = vcmp.ge.f32.partialorder %v4336, 0.0
  %vm4663 = vcmp.ge.f32.partialorder %v4341, 0.0
  %vm4664 = vcmp.ge.f32.partialorder %v4344, 0.0
  %vm4665 = vcmp.ge.f32.partialorder %v4349, 0.0
  %vm4666 = vcmp.ge.f32.partialorder %v4352, 0.0
  %vm4667 = vcmp.ge.f32.partialorder %v4357, 0.0
  %vm4668 = vcmp.ge.f32.partialorder %v4360, 0.0
  %vm4669 = vcmp.ge.f32.partialorder %v4365, 0.0
  %vm4670 = vcmp.ge.f32.partialorder %v4368, 0.0
  %vm4671 = vcmp.ge.f32.partialorder %v4373, 0.0
  %vm4672 = vcmp.ge.f32.partialorder %v4376, 0.0
  %vm4673 = vcmp.ge.f32.partialorder %v4381, 0.0
  %vm4674 = vcmp.ge.f32.partialorder %v4384, 0.0
  %vm4675 = vcmp.ge.f32.partialorder %v4389, 0.0
  %vm4676 = vcmp.ge.f32.partialorder %v4392, 0.0
  %vm4677 = vcmp.ge.f32.partialorder %v4397, 0.0
  %vm4678 = vcmp.ge.f32.partialorder %v4400, 0.0
  %vm4679 = vcmp.ge.f32.partialorder %v4405, 0.0
  %vm4680 = vcmp.ge.f32.partialorder %v4408, 0.0
  %vm4681 = vcmp.ge.f32.partialorder %v4413, 0.0
  %vm4682 = vcmp.ge.f32.partialorder %v4416, 0.0
  %vm4683 = vcmp.ge.f32.partialorder %v4421, 0.0
  %vm4684 = vcmp.ge.f32.partialorder %v4424, 0.0
  %vm4685 = vcmp.ge.f32.partialorder %v4429, 0.0
  %vm4686 = vcmp.ge.f32.partialorder %v4432, 0.0
  %vm4687 = vcmp.ge.f32.partialorder %v4437, 0.0
  %vm4688 = vcmp.ge.f32.partialorder %v4440, 0.0
  %vm4689 = vcmp.ge.f32.partialorder %v4445, 0.0
  %vm4690 = vcmp.ge.f32.partialorder %v4448, 0.0
  %vm4691 = vcmp.ge.f32.partialorder %v4453, 0.0
  %vm4692 = vcmp.ge.f32.partialorder %v4456, 0.0
  %vm4693 = vcmp.ge.f32.partialorder %v4461, 0.0
  %vm4694 = vcmp.ge.f32.partialorder %v4464, 0.0
  %vm4695 = vcmp.ge.f32.partialorder %v4469, 0.0
  %vm4696 = vcmp.ge.f32.partialorder %v4472, 0.0
  %vm4697 = vcmp.ge.f32.partialorder %v4477, 0.0
  %vm4698 = vcmp.ge.f32.partialorder %v4480, 0.0
  %vm4699 = vcmp.ge.f32.partialorder %v4485, 0.0
  %vm4700 = vcmp.ge.f32.partialorder %v4488, 0.0
  %vm4701 = vcmp.ge.f32.partialorder %v4493, 0.0
  %vm4702 = vcmp.ge.f32.partialorder %v4496, 0.0
  %vm4703 = vcmp.ge.f32.partialorder %v4501, 0.0
  %vm4704 = vcmp.ge.f32.partialorder %v4504, 0.0
  %vm4705 = vcmp.ge.f32.partialorder %v4509, 0.0
  %vm4706 = vcmp.ge.f32.partialorder %v4512, 0.0
  %vm4707 = vcmp.ge.f32.partialorder %v4517, 0.0
  %vm4708 = vcmp.ge.f32.partialorder %v4520, 0.0
  %vm4709 = vcmp.ge.f32.partialorder %v4525, 0.0
  %vm4710 = vcmp.ge.f32.partialorder %v4528, 0.0
  %vm4711 = vcmp.ge.f32.partialorder %v4533, 0.0
  %vm4712 = vcmp.ge.f32.partialorder %v4536, 0.0
  %vm4713 = vcmp.ge.f32.partialorder %v4541, 0.0
  %vm4714 = vcmp.ge.f32.partialorder %v4544, 0.0
  %vm4715 = vcmp.ge.f32.partialorder %v4549, 0.0
  %vm4716 = vcmp.ge.f32.partialorder %v4552, 0.0
  %vm4717 = vcmp.ge.f32.partialorder %v4557, 0.0
  %vm4718 = vcmp.ge.f32.partialorder %v4560, 0.0
  %vm4719 = vcmp.ge.f32.partialorder %v4565, 0.0
  %vm4720 = vcmp.ge.f32.partialorder %v4568, 0.0
  %vm4721 = vcmp.ge.f32.partialorder %v4573, 0.0
  %vm4722 = vcmp.ge.f32.partialorder %v4576, 0.0
  %vm4723 = vcmp.ge.f32.partialorder %v4581, 0.0
  %vm4724 = vcmp.ge.f32.partialorder %v4584, 0.0
  %vm4725 = vcmp.ge.f32.partialorder %v4589, 0.0
  %vm4726 = vcmp.ge.f32.partialorder %v4592, 0.0
  %vm4727 = vcmp.ge.f32.partialorder %v4597, 0.0
  %vm4728 = vcmp.ge.f32.partialorder %v4600, 0.0
  %vm4729 = vcmp.ge.f32.partialorder %v4605, 0.0
  %vm4730 = vcmp.ge.f32.partialorder %v4608, 0.0
  %vm4731 = vcmp.ge.f32.partialorder %v4613, 0.0
  %vm4732 = vcmp.ge.f32.partialorder %v4616, 0.0
  %vm4733 = vcmp.ge.f32.partialorder %v4621, 0.0
  %vm4734 = vcmp.ge.f32.partialorder %v4624, 0.0
  %vm4735 = vcmp.ge.f32.partialorder %v4629, 0.0
  %vm4736 = vcmp.ge.f32.partialorder %v4632, 0.0
  %vm4737 = vcmp.ge.f32.partialorder %v4637, 0.0
  %vm4738 = vcmp.ge.f32.partialorder %v4640, 0.0
  %v4739 = vmul.f32 %v4261, 0.01
  %v4740 = vmul.f32 %v4264, 0.01
  %v4741 = vmul.f32 %v4269, 0.01
  %v4742 = vmul.f32 %v4272, 0.01
  %v4743 = vmul.f32 %v4277, 0.01
  %v4744 = vmul.f32 %v4280, 0.01
  %v4745 = vmul.f32 %v4285, 0.01
  %v4746 = vmul.f32 %v4288, 0.01
  %v4747 = vmul.f32 %v4293, 0.01
  %v4748 = vmul.f32 %v4296, 0.01
  %v4749 = vmul.f32 %v4301, 0.01
  %v4750 = vmul.f32 %v4304, 0.01
  %v4751 = vmul.f32 %v4309, 0.01
  %v4752 = vmul.f32 %v4312, 0.01
  %v4753 = vmul.f32 %v4317, 0.01
  %v4754 = vmul.f32 %v4320, 0.01
  %v4755 = vmul.f32 %v4325, 0.01
  %v4756 = vmul.f32 %v4328, 0.01
  %v4757 = vmul.f32 %v4333, 0.01
  %v4758 = vmul.f32 %v4336, 0.01
  %v4759 = vmul.f32 %v4341, 0.01
  %v4760 = vmul.f32 %v4344, 0.01
  %v4761 = vmul.f32 %v4349, 0.01
  %v4762 = vmul.f32 %v4352, 0.01
  %v4763 = vmul.f32 %v4357, 0.01
  %v4764 = vmul.f32 %v4360, 0.01
  %v4765 = vmul.f32 %v4365, 0.01
  %v4766 = vmul.f32 %v4368, 0.01
  %v4767 = vmul.f32 %v4373, 0.01
  %v4768 = vmul.f32 %v4376, 0.01
  %v4769 = vmul.f32 %v4381, 0.01
  %v4770 = vmul.f32 %v4384, 0.01
  %v4771 = vmul.f32 %v4389, 0.01
  %v4772 = vmul.f32 %v4392, 0.01
  %v4773 = vmul.f32 %v4397, 0.01
  %v4774 = vmul.f32 %v4400, 0.01
  %v4775 = vmul.f32 %v4405, 0.01
  %v4776 = vmul.f32 %v4408, 0.01
  %v4777 = vmul.f32 %v4413, 0.01
  %v4778 = vmul.f32 %v4416, 0.01
  %v4779 = vmul.f32 %v4421, 0.01
  %v4780 = vmul.f32 %v4424, 0.01
  %v4781 = vmul.f32 %v4429, 0.01
  %v4782 = vmul.f32 %v4432, 0.01
  %v4783 = vmul.f32 %v4437, 0.01
  %v4784 = vmul.f32 %v4440, 0.01
  %v4785 = vmul.f32 %v4445, 0.01
  %v4786 = vmul.f32 %v4448, 0.01
  %v4787 = vmul.f32 %v4453, 0.01
  %v4788 = vmul.f32 %v4456, 0.01
  %v4789 = vmul.f32 %v4461, 0.01
  %v4790 = vmul.f32 %v4464, 0.01
  %v4791 = vmul.f32 %v4469, 0.01
  %v4792 = vmul.f32 %v4472, 0.01
  %v4793 = vmul.f32 %v4477, 0.01
  %v4794 = vmul.f32 %v4480, 0.01
  %v4795 = vmul.f32 %v4485, 0.01
  %v4796 = vmul.f32 %v4488, 0.01
  %v4797 = vmul.f32 %v4493, 0.01
  %v4798 = vmul.f32 %v4496, 0.01
  %v4799 = vmul.f32 %v4501, 0.01
  %v4800 = vmul.f32 %v4504, 0.01
  %v4801 = vmul.f32 %v4509, 0.01
  %v4802 = vmul.f32 %v4512, 0.01
  %v4803 = vmul.f32 %v4517, 0.01
  %v4804 = vmul.f32 %v4520, 0.01
  %v4805 = vmul.f32 %v4525, 0.01
  %v4806 = vmul.f32 %v4528, 0.01
  %v4807 = vmul.f32 %v4533, 0.01
  %v4808 = vmul.f32 %v4536, 0.01
  %v4809 = vmul.f32 %v4541, 0.01
  %v4810 = vmul.f32 %v4544, 0.01
  %v4811 = vmul.f32 %v4549, 0.01
  %v4812 = vmul.f32 %v4552, 0.01
  %v4813 = vmul.f32 %v4557, 0.01
  %v4814 = vmul.f32 %v4560, 0.01
  %v4815 = vmul.f32 %v4565, 0.01
  %v4816 = vmul.f32 %v4568, 0.01
  %v4817 = vmul.f32 %v4573, 0.01
  %v4818 = vmul.f32 %v4576, 0.01
  %v4819 = vmul.f32 %v4581, 0.01
  %v4820 = vmul.f32 %v4584, 0.01
  %v4821 = vmul.f32 %v4589, 0.01
  %v4822 = vmul.f32 %v4592, 0.01
  %v4823 = vmul.f32 %v4597, 0.01
  %v4824 = vmul.f32 %v4600, 0.01
  %v4825 = vmul.f32 %v4605, 0.01
  %v4826 = vmul.f32 %v4608, 0.01
  %v4827 = vmul.f32 %v4613, 0.01
  %v4828 = vmul.f32 %v4616, 0.01
  %v4829 = vmul.f32 %v4621, 0.01
  %v4830 = vmul.f32 %v4624, 0.01
  %v4831 = vmul.f32 %v4629, 0.01
  %v4832 = vmul.f32 %v4632, 0.01
  %v4833 = vmul.f32 %v4637, 0.01
  %v4834 = vmul.f32 %v4640, 0.01
  %v4835 = vsel %vm4643, %v4261, %v4739
  %v4836 = vsel %vm4644, %v4264, %v4740
  %v4837 = vsel %vm4645, %v4269, %v4741
  %v4838 = vsel %vm4646, %v4272, %v4742
  %v4839 = vsel %vm4647, %v4277, %v4743
  %v4840 = vsel %vm4648, %v4280, %v4744
  %v4841 = vsel %vm4649, %v4285, %v4745
  %v4842 = vsel %vm4650, %v4288, %v4746
  %v4843 = vsel %vm4651, %v4293, %v4747
  %v4844 = vsel %vm4652, %v4296, %v4748
  %v4845 = vsel %vm4653, %v4301, %v4749
  %v4846 = vsel %vm4654, %v4304, %v4750
  %v4847 = vsel %vm4655, %v4309, %v4751
  %v4848 = vsel %vm4656, %v4312, %v4752
  %v4849 = vsel %vm4657, %v4317, %v4753
  %v4850 = vsel %vm4658, %v4320, %v4754
  %v4851 = vsel %vm4659, %v4325, %v4755
  %v4852 = vsel %vm4660, %v4328, %v4756
  %v4853 = vsel %vm4661, %v4333, %v4757
  %v4854 = vsel %vm4662, %v4336, %v4758
  %v4855 = vsel %vm4663, %v4341, %v4759
  %v4856 = vsel %vm4664, %v4344, %v4760
  %v4857 = vsel %vm4665, %v4349, %v4761
  %v4858 = vsel %vm4666, %v4352, %v4762
  %v4859 = vsel %vm4667, %v4357, %v4763
  %v4860 = vsel %vm4668, %v4360, %v4764
  %v4861 = vsel %vm4669, %v4365, %v4765
  %v4862 = vsel %vm4670, %v4368, %v4766
  %v4863 = vsel %vm4671, %v4373, %v4767
  %v4864 = vsel %vm4672, %v4376, %v4768
  %v4865 = vsel %vm4673, %v4381, %v4769
  %v4866 = vsel %vm4674, %v4384, %v4770
  %v4867 = vsel %vm4675, %v4389, %v4771
  %v4868 = vsel %vm4676, %v4392, %v4772
  %v4869 = vsel %vm4677, %v4397, %v4773
  %v4870 = vsel %vm4678, %v4400, %v4774
  %v4871 = vsel %vm4679, %v4405, %v4775
  %v4872 = vsel %vm4680, %v4408, %v4776
  %v4873 = vsel %vm4681, %v4413, %v4777
  %v4874 = vsel %vm4682, %v4416, %v4778
  %v4875 = vsel %vm4683, %v4421, %v4779
  %v4876 = vsel %vm4684, %v4424, %v4780
  %v4877 = vsel %vm4685, %v4429, %v4781
  %v4878 = vsel %vm4686, %v4432, %v4782
  %v4879 = vsel %vm4687, %v4437, %v4783
  %v4880 = vsel %vm4688, %v4440, %v4784
  %v4881 = vsel %vm4689, %v4445, %v4785
  %v4882 = vsel %vm4690, %v4448, %v4786
  %v4883 = vsel %vm4691, %v4453, %v4787
  %v4884 = vsel %vm4692, %v4456, %v4788
  %v4885 = vsel %vm4693, %v4461, %v4789
  %v4886 = vsel %vm4694, %v4464, %v4790
  %v4887 = vsel %vm4695, %v4469, %v4791
  %v4888 = vsel %vm4696, %v4472, %v4792
  %v4889 = vsel %vm4697, %v4477, %v4793
  %v4890 = vsel %vm4698, %v4480, %v4794
  %v4891 = vsel %vm4699, %v4485, %v4795
  %v4892 = vsel %vm4700, %v4488, %v4796
  %v4893 = vsel %vm4701, %v4493, %v4797
  %v4894 = vsel %vm4702, %v4496, %v4798
  %v4895 = vsel %vm4703, %v4501, %v4799
  %v4896 = vsel %vm4704, %v4504, %v4800
  %v4897 = vsel %vm4705, %v4509, %v4801
  %v4898 = vsel %vm4706, %v4512, %v4802
  %v4899 = vsel %vm4707, %v4517, %v4803
  %v4900 = vsel %vm4708, %v4520, %v4804
  %v4901 = vsel %vm4709, %v4525, %v4805
  %v4902 = vsel %vm4710, %v4528, %v4806
  %v4903 = vsel %vm4711, %v4533, %v4807
  %v4904 = vsel %vm4712, %v4536, %v4808
  %v4905 = vsel %vm4713, %v4541, %v4809
  %v4906 = vsel %vm4714, %v4544, %v4810
  %v4907 = vsel %vm4715, %v4549, %v4811
  %v4908 = vsel %vm4716, %v4552, %v4812
  %v4909 = vsel %vm4717, %v4557, %v4813
  %v4910 = vsel %vm4718, %v4560, %v4814
  %v4911 = vsel %vm4719, %v4565, %v4815
  %v4912 = vsel %vm4720, %v4568, %v4816
  %v4913 = vsel %vm4721, %v4573, %v4817
  %v4914 = vsel %vm4722, %v4576, %v4818
  %v4915 = vsel %vm4723, %v4581, %v4819
  %v4916 = vsel %vm4724, %v4584, %v4820
  %v4917 = vsel %vm4725, %v4589, %v4821
  %v4918 = vsel %vm4726, %v4592, %v4822
  %v4919 = vsel %vm4727, %v4597, %v4823
  %v4920 = vsel %vm4728, %v4600, %v4824
  %v4921 = vsel %vm4729, %v4605, %v4825
  %v4922 = vsel %vm4730, %v4608, %v4826
  %v4923 = vsel %vm4731, %v4613, %v4827
  %v4924 = vsel %vm4732, %v4616, %v4828
  %v4925 = vsel %vm4733, %v4621, %v4829
  %v4926 = vsel %vm4734, %v4624, %v4830
  %v4927 = vsel %vm4735, %v4629, %v4831
  %v4928 = vsel %vm4736, %v4632, %v4832
  %v4929 = vsel %vm4737, %v4637, %v4833
  %v4930 = vsel %vm4738, %v4640, %v4834
  %v4931 = vld [vmem:[%s9] sm:$0x1]
  %v4932 = vld [vmem:[%s10] sm:$0x1]
  %v4933 = vsel %vm2593, %v4835, 0.0
  %v4934 = vsel %vm2594, %v4836, 0.0
  %v4935 = vsel %vm2595, %v4837, 0.0
  %v4936 = vsel %vm2596, %v4838, 0.0
  %v4937 = vsel %vm2597, %v4839, 0.0
  %v4938 = vsel %vm2598, %v4840, 0.0
  %v4939 = vsel %vm2599, %v4841, 0.0
  %v4940 = vsel %vm2600, %v4842, 0.0
  %v4941 = vsel %vm2601, %v4843, 0.0
  %v4942 = vsel %vm2602, %v4844, 0.0
  %v4943 = vsel %vm2603, %v4845, 0.0
  %v4944 = vsel %vm2604, %v4846, 0.0
  %v4945 = vsel %vm2605, %v4847, 0.0
  %v4946 = vsel %vm2606, %v4848, 0.0
  %v4947 = vsel %vm2607, %v4849, 0.0
  %v4948 = vsel %vm2608, %v4850, 0.0
  %v4949 = vsel %vm2609, %v4851, 0.0
  %v4950 = vsel %vm2610, %v4852, 0.0
  %v4951 = vsel %vm2611, %v4853, 0.0
  %v4952 = vsel %vm2612, %v4854, 0.0
  %v4953 = vsel %vm2613, %v4855, 0.0
  %v4954 = vsel %vm2614, %v4856, 0.0
  %v4955 = vsel %vm2615, %v4857, 0.0
  %v4956 = vsel %vm2616, %v4858, 0.0
  %v4957 = vsel %vm2617, %v4859, 0.0
  %v4958 = vsel %vm2618, %v4860, 0.0
  %v4959 = vsel %vm2619, %v4861, 0.0
  %v4960 = vsel %vm2620, %v4862, 0.0
  %v4961 = vsel %vm2621, %v4863, 0.0
  %v4962 = vsel %vm2622, %v4864, 0.0
  %v4963 = vsel %vm2623, %v4865, 0.0
  %v4964 = vsel %vm2624, %v4866, 0.0
  %v4965 = vsel %vm2625, %v4867, 0.0
  %v4966 = vsel %vm2626, %v4868, 0.0
  %v4967 = vsel %vm2627, %v4869, 0.0
  %v4968 = vsel %vm2628, %v4870, 0.0
  %v4969 = vsel %vm2629, %v4871, 0.0
  %v4970 = vsel %vm2630, %v4872, 0.0
  %v4971 = vsel %vm2631, %v4873, 0.0
  %v4972 = vsel %vm2632, %v4874, 0.0
  %v4973 = vsel %vm2633, %v4875, 0.0
  %v4974 = vsel %vm2634, %v4876, 0.0
  %v4975 = vsel %vm2635, %v4877, 0.0
  %v4976 = vsel %vm2636, %v4878, 0.0
  %v4977 = vsel %vm2637, %v4879, 0.0
  %v4978 = vsel %vm2638, %v4880, 0.0
  %v4979 = vsel %vm2639, %v4881, 0.0
  %v4980 = vsel %vm2640, %v4882, 0.0
  %v4981 = vsel %vm2641, %v4883, 0.0
  %v4982 = vsel %vm2642, %v4884, 0.0
  %v4983 = vsel %vm2643, %v4885, 0.0
  %v4984 = vsel %vm2644, %v4886, 0.0
  %v4985 = vsel %vm2645, %v4887, 0.0
  %v4986 = vsel %vm2646, %v4888, 0.0
  %v4987 = vsel %vm2647, %v4889, 0.0
  %v4988 = vsel %vm2648, %v4890, 0.0
  %v4989 = vsel %vm2649, %v4891, 0.0
  %v4990 = vsel %vm2650, %v4892, 0.0
  %v4991 = vsel %vm2651, %v4893, 0.0
  %v4992 = vsel %vm2652, %v4894, 0.0
  %v4993 = vsel %vm2653, %v4895, 0.0
  %v4994 = vsel %vm2654, %v4896, 0.0
  %v4995 = vsel %vm2655, %v4897, 0.0
  %v4996 = vsel %vm2656, %v4898, 0.0
  %v4997 = vsel %vm2657, %v4899, 0.0
  %v4998 = vsel %vm2658, %v4900, 0.0
  %v4999 = vsel %vm2659, %v4901, 0.0
  %v5000 = vsel %vm2660, %v4902, 0.0
  %v5001 = vsel %vm2661, %v4903, 0.0
  %v5002 = vsel %vm2662, %v4904, 0.0
  %v5003 = vsel %vm2663, %v4905, 0.0
  %v5004 = vsel %vm2664, %v4906, 0.0
  %v5005 = vsel %vm2665, %v4907, 0.0
  %v5006 = vsel %vm2666, %v4908, 0.0
  %v5007 = vsel %vm2667, %v4909, 0.0
  %v5008 = vsel %vm2668, %v4910, 0.0
  %v5009 = vsel %vm2669, %v4911, 0.0
  %v5010 = vsel %vm2670, %v4912, 0.0
  %v5011 = vsel %vm2671, %v4913, 0.0
  %v5012 = vsel %vm2672, %v4914, 0.0
  %v5013 = vsel %vm2673, %v4915, 0.0
  %v5014 = vsel %vm2674, %v4916, 0.0
  %v5015 = vsel %vm2675, %v4917, 0.0
  %v5016 = vsel %vm2676, %v4918, 0.0
  %v5017 = vsel %vm2677, %v4919, 0.0
  %v5018 = vsel %vm2678, %v4920, 0.0
  %v5019 = vsel %vm2679, %v4921, 0.0
  %v5020 = vsel %vm2680, %v4922, 0.0
  %v5021 = vsel %vm2681, %v4923, 0.0
  %v5022 = vsel %vm2682, %v4924, 0.0
  %v5023 = vsel %vm2683, %v4925, 0.0
  %v5024 = vsel %vm2684, %v4926, 0.0
  %v5025 = vsel %vm2685, %v4927, 0.0
  %v5026 = vsel %vm2686, %v4928, 0.0
  %v5027 = vsel %vm2687, %v4929, 0.0
  %v5028 = vsel %vm2688, %v4930, 0.0
  %v5029 = vadd.f32 %v4933, %v4934
  %v5030 = vadd.f32 %v5029, %v4935
  %v5031 = vadd.f32 %v5030, %v4936
  %v5032 = vadd.f32 %v5031, %v4937
  %v5033 = vadd.f32 %v5032, %v4938
  %v5034 = vadd.f32 %v5033, %v4939
  %v5035 = vadd.f32 %v5034, %v4940
  %v5036 = vadd.f32 %v5035, %v4941
  %v5037 = vadd.f32 %v5036, %v4942
  %v5038 = vadd.f32 %v5037, %v4943
  %v5039 = vadd.f32 %v5038, %v4944
  %v5040 = vadd.f32 %v5039, %v4945
  %v5041 = vadd.f32 %v5040, %v4946
  %v5042 = vadd.f32 %v5041, %v4947
  %v5043 = vadd.f32 %v5042, %v4948
  %v5044 = vadd.f32 %v5043, %v4949
  %v5045 = vadd.f32 %v5044, %v4950
  %v5046 = vadd.f32 %v5045, %v4951
  %v5047 = vadd.f32 %v5046, %v4952
  %v5048 = vadd.f32 %v5047, %v4953
  %v5049 = vadd.f32 %v5048, %v4954
  %v5050 = vadd.f32 %v5049, %v4955
  %v5051 = vadd.f32 %v5050, %v4956
  %v5052 = vadd.f32 %v5051, %v4957
  %v5053 = vadd.f32 %v5052, %v4958
  %v5054 = vadd.f32 %v5053, %v4959
  %v5055 = vadd.f32 %v5054, %v4960
  %v5056 = vadd.f32 %v5055, %v4961
  %v5057 = vadd.f32 %v5056, %v4962
  %v5058 = vadd.f32 %v5057, %v4963
  %v5059 = vadd.f32 %v5058, %v4964
  %v5060 = vadd.f32 %v5059, %v4965
  %v5061 = vadd.f32 %v5060, %v4966
  %v5062 = vadd.f32 %v5061, %v4967
  %v5063 = vadd.f32 %v5062, %v4968
  %v5064 = vadd.f32 %v5063, %v4969
  %v5065 = vadd.f32 %v5064, %v4970
  %v5066 = vadd.f32 %v5065, %v4971
  %v5067 = vadd.f32 %v5066, %v4972
  %v5068 = vadd.f32 %v5067, %v4973
  %v5069 = vadd.f32 %v5068, %v4974
  %v5070 = vadd.f32 %v5069, %v4975
  %v5071 = vadd.f32 %v5070, %v4976
  %v5072 = vadd.f32 %v5071, %v4977
  %v5073 = vadd.f32 %v5072, %v4978
  %v5074 = vadd.f32 %v5073, %v4979
  %v5075 = vadd.f32 %v5074, %v4980
  %v5076 = vadd.f32 %v5075, %v4981
  %v5077 = vadd.f32 %v5076, %v4982
  %v5078 = vadd.f32 %v5077, %v4983
  %v5079 = vadd.f32 %v5078, %v4984
  %v5080 = vadd.f32 %v5079, %v4985
  %v5081 = vadd.f32 %v5080, %v4986
  %v5082 = vadd.f32 %v5081, %v4987
  %v5083 = vadd.f32 %v5082, %v4988
  %v5084 = vadd.f32 %v5083, %v4989
  %v5085 = vadd.f32 %v5084, %v4990
  %v5086 = vadd.f32 %v5085, %v4991
  %v5087 = vadd.f32 %v5086, %v4992
  %v5088 = vadd.f32 %v5087, %v4993
  %v5089 = vadd.f32 %v5088, %v4994
  %v5090 = vadd.f32 %v5089, %v4995
  %v5091 = vadd.f32 %v5090, %v4996
  %v5092 = vadd.f32 %v5091, %v4997
  %v5093 = vadd.f32 %v5092, %v4998
  %v5094 = vadd.f32 %v5093, %v4999
  %v5095 = vadd.f32 %v5094, %v5000
  %v5096 = vadd.f32 %v5095, %v5001
  %v5097 = vadd.f32 %v5096, %v5002
  %v5098 = vadd.f32 %v5097, %v5003
  %v5099 = vadd.f32 %v5098, %v5004
  %v5100 = vadd.f32 %v5099, %v5005
  %v5101 = vadd.f32 %v5100, %v5006
  %v5102 = vadd.f32 %v5101, %v5007
  %v5103 = vadd.f32 %v5102, %v5008
  %v5104 = vadd.f32 %v5103, %v5009
  %v5105 = vadd.f32 %v5104, %v5010
  %v5106 = vadd.f32 %v5105, %v5011
  %v5107 = vadd.f32 %v5106, %v5012
  %v5108 = vadd.f32 %v5107, %v5013
  %v5109 = vadd.f32 %v5108, %v5014
  %v5110 = vadd.f32 %v5109, %v5015
  %v5111 = vadd.f32 %v5110, %v5016
  %v5112 = vadd.f32 %v5111, %v5017
  %v5113 = vadd.f32 %v5112, %v5018
  %v5114 = vadd.f32 %v5113, %v5019
  %v5115 = vadd.f32 %v5114, %v5020
  %v5116 = vadd.f32 %v5115, %v5021
  %v5117 = vadd.f32 %v5116, %v5022
  %v5118 = vadd.f32 %v5117, %v5023
  %v5119 = vadd.f32 %v5118, %v5024
  %v5120 = vadd.f32 %v5119, %v5025
  %v5121 = vadd.f32 %v5120, %v5026
  %v5122 = vadd.f32 %v5121, %v5027
  %v5123 = vadd.f32 %v5122, %v5028
  %v5124 = vrot.slane %v5123, 4
  %v5125 = vadd.f32 %v5123, %v5124
  %v5126 = vrot.slane %v5125, 2
  %v5127 = vadd.f32 %v5125, %v5126
  %v5128 = vrot.slane %v5127, 1
  %v5129 = vadd.f32 %v5127, %v5128
  %v5130 = vmul.f32 %v5129, 0.0013157895
  %v5131 = vsub.f32 %v4835, %v5130
  %v5132 = vsub.f32 %v4836, %v5130
  %v5133 = vsub.f32 %v4837, %v5130
  %v5134 = vsub.f32 %v4838, %v5130
  %v5135 = vsub.f32 %v4839, %v5130
  %v5136 = vsub.f32 %v4840, %v5130
  %v5137 = vsub.f32 %v4841, %v5130
  %v5138 = vsub.f32 %v4842, %v5130
  %v5139 = vsub.f32 %v4843, %v5130
  %v5140 = vsub.f32 %v4844, %v5130
  %v5141 = vsub.f32 %v4845, %v5130
  %v5142 = vsub.f32 %v4846, %v5130
  %v5143 = vsub.f32 %v4847, %v5130
  %v5144 = vsub.f32 %v4848, %v5130
  %v5145 = vsub.f32 %v4849, %v5130
  %v5146 = vsub.f32 %v4850, %v5130
  %v5147 = vsub.f32 %v4851, %v5130
  %v5148 = vsub.f32 %v4852, %v5130
  %v5149 = vsub.f32 %v4853, %v5130
  %v5150 = vsub.f32 %v4854, %v5130
  %v5151 = vsub.f32 %v4855, %v5130
  %v5152 = vsub.f32 %v4856, %v5130
  %v5153 = vsub.f32 %v4857, %v5130
  %v5154 = vsub.f32 %v4858, %v5130
  %v5155 = vsub.f32 %v4859, %v5130
  %v5156 = vsub.f32 %v4860, %v5130
  %v5157 = vsub.f32 %v4861, %v5130
  %v5158 = vsub.f32 %v4862, %v5130
  %v5159 = vsub.f32 %v4863, %v5130
  %v5160 = vsub.f32 %v4864, %v5130
  %v5161 = vsub.f32 %v4865, %v5130
  %v5162 = vsub.f32 %v4866, %v5130
  %v5163 = vsub.f32 %v4867, %v5130
  %v5164 = vsub.f32 %v4868, %v5130
  %v5165 = vsub.f32 %v4869, %v5130
  %v5166 = vsub.f32 %v4870, %v5130
  %v5167 = vsub.f32 %v4871, %v5130
  %v5168 = vsub.f32 %v4872, %v5130
  %v5169 = vsub.f32 %v4873, %v5130
  %v5170 = vsub.f32 %v4874, %v5130
  %v5171 = vsub.f32 %v4875, %v5130
  %v5172 = vsub.f32 %v4876, %v5130
  %v5173 = vsub.f32 %v4877, %v5130
  %v5174 = vsub.f32 %v4878, %v5130
  %v5175 = vsub.f32 %v4879, %v5130
  %v5176 = vsub.f32 %v4880, %v5130
  %v5177 = vsub.f32 %v4881, %v5130
  %v5178 = vsub.f32 %v4882, %v5130
  %v5179 = vsub.f32 %v4883, %v5130
  %v5180 = vsub.f32 %v4884, %v5130
  %v5181 = vsub.f32 %v4885, %v5130
  %v5182 = vsub.f32 %v4886, %v5130
  %v5183 = vsub.f32 %v4887, %v5130
  %v5184 = vsub.f32 %v4888, %v5130
  %v5185 = vsub.f32 %v4889, %v5130
  %v5186 = vsub.f32 %v4890, %v5130
  %v5187 = vsub.f32 %v4891, %v5130
  %v5188 = vsub.f32 %v4892, %v5130
  %v5189 = vsub.f32 %v4893, %v5130
  %v5190 = vsub.f32 %v4894, %v5130
  %v5191 = vsub.f32 %v4895, %v5130
  %v5192 = vsub.f32 %v4896, %v5130
  %v5193 = vsub.f32 %v4897, %v5130
  %v5194 = vsub.f32 %v4898, %v5130
  %v5195 = vsub.f32 %v4899, %v5130
  %v5196 = vsub.f32 %v4900, %v5130
  %v5197 = vsub.f32 %v4901, %v5130
  %v5198 = vsub.f32 %v4902, %v5130
  %v5199 = vsub.f32 %v4903, %v5130
  %v5200 = vsub.f32 %v4904, %v5130
  %v5201 = vsub.f32 %v4905, %v5130
  %v5202 = vsub.f32 %v4906, %v5130
  %v5203 = vsub.f32 %v4907, %v5130
  %v5204 = vsub.f32 %v4908, %v5130
  %v5205 = vsub.f32 %v4909, %v5130
  %v5206 = vsub.f32 %v4910, %v5130
  %v5207 = vsub.f32 %v4911, %v5130
  %v5208 = vsub.f32 %v4912, %v5130
  %v5209 = vsub.f32 %v4913, %v5130
  %v5210 = vsub.f32 %v4914, %v5130
  %v5211 = vsub.f32 %v4915, %v5130
  %v5212 = vsub.f32 %v4916, %v5130
  %v5213 = vsub.f32 %v4917, %v5130
  %v5214 = vsub.f32 %v4918, %v5130
  %v5215 = vsub.f32 %v4919, %v5130
  %v5216 = vsub.f32 %v4920, %v5130
  %v5217 = vsub.f32 %v4921, %v5130
  %v5218 = vsub.f32 %v4922, %v5130
  %v5219 = vsub.f32 %v4923, %v5130
  %v5220 = vsub.f32 %v4924, %v5130
  %v5221 = vsub.f32 %v4925, %v5130
  %v5222 = vsub.f32 %v4926, %v5130
  %v5223 = vsub.f32 %v4927, %v5130
  %v5224 = vsub.f32 %v4928, %v5130
  %v5225 = vsub.f32 %v4929, %v5130
  %v5226 = vsub.f32 %v4930, %v5130
  %v5227 = vmul.f32 %v5131, %v5131
  %v5228 = vmul.f32 %v5132, %v5132
  %v5229 = vmul.f32 %v5133, %v5133
  %v5230 = vmul.f32 %v5134, %v5134
  %v5231 = vmul.f32 %v5135, %v5135
  %v5232 = vmul.f32 %v5136, %v5136
  %v5233 = vmul.f32 %v5137, %v5137
  %v5234 = vmul.f32 %v5138, %v5138
  %v5235 = vmul.f32 %v5139, %v5139
  %v5236 = vmul.f32 %v5140, %v5140
  %v5237 = vmul.f32 %v5141, %v5141
  %v5238 = vmul.f32 %v5142, %v5142
  %v5239 = vmul.f32 %v5143, %v5143
  %v5240 = vmul.f32 %v5144, %v5144
  %v5241 = vmul.f32 %v5145, %v5145
  %v5242 = vmul.f32 %v5146, %v5146
  %v5243 = vmul.f32 %v5147, %v5147
  %v5244 = vmul.f32 %v5148, %v5148
  %v5245 = vmul.f32 %v5149, %v5149
  %v5246 = vmul.f32 %v5150, %v5150
  %v5247 = vmul.f32 %v5151, %v5151
  %v5248 = vmul.f32 %v5152, %v5152
  %v5249 = vmul.f32 %v5153, %v5153
  %v5250 = vmul.f32 %v5154, %v5154
  %v5251 = vmul.f32 %v5155, %v5155
  %v5252 = vmul.f32 %v5156, %v5156
  %v5253 = vmul.f32 %v5157, %v5157
  %v5254 = vmul.f32 %v5158, %v5158
  %v5255 = vmul.f32 %v5159, %v5159
  %v5256 = vmul.f32 %v5160, %v5160
  %v5257 = vmul.f32 %v5161, %v5161
  %v5258 = vmul.f32 %v5162, %v5162
  %v5259 = vmul.f32 %v5163, %v5163
  %v5260 = vmul.f32 %v5164, %v5164
  %v5261 = vmul.f32 %v5165, %v5165
  %v5262 = vmul.f32 %v5166, %v5166
  %v5263 = vmul.f32 %v5167, %v5167
  %v5264 = vmul.f32 %v5168, %v5168
  %v5265 = vmul.f32 %v5169, %v5169
  %v5266 = vmul.f32 %v5170, %v5170
  %v5267 = vmul.f32 %v5171, %v5171
  %v5268 = vmul.f32 %v5172, %v5172
  %v5269 = vmul.f32 %v5173, %v5173
  %v5270 = vmul.f32 %v5174, %v5174
  %v5271 = vmul.f32 %v5175, %v5175
  %v5272 = vmul.f32 %v5176, %v5176
  %v5273 = vmul.f32 %v5177, %v5177
  %v5274 = vmul.f32 %v5178, %v5178
  %v5275 = vmul.f32 %v5179, %v5179
  %v5276 = vmul.f32 %v5180, %v5180
  %v5277 = vmul.f32 %v5181, %v5181
  %v5278 = vmul.f32 %v5182, %v5182
  %v5279 = vmul.f32 %v5183, %v5183
  %v5280 = vmul.f32 %v5184, %v5184
  %v5281 = vmul.f32 %v5185, %v5185
  %v5282 = vmul.f32 %v5186, %v5186
  %v5283 = vmul.f32 %v5187, %v5187
  %v5284 = vmul.f32 %v5188, %v5188
  %v5285 = vmul.f32 %v5189, %v5189
  %v5286 = vmul.f32 %v5190, %v5190
  %v5287 = vmul.f32 %v5191, %v5191
  %v5288 = vmul.f32 %v5192, %v5192
  %v5289 = vmul.f32 %v5193, %v5193
  %v5290 = vmul.f32 %v5194, %v5194
  %v5291 = vmul.f32 %v5195, %v5195
  %v5292 = vmul.f32 %v5196, %v5196
  %v5293 = vmul.f32 %v5197, %v5197
  %v5294 = vmul.f32 %v5198, %v5198
  %v5295 = vmul.f32 %v5199, %v5199
  %v5296 = vmul.f32 %v5200, %v5200
  %v5297 = vmul.f32 %v5201, %v5201
  %v5298 = vmul.f32 %v5202, %v5202
  %v5299 = vmul.f32 %v5203, %v5203
  %v5300 = vmul.f32 %v5204, %v5204
  %v5301 = vmul.f32 %v5205, %v5205
  %v5302 = vmul.f32 %v5206, %v5206
  %v5303 = vmul.f32 %v5207, %v5207
  %v5304 = vmul.f32 %v5208, %v5208
  %v5305 = vmul.f32 %v5209, %v5209
  %v5306 = vmul.f32 %v5210, %v5210
  %v5307 = vmul.f32 %v5211, %v5211
  %v5308 = vmul.f32 %v5212, %v5212
  %v5309 = vmul.f32 %v5213, %v5213
  %v5310 = vmul.f32 %v5214, %v5214
  %v5311 = vmul.f32 %v5215, %v5215
  %v5312 = vmul.f32 %v5216, %v5216
  %v5313 = vmul.f32 %v5217, %v5217
  %v5314 = vmul.f32 %v5218, %v5218
  %v5315 = vmul.f32 %v5219, %v5219
  %v5316 = vmul.f32 %v5220, %v5220
  %v5317 = vmul.f32 %v5221, %v5221
  %v5318 = vmul.f32 %v5222, %v5222
  %v5319 = vmul.f32 %v5223, %v5223
  %v5320 = vmul.f32 %v5224, %v5224
  %v5321 = vmul.f32 %v5225, %v5225
  %v5322 = vmul.f32 %v5226, %v5226
  %v5323 = vsel %vm2593, %v5227, 0.0
  %v5324 = vsel %vm2594, %v5228, 0.0
  %v5325 = vsel %vm2595, %v5229, 0.0
  %v5326 = vsel %vm2596, %v5230, 0.0
  %v5327 = vsel %vm2597, %v5231, 0.0
  %v5328 = vsel %vm2598, %v5232, 0.0
  %v5329 = vsel %vm2599, %v5233, 0.0
  %v5330 = vsel %vm2600, %v5234, 0.0
  %v5331 = vsel %vm2601, %v5235, 0.0
  %v5332 = vsel %vm2602, %v5236, 0.0
  %v5333 = vsel %vm2603, %v5237, 0.0
  %v5334 = vsel %vm2604, %v5238, 0.0
  %v5335 = vsel %vm2605, %v5239, 0.0
  %v5336 = vsel %vm2606, %v5240, 0.0
  %v5337 = vsel %vm2607, %v5241, 0.0
  %v5338 = vsel %vm2608, %v5242, 0.0
  %v5339 = vsel %vm2609, %v5243, 0.0
  %v5340 = vsel %vm2610, %v5244, 0.0
  %v5341 = vsel %vm2611, %v5245, 0.0
  %v5342 = vsel %vm2612, %v5246, 0.0
  %v5343 = vsel %vm2613, %v5247, 0.0
  %v5344 = vsel %vm2614, %v5248, 0.0
  %v5345 = vsel %vm2615, %v5249, 0.0
  %v5346 = vsel %vm2616, %v5250, 0.0
  %v5347 = vsel %vm2617, %v5251, 0.0
  %v5348 = vsel %vm2618, %v5252, 0.0
  %v5349 = vsel %vm2619, %v5253, 0.0
  %v5350 = vsel %vm2620, %v5254, 0.0
  %v5351 = vsel %vm2621, %v5255, 0.0
  %v5352 = vsel %vm2622, %v5256, 0.0
  %v5353 = vsel %vm2623, %v5257, 0.0
  %v5354 = vsel %vm2624, %v5258, 0.0
  %v5355 = vsel %vm2625, %v5259, 0.0
  %v5356 = vsel %vm2626, %v5260, 0.0
  %v5357 = vsel %vm2627, %v5261, 0.0
  %v5358 = vsel %vm2628, %v5262, 0.0
  %v5359 = vsel %vm2629, %v5263, 0.0
  %v5360 = vsel %vm2630, %v5264, 0.0
  %v5361 = vsel %vm2631, %v5265, 0.0
  %v5362 = vsel %vm2632, %v5266, 0.0
  %v5363 = vsel %vm2633, %v5267, 0.0
  %v5364 = vsel %vm2634, %v5268, 0.0
  %v5365 = vsel %vm2635, %v5269, 0.0
  %v5366 = vsel %vm2636, %v5270, 0.0
  %v5367 = vsel %vm2637, %v5271, 0.0
  %v5368 = vsel %vm2638, %v5272, 0.0
  %v5369 = vsel %vm2639, %v5273, 0.0
  %v5370 = vsel %vm2640, %v5274, 0.0
  %v5371 = vsel %vm2641, %v5275, 0.0
  %v5372 = vsel %vm2642, %v5276, 0.0
  %v5373 = vsel %vm2643, %v5277, 0.0
  %v5374 = vsel %vm2644, %v5278, 0.0
  %v5375 = vsel %vm2645, %v5279, 0.0
  %v5376 = vsel %vm2646, %v5280, 0.0
  %v5377 = vsel %vm2647, %v5281, 0.0
  %v5378 = vsel %vm2648, %v5282, 0.0
  %v5379 = vsel %vm2649, %v5283, 0.0
  %v5380 = vsel %vm2650, %v5284, 0.0
  %v5381 = vsel %vm2651, %v5285, 0.0
  %v5382 = vsel %vm2652, %v5286, 0.0
  %v5383 = vsel %vm2653, %v5287, 0.0
  %v5384 = vsel %vm2654, %v5288, 0.0
  %v5385 = vsel %vm2655, %v5289, 0.0
  %v5386 = vsel %vm2656, %v5290, 0.0
  %v5387 = vsel %vm2657, %v5291, 0.0
  %v5388 = vsel %vm2658, %v5292, 0.0
  %v5389 = vsel %vm2659, %v5293, 0.0
  %v5390 = vsel %vm2660, %v5294, 0.0
  %v5391 = vsel %vm2661, %v5295, 0.0
  %v5392 = vsel %vm2662, %v5296, 0.0
  %v5393 = vsel %vm2663, %v5297, 0.0
  %v5394 = vsel %vm2664, %v5298, 0.0
  %v5395 = vsel %vm2665, %v5299, 0.0
  %v5396 = vsel %vm2666, %v5300, 0.0
  %v5397 = vsel %vm2667, %v5301, 0.0
  %v5398 = vsel %vm2668, %v5302, 0.0
  %v5399 = vsel %vm2669, %v5303, 0.0
  %v5400 = vsel %vm2670, %v5304, 0.0
  %v5401 = vsel %vm2671, %v5305, 0.0
  %v5402 = vsel %vm2672, %v5306, 0.0
  %v5403 = vsel %vm2673, %v5307, 0.0
  %v5404 = vsel %vm2674, %v5308, 0.0
  %v5405 = vsel %vm2675, %v5309, 0.0
  %v5406 = vsel %vm2676, %v5310, 0.0
  %v5407 = vsel %vm2677, %v5311, 0.0
  %v5408 = vsel %vm2678, %v5312, 0.0
  %v5409 = vsel %vm2679, %v5313, 0.0
  %v5410 = vsel %vm2680, %v5314, 0.0
  %v5411 = vsel %vm2681, %v5315, 0.0
  %v5412 = vsel %vm2682, %v5316, 0.0
  %v5413 = vsel %vm2683, %v5317, 0.0
  %v5414 = vsel %vm2684, %v5318, 0.0
  %v5415 = vsel %vm2685, %v5319, 0.0
  %v5416 = vsel %vm2686, %v5320, 0.0
  %v5417 = vsel %vm2687, %v5321, 0.0
  %v5418 = vsel %vm2688, %v5322, 0.0
  %v5419 = vadd.f32 %v5323, %v5324
  %v5420 = vadd.f32 %v5419, %v5325
  %v5421 = vadd.f32 %v5420, %v5326
  %v5422 = vadd.f32 %v5421, %v5327
  %v5423 = vadd.f32 %v5422, %v5328
  %v5424 = vadd.f32 %v5423, %v5329
  %v5425 = vadd.f32 %v5424, %v5330
  %v5426 = vadd.f32 %v5425, %v5331
  %v5427 = vadd.f32 %v5426, %v5332
  %v5428 = vadd.f32 %v5427, %v5333
  %v5429 = vadd.f32 %v5428, %v5334
  %v5430 = vadd.f32 %v5429, %v5335
  %v5431 = vadd.f32 %v5430, %v5336
  %v5432 = vadd.f32 %v5431, %v5337
  %v5433 = vadd.f32 %v5432, %v5338
  %v5434 = vadd.f32 %v5433, %v5339
  %v5435 = vadd.f32 %v5434, %v5340
  %v5436 = vadd.f32 %v5435, %v5341
  %v5437 = vadd.f32 %v5436, %v5342
  %v5438 = vadd.f32 %v5437, %v5343
  %v5439 = vadd.f32 %v5438, %v5344
  %v5440 = vadd.f32 %v5439, %v5345
  %v5441 = vadd.f32 %v5440, %v5346
  %v5442 = vadd.f32 %v5441, %v5347
  %v5443 = vadd.f32 %v5442, %v5348
  %v5444 = vadd.f32 %v5443, %v5349
  %v5445 = vadd.f32 %v5444, %v5350
  %v5446 = vadd.f32 %v5445, %v5351
  %v5447 = vadd.f32 %v5446, %v5352
  %v5448 = vadd.f32 %v5447, %v5353
  %v5449 = vadd.f32 %v5448, %v5354
  %v5450 = vadd.f32 %v5449, %v5355
  %v5451 = vadd.f32 %v5450, %v5356
  %v5452 = vadd.f32 %v5451, %v5357
  %v5453 = vadd.f32 %v5452, %v5358
  %v5454 = vadd.f32 %v5453, %v5359
  %v5455 = vadd.f32 %v5454, %v5360
  %v5456 = vadd.f32 %v5455, %v5361
  %v5457 = vadd.f32 %v5456, %v5362
  %v5458 = vadd.f32 %v5457, %v5363
  %v5459 = vadd.f32 %v5458, %v5364
  %v5460 = vadd.f32 %v5459, %v5365
  %v5461 = vadd.f32 %v5460, %v5366
  %v5462 = vadd.f32 %v5461, %v5367
  %v5463 = vadd.f32 %v5462, %v5368
  %v5464 = vadd.f32 %v5463, %v5369
  %v5465 = vadd.f32 %v5464, %v5370
  %v5466 = vadd.f32 %v5465, %v5371
  %v5467 = vadd.f32 %v5466, %v5372
  %v5468 = vadd.f32 %v5467, %v5373
  %v5469 = vadd.f32 %v5468, %v5374
  %v5470 = vadd.f32 %v5469, %v5375
  %v5471 = vadd.f32 %v5470, %v5376
  %v5472 = vadd.f32 %v5471, %v5377
  %v5473 = vadd.f32 %v5472, %v5378
  %v5474 = vadd.f32 %v5473, %v5379
  %v5475 = vadd.f32 %v5474, %v5380
  %v5476 = vadd.f32 %v5475, %v5381
  %v5477 = vadd.f32 %v5476, %v5382
  %v5478 = vadd.f32 %v5477, %v5383
  %v5479 = vadd.f32 %v5478, %v5384
  %v5480 = vadd.f32 %v5479, %v5385
  %v5481 = vadd.f32 %v5480, %v5386
  %v5482 = vadd.f32 %v5481, %v5387
  %v5483 = vadd.f32 %v5482, %v5388
  %v5484 = vadd.f32 %v5483, %v5389
  %v5485 = vadd.f32 %v5484, %v5390
  %v5486 = vadd.f32 %v5485, %v5391
  %v5487 = vadd.f32 %v5486, %v5392
  %v5488 = vadd.f32 %v5487, %v5393
  %v5489 = vadd.f32 %v5488, %v5394
  %v5490 = vadd.f32 %v5489, %v5395
  %v5491 = vadd.f32 %v5490, %v5396
  %v5492 = vadd.f32 %v5491, %v5397
  %v5493 = vadd.f32 %v5492, %v5398
  %v5494 = vadd.f32 %v5493, %v5399
  %v5495 = vadd.f32 %v5494, %v5400
  %v5496 = vadd.f32 %v5495, %v5401
  %v5497 = vadd.f32 %v5496, %v5402
  %v5498 = vadd.f32 %v5497, %v5403
  %v5499 = vadd.f32 %v5498, %v5404
  %v5500 = vadd.f32 %v5499, %v5405
  %v5501 = vadd.f32 %v5500, %v5406
  %v5502 = vadd.f32 %v5501, %v5407
  %v5503 = vadd.f32 %v5502, %v5408
  %v5504 = vadd.f32 %v5503, %v5409
  %v5505 = vadd.f32 %v5504, %v5410
  %v5506 = vadd.f32 %v5505, %v5411
  %v5507 = vadd.f32 %v5506, %v5412
  %v5508 = vadd.f32 %v5507, %v5413
  %v5509 = vadd.f32 %v5508, %v5414
  %v5510 = vadd.f32 %v5509, %v5415
  %v5511 = vadd.f32 %v5510, %v5416
  %v5512 = vadd.f32 %v5511, %v5417
  %v5513 = vadd.f32 %v5512, %v5418
  %v5514 = vrot.slane %v5513, 4
  %v5515 = vadd.f32 %v5513, %v5514
  %v5516 = vrot.slane %v5515, 2
  %v5517 = vadd.f32 %v5515, %v5516
  %v5518 = vrot.slane %v5517, 1
  %v5519 = vadd.f32 %v5517, %v5518
  %v5520 = vmul.f32 %v5519, 0.0013157895
  %v5521 = vadd.f32 %v5520, 1e-05
  %v5522 = vrsqrt.pop %v5521
  %v5523 = vmul.f32 %v5131, %v5522
  %v5524 = vmul.f32 %v5132, %v5522
  %v5525 = vmul.f32 %v5133, %v5522
  %v5526 = vmul.f32 %v5134, %v5522
  %v5527 = vmul.f32 %v5135, %v5522
  %v5528 = vmul.f32 %v5136, %v5522
  %v5529 = vmul.f32 %v5137, %v5522
  %v5530 = vmul.f32 %v5138, %v5522
  %v5531 = vmul.f32 %v5139, %v5522
  %v5532 = vmul.f32 %v5140, %v5522
  %v5533 = vmul.f32 %v5141, %v5522
  %v5534 = vmul.f32 %v5142, %v5522
  %v5535 = vmul.f32 %v5143, %v5522
  %v5536 = vmul.f32 %v5144, %v5522
  %v5537 = vmul.f32 %v5145, %v5522
  %v5538 = vmul.f32 %v5146, %v5522
  %v5539 = vmul.f32 %v5147, %v5522
  %v5540 = vmul.f32 %v5148, %v5522
  %v5541 = vmul.f32 %v5149, %v5522
  %v5542 = vmul.f32 %v5150, %v5522
  %v5543 = vmul.f32 %v5151, %v5522
  %v5544 = vmul.f32 %v5152, %v5522
  %v5545 = vmul.f32 %v5153, %v5522
  %v5546 = vmul.f32 %v5154, %v5522
  %v5547 = vmul.f32 %v5155, %v5522
  %v5548 = vmul.f32 %v5156, %v5522
  %v5549 = vmul.f32 %v5157, %v5522
  %v5550 = vmul.f32 %v5158, %v5522
  %v5551 = vmul.f32 %v5159, %v5522
  %v5552 = vmul.f32 %v5160, %v5522
  %v5553 = vmul.f32 %v5161, %v5522
  %v5554 = vmul.f32 %v5162, %v5522
  %v5555 = vmul.f32 %v5163, %v5522
  %v5556 = vmul.f32 %v5164, %v5522
  %v5557 = vmul.f32 %v5165, %v5522
  %v5558 = vmul.f32 %v5166, %v5522
  %v5559 = vmul.f32 %v5167, %v5522
  %v5560 = vmul.f32 %v5168, %v5522
  %v5561 = vmul.f32 %v5169, %v5522
  %v5562 = vmul.f32 %v5170, %v5522
  %v5563 = vmul.f32 %v5171, %v5522
  %v5564 = vmul.f32 %v5172, %v5522
  %v5565 = vmul.f32 %v5173, %v5522
  %v5566 = vmul.f32 %v5174, %v5522
  %v5567 = vmul.f32 %v5175, %v5522
  %v5568 = vmul.f32 %v5176, %v5522
  %v5569 = vmul.f32 %v5177, %v5522
  %v5570 = vmul.f32 %v5178, %v5522
  %v5571 = vmul.f32 %v5179, %v5522
  %v5572 = vmul.f32 %v5180, %v5522
  %v5573 = vmul.f32 %v5181, %v5522
  %v5574 = vmul.f32 %v5182, %v5522
  %v5575 = vmul.f32 %v5183, %v5522
  %v5576 = vmul.f32 %v5184, %v5522
  %v5577 = vmul.f32 %v5185, %v5522
  %v5578 = vmul.f32 %v5186, %v5522
  %v5579 = vmul.f32 %v5187, %v5522
  %v5580 = vmul.f32 %v5188, %v5522
  %v5581 = vmul.f32 %v5189, %v5522
  %v5582 = vmul.f32 %v5190, %v5522
  %v5583 = vmul.f32 %v5191, %v5522
  %v5584 = vmul.f32 %v5192, %v5522
  %v5585 = vmul.f32 %v5193, %v5522
  %v5586 = vmul.f32 %v5194, %v5522
  %v5587 = vmul.f32 %v5195, %v5522
  %v5588 = vmul.f32 %v5196, %v5522
  %v5589 = vmul.f32 %v5197, %v5522
  %v5590 = vmul.f32 %v5198, %v5522
  %v5591 = vmul.f32 %v5199, %v5522
  %v5592 = vmul.f32 %v5200, %v5522
  %v5593 = vmul.f32 %v5201, %v5522
  %v5594 = vmul.f32 %v5202, %v5522
  %v5595 = vmul.f32 %v5203, %v5522
  %v5596 = vmul.f32 %v5204, %v5522
  %v5597 = vmul.f32 %v5205, %v5522
  %v5598 = vmul.f32 %v5206, %v5522
  %v5599 = vmul.f32 %v5207, %v5522
  %v5600 = vmul.f32 %v5208, %v5522
  %v5601 = vmul.f32 %v5209, %v5522
  %v5602 = vmul.f32 %v5210, %v5522
  %v5603 = vmul.f32 %v5211, %v5522
  %v5604 = vmul.f32 %v5212, %v5522
  %v5605 = vmul.f32 %v5213, %v5522
  %v5606 = vmul.f32 %v5214, %v5522
  %v5607 = vmul.f32 %v5215, %v5522
  %v5608 = vmul.f32 %v5216, %v5522
  %v5609 = vmul.f32 %v5217, %v5522
  %v5610 = vmul.f32 %v5218, %v5522
  %v5611 = vmul.f32 %v5219, %v5522
  %v5612 = vmul.f32 %v5220, %v5522
  %v5613 = vmul.f32 %v5221, %v5522
  %v5614 = vmul.f32 %v5222, %v5522
  %v5615 = vmul.f32 %v5223, %v5522
  %v5616 = vmul.f32 %v5224, %v5522
  %v5617 = vmul.f32 %v5225, %v5522
  %v5618 = vmul.f32 %v5226, %v5522
  %v5620 = vlaneseq
  %v5621 = vshrl.u32 %v5620, 7
  %v5622 = vsub.s32 0, %v5621
  %v5623 = vrot.slane %v4931, %v5622
  %v5625 = vmul.f32 %v5523, %v5623
  %v5626 = vmul.f32 %v5524, %v5623
  %v5627 = vmul.f32 %v5525, %v5623
  %v5628 = vmul.f32 %v5526, %v5623
  %v5629 = vmul.f32 %v5527, %v5623
  %v5630 = vmul.f32 %v5528, %v5623
  %v5631 = vmul.f32 %v5529, %v5623
  %v5632 = vmul.f32 %v5530, %v5623
  %v5633 = vmul.f32 %v5531, %v5623
  %v5634 = vmul.f32 %v5532, %v5623
  %v5635 = vmul.f32 %v5533, %v5623
  %v5636 = vmul.f32 %v5534, %v5623
  %v5637 = vmul.f32 %v5535, %v5623
  %v5638 = vmul.f32 %v5536, %v5623
  %v5639 = vmul.f32 %v5537, %v5623
  %v5640 = vmul.f32 %v5538, %v5623
  %v5641 = vmul.f32 %v5539, %v5623
  %v5642 = vmul.f32 %v5540, %v5623
  %v5643 = vmul.f32 %v5541, %v5623
  %v5644 = vmul.f32 %v5542, %v5623
  %v5645 = vmul.f32 %v5543, %v5623
  %v5646 = vmul.f32 %v5544, %v5623
  %v5647 = vmul.f32 %v5545, %v5623
  %v5648 = vmul.f32 %v5546, %v5623
  %v5649 = vmul.f32 %v5547, %v5623
  %v5650 = vmul.f32 %v5548, %v5623
  %v5651 = vmul.f32 %v5549, %v5623
  %v5652 = vmul.f32 %v5550, %v5623
  %v5653 = vmul.f32 %v5551, %v5623
  %v5654 = vmul.f32 %v5552, %v5623
  %v5655 = vmul.f32 %v5553, %v5623
  %v5656 = vmul.f32 %v5554, %v5623
  %v5657 = vmul.f32 %v5555, %v5623
  %v5658 = vmul.f32 %v5556, %v5623
  %v5659 = vmul.f32 %v5557, %v5623
  %v5660 = vmul.f32 %v5558, %v5623
  %v5661 = vmul.f32 %v5559, %v5623
  %v5662 = vmul.f32 %v5560, %v5623
  %v5663 = vmul.f32 %v5561, %v5623
  %v5664 = vmul.f32 %v5562, %v5623
  %v5665 = vmul.f32 %v5563, %v5623
  %v5666 = vmul.f32 %v5564, %v5623
  %v5667 = vmul.f32 %v5565, %v5623
  %v5668 = vmul.f32 %v5566, %v5623
  %v5669 = vmul.f32 %v5567, %v5623
  %v5670 = vmul.f32 %v5568, %v5623
  %v5671 = vmul.f32 %v5569, %v5623
  %v5672 = vmul.f32 %v5570, %v5623
  %v5673 = vmul.f32 %v5571, %v5623
  %v5674 = vmul.f32 %v5572, %v5623
  %v5675 = vmul.f32 %v5573, %v5623
  %v5676 = vmul.f32 %v5574, %v5623
  %v5677 = vmul.f32 %v5575, %v5623
  %v5678 = vmul.f32 %v5576, %v5623
  %v5679 = vmul.f32 %v5577, %v5623
  %v5680 = vmul.f32 %v5578, %v5623
  %v5681 = vmul.f32 %v5579, %v5623
  %v5682 = vmul.f32 %v5580, %v5623
  %v5683 = vmul.f32 %v5581, %v5623
  %v5684 = vmul.f32 %v5582, %v5623
  %v5685 = vmul.f32 %v5583, %v5623
  %v5686 = vmul.f32 %v5584, %v5623
  %v5687 = vmul.f32 %v5585, %v5623
  %v5688 = vmul.f32 %v5586, %v5623
  %v5689 = vmul.f32 %v5587, %v5623
  %v5690 = vmul.f32 %v5588, %v5623
  %v5691 = vmul.f32 %v5589, %v5623
  %v5692 = vmul.f32 %v5590, %v5623
  %v5693 = vmul.f32 %v5591, %v5623
  %v5694 = vmul.f32 %v5592, %v5623
  %v5695 = vmul.f32 %v5593, %v5623
  %v5696 = vmul.f32 %v5594, %v5623
  %v5697 = vmul.f32 %v5595, %v5623
  %v5698 = vmul.f32 %v5596, %v5623
  %v5699 = vmul.f32 %v5597, %v5623
  %v5700 = vmul.f32 %v5598, %v5623
  %v5701 = vmul.f32 %v5599, %v5623
  %v5702 = vmul.f32 %v5600, %v5623
  %v5703 = vmul.f32 %v5601, %v5623
  %v5704 = vmul.f32 %v5602, %v5623
  %v5705 = vmul.f32 %v5603, %v5623
  %v5706 = vmul.f32 %v5604, %v5623
  %v5707 = vmul.f32 %v5605, %v5623
  %v5708 = vmul.f32 %v5606, %v5623
  %v5709 = vmul.f32 %v5607, %v5623
  %v5710 = vmul.f32 %v5608, %v5623
  %v5711 = vmul.f32 %v5609, %v5623
  %v5712 = vmul.f32 %v5610, %v5623
  %v5713 = vmul.f32 %v5611, %v5623
  %v5714 = vmul.f32 %v5612, %v5623
  %v5715 = vmul.f32 %v5613, %v5623
  %v5716 = vmul.f32 %v5614, %v5623
  %v5717 = vmul.f32 %v5615, %v5623
  %v5718 = vmul.f32 %v5616, %v5623
  %v5719 = vmul.f32 %v5617, %v5623
  %v5720 = vmul.f32 %v5618, %v5623
  %v5722 = vlaneseq
  %v5723 = vshrl.u32 %v5722, 7
  %v5724 = vsub.s32 0, %v5723
  %v5725 = vrot.slane %v4932, %v5724
  %v5727 = vadd.f32 %v5625, %v5725
  %v5728 = vadd.f32 %v5626, %v5725
  %v5729 = vadd.f32 %v5627, %v5725
  %v5730 = vadd.f32 %v5628, %v5725
  %v5731 = vadd.f32 %v5629, %v5725
  %v5732 = vadd.f32 %v5630, %v5725
  %v5733 = vadd.f32 %v5631, %v5725
  %v5734 = vadd.f32 %v5632, %v5725
  %v5735 = vadd.f32 %v5633, %v5725
  %v5736 = vadd.f32 %v5634, %v5725
  %v5737 = vadd.f32 %v5635, %v5725
  %v5738 = vadd.f32 %v5636, %v5725
  %v5739 = vadd.f32 %v5637, %v5725
  %v5740 = vadd.f32 %v5638, %v5725
  %v5741 = vadd.f32 %v5639, %v5725
  %v5742 = vadd.f32 %v5640, %v5725
  %v5743 = vadd.f32 %v5641, %v5725
  %v5744 = vadd.f32 %v5642, %v5725
  %v5745 = vadd.f32 %v5643, %v5725
  %v5746 = vadd.f32 %v5644, %v5725
  %v5747 = vadd.f32 %v5645, %v5725
  %v5748 = vadd.f32 %v5646, %v5725
  %v5749 = vadd.f32 %v5647, %v5725
  %v5750 = vadd.f32 %v5648, %v5725
  %v5751 = vadd.f32 %v5649, %v5725
  %v5752 = vadd.f32 %v5650, %v5725
  %v5753 = vadd.f32 %v5651, %v5725
  %v5754 = vadd.f32 %v5652, %v5725
  %v5755 = vadd.f32 %v5653, %v5725
  %v5756 = vadd.f32 %v5654, %v5725
  %v5757 = vadd.f32 %v5655, %v5725
  %v5758 = vadd.f32 %v5656, %v5725
  %v5759 = vadd.f32 %v5657, %v5725
  %v5760 = vadd.f32 %v5658, %v5725
  %v5761 = vadd.f32 %v5659, %v5725
  %v5762 = vadd.f32 %v5660, %v5725
  %v5763 = vadd.f32 %v5661, %v5725
  %v5764 = vadd.f32 %v5662, %v5725
  %v5765 = vadd.f32 %v5663, %v5725
  %v5766 = vadd.f32 %v5664, %v5725
  %v5767 = vadd.f32 %v5665, %v5725
  %v5768 = vadd.f32 %v5666, %v5725
  %v5769 = vadd.f32 %v5667, %v5725
  %v5770 = vadd.f32 %v5668, %v5725
  %v5771 = vadd.f32 %v5669, %v5725
  %v5772 = vadd.f32 %v5670, %v5725
  %v5773 = vadd.f32 %v5671, %v5725
  %v5774 = vadd.f32 %v5672, %v5725
  %v5775 = vadd.f32 %v5673, %v5725
  %v5776 = vadd.f32 %v5674, %v5725
  %v5777 = vadd.f32 %v5675, %v5725
  %v5778 = vadd.f32 %v5676, %v5725
  %v5779 = vadd.f32 %v5677, %v5725
  %v5780 = vadd.f32 %v5678, %v5725
  %v5781 = vadd.f32 %v5679, %v5725
  %v5782 = vadd.f32 %v5680, %v5725
  %v5783 = vadd.f32 %v5681, %v5725
  %v5784 = vadd.f32 %v5682, %v5725
  %v5785 = vadd.f32 %v5683, %v5725
  %v5786 = vadd.f32 %v5684, %v5725
  %v5787 = vadd.f32 %v5685, %v5725
  %v5788 = vadd.f32 %v5686, %v5725
  %v5789 = vadd.f32 %v5687, %v5725
  %v5790 = vadd.f32 %v5688, %v5725
  %v5791 = vadd.f32 %v5689, %v5725
  %v5792 = vadd.f32 %v5690, %v5725
  %v5793 = vadd.f32 %v5691, %v5725
  %v5794 = vadd.f32 %v5692, %v5725
  %v5795 = vadd.f32 %v5693, %v5725
  %v5796 = vadd.f32 %v5694, %v5725
  %v5797 = vadd.f32 %v5695, %v5725
  %v5798 = vadd.f32 %v5696, %v5725
  %v5799 = vadd.f32 %v5697, %v5725
  %v5800 = vadd.f32 %v5698, %v5725
  %v5801 = vadd.f32 %v5699, %v5725
  %v5802 = vadd.f32 %v5700, %v5725
  %v5803 = vadd.f32 %v5701, %v5725
  %v5804 = vadd.f32 %v5702, %v5725
  %v5805 = vadd.f32 %v5703, %v5725
  %v5806 = vadd.f32 %v5704, %v5725
  %v5807 = vadd.f32 %v5705, %v5725
  %v5808 = vadd.f32 %v5706, %v5725
  %v5809 = vadd.f32 %v5707, %v5725
  %v5810 = vadd.f32 %v5708, %v5725
  %v5811 = vadd.f32 %v5709, %v5725
  %v5812 = vadd.f32 %v5710, %v5725
  %v5813 = vadd.f32 %v5711, %v5725
  %v5814 = vadd.f32 %v5712, %v5725
  %v5815 = vadd.f32 %v5713, %v5725
  %v5816 = vadd.f32 %v5714, %v5725
  %v5817 = vadd.f32 %v5715, %v5725
  %v5818 = vadd.f32 %v5716, %v5725
  %v5819 = vadd.f32 %v5717, %v5725
  %v5820 = vadd.f32 %v5718, %v5725
  %v5821 = vadd.f32 %v5719, %v5725
  %v5822 = vadd.f32 %v5720, %v5725
  %v5823 = vsel %vm2593, %v5727, 0.0
  %v5824 = vsel %vm2594, %v5728, 0.0
  %v5825 = vsel %vm2595, %v5729, 0.0
  %v5826 = vsel %vm2596, %v5730, 0.0
  %v5827 = vsel %vm2597, %v5731, 0.0
  %v5828 = vsel %vm2598, %v5732, 0.0
  %v5829 = vsel %vm2599, %v5733, 0.0
  %v5830 = vsel %vm2600, %v5734, 0.0
  %v5831 = vsel %vm2601, %v5735, 0.0
  %v5832 = vsel %vm2602, %v5736, 0.0
  %v5833 = vsel %vm2603, %v5737, 0.0
  %v5834 = vsel %vm2604, %v5738, 0.0
  %v5835 = vsel %vm2605, %v5739, 0.0
  %v5836 = vsel %vm2606, %v5740, 0.0
  %v5837 = vsel %vm2607, %v5741, 0.0
  %v5838 = vsel %vm2608, %v5742, 0.0
  %v5839 = vsel %vm2609, %v5743, 0.0
  %v5840 = vsel %vm2610, %v5744, 0.0
  %v5841 = vsel %vm2611, %v5745, 0.0
  %v5842 = vsel %vm2612, %v5746, 0.0
  %v5843 = vsel %vm2613, %v5747, 0.0
  %v5844 = vsel %vm2614, %v5748, 0.0
  %v5845 = vsel %vm2615, %v5749, 0.0
  %v5846 = vsel %vm2616, %v5750, 0.0
  %v5847 = vsel %vm2617, %v5751, 0.0
  %v5848 = vsel %vm2618, %v5752, 0.0
  %v5849 = vsel %vm2619, %v5753, 0.0
  %v5850 = vsel %vm2620, %v5754, 0.0
  %v5851 = vsel %vm2621, %v5755, 0.0
  %v5852 = vsel %vm2622, %v5756, 0.0
  %v5853 = vsel %vm2623, %v5757, 0.0
  %v5854 = vsel %vm2624, %v5758, 0.0
  %v5855 = vsel %vm2625, %v5759, 0.0
  %v5856 = vsel %vm2626, %v5760, 0.0
  %v5857 = vsel %vm2627, %v5761, 0.0
  %v5858 = vsel %vm2628, %v5762, 0.0
  %v5859 = vsel %vm2629, %v5763, 0.0
  %v5860 = vsel %vm2630, %v5764, 0.0
  %v5861 = vsel %vm2631, %v5765, 0.0
  %v5862 = vsel %vm2632, %v5766, 0.0
  %v5863 = vsel %vm2633, %v5767, 0.0
  %v5864 = vsel %vm2634, %v5768, 0.0
  %v5865 = vsel %vm2635, %v5769, 0.0
  %v5866 = vsel %vm2636, %v5770, 0.0
  %v5867 = vsel %vm2637, %v5771, 0.0
  %v5868 = vsel %vm2638, %v5772, 0.0
  %v5869 = vsel %vm2639, %v5773, 0.0
  %v5870 = vsel %vm2640, %v5774, 0.0
  %v5871 = vsel %vm2641, %v5775, 0.0
  %v5872 = vsel %vm2642, %v5776, 0.0
  %v5873 = vsel %vm2643, %v5777, 0.0
  %v5874 = vsel %vm2644, %v5778, 0.0
  %v5875 = vsel %vm2645, %v5779, 0.0
  %v5876 = vsel %vm2646, %v5780, 0.0
  %v5877 = vsel %vm2647, %v5781, 0.0
  %v5878 = vsel %vm2648, %v5782, 0.0
  %v5879 = vsel %vm2649, %v5783, 0.0
  %v5880 = vsel %vm2650, %v5784, 0.0
  %v5881 = vsel %vm2651, %v5785, 0.0
  %v5882 = vsel %vm2652, %v5786, 0.0
  %v5883 = vsel %vm2653, %v5787, 0.0
  %v5884 = vsel %vm2654, %v5788, 0.0
  %v5885 = vsel %vm2655, %v5789, 0.0
  %v5886 = vsel %vm2656, %v5790, 0.0
  %v5887 = vsel %vm2657, %v5791, 0.0
  %v5888 = vsel %vm2658, %v5792, 0.0
  %v5889 = vsel %vm2659, %v5793, 0.0
  %v5890 = vsel %vm2660, %v5794, 0.0
  %v5891 = vsel %vm2661, %v5795, 0.0
  %v5892 = vsel %vm2662, %v5796, 0.0
  %v5893 = vsel %vm2663, %v5797, 0.0
  %v5894 = vsel %vm2664, %v5798, 0.0
  %v5895 = vsel %vm2665, %v5799, 0.0
  %v5896 = vsel %vm2666, %v5800, 0.0
  %v5897 = vsel %vm2667, %v5801, 0.0
  %v5898 = vsel %vm2668, %v5802, 0.0
  %v5899 = vsel %vm2669, %v5803, 0.0
  %v5900 = vsel %vm2670, %v5804, 0.0
  %v5901 = vsel %vm2671, %v5805, 0.0
  %v5902 = vsel %vm2672, %v5806, 0.0
  %v5903 = vsel %vm2673, %v5807, 0.0
  %v5904 = vsel %vm2674, %v5808, 0.0
  %v5905 = vsel %vm2675, %v5809, 0.0
  %v5906 = vsel %vm2676, %v5810, 0.0
  %v5907 = vsel %vm2677, %v5811, 0.0
  %v5908 = vsel %vm2678, %v5812, 0.0
  %v5909 = vsel %vm2679, %v5813, 0.0
  %v5910 = vsel %vm2680, %v5814, 0.0
  %v5911 = vsel %vm2681, %v5815, 0.0
  %v5912 = vsel %vm2682, %v5816, 0.0
  %v5913 = vsel %vm2683, %v5817, 0.0
  %v5914 = vsel %vm2684, %v5818, 0.0
  %v5915 = vsel %vm2685, %v5819, 0.0
  %v5916 = vsel %vm2686, %v5820, 0.0
  %v5917 = vsel %vm2687, %v5821, 0.0
  %v5918 = vsel %vm2688, %v5822, 0.0
  %v5919 = vpack.c.bf16 %v5824, %v5823
  %v5920 = vpack.c.bf16 %v5826, %v5825
  %v5921 = vpack.c.bf16 %v5828, %v5827
  %v5922 = vpack.c.bf16 %v5830, %v5829
  %v5923 = vpack.c.bf16 %v5832, %v5831
  %v5924 = vpack.c.bf16 %v5834, %v5833
  %v5925 = vpack.c.bf16 %v5836, %v5835
  %v5926 = vpack.c.bf16 %v5838, %v5837
  %v5927 = vpack.c.bf16 %v5840, %v5839
  %v5928 = vpack.c.bf16 %v5842, %v5841
  %v5929 = vpack.c.bf16 %v5844, %v5843
  %v5930 = vpack.c.bf16 %v5846, %v5845
  %v5931 = vpack.c.bf16 %v5848, %v5847
  %v5932 = vpack.c.bf16 %v5850, %v5849
  %v5933 = vpack.c.bf16 %v5852, %v5851
  %v5934 = vpack.c.bf16 %v5854, %v5853
  %v5935 = vpack.c.bf16 %v5856, %v5855
  %v5936 = vpack.c.bf16 %v5858, %v5857
  %v5937 = vpack.c.bf16 %v5860, %v5859
  %v5938 = vpack.c.bf16 %v5862, %v5861
  %v5939 = vpack.c.bf16 %v5864, %v5863
  %v5940 = vpack.c.bf16 %v5866, %v5865
  %v5941 = vpack.c.bf16 %v5868, %v5867
  %v5942 = vpack.c.bf16 %v5870, %v5869
  %v5943 = vpack.c.bf16 %v5872, %v5871
  %v5944 = vpack.c.bf16 %v5874, %v5873
  %v5945 = vpack.c.bf16 %v5876, %v5875
  %v5946 = vpack.c.bf16 %v5878, %v5877
  %v5947 = vpack.c.bf16 %v5880, %v5879
  %v5948 = vpack.c.bf16 %v5882, %v5881
  %v5949 = vpack.c.bf16 %v5884, %v5883
  %v5950 = vpack.c.bf16 %v5886, %v5885
  %v5951 = vpack.c.bf16 %v5888, %v5887
  %v5952 = vpack.c.bf16 %v5890, %v5889
  %v5953 = vpack.c.bf16 %v5892, %v5891
  %v5954 = vpack.c.bf16 %v5894, %v5893
  %v5955 = vpack.c.bf16 %v5896, %v5895
  %v5956 = vpack.c.bf16 %v5898, %v5897
  %v5957 = vpack.c.bf16 %v5900, %v5899
  %v5958 = vpack.c.bf16 %v5902, %v5901
  %v5959 = vpack.c.bf16 %v5904, %v5903
  %v5960 = vpack.c.bf16 %v5906, %v5905
  %v5961 = vpack.c.bf16 %v5908, %v5907
  %v5962 = vpack.c.bf16 %v5910, %v5909
  %v5963 = vpack.c.bf16 %v5912, %v5911
  %v5964 = vpack.c.bf16 %v5914, %v5913
  %v5965 = vpack.c.bf16 %v5916, %v5915
  %v5966 = vpack.c.bf16 %v5918, %v5917
  %v6015 = vunpack.c.l.b16 %v5919
  %v6016 = vunpack.c.h.b16 %v5919
  %v6017 = vunpack.c.l.b16 %v5920
  %v6018 = vunpack.c.h.b16 %v5920
  %v6019 = vunpack.c.l.b16 %v5921
  %v6020 = vunpack.c.h.b16 %v5921
  %v6021 = vunpack.c.l.b16 %v5922
  %v6022 = vunpack.c.h.b16 %v5922
  %v6023 = vunpack.c.l.b16 %v5923
  %v6024 = vunpack.c.h.b16 %v5923
  %v6025 = vunpack.c.l.b16 %v5924
  %v6026 = vunpack.c.h.b16 %v5924
  %v6027 = vunpack.c.l.b16 %v5925
  %v6028 = vunpack.c.h.b16 %v5925
  %v6029 = vunpack.c.l.b16 %v5926
  %v6030 = vunpack.c.h.b16 %v5926
  %v6031 = vunpack.c.l.b16 %v5927
  %v6032 = vunpack.c.h.b16 %v5927
  %v6033 = vunpack.c.l.b16 %v5928
  %v6034 = vunpack.c.h.b16 %v5928
  %v6035 = vunpack.c.l.b16 %v5929
  %v6036 = vunpack.c.h.b16 %v5929
  %v6037 = vunpack.c.l.b16 %v5930
  %v6038 = vunpack.c.h.b16 %v5930
  %v6039 = vunpack.c.l.b16 %v5931
  %v6040 = vunpack.c.h.b16 %v5931
  %v6041 = vunpack.c.l.b16 %v5932
  %v6042 = vunpack.c.h.b16 %v5932
  %v6043 = vunpack.c.l.b16 %v5933
  %v6044 = vunpack.c.h.b16 %v5933
  %v6045 = vunpack.c.l.b16 %v5934
  %v6046 = vunpack.c.h.b16 %v5934
  %v6047 = vunpack.c.l.b16 %v5935
  %v6048 = vunpack.c.h.b16 %v5935
  %v6049 = vunpack.c.l.b16 %v5936
  %v6050 = vunpack.c.h.b16 %v5936
  %v6051 = vunpack.c.l.b16 %v5937
  %v6052 = vunpack.c.h.b16 %v5937
  %v6053 = vunpack.c.l.b16 %v5938
  %v6054 = vunpack.c.h.b16 %v5938
  %v6055 = vunpack.c.l.b16 %v5939
  %v6056 = vunpack.c.h.b16 %v5939
  %v6057 = vunpack.c.l.b16 %v5940
  %v6058 = vunpack.c.h.b16 %v5940
  %v6059 = vunpack.c.l.b16 %v5941
  %v6060 = vunpack.c.h.b16 %v5941
  %v6061 = vunpack.c.l.b16 %v5942
  %v6062 = vunpack.c.h.b16 %v5942
  %v6063 = vunpack.c.l.b16 %v5943
  %v6064 = vunpack.c.h.b16 %v5943
  %v6065 = vunpack.c.l.b16 %v5944
  %v6066 = vunpack.c.h.b16 %v5944
  %v6067 = vunpack.c.l.b16 %v5945
  %v6068 = vunpack.c.h.b16 %v5945
  %v6069 = vunpack.c.l.b16 %v5946
  %v6070 = vunpack.c.h.b16 %v5946
  %v6071 = vunpack.c.l.b16 %v5947
  %v6072 = vunpack.c.h.b16 %v5947
  %v6073 = vunpack.c.l.b16 %v5948
  %v6074 = vunpack.c.h.b16 %v5948
  %v6075 = vunpack.c.l.b16 %v5949
  %v6076 = vunpack.c.h.b16 %v5949
  %v6077 = vunpack.c.l.b16 %v5950
  %v6078 = vunpack.c.h.b16 %v5950
  %v6079 = vunpack.c.l.b16 %v5951
  %v6080 = vunpack.c.h.b16 %v5951
  %v6081 = vunpack.c.l.b16 %v5952
  %v6082 = vunpack.c.h.b16 %v5952
  %v6083 = vunpack.c.l.b16 %v5953
  %v6084 = vunpack.c.h.b16 %v5953
  %v6085 = vunpack.c.l.b16 %v5954
  %v6086 = vunpack.c.h.b16 %v5954
  %v6087 = vunpack.c.l.b16 %v5955
  %v6088 = vunpack.c.h.b16 %v5955
  %v6089 = vunpack.c.l.b16 %v5956
  %v6090 = vunpack.c.h.b16 %v5956
  %v6091 = vunpack.c.l.b16 %v5957
  %v6092 = vunpack.c.h.b16 %v5957
  %v6093 = vunpack.c.l.b16 %v5958
  %v6094 = vunpack.c.h.b16 %v5958
  %v6095 = vunpack.c.l.b16 %v5959
  %v6096 = vunpack.c.h.b16 %v5959
  %v6097 = vunpack.c.l.b16 %v5960
  %v6098 = vunpack.c.h.b16 %v5960
  %v6099 = vunpack.c.l.b16 %v5961
  %v6100 = vunpack.c.h.b16 %v5961
  %v6101 = vunpack.c.l.b16 %v5962
  %v6102 = vunpack.c.h.b16 %v5962
  %v6103 = vunpack.c.l.b16 %v5963
  %v6104 = vunpack.c.h.b16 %v5963
  %v6105 = vunpack.c.l.b16 %v5964
  %v6106 = vunpack.c.h.b16 %v5964
  %v6107 = vunpack.c.l.b16 %v5965
  %v6108 = vunpack.c.h.b16 %v5965
  %v6109 = vunpack.c.l.b16 %v5966
  %v6110 = vunpack.c.h.b16 %v5966
  %v6111 = vpack.c.b16 %v6015, %v6015
  %v6112 = vpack.c.b16 %v6016, %v6016
  %v6113 = vpack.c.b16 %v6017, %v6017
  %v6114 = vpack.c.b16 %v6018, %v6018
  %v6115 = vpack.c.b16 %v6019, %v6019
  %v6116 = vpack.c.b16 %v6020, %v6020
  %v6117 = vpack.c.b16 %v6021, %v6021
  %v6118 = vpack.c.b16 %v6022, %v6022
  %v6119 = vpack.c.b16 %v6023, %v6023
  %v6120 = vpack.c.b16 %v6024, %v6024
  %v6121 = vpack.c.b16 %v6025, %v6025
  %v6122 = vpack.c.b16 %v6026, %v6026
  %v6123 = vpack.c.b16 %v6027, %v6027
  %v6124 = vpack.c.b16 %v6028, %v6028
  %v6125 = vpack.c.b16 %v6029, %v6029
  %v6126 = vpack.c.b16 %v6030, %v6030
  %v6127 = vpack.c.b16 %v6031, %v6031
  %v6128 = vpack.c.b16 %v6032, %v6032
  %v6129 = vpack.c.b16 %v6033, %v6033
  %v6130 = vpack.c.b16 %v6034, %v6034
  %v6131 = vpack.c.b16 %v6035, %v6035
  %v6132 = vpack.c.b16 %v6036, %v6036
  %v6133 = vpack.c.b16 %v6037, %v6037
  %v6134 = vpack.c.b16 %v6038, %v6038
  %v6135 = vpack.c.b16 %v6039, %v6039
  %v6136 = vpack.c.b16 %v6040, %v6040
  %v6137 = vpack.c.b16 %v6041, %v6041
  %v6138 = vpack.c.b16 %v6042, %v6042
  %v6139 = vpack.c.b16 %v6043, %v6043
  %v6140 = vpack.c.b16 %v6044, %v6044
  %v6141 = vpack.c.b16 %v6045, %v6045
  %v6142 = vpack.c.b16 %v6046, %v6046
  %v6143 = vpack.c.b16 %v6047, %v6047
  %v6144 = vpack.c.b16 %v6048, %v6048
  %v6145 = vpack.c.b16 %v6049, %v6049
  %v6146 = vpack.c.b16 %v6050, %v6050
  %v6147 = vpack.c.b16 %v6051, %v6051
  %v6148 = vpack.c.b16 %v6052, %v6052
  %v6149 = vpack.c.b16 %v6053, %v6053
  %v6150 = vpack.c.b16 %v6054, %v6054
  %v6151 = vpack.c.b16 %v6055, %v6055
  %v6152 = vpack.c.b16 %v6056, %v6056
  %v6153 = vpack.c.b16 %v6057, %v6057
  %v6154 = vpack.c.b16 %v6058, %v6058
  %v6155 = vpack.c.b16 %v6059, %v6059
  %v6156 = vpack.c.b16 %v6060, %v6060
  %v6157 = vpack.c.b16 %v6061, %v6061
  %v6158 = vpack.c.b16 %v6062, %v6062
  %v6159 = vpack.c.b16 %v6063, %v6063
  %v6160 = vpack.c.b16 %v6064, %v6064
  %v6161 = vpack.c.b16 %v6065, %v6065
  %v6162 = vpack.c.b16 %v6066, %v6066
  %v6163 = vpack.c.b16 %v6067, %v6067
  %v6164 = vpack.c.b16 %v6068, %v6068
  %v6165 = vpack.c.b16 %v6069, %v6069
  %v6166 = vpack.c.b16 %v6070, %v6070
  %v6167 = vpack.c.b16 %v6071, %v6071
  %v6168 = vpack.c.b16 %v6072, %v6072
  %v6169 = vpack.c.b16 %v6073, %v6073
  %v6170 = vpack.c.b16 %v6074, %v6074
  %v6171 = vpack.c.b16 %v6075, %v6075
  %v6172 = vpack.c.b16 %v6076, %v6076
  %v6173 = vpack.c.b16 %v6077, %v6077
  %v6174 = vpack.c.b16 %v6078, %v6078
  %v6175 = vpack.c.b16 %v6079, %v6079
  %v6176 = vpack.c.b16 %v6080, %v6080
  %v6177 = vpack.c.b16 %v6081, %v6081
  %v6178 = vpack.c.b16 %v6082, %v6082
  %v6179 = vpack.c.b16 %v6083, %v6083
  %v6180 = vpack.c.b16 %v6084, %v6084
  %v6181 = vpack.c.b16 %v6085, %v6085
  %v6182 = vpack.c.b16 %v6086, %v6086
  %v6183 = vpack.c.b16 %v6087, %v6087
  %v6184 = vpack.c.b16 %v6088, %v6088
  %v6185 = vpack.c.b16 %v6089, %v6089
  %v6186 = vpack.c.b16 %v6090, %v6090
  %v6187 = vpack.c.b16 %v6091, %v6091
  %v6188 = vpack.c.b16 %v6092, %v6092
  %v6189 = vpack.c.b16 %v6093, %v6093
  %v6190 = vpack.c.b16 %v6094, %v6094
  %v6191 = vpack.c.b16 %v6095, %v6095
  %v6192 = vpack.c.b16 %v6096, %v6096
  %v6193 = vpack.c.b16 %v6097, %v6097
  %v6194 = vpack.c.b16 %v6098, %v6098
  %v6195 = vpack.c.b16 %v6099, %v6099
  %v6196 = vpack.c.b16 %v6100, %v6100
  %v6197 = vpack.c.b16 %v6101, %v6101
  %v6198 = vpack.c.b16 %v6102, %v6102
  %v6199 = vpack.c.b16 %v6103, %v6103
  %v6200 = vpack.c.b16 %v6104, %v6104
  %v6201 = vpack.c.b16 %v6105, %v6105
  %v6202 = vpack.c.b16 %v6106, %v6106
  %v6203 = vpack.c.b16 %v6107, %v6107
  %v6204 = vpack.c.b16 %v6108, %v6108
  %v6205 = vpack.c.b16 %v6109, %v6109
  %v6206 = vpack.c.b16 %v6110, %v6110
  %6303 = vst [vmem:[%s12] sm:$0xf] %v6111
  %6304 = vst [vmem:[%s12 + $0x4] sm:$0xf] %v6112
  %6305 = vst [vmem:[%s12 + $0x8] sm:$0xf] %v6113
  %6306 = vst [vmem:[%s12 + $0xc] sm:$0xf] %v6114
  %6307 = vst [vmem:[%s12 + $0x10] sm:$0xf] %v6115
  %6308 = vst [vmem:[%s12 + $0x14] sm:$0xf] %v6116
  %6309 = vst [vmem:[%s12 + $0x18] sm:$0xf] %v6117
  %6310 = vst [vmem:[%s12 + $0x1c] sm:$0xf] %v6118
  %6311 = vst [vmem:[%s12 + $0x20] sm:$0xf] %v6119
  %6312 = vst [vmem:[%s12 + $0x24] sm:$0xf] %v6120
  %6313 = vst [vmem:[%s12 + $0x28] sm:$0xf] %v6121
  %6314 = vst [vmem:[%s12 + $0x2c] sm:$0xf] %v6122
  %6315 = vst [vmem:[%s12 + $0x30] sm:$0xf] %v6123
  %6316 = vst [vmem:[%s12 + $0x34] sm:$0xf] %v6124
  %6317 = vst [vmem:[%s12 + $0x38] sm:$0xf] %v6125
  %6318 = vst [vmem:[%s12 + $0x3c] sm:$0xf] %v6126
  %6319 = vst [vmem:[%s12 + $0x40] sm:$0xf] %v6127
  %6320 = vst [vmem:[%s12 + $0x44] sm:$0xf] %v6128
  %6321 = vst [vmem:[%s12 + $0x48] sm:$0xf] %v6129
  %6322 = vst [vmem:[%s12 + $0x4c] sm:$0xf] %v6130
  %6323 = vst [vmem:[%s12 + $0x50] sm:$0xf] %v6131
  %6324 = vst [vmem:[%s12 + $0x54] sm:$0xf] %v6132
  %6325 = vst [vmem:[%s12 + $0x58] sm:$0xf] %v6133
  %6326 = vst [vmem:[%s12 + $0x5c] sm:$0xf] %v6134
  %6327 = vst [vmem:[%s12 + $0x60] sm:$0xf] %v6135
  %6328 = vst [vmem:[%s12 + $0x64] sm:$0xf] %v6136
  %6329 = vst [vmem:[%s12 + $0x68] sm:$0xf] %v6137
  %6330 = vst [vmem:[%s12 + $0x6c] sm:$0xf] %v6138
  %6331 = vst [vmem:[%s12 + $0x70] sm:$0xf] %v6139
  %6332 = vst [vmem:[%s12 + $0x74] sm:$0xf] %v6140
  %6333 = vst [vmem:[%s12 + $0x78] sm:$0xf] %v6141
  %6334 = vst [vmem:[%s12 + $0x7c] sm:$0xf] %v6142
  %6335 = vst [vmem:[%s12 + $0x80] sm:$0xf] %v6143
  %6336 = vst [vmem:[%s12 + $0x84] sm:$0xf] %v6144
  %6337 = vst [vmem:[%s12 + $0x88] sm:$0xf] %v6145
  %6338 = vst [vmem:[%s12 + $0x8c] sm:$0xf] %v6146
  %6339 = vst [vmem:[%s12 + $0x90] sm:$0xf] %v6147
  %6340 = vst [vmem:[%s12 + $0x94] sm:$0xf] %v6148
  %6341 = vst [vmem:[%s12 + $0x98] sm:$0xf] %v6149
  %6342 = vst [vmem:[%s12 + $0x9c] sm:$0xf] %v6150
  %6343 = vst [vmem:[%s12 + $0xa0] sm:$0xf] %v6151
  %6344 = vst [vmem:[%s12 + $0xa4] sm:$0xf] %v6152
  %6345 = vst [vmem:[%s12 + $0xa8] sm:$0xf] %v6153
  %6346 = vst [vmem:[%s12 + $0xac] sm:$0xf] %v6154
  %6347 = vst [vmem:[%s12 + $0xb0] sm:$0xf] %v6155
  %6348 = vst [vmem:[%s12 + $0xb4] sm:$0xf] %v6156
  %6349 = vst [vmem:[%s12 + $0xb8] sm:$0xf] %v6157
  %6350 = vst [vmem:[%s12 + $0xbc] sm:$0xf] %v6158
  %6351 = vst [vmem:[%s12 + $0xc0] sm:$0xf] %v6159
  %6352 = vst [vmem:[%s12 + $0xc4] sm:$0xf] %v6160
  %6353 = vst [vmem:[%s12 + $0xc8] sm:$0xf] %v6161
  %6354 = vst [vmem:[%s12 + $0xcc] sm:$0xf] %v6162
  %6355 = vst [vmem:[%s12 + $0xd0] sm:$0xf] %v6163
  %6356 = vst [vmem:[%s12 + $0xd4] sm:$0xf] %v6164
  %6357 = vst [vmem:[%s12 + $0xd8] sm:$0xf] %v6165
  %6358 = vst [vmem:[%s12 + $0xdc] sm:$0xf] %v6166
  %6359 = vst [vmem:[%s12 + $0xe0] sm:$0xf] %v6167
  %6360 = vst [vmem:[%s12 + $0xe4] sm:$0xf] %v6168
  %6361 = vst [vmem:[%s12 + $0xe8] sm:$0xf] %v6169
  %6362 = vst [vmem:[%s12 + $0xec] sm:$0xf] %v6170
  %6363 = vst [vmem:[%s12 + $0xf0] sm:$0xf] %v6171
  %6364 = vst [vmem:[%s12 + $0xf4] sm:$0xf] %v6172
  %6365 = vst [vmem:[%s12 + $0xf8] sm:$0xf] %v6173
  %6366 = vst [vmem:[%s12 + $0xfc] sm:$0xf] %v6174
  %6367 = vst [vmem:[%s12 + $0x100] sm:$0xf] %v6175
  %6368 = vst [vmem:[%s12 + $0x104] sm:$0xf] %v6176
  %6369 = vst [vmem:[%s12 + $0x108] sm:$0xf] %v6177
  %6370 = vst [vmem:[%s12 + $0x10c] sm:$0xf] %v6178
  %6371 = vst [vmem:[%s12 + $0x110] sm:$0xf] %v6179
  %6372 = vst [vmem:[%s12 + $0x114] sm:$0xf] %v6180
  %6373 = vst [vmem:[%s12 + $0x118] sm:$0xf] %v6181
  %6374 = vst [vmem:[%s12 + $0x11c] sm:$0xf] %v6182
  %6375 = vst [vmem:[%s12 + $0x120] sm:$0xf] %v6183
  %6376 = vst [vmem:[%s12 + $0x124] sm:$0xf] %v6184
  %6377 = vst [vmem:[%s12 + $0x128] sm:$0xf] %v6185
  %6378 = vst [vmem:[%s12 + $0x12c] sm:$0xf] %v6186
  %6379 = vst [vmem:[%s12 + $0x130] sm:$0xf] %v6187
  %6380 = vst [vmem:[%s12 + $0x134] sm:$0xf] %v6188
  %6381 = vst [vmem:[%s12 + $0x138] sm:$0xf] %v6189
  %6382 = vst [vmem:[%s12 + $0x13c] sm:$0xf] %v6190
  %6383 = vst [vmem:[%s12 + $0x140] sm:$0xf] %v6191
  %6384 = vst [vmem:[%s12 + $0x144] sm:$0xf] %v6192
  %6385 = vst [vmem:[%s12 + $0x148] sm:$0xf] %v6193
  %6386 = vst [vmem:[%s12 + $0x14c] sm:$0xf] %v6194
  %6387 = vst [vmem:[%s12 + $0x150] sm:$0xf] %v6195
  %6388 = vst [vmem:[%s12 + $0x154] sm:$0xf] %v6196
  %6389 = vst [vmem:[%s12 + $0x158] sm:$0xf] %v6197
  %6390 = vst [vmem:[%s12 + $0x15c] sm:$0xf] %v6198
  %6391 = vst [vmem:[%s12 + $0x160] sm:$0xf] %v6199
  %6392 = vst [vmem:[%s12 + $0x164] sm:$0xf] %v6200
  %6393 = vst [vmem:[%s12 + $0x168] sm:$0xf] %v6201
  %6394 = vst [vmem:[%s12 + $0x16c] sm:$0xf] %v6202
  %6395 = vst [vmem:[%s12 + $0x170] sm:$0xf] %v6203
  %6396 = vst [vmem:[%s12 + $0x174] sm:$0xf] %v6204
  %6397 = vst [vmem:[%s12 + $0x178] sm:$0xf] %v6205
  %6398 = vst [vmem:[%s12 + $0x17c] sm:$0xf] %v6206
  // Predicated region
  $region46: #{attention_prop_forward.4} parent=0 // pred_check
    _
  $region47: #{attention_prop_forward.4} parent=0 // pred_check_branch
    %6400 = sbr.rel (0) target = $region49
  $region48: #{attention_prop_forward.4} parent=0 // pred_region
    _
  $region49: #{attention_prop_forward.4} parent=0 // pred_fallthru
    _
  // Predicated region
  $region50: #{attention_prop_forward.4} parent=0 // pred_check
    _
  $region51: #{attention_prop_forward.4} parent=0 // pred_check_branch
    %6402 = sbr.rel (0) target = $region53
  $region52: #{attention_prop_forward.4} parent=0 // pred_region
    _
  $region53: #{attention_prop_forward.4} parent=0 // pred_fallthru
    _
  // Predicated region
  $region54: #{attention_prop_forward.4} parent=0 // pred_check
    _
  $region55: #{attention_prop_forward.4} parent=0 // pred_check_branch
    %6404 = sbr.rel (0) target = $region57
  $region56: #{attention_prop_forward.4} parent=0 // pred_region
    _
  $region57: #{attention_prop_forward.4} parent=0 // pred_fallthru
    _
  // Predicated region
  $region58: #{attention_prop_forward.4} parent=0 // pred_check
    _
  $region59: #{attention_prop_forward.4} parent=0 // pred_check_branch
    %6406 = sbr.rel (0) target = $region61
  $region60: #{attention_prop_forward.4} parent=0 // pred_region
    _
  $region61: #{attention_prop_forward.4} parent=0 // pred_fallthru
    _

</llo_original>
